<compile_context>
chip_gen: v7x
topology: tpu7x:2x2x1
jax: 0.10.0
libtpu: 0.0.40
codegen_flags: <defaults>
</compile_context>

<pallas_src>
import jax
import jax.numpy as jnp
from jax.experimental import pallas as pl
from jax.experimental.pallas import tpu as pltpu


# ----------------------------------------------------------------------------
# Kernel 1: fused bidirectional masked LSTM scan (encoder), single invocation
# ----------------------------------------------------------------------------
def _encoder_kernel(xg_f_ref, xg_b_ref, m_ref, whh_f_ref, whh_b_ref,
                    hs_ref, hfin_ref, cfin_ref,
                    hf_scr, cf_scr, hb_scr, cb_scr):
    S = xg_f_ref.shape[0]
    H = whh_f_ref.shape[0]

    hf_scr[...] = jnp.zeros_like(hf_scr)
    cf_scr[...] = jnp.zeros_like(cf_scr)
    hb_scr[...] = jnp.zeros_like(hb_scr)
    cb_scr[...] = jnp.zeros_like(cb_scr)

    def lstm_step(xg, h, c, whh):
        # xg already contains x @ W_ih + b (hoisted); only h @ W_hh is here.
        gates = xg + jnp.dot(h, whh, preferred_element_type=jnp.float32)
        i = jax.nn.sigmoid(gates[:, 0 * H:1 * H])
        f = jax.nn.sigmoid(gates[:, 1 * H:2 * H])
        g = jnp.tanh(gates[:, 2 * H:3 * H])
        o = jax.nn.sigmoid(gates[:, 3 * H:4 * H])
        c_new = f * c + i * g
        h_new = o * jnp.tanh(c_new)
        return h_new, c_new

    @pl.loop(0, S, unroll=True)
    def _(t):
        # ---- forward direction: source position t ----
        m_t = m_ref[t]                                       # (B, 1)
        h_new, c_new = lstm_step(xg_f_ref[t], hf_scr[...], cf_scr[...],
                                 whh_f_ref[...])
        # masked update == pack_padded_sequence semantics (state frozen at pads)
        h_upd = m_t * h_new + (1.0 - m_t) * hf_scr[...]
        c_upd = m_t * c_new + (1.0 - m_t) * cf_scr[...]
        hf_scr[...] = h_upd
        cf_scr[...] = c_upd
        hs_ref[t, :, 0:H] = m_t * h_upd                      # pads emit zeros

        # ---- backward direction: source position S-1-t (no host reverses) ----
        s = S - 1 - t
        m_s = m_ref[s]
        hb_new, cb_new = lstm_step(xg_b_ref[s], hb_scr[...], cb_scr[...],
                                   whh_b_ref[...])
        hb_upd = m_s * hb_new + (1.0 - m_s) * hb_scr[...]
        cb_upd = m_s * cb_new + (1.0 - m_s) * cb_scr[...]
        hb_scr[...] = hb_upd
        cb_scr[...] = cb_upd
        hs_ref[s, :, H:2 * H] = m_s * hb_upd

    # final states written once, after the scan
    hfin_ref[:, 0:H] = hf_scr[...]
    hfin_ref[:, H:2 * H] = hb_scr[...]
    cfin_ref[:, 0:H] = cf_scr[...]
    cfin_ref[:, H:2 * H] = cb_scr[...]


def encoder_pallas(xg_f, xg_b, mask, whh_f, whh_b):
    S, B, _ = xg_f.shape
    H = whh_f.shape[0]
    return pl.pallas_call(
        _encoder_kernel,
        out_shape=(jax.ShapeDtypeStruct((S, B, 2 * H), jnp.float32),  # hs (cat)
                   jax.ShapeDtypeStruct((B, 2 * H), jnp.float32),     # h final
                   jax.ShapeDtypeStruct((B, 2 * H), jnp.float32)),    # c final
        scratch_shapes=[pltpu.VMEM((B, H), jnp.float32)] * 4,
    )(xg_f, xg_b, mask, whh_f, whh_b)


# ----------------------------------------------------------------------------
# Kernel 2: decoder recurrence (LSTMCell + attention + combine), single call
# ----------------------------------------------------------------------------
def _decoder_kernel(yg_ref, enc_ref, proj_ref, amask_ref, h0_ref, c0_ref,
                    wo_ref, whh_ref, wca_ref, wch_ref,
                    out_ref,
                    h_scr, c_scr, o_scr):
    T = yg_ref.shape[0]
    H = whh_ref.shape[0]

    h_scr[...] = h0_ref[...]
    c_scr[...] = c0_ref[...]
    o_scr[...] = jnp.zeros_like(o_scr)

    @pl.loop(0, T, unroll=True)
    def _(t):
        # gates: precomputed y-part + o_prev @ W_o + h @ W_hh (no in-kernel concat)
        gates = (yg_ref[t]
                 + jnp.dot(o_scr[...], wo_ref[...],
                           preferred_element_type=jnp.float32)
                 + jnp.dot(h_scr[...], whh_ref[...],
                           preferred_element_type=jnp.float32))
        i = jax.nn.sigmoid(gates[:, 0 * H:1 * H])
        f = jax.nn.sigmoid(gates[:, 1 * H:2 * H])
        g = jnp.tanh(gates[:, 2 * H:3 * H])
        o = jax.nn.sigmoid(gates[:, 3 * H:4 * H])
        c_new = f * c_scr[...] + i * g
        h_new = o * jnp.tanh(c_new)
        h_scr[...] = h_new
        c_scr[...] = c_new

        # attention scores: batched MXU matmul (B,S,H) x (B,H,1) -> (B,S)
        e = jnp.einsum('bsh,bhk->bsk', proj_ref[...], h_new[:, :, None],
                       preferred_element_type=jnp.float32)[:, :, 0]
        e = e + amask_ref[...]                              # -1e9 at pads
        e = e - jnp.max(e, axis=-1, keepdims=True)
        p = jnp.exp(e)
        alpha = p * pl.reciprocal(jnp.sum(p, axis=-1, keepdims=True),
                                  approx=True)              # (B, S)
        # context: batched MXU matmul (B,1,S) x (B,S,2H) -> (B,2H)
        a = jnp.einsum('bks,bsh->bkh', alpha[:, None, :], enc_ref[...],
                       preferred_element_type=jnp.float32)[:, 0, :]

        # combine projection split into two dots (no in-kernel concat)
        o_t = jnp.tanh(
            jnp.dot(a, wca_ref[...], preferred_element_type=jnp.float32)
            + jnp.dot(h_new, wch_ref[...], preferred_element_type=jnp.float32))
        o_scr[...] = o_t
        out_ref[t] = o_t


def decoder_pallas(yg, src_enc, src_proj, add_mask, h0, c0,
                   w_o, w_hh, w_comb_a, w_comb_h):
    T, B, _ = yg.shape
    H = w_hh.shape[0]
    return pl.pallas_call(
        _decoder_kernel,
        out_shape=jax.ShapeDtypeStruct((T, B, H), jnp.float32),
        scratch_shapes=[pltpu.VMEM((B, H), jnp.float32)] * 3,
    )(yg, src_enc, src_proj, add_mask, h0, c0, w_o, w_hh, w_comb_a, w_comb_h)


# ----------------------------------------------------------------------------
# Kernel 3: generator (Linear + log_softmax) + gather at target + masked sum,
#           tiled over row blocks with a resident scalar accumulator.
# ----------------------------------------------------------------------------
def gen_loss_kernel(x_ref, w_ref, b_ref, ids_ref, mask_ref, out_ref):
    @pl.when(pl.program_id(0) == 0)
    def _():
        out_ref[...] = jnp.zeros_like(out_ref)

    logits = (jnp.dot(x_ref[...], w_ref[...],
                      preferred_element_type=jnp.float32)
              + b_ref[...])                                   # (RB, V)
    m = jnp.max(logits, axis=-1, keepdims=True)
    lse = jnp.log(jnp.sum(jnp.exp(logits - m), axis=-1, keepdims=True)) + m
    logp = logits - lse                                       # (RB, V)
    col = jax.lax.broadcasted_iota(jnp.int32, logp.shape, 1)
    onehot = (col == ids_ref[...]).astype(jnp.float32)        # (RB, V)
    picked = jnp.sum(logp * onehot, axis=-1, keepdims=True)   # (RB, 1)
    out_ref[...] += jnp.sum(picked * mask_ref[...], keepdims=True)


def generator_loss_pallas(x, w, b, ids, mask, row_block=32):
    R, H = x.shape
    V = w.shape[1]
    Rp = ((R + row_block - 1) // row_block) * row_block
    if Rp != R:
        pad = Rp - R
        x = jnp.pad(x, ((0, pad), (0, 0)))
        ids = jnp.pad(ids, ((0, pad), (0, 0)))
        mask = jnp.pad(mask, ((0, pad), (0, 0)))     # pad rows contribute 0
    out = pl.pallas_call(
        gen_loss_kernel,
        out_shape=jax.ShapeDtypeStruct((1, 1), jnp.float32),
        grid=(Rp // row_block,),
        in_specs=[
            pl.BlockSpec((row_block, H), lambda r: (r, 0)),
            pl.BlockSpec((H, V), lambda r: (0, 0)),
            pl.BlockSpec((1, V), lambda r: (0, 0)),
            pl.BlockSpec((row_block, 1), lambda r: (r, 0)),
            pl.BlockSpec((row_block, 1), lambda r: (r, 0)),
        ],
        out_specs=pl.BlockSpec((1, 1), lambda r: (0, 0)),
        compiler_params=pltpu.CompilerParams(
            dimension_semantics=("arbitrary",)),
    )(x, w, b, ids, mask)
    return out[0, 0]


# ----------------------------------------------------------------------------
# Full forward (glue + hoisted big GEMMs in plain JAX, recurrences in Pallas)
# ----------------------------------------------------------------------------
def nmt_forward(params, src_ids, src_len, tgt_ids, pad_idx):
    S, B = src_ids.shape
    H = params["W_hproj"].shape[1]
    E = params["E_src"].shape[1]

    # ---- Encoder ----
    emb = params["E_src"][src_ids]                                    # (S,B,E)
    # hoisted input-side LSTM matmuls (one big MXU GEMM per direction)
    xg_f = jnp.einsum('sbe,eg->sbg', emb, params["Wf_ih"]) + params["bf"]
    xg_b = jnp.einsum('sbe,eg->sbg', emb, params["Wb_ih"]) + params["bb"]
    lmask = (jnp.arange(S)[:, None] < src_len[None, :]).astype(
        jnp.float32)[:, :, None]                                      # (S,B,1)

    hs, hfin, cfin = encoder_pallas(xg_f, xg_b, lmask,
                                    params["Wf_hh"], params["Wb_hh"])
    src_enc = jnp.transpose(hs, (1, 0, 2))                            # (B,S,2H)
    h0 = hfin @ params["W_hproj"]                                     # (B,H)
    c0 = cfin @ params["W_cproj"]                                     # (B,H)
    src_proj = src_enc @ params["W_att"]                              # (B,S,H)

    # sentence masks (1 at pad positions) -> additive -1e9 mask for attention
    add_mask = (jnp.arange(S)[None, :] >= src_len[:, None]).astype(
        jnp.float32) * (-1e9)                                         # (B,S)

    # ---- Decoder ----
    y_emb = params["E_tgt"][tgt_ids[:-1]]                             # (T-1,B,E)
    W_y = params["Wd_ih"][:E]                                         # (E,4H)
    W_o = params["Wd_ih"][E:]                                         # (H,4H)
    # hoisted input-side decoder matmul
    yg = jnp.einsum('tbe,eg->tbg', y_emb, W_y) + params["bd"]         # (T-1,B,4H)
    W_comb_a = params["W_comb"][:2 * H]                               # (2H,H)
    W_comb_h = params["W_comb"][2 * H:]                               # (H,H)

    combined = decoder_pallas(yg, src_enc, src_proj, add_mask, h0, c0,
                              W_o, params["Wd_hh"], W_comb_a, W_comb_h)

    # ---- Generator + loss ----
    Tm1 = combined.shape[0]
    X = combined.reshape(Tm1 * B, H)
    ids = tgt_ids[1:].reshape(-1, 1).astype(jnp.int32)
    tmask = (tgt_ids[1:] != pad_idx).astype(jnp.float32).reshape(-1, 1)
    loss = generator_loss_pallas(X, params["W_gen"], params["b_gen"], ids, tmask)
    return loss


# ----------------------------------------------------------------------------
# Pure-JAX reference (same math) for correctness checking
# ----------------------------------------------------------------------------
def nmt_forward_ref(params, src_ids, src_len, tgt_ids, pad_idx):
    S, B = src_ids.shape
    H = params["W_hproj"].shape[1]
    emb = params["E_src"][src_ids]
    lmask = (jnp.arange(S)[:, None] < src_len[None, :]).astype(
        jnp.float32)[:, :, None]

    def scan_lstm(x, m, w_ih, w_hh, b):
        def step(carry, inp):
            h, c = carry
            x_t, m_t = inp
            gates = x_t @ w_ih + h @ w_hh + b
            i, f, g, o = jnp.split(gates, 4, axis=-1)
            i, f, g, o = (jax.nn.sigmoid(i), jax.nn.sigmoid(f),
                          jnp.tanh(g), jax.nn.sigmoid(o))
            c_new = f * c + i * g
            h_new = o * jnp.tanh(c_new)
            h_u = m_t * h_new + (1.0 - m_t) * h
            c_u = m_t * c_new + (1.0 - m_t) * c
            return (h_u, c_u), m_t * h_u
        init = (jnp.zeros((B, H), jnp.float32), jnp.zeros((B, H), jnp.float32))
        (hf, cf), hs = jax.lax.scan(step, init, (x, m))
        return hs, hf, cf

    hs_f, hf_f, cf_f = scan_lstm(emb, lmask, params["Wf_ih"], params["Wf_hh"],
                                 params["bf"])
    hs_b_rev, hf_b, cf_b = scan_lstm(emb[::-1], lmask[::-1], params["Wb_ih"],
                                     params["Wb_hh"], params["bb"])
    hs_b = hs_b_rev[::-1]
    src_enc = jnp.transpose(jnp.concatenate([hs_f, hs_b], axis=-1), (1, 0, 2))
    h = jnp.concatenate([hf_f, hf_b], axis=-1) @ params["W_hproj"]
    c = jnp.concatenate([cf_f, cf_b], axis=-1) @ params["W_cproj"]
    src_proj = src_enc @ params["W_att"]
    add_mask = (jnp.arange(S)[None, :] >= src_len[:, None]).astype(
        jnp.float32) * (-1e9)

    y_emb = params["E_tgt"][tgt_ids[:-1]]
    o_prev = jnp.zeros((B, H), jnp.float32)
    outs = []
    for t in range(y_emb.shape[0]):
        ybar = jnp.concatenate([y_emb[t], o_prev], axis=-1)
        gates = ybar @ params["Wd_ih"] + h @ params["Wd_hh"] + params["bd"]
        i, f, g, o = jnp.split(gates, 4, axis=-1)
        i, f, g, o = (jax.nn.sigmoid(i), jax.nn.sigmoid(f),
                      jnp.tanh(g), jax.nn.sigmoid(o))
        c = f * c + i * g
        h = o * jnp.tanh(c)
        e = jnp.sum(src_proj * h[:, None, :], axis=-1) + add_mask
        alpha = jax.nn.softmax(e, axis=-1)
        a = jnp.sum(alpha[:, :, None] * src_enc, axis=1)
        u = jnp.concatenate([a, h], axis=-1)
        o_prev = jnp.tanh(u @ params["W_comb"])
        outs.append(o_prev)
    X = jnp.stack(outs, axis=0).reshape(-1, H)
    logits = X @ params["W_gen"] + params["b_gen"]
    logp = jax.nn.log_softmax(logits, axis=-1)
    ids = tgt_ids[1:].reshape(-1)
    tmask = (tgt_ids[1:] != pad_idx).astype(jnp.float32).reshape(-1)
    picked = jnp.take_along_axis(logp, ids[:, None], axis=-1)[:, 0]
    return jnp.sum(picked * tmask)


# ----------------------------------------------------------------------------
if __name__ == "__main__":
    # lane-dense demo sizes: E = H = 128, 4H = 512, 2H = 256, V = 256, B = 8
    V_SRC, V_TGT = 256, 256
    E, H = 128, 128
    B, S, T = 8, 8, 8
    PAD = 0

    key = jax.random.PRNGKey(0)
    ks = jax.random.split(key, 20)

    def init(k, shape, scale=0.1):
        return jax.random.normal(k, shape, dtype=jnp.float32) * scale

    params = {
        "E_src":   init(ks[0], (V_SRC, E)),
        "E_tgt":   init(ks[1], (V_TGT, E)),
        # encoder bi-LSTM
        "Wf_ih":   init(ks[2], (E, 4 * H)),
        "Wf_hh":   init(ks[3], (H, 4 * H)),
        "bf":      init(ks[4], (1, 4 * H)),
        "Wb_ih":   init(ks[5], (E, 4 * H)),
        "Wb_hh":   init(ks[6], (H, 4 * H)),
        "bb":      init(ks[7], (1, 4 * H)),
        # projections (Linear, bias=False in the reference module)
        "W_hproj": init(ks[8], (2 * H, H)),
        "W_cproj": init(ks[9], (2 * H, H)),
        "W_att":   init(ks[10], (2 * H, H)),
        # decoder LSTMCell (input = embed + o_prev) and combine projection
        "Wd_ih":   init(ks[11], (E + H, 4 * H)),
        "Wd_hh":   init(ks[12], (H, 4 * H)),
        "bd":      init(ks[13], (1, 4 * H)),
        "W_comb":  init(ks[14], (3 * H, H)),
        # generator
        "W_gen":   init(ks[15], (H, V_TGT)),
        "b_gen":   init(ks[16], (1, V_TGT)),
    }

    src_len = jnp.array([8, 6, 8, 5, 7, 8, 4, 8], dtype=jnp.int32)
    tgt_len = jnp.array([8, 7, 6, 8, 5, 8, 7, 6], dtype=jnp.int32)
    src_ids = jax.random.randint(ks[17], (S, B), 1, V_SRC, dtype=jnp.int32)
    src_ids = jnp.where(jnp.arange(S)[:, None] < src_len[None, :], src_ids, PAD)
    tgt_ids = jax.random.randint(ks[18], (T, B), 1, V_TGT, dtype=jnp.int32)
    tgt_ids = jnp.where(jnp.arange(T)[:, None] < tgt_len[None, :], tgt_ids, PAD)

    loss = nmt_forward(params, src_ids, src_len, tgt_ids, PAD)
    loss = jax.block_until_ready(loss)

    ref = nmt_forward_ref(params, src_ids, src_len, tgt_ids, PAD)
    ref = jax.block_until_ready(ref)

    assert bool(jnp.isfinite(loss)), "loss is not finite"
    assert abs(float(loss) - float(ref)) <= 1e-2 * max(1.0, abs(float(ref))), \
        f"mismatch: pallas={float(loss)} ref={float(ref)}"
    print("KERNEL_OK")
</pallas_src>

<mosaic_0001>
module attributes {stable_mosaic.version = 11 : i64} {
  func.func @_encoder_kernel(%arg0: memref<8x8x512xf32, #tpu.memory_space<vmem>>, %arg1: memref<8x8x512xf32, #tpu.memory_space<vmem>>, %arg2: memref<8x8x1xf32, #tpu.memory_space<vmem>>, %arg3: memref<128x512xf32, #tpu.memory_space<vmem>>, %arg4: memref<128x512xf32, #tpu.memory_space<vmem>>, %arg5: memref<8x8x256xf32, #tpu.memory_space<vmem>>, %arg6: memref<8x256xf32, #tpu.memory_space<vmem>>, %arg7: memref<8x256xf32, #tpu.memory_space<vmem>>, %arg8: memref<8x128xf32, #tpu.memory_space<vmem>>, %arg9: memref<8x128xf32, #tpu.memory_space<vmem>>, %arg10: memref<8x128xf32, #tpu.memory_space<vmem>>, %arg11: memref<8x128xf32, #tpu.memory_space<vmem>>) attributes {dimension_semantics = [], scalar_prefetch = 0 : i64, scratch_operands = 4 : i64, tpu.core_type = #tpu.core_type<tc>} {
    %cst = arith.constant 0.000000e+00 : f32
    %0 = vector.broadcast %cst : f32 to vector<8x128xf32>
    %c0 = arith.constant 0 : index
    %c0_0 = arith.constant 0 : index
    %1 = vector.load %arg8[%c0, %c0_0] : memref<8x128xf32, #tpu.memory_space<vmem>>, vector<8x128xf32>
    tpu.vector_store %arg8[%c0, %c0_0], %0 {strides = array<i32>} : memref<8x128xf32, #tpu.memory_space<vmem>>, vector<8x128xf32>,
    %cst_1 = arith.constant 0.000000e+00 : f32
    %2 = vector.broadcast %cst_1 : f32 to vector<8x128xf32>
    %c0_2 = arith.constant 0 : index
    %c0_3 = arith.constant 0 : index
    %3 = vector.load %arg9[%c0_2, %c0_3] : memref<8x128xf32, #tpu.memory_space<vmem>>, vector<8x128xf32>
    tpu.vector_store %arg9[%c0_2, %c0_3], %2 {strides = array<i32>} : memref<8x128xf32, #tpu.memory_space<vmem>>, vector<8x128xf32>,
    %cst_4 = arith.constant 0.000000e+00 : f32
    %4 = vector.broadcast %cst_4 : f32 to vector<8x128xf32>
    %c0_5 = arith.constant 0 : index
    %c0_6 = arith.constant 0 : index
    %5 = vector.load %arg10[%c0_5, %c0_6] : memref<8x128xf32, #tpu.memory_space<vmem>>, vector<8x128xf32>
    tpu.vector_store %arg10[%c0_5, %c0_6], %4 {strides = array<i32>} : memref<8x128xf32, #tpu.memory_space<vmem>>, vector<8x128xf32>,
    %cst_7 = arith.constant 0.000000e+00 : f32
    %6 = vector.broadcast %cst_7 : f32 to vector<8x128xf32>
    %c0_8 = arith.constant 0 : index
    %c0_9 = arith.constant 0 : index
    %7 = vector.load %arg11[%c0_8, %c0_9] : memref<8x128xf32, #tpu.memory_space<vmem>>, vector<8x128xf32>
    tpu.vector_store %arg11[%c0_8, %c0_9], %6 {strides = array<i32>} : memref<8x128xf32, #tpu.memory_space<vmem>>, vector<8x128xf32>,
    %c0_i32 = arith.constant 0 : i32
    %c1_i32 = arith.constant 1 : i32
    %8 = arith.muli %c0_i32, %c1_i32 : i32
    %c0_i32_10 = arith.constant 0 : i32
    %9 = arith.addi %c0_i32_10, %8 : i32
    %10 = arith.index_cast %9 : i32 to index
    %c0_11 = arith.constant 0 : index
    %c0_12 = arith.constant 0 : index
    %11 = vector.load %arg2[%10, %c0_11, %c0_12] : memref<8x8x1xf32, #tpu.memory_space<vmem>>, vector<1x8x1xf32>
    %12 = vector.shape_cast %11 : vector<1x8x1xf32> to vector<8x1xf32>
    %13 = arith.index_cast %9 : i32 to index
    %c0_13 = arith.constant 0 : index
    %c0_14 = arith.constant 0 : index
    %14 = vector.load %arg0[%13, %c0_13, %c0_14] : memref<8x8x512xf32, #tpu.memory_space<vmem>>, vector<1x8x512xf32>
    %15 = vector.shape_cast %14 : vector<1x8x512xf32> to vector<8x512xf32>
    %c0_15 = arith.constant 0 : index
    %c0_16 = arith.constant 0 : index
    %16 = vector.load %arg8[%c0_15, %c0_16] : memref<8x128xf32, #tpu.memory_space<vmem>>, vector<8x128xf32>
    %c0_17 = arith.constant 0 : index
    %c0_18 = arith.constant 0 : index
    %17 = vector.load %arg9[%c0_17, %c0_18] : memref<8x128xf32, #tpu.memory_space<vmem>>, vector<8x128xf32>
    %c0_19 = arith.constant 0 : index
    %c0_20 = arith.constant 0 : index
    %18 = vector.load %arg3[%c0_19, %c0_20] : memref<128x512xf32, #tpu.memory_space<vmem>>, vector<128x512xf32>
    %cst_21 = arith.constant dense<0.000000e+00> : vector<8x512xf32>
    %19 = tpu.matmul %16, %18, %cst_21 {dimension_numbers = #tpu.dot_dimension_numbers<[1], [0], [0], [1], [0, 0, 1, 1], [], []>} : vector<8x128xf32>, vector<128x512xf32>, vector<8x512xf32> -> vector<8x512xf32>
    %20 = arith.addf %15, %19 : vector<8x512xf32>
    %21 = vector.extract_strided_slice %20 {offsets = [0, 0], sizes = [8, 128], strides = [1, 1]} : vector<8x512xf32> to vector<8x128xf32>
    %22 = arith.negf %21 : vector<8x128xf32>
    %23 = math.exp %22 : vector<8x128xf32>
    %cst_22 = arith.constant 1.000000e+00 : f32
    %24 = vector.broadcast %cst_22 : f32 to vector<8x128xf32>
    %25 = arith.addf %24, %23 : vector<8x128xf32>
    %26 = arith.divf %24, %25 : vector<8x128xf32>
    %27 = vector.extract_strided_slice %20 {offsets = [0, 128], sizes = [8, 128], strides = [1, 1]} : vector<8x512xf32> to vector<8x128xf32>
    %28 = arith.negf %27 : vector<8x128xf32>
    %29 = math.exp %28 : vector<8x128xf32>
    %cst_23 = arith.constant 1.000000e+00 : f32
    %30 = vector.broadcast %cst_23 : f32 to vector<8x128xf32>
    %31 = arith.addf %30, %29 : vector<8x128xf32>
    %32 = arith.divf %30, %31 : vector<8x128xf32>
    %33 = vector.extract_strided_slice %20 {offsets = [0, 256], sizes = [8, 128], strides = [1, 1]} : vector<8x512xf32> to vector<8x128xf32>
    %34 = math.tanh %33 : vector<8x128xf32>
    %35 = vector.extract_strided_slice %20 {offsets = [0, 384], sizes = [8, 128], strides = [1, 1]} : vector<8x512xf32> to vector<8x128xf32>
    %36 = arith.negf %35 : vector<8x128xf32>
    %37 = math.exp %36 : vector<8x128xf32>
    %cst_24 = arith.constant 1.000000e+00 : f32
    %38 = vector.broadcast %cst_24 : f32 to vector<8x128xf32>
    %39 = arith.addf %38, %37 : vector<8x128xf32>
    %40 = arith.divf %38, %39 : vector<8x128xf32>
    %41 = arith.mulf %32, %17 : vector<8x128xf32>
    %42 = arith.mulf %26, %34 : vector<8x128xf32>
    %43 = arith.addf %41, %42 : vector<8x128xf32>
    %44 = math.tanh %43 : vector<8x128xf32>
    %45 = arith.mulf %40, %44 : vector<8x128xf32>
    %46 = vector.broadcast %12 : vector<8x1xf32> to vector<8x128xf32>
    %47 = arith.mulf %46, %45 : vector<8x128xf32>
    %cst_25 = arith.constant 1.000000e+00 : f32
    %48 = vector.broadcast %cst_25 : f32 to vector<8x1xf32>
    %49 = arith.subf %48, %12 : vector<8x1xf32>
    %c0_26 = arith.constant 0 : index
    %c0_27 = arith.constant 0 : index
    %50 = vector.load %arg8[%c0_26, %c0_27] : memref<8x128xf32, #tpu.memory_space<vmem>>, vector<8x128xf32>
    %51 = vector.broadcast %49 : vector<8x1xf32> to vector<8x128xf32>
    %52 = arith.mulf %51, %50 : vector<8x128xf32>
    %53 = arith.addf %47, %52 : vector<8x128xf32>
    %54 = vector.broadcast %12 : vector<8x1xf32> to vector<8x128xf32>
    %55 = arith.mulf %54, %43 : vector<8x128xf32>
    %cst_28 = arith.constant 1.000000e+00 : f32
    %56 = vector.broadcast %cst_28 : f32 to vector<8x1xf32>
    %57 = arith.subf %56, %12 : vector<8x1xf32>
    %c0_29 = arith.constant 0 : index
    %c0_30 = arith.constant 0 : index
    %58 = vector.load %arg9[%c0_29, %c0_30] : memref<8x128xf32, #tpu.memory_space<vmem>>, vector<8x128xf32>
    %59 = vector.broadcast %57 : vector<8x1xf32> to vector<8x128xf32>
    %60 = arith.mulf %59, %58 : vector<8x128xf32>
    %61 = arith.addf %55, %60 : vector<8x128xf32>
    %c0_31 = arith.constant 0 : index
    %c0_32 = arith.constant 0 : index
    %62 = vector.load %arg8[%c0_31, %c0_32] : memref<8x128xf32, #tpu.memory_space<vmem>>, vector<8x128xf32>
    tpu.vector_store %arg8[%c0_31, %c0_32], %53 {strides = array<i32>} : memref<8x128xf32, #tpu.memory_space<vmem>>, vector<8x128xf32>,
    %c0_33 = arith.constant 0 : index
    %c0_34 = arith.constant 0 : index
    %63 = vector.load %arg9[%c0_33, %c0_34] : memref<8x128xf32, #tpu.memory_space<vmem>>, vector<8x128xf32>
    tpu.vector_store %arg9[%c0_33, %c0_34], %61 {strides = array<i32>} : memref<8x128xf32, #tpu.memory_space<vmem>>, vector<8x128xf32>,
    %64 = vector.broadcast %12 : vector<8x1xf32> to vector<8x128xf32>
    %65 = arith.mulf %64, %53 : vector<8x128xf32>
    %66 = arith.index_cast %9 : i32 to index
    %c0_35 = arith.constant 0 : index
    %c0_36 = arith.constant 0 : index
    %67 = vector.load %arg5[%66, %c0_35, %c0_36] : memref<8x8x256xf32, #tpu.memory_space<vmem>>, vector<1x8x128xf32>
    %68 = vector.shape_cast %67 : vector<1x8x128xf32> to vector<8x128xf32>
    %69 = vector.shape_cast %65 : vector<8x128xf32> to vector<1x8x128xf32>
    tpu.vector_store %arg5[%66, %c0_35, %c0_36], %69 {strides = array<i32>} : memref<8x8x256xf32, #tpu.memory_space<vmem>>, vector<1x8x128xf32>,
    %c7_i32 = arith.constant 7 : i32
    %70 = arith.subi %c7_i32, %9 : i32
    %71 = arith.index_cast %70 : i32 to index
    %c0_37 = arith.constant 0 : index
    %c0_38 = arith.constant 0 : index
    %72 = vector.load %arg2[%71, %c0_37, %c0_38] : memref<8x8x1xf32, #tpu.memory_space<vmem>>, vector<1x8x1xf32>
    %73 = vector.shape_cast %72 : vector<1x8x1xf32> to vector<8x1xf32>
    %74 = arith.index_cast %70 : i32 to index
    %c0_39 = arith.constant 0 : index
    %c0_40 = arith.constant 0 : index
    %75 = vector.load %arg1[%74, %c0_39, %c0_40] : memref<8x8x512xf32, #tpu.memory_space<vmem>>, vector<1x8x512xf32>
    %76 = vector.shape_cast %75 : vector<1x8x512xf32> to vector<8x512xf32>
    %c0_41 = arith.constant 0 : index
    %c0_42 = arith.constant 0 : index
    %77 = vector.load %arg10[%c0_41, %c0_42] : memref<8x128xf32, #tpu.memory_space<vmem>>, vector<8x128xf32>
    %c0_43 = arith.constant 0 : index
    %c0_44 = arith.constant 0 : index
    %78 = vector.load %arg11[%c0_43, %c0_44] : memref<8x128xf32, #tpu.memory_space<vmem>>, vector<8x128xf32>
    %c0_45 = arith.constant 0 : index
    %c0_46 = arith.constant 0 : index
    %79 = vector.load %arg4[%c0_45, %c0_46] : memref<128x512xf32, #tpu.memory_space<vmem>>, vector<128x512xf32>
    %cst_47 = arith.constant dense<0.000000e+00> : vector<8x512xf32>
    %80 = tpu.matmul %77, %79, %cst_47 {dimension_numbers = #tpu.dot_dimension_numbers<[1], [0], [0], [1], [0, 0, 1, 1], [], []>} : vector<8x128xf32>, vector<128x512xf32>, vector<8x512xf32> -> vector<8x512xf32>
    %81 = arith.addf %76, %80 : vector<8x512xf32>
    %82 = vector.extract_strided_slice %81 {offsets = [0, 0], sizes = [8, 128], strides = [1, 1]} : vector<8x512xf32> to vector<8x128xf32>
    %83 = arith.negf %82 : vector<8x128xf32>
    %84 = math.exp %83 : vector<8x128xf32>
    %cst_48 = arith.constant 1.000000e+00 : f32
    %85 = vector.broadcast %cst_48 : f32 to vector<8x128xf32>
    %86 = arith.addf %85, %84 : vector<8x128xf32>
    %87 = arith.divf %85, %86 : vector<8x128xf32>
    %88 = vector.extract_strided_slice %81 {offsets = [0, 128], sizes = [8, 128], strides = [1, 1]} : vector<8x512xf32> to vector<8x128xf32>
    %89 = arith.negf %88 : vector<8x128xf32>
    %90 = math.exp %89 : vector<8x128xf32>
    %cst_49 = arith.constant 1.000000e+00 : f32
    %91 = vector.broadcast %cst_49 : f32 to vector<8x128xf32>
    %92 = arith.addf %91, %90 : vector<8x128xf32>
    %93 = arith.divf %91, %92 : vector<8x128xf32>
    %94 = vector.extract_strided_slice %81 {offsets = [0, 256], sizes = [8, 128], strides = [1, 1]} : vector<8x512xf32> to vector<8x128xf32>
    %95 = math.tanh %94 : vector<8x128xf32>
    %96 = vector.extract_strided_slice %81 {offsets = [0, 384], sizes = [8, 128], strides = [1, 1]} : vector<8x512xf32> to vector<8x128xf32>
    %97 = arith.negf %96 : vector<8x128xf32>
    %98 = math.exp %97 : vector<8x128xf32>
    %cst_50 = arith.constant 1.000000e+00 : f32
    %99 = vector.broadcast %cst_50 : f32 to vector<8x128xf32>
    %100 = arith.addf %99, %98 : vector<8x128xf32>
    %101 = arith.divf %99, %100 : vector<8x128xf32>
    %102 = arith.mulf %93, %78 : vector<8x128xf32>
    %103 = arith.mulf %87, %95 : vector<8x128xf32>
    %104 = arith.addf %102, %103 : vector<8x128xf32>
    %105 = math.tanh %104 : vector<8x128xf32>
    %106 = arith.mulf %101, %105 : vector<8x128xf32>
    %107 = vector.broadcast %73 : vector<8x1xf32> to vector<8x128xf32>
    %108 = arith.mulf %107, %106 : vector<8x128xf32>
    %cst_51 = arith.constant 1.000000e+00 : f32
    %109 = vector.broadcast %cst_51 : f32 to vector<8x1xf32>
    %110 = arith.subf %109, %73 : vector<8x1xf32>
    %c0_52 = arith.constant 0 : index
    %c0_53 = arith.constant 0 : index
    %111 = vector.load %arg10[%c0_52, %c0_53] : memref<8x128xf32, #tpu.memory_space<vmem>>, vector<8x128xf32>
    %112 = vector.broadcast %110 : vector<8x1xf32> to vector<8x128xf32>
    %113 = arith.mulf %112, %111 : vector<8x128xf32>
    %114 = arith.addf %108, %113 : vector<8x128xf32>
    %115 = vector.broadcast %73 : vector<8x1xf32> to vector<8x128xf32>
    %116 = arith.mulf %115, %104 : vector<8x128xf32>
    %cst_54 = arith.constant 1.000000e+00 : f32
    %117 = vector.broadcast %cst_54 : f32 to vector<8x1xf32>
    %118 = arith.subf %117, %73 : vector<8x1xf32>
    %c0_55 = arith.constant 0 : index
    %c0_56 = arith.constant 0 : index
    %119 = vector.load %arg11[%c0_55, %c0_56] : memref<8x128xf32, #tpu.memory_space<vmem>>, vector<8x128xf32>
    %120 = vector.broadcast %118 : vector<8x1xf32> to vector<8x128xf32>
    %121 = arith.mulf %120, %119 : vector<8x128xf32>
    %122 = arith.addf %116, %121 : vector<8x128xf32>
    %c0_57 = arith.constant 0 : index
    %c0_58 = arith.constant 0 : index
    %123 = vector.load %arg10[%c0_57, %c0_58] : memref<8x128xf32, #tpu.memory_space<vmem>>, vector<8x128xf32>
    tpu.vector_store %arg10[%c0_57, %c0_58], %114 {strides = array<i32>} : memref<8x128xf32, #tpu.memory_space<vmem>>, vector<8x128xf32>,
    %c0_59 = arith.constant 0 : index
    %c0_60 = arith.constant 0 : index
    %124 = vector.load %arg11[%c0_59, %c0_60] : memref<8x128xf32, #tpu.memory_space<vmem>>, vector<8x128xf32>
    tpu.vector_store %arg11[%c0_59, %c0_60], %122 {strides = array<i32>} : memref<8x128xf32, #tpu.memory_space<vmem>>, vector<8x128xf32>,
    %125 = vector.broadcast %73 : vector<8x1xf32> to vector<8x128xf32>
    %126 = arith.mulf %125, %114 : vector<8x128xf32>
    %127 = arith.index_cast %70 : i32 to index
    %c0_61 = arith.constant 0 : index
    %c128 = arith.constant 128 : index
    %128 = vector.load %arg5[%127, %c0_61, %c128] : memref<8x8x256xf32, #tpu.memory_space<vmem>>, vector<1x8x128xf32>
    %129 = vector.shape_cast %128 : vector<1x8x128xf32> to vector<8x128xf32>
    %130 = vector.shape_cast %126 : vector<8x128xf32> to vector<1x8x128xf32>
    tpu.vector_store %arg5[%127, %c0_61, %c128], %130 {strides = array<i32>} : memref<8x8x256xf32, #tpu.memory_space<vmem>>, vector<1x8x128xf32>,
    %c1_i32_62 = arith.constant 1 : i32
    %c1_i32_63 = arith.constant 1 : i32
    %131 = arith.muli %c1_i32_62, %c1_i32_63 : i32
    %c0_i32_64 = arith.constant 0 : i32
    %132 = arith.addi %c0_i32_64, %131 : i32
    %133 = arith.index_cast %132 : i32 to index
    %c0_65 = arith.constant 0 : index
    %c0_66 = arith.constant 0 : index
    %134 = vector.load %arg2[%133, %c0_65, %c0_66] : memref<8x8x1xf32, #tpu.memory_space<vmem>>, vector<1x8x1xf32>
    %135 = vector.shape_cast %134 : vector<1x8x1xf32> to vector<8x1xf32>
    %136 = arith.index_cast %132 : i32 to index
    %c0_67 = arith.constant 0 : index
    %c0_68 = arith.constant 0 : index
    %137 = vector.load %arg0[%136, %c0_67, %c0_68] : memref<8x8x512xf32, #tpu.memory_space<vmem>>, vector<1x8x512xf32>
    %138 = vector.shape_cast %137 : vector<1x8x512xf32> to vector<8x512xf32>
    %c0_69 = arith.constant 0 : index
    %c0_70 = arith.constant 0 : index
    %139 = vector.load %arg8[%c0_69, %c0_70] : memref<8x128xf32, #tpu.memory_space<vmem>>, vector<8x128xf32>
    %c0_71 = arith.constant 0 : index
    %c0_72 = arith.constant 0 : index
    %140 = vector.load %arg9[%c0_71, %c0_72] : memref<8x128xf32, #tpu.memory_space<vmem>>, vector<8x128xf32>
    %c0_73 = arith.constant 0 : index
    %c0_74 = arith.constant 0 : index
    %141 = vector.load %arg3[%c0_73, %c0_74] : memref<128x512xf32, #tpu.memory_space<vmem>>, vector<128x512xf32>
    %cst_75 = arith.constant dense<0.000000e+00> : vector<8x512xf32>
    %142 = tpu.matmul %139, %141, %cst_75 {dimension_numbers = #tpu.dot_dimension_numbers<[1], [0], [0], [1], [0, 0, 1, 1], [], []>} : vector<8x128xf32>, vector<128x512xf32>, vector<8x512xf32> -> vector<8x512xf32>
    %143 = arith.addf %138, %142 : vector<8x512xf32>
    %144 = vector.extract_strided_slice %143 {offsets = [0, 0], sizes = [8, 128], strides = [1, 1]} : vector<8x512xf32> to vector<8x128xf32>
    %145 = arith.negf %144 : vector<8x128xf32>
    %146 = math.exp %145 : vector<8x128xf32>
    %cst_76 = arith.constant 1.000000e+00 : f32
    %147 = vector.broadcast %cst_76 : f32 to vector<8x128xf32>
    %148 = arith.addf %147, %146 : vector<8x128xf32>
    %149 = arith.divf %147, %148 : vector<8x128xf32>
    %150 = vector.extract_strided_slice %143 {offsets = [0, 128], sizes = [8, 128], strides = [1, 1]} : vector<8x512xf32> to vector<8x128xf32>
    %151 = arith.negf %150 : vector<8x128xf32>
    %152 = math.exp %151 : vector<8x128xf32>
    %cst_77 = arith.constant 1.000000e+00 : f32
    %153 = vector.broadcast %cst_77 : f32 to vector<8x128xf32>
    %154 = arith.addf %153, %152 : vector<8x128xf32>
    %155 = arith.divf %153, %154 : vector<8x128xf32>
    %156 = vector.extract_strided_slice %143 {offsets = [0, 256], sizes = [8, 128], strides = [1, 1]} : vector<8x512xf32> to vector<8x128xf32>
    %157 = math.tanh %156 : vector<8x128xf32>
    %158 = vector.extract_strided_slice %143 {offsets = [0, 384], sizes = [8, 128], strides = [1, 1]} : vector<8x512xf32> to vector<8x128xf32>
    %159 = arith.negf %158 : vector<8x128xf32>
    %160 = math.exp %159 : vector<8x128xf32>
    %cst_78 = arith.constant 1.000000e+00 : f32
    %161 = vector.broadcast %cst_78 : f32 to vector<8x128xf32>
    %162 = arith.addf %161, %160 : vector<8x128xf32>
    %163 = arith.divf %161, %162 : vector<8x128xf32>
    %164 = arith.mulf %155, %140 : vector<8x128xf32>
    %165 = arith.mulf %149, %157 : vector<8x128xf32>
    %166 = arith.addf %164, %165 : vector<8x128xf32>
    %167 = math.tanh %166 : vector<8x128xf32>
    %168 = arith.mulf %163, %167 : vector<8x128xf32>
    %169 = vector.broadcast %135 : vector<8x1xf32> to vector<8x128xf32>
    %170 = arith.mulf %169, %168 : vector<8x128xf32>
    %cst_79 = arith.constant 1.000000e+00 : f32
    %171 = vector.broadcast %cst_79 : f32 to vector<8x1xf32>
    %172 = arith.subf %171, %135 : vector<8x1xf32>
    %c0_80 = arith.constant 0 : index
    %c0_81 = arith.constant 0 : index
    %173 = vector.load %arg8[%c0_80, %c0_81] : memref<8x128xf32, #tpu.memory_space<vmem>>, vector<8x128xf32>
    %174 = vector.broadcast %172 : vector<8x1xf32> to vector<8x128xf32>
    %175 = arith.mulf %174, %173 : vector<8x128xf32>
    %176 = arith.addf %170, %175 : vector<8x128xf32>
    %177 = vector.broadcast %135 : vector<8x1xf32> to vector<8x128xf32>
    %178 = arith.mulf %177, %166 : vector<8x128xf32>
    %cst_82 = arith.constant 1.000000e+00 : f32
    %179 = vector.broadcast %cst_82 : f32 to vector<8x1xf32>
    %180 = arith.subf %179, %135 : vector<8x1xf32>
    %c0_83 = arith.constant 0 : index
    %c0_84 = arith.constant 0 : index
    %181 = vector.load %arg9[%c0_83, %c0_84] : memref<8x128xf32, #tpu.memory_space<vmem>>, vector<8x128xf32>
    %182 = vector.broadcast %180 : vector<8x1xf32> to vector<8x128xf32>
    %183 = arith.mulf %182, %181 : vector<8x128xf32>
    %184 = arith.addf %178, %183 : vector<8x128xf32>
    %c0_85 = arith.constant 0 : index
    %c0_86 = arith.constant 0 : index
    %185 = vector.load %arg8[%c0_85, %c0_86] : memref<8x128xf32, #tpu.memory_space<vmem>>, vector<8x128xf32>
    tpu.vector_store %arg8[%c0_85, %c0_86], %176 {strides = array<i32>} : memref<8x128xf32, #tpu.memory_space<vmem>>, vector<8x128xf32>,
    %c0_87 = arith.constant 0 : index
    %c0_88 = arith.constant 0 : index
    %186 = vector.load %arg9[%c0_87, %c0_88] : memref<8x128xf32, #tpu.memory_space<vmem>>, vector<8x128xf32>
    tpu.vector_store %arg9[%c0_87, %c0_88], %184 {strides = array<i32>} : memref<8x128xf32, #tpu.memory_space<vmem>>, vector<8x128xf32>,
    %187 = vector.broadcast %135 : vector<8x1xf32> to vector<8x128xf32>
    %188 = arith.mulf %187, %176 : vector<8x128xf32>
    %189 = arith.index_cast %132 : i32 to index
    %c0_89 = arith.constant 0 : index
    %c0_90 = arith.constant 0 : index
    %190 = vector.load %arg5[%189, %c0_89, %c0_90] : memref<8x8x256xf32, #tpu.memory_space<vmem>>, vector<1x8x128xf32>
    %191 = vector.shape_cast %190 : vector<1x8x128xf32> to vector<8x128xf32>
    %192 = vector.shape_cast %188 : vector<8x128xf32> to vector<1x8x128xf32>
    tpu.vector_store %arg5[%189, %c0_89, %c0_90], %192 {strides = array<i32>} : memref<8x8x256xf32, #tpu.memory_space<vmem>>, vector<1x8x128xf32>,
    %c7_i32_91 = arith.constant 7 : i32
    %193 = arith.subi %c7_i32_91, %132 : i32
    %194 = arith.index_cast %193 : i32 to index
    %c0_92 = arith.constant 0 : index
    %c0_93 = arith.constant 0 : index
    %195 = vector.load %arg2[%194, %c0_92, %c0_93] : memref<8x8x1xf32, #tpu.memory_space<vmem>>, vector<1x8x1xf32>
    %196 = vector.shape_cast %195 : vector<1x8x1xf32> to vector<8x1xf32>
    %197 = arith.index_cast %193 : i32 to index
    %c0_94 = arith.constant 0 : index
    %c0_95 = arith.constant 0 : index
    %198 = vector.load %arg1[%197, %c0_94, %c0_95] : memref<8x8x512xf32, #tpu.memory_space<vmem>>, vector<1x8x512xf32>
    %199 = vector.shape_cast %198 : vector<1x8x512xf32> to vector<8x512xf32>
    %c0_96 = arith.constant 0 : index
    %c0_97 = arith.constant 0 : index
    %200 = vector.load %arg10[%c0_96, %c0_97] : memref<8x128xf32, #tpu.memory_space<vmem>>, vector<8x128xf32>
    %c0_98 = arith.constant 0 : index
    %c0_99 = arith.constant 0 : index
    %201 = vector.load %arg11[%c0_98, %c0_99] : memref<8x128xf32, #tpu.memory_space<vmem>>, vector<8x128xf32>
    %c0_100 = arith.constant 0 : index
    %c0_101 = arith.constant 0 : index
    %202 = vector.load %arg4[%c0_100, %c0_101] : memref<128x512xf32, #tpu.memory_space<vmem>>, vector<128x512xf32>
    %cst_102 = arith.constant dense<0.000000e+00> : vector<8x512xf32>
    %203 = tpu.matmul %200, %202, %cst_102 {dimension_numbers = #tpu.dot_dimension_numbers<[1], [0], [0], [1], [0, 0, 1, 1], [], []>} : vector<8x128xf32>, vector<128x512xf32>, vector<8x512xf32> -> vector<8x512xf32>
    %204 = arith.addf %199, %203 : vector<8x512xf32>
    %205 = vector.extract_strided_slice %204 {offsets = [0, 0], sizes = [8, 128], strides = [1, 1]} : vector<8x512xf32> to vector<8x128xf32>
    %206 = arith.negf %205 : vector<8x128xf32>
    %207 = math.exp %206 : vector<8x128xf32>
    %cst_103 = arith.constant 1.000000e+00 : f32
    %208 = vector.broadcast %cst_103 : f32 to vector<8x128xf32>
    %209 = arith.addf %208, %207 : vector<8x128xf32>
    %210 = arith.divf %208, %209 : vector<8x128xf32>
    %211 = vector.extract_strided_slice %204 {offsets = [0, 128], sizes = [8, 128], strides = [1, 1]} : vector<8x512xf32> to vector<8x128xf32>
    %212 = arith.negf %211 : vector<8x128xf32>
    %213 = math.exp %212 : vector<8x128xf32>
    %cst_104 = arith.constant 1.000000e+00 : f32
    %214 = vector.broadcast %cst_104 : f32 to vector<8x128xf32>
    %215 = arith.addf %214, %213 : vector<8x128xf32>
    %216 = arith.divf %214, %215 : vector<8x128xf32>
    %217 = vector.extract_strided_slice %204 {offsets = [0, 256], sizes = [8, 128], strides = [1, 1]} : vector<8x512xf32> to vector<8x128xf32>
    %218 = math.tanh %217 : vector<8x128xf32>
    %219 = vector.extract_strided_slice %204 {offsets = [0, 384], sizes = [8, 128], strides = [1, 1]} : vector<8x512xf32> to vector<8x128xf32>
    %220 = arith.negf %219 : vector<8x128xf32>
    %221 = math.exp %220 : vector<8x128xf32>
    %cst_105 = arith.constant 1.000000e+00 : f32
    %222 = vector.broadcast %cst_105 : f32 to vector<8x128xf32>
    %223 = arith.addf %222, %221 : vector<8x128xf32>
    %224 = arith.divf %222, %223 : vector<8x128xf32>
    %225 = arith.mulf %216, %201 : vector<8x128xf32>
    %226 = arith.mulf %210, %218 : vector<8x128xf32>
    %227 = arith.addf %225, %226 : vector<8x128xf32>
    %228 = math.tanh %227 : vector<8x128xf32>
    %229 = arith.mulf %224, %228 : vector<8x128xf32>
    %230 = vector.broadcast %196 : vector<8x1xf32> to vector<8x128xf32>
    %231 = arith.mulf %230, %229 : vector<8x128xf32>
    %cst_106 = arith.constant 1.000000e+00 : f32
    %232 = vector.broadcast %cst_106 : f32 to vector<8x1xf32>
    %233 = arith.subf %232, %196 : vector<8x1xf32>
    %c0_107 = arith.constant 0 : index
    %c0_108 = arith.constant 0 : index
    %234 = vector.load %arg10[%c0_107, %c0_108] : memref<8x128xf32, #tpu.memory_space<vmem>>, vector<8x128xf32>
    %235 = vector.broadcast %233 : vector<8x1xf32> to vector<8x128xf32>
    %236 = arith.mulf %235, %234 : vector<8x128xf32>
    %237 = arith.addf %231, %236 : vector<8x128xf32>
    %238 = vector.broadcast %196 : vector<8x1xf32> to vector<8x128xf32>
    %239 = arith.mulf %238, %227 : vector<8x128xf32>
    %cst_109 = arith.constant 1.000000e+00 : f32
    %240 = vector.broadcast %cst_109 : f32 to vector<8x1xf32>
    %241 = arith.subf %240, %196 : vector<8x1xf32>
    %c0_110 = arith.constant 0 : index
    %c0_111 = arith.constant 0 : index
    %242 = vector.load %arg11[%c0_110, %c0_111] : memref<8x128xf32, #tpu.memory_space<vmem>>, vector<8x128xf32>
    %243 = vector.broadcast %241 : vector<8x1xf32> to vector<8x128xf32>
    %244 = arith.mulf %243, %242 : vector<8x128xf32>
    %245 = arith.addf %239, %244 : vector<8x128xf32>
    %c0_112 = arith.constant 0 : index
    %c0_113 = arith.constant 0 : index
    %246 = vector.load %arg10[%c0_112, %c0_113] : memref<8x128xf32, #tpu.memory_space<vmem>>, vector<8x128xf32>
    tpu.vector_store %arg10[%c0_112, %c0_113], %237 {strides = array<i32>} : memref<8x128xf32, #tpu.memory_space<vmem>>, vector<8x128xf32>,
    %c0_114 = arith.constant 0 : index
    %c0_115 = arith.constant 0 : index
    %247 = vector.load %arg11[%c0_114, %c0_115] : memref<8x128xf32, #tpu.memory_space<vmem>>, vector<8x128xf32>
    tpu.vector_store %arg11[%c0_114, %c0_115], %245 {strides = array<i32>} : memref<8x128xf32, #tpu.memory_space<vmem>>, vector<8x128xf32>,
    %248 = vector.broadcast %196 : vector<8x1xf32> to vector<8x128xf32>
    %249 = arith.mulf %248, %237 : vector<8x128xf32>
    %250 = arith.index_cast %193 : i32 to index
    %c0_116 = arith.constant 0 : index
    %c128_117 = arith.constant 128 : index
    %251 = vector.load %arg5[%250, %c0_116, %c128_117] : memref<8x8x256xf32, #tpu.memory_space<vmem>>, vector<1x8x128xf32>
    %252 = vector.shape_cast %251 : vector<1x8x128xf32> to vector<8x128xf32>
    %253 = vector.shape_cast %249 : vector<8x128xf32> to vector<1x8x128xf32>
    tpu.vector_store %arg5[%250, %c0_116, %c128_117], %253 {strides = array<i32>} : memref<8x8x256xf32, #tpu.memory_space<vmem>>, vector<1x8x128xf32>,
    %c2_i32 = arith.constant 2 : i32
    %c1_i32_118 = arith.constant 1 : i32
    %254 = arith.muli %c2_i32, %c1_i32_118 : i32
    %c0_i32_119 = arith.constant 0 : i32
    %255 = arith.addi %c0_i32_119, %254 : i32
    %256 = arith.index_cast %255 : i32 to index
    %c0_120 = arith.constant 0 : index
    %c0_121 = arith.constant 0 : index
    %257 = vector.load %arg2[%256, %c0_120, %c0_121] : memref<8x8x1xf32, #tpu.memory_space<vmem>>, vector<1x8x1xf32>
    %258 = vector.shape_cast %257 : vector<1x8x1xf32> to vector<8x1xf32>
    %259 = arith.index_cast %255 : i32 to index
    %c0_122 = arith.constant 0 : index
    %c0_123 = arith.constant 0 : index
    %260 = vector.load %arg0[%259, %c0_122, %c0_123] : memref<8x8x512xf32, #tpu.memory_space<vmem>>, vector<1x8x512xf32>
    %261 = vector.shape_cast %260 : vector<1x8x512xf32> to vector<8x512xf32>
    %c0_124 = arith.constant 0 : index
    %c0_125 = arith.constant 0 : index
    %262 = vector.load %arg8[%c0_124, %c0_125] : memref<8x128xf32, #tpu.memory_space<vmem>>, vector<8x128xf32>
    %c0_126 = arith.constant 0 : index
    %c0_127 = arith.constant 0 : index
    %263 = vector.load %arg9[%c0_126, %c0_127] : memref<8x128xf32, #tpu.memory_space<vmem>>, vector<8x128xf32>
    %c0_128 = arith.constant 0 : index
    %c0_129 = arith.constant 0 : index
    %264 = vector.load %arg3[%c0_128, %c0_129] : memref<128x512xf32, #tpu.memory_space<vmem>>, vector<128x512xf32>
    %cst_130 = arith.constant dense<0.000000e+00> : vector<8x512xf32>
    %265 = tpu.matmul %262, %264, %cst_130 {dimension_numbers = #tpu.dot_dimension_numbers<[1], [0], [0], [1], [0, 0, 1, 1], [], []>} : vector<8x128xf32>, vector<128x512xf32>, vector<8x512xf32> -> vector<8x512xf32>
    %266 = arith.addf %261, %265 : vector<8x512xf32>
    %267 = vector.extract_strided_slice %266 {offsets = [0, 0], sizes = [8, 128], strides = [1, 1]} : vector<8x512xf32> to vector<8x128xf32>
    %268 = arith.negf %267 : vector<8x128xf32>
    %269 = math.exp %268 : vector<8x128xf32>
    %cst_131 = arith.constant 1.000000e+00 : f32
    %270 = vector.broadcast %cst_131 : f32 to vector<8x128xf32>
    %271 = arith.addf %270, %269 : vector<8x128xf32>
    %272 = arith.divf %270, %271 : vector<8x128xf32>
    %273 = vector.extract_strided_slice %266 {offsets = [0, 128], sizes = [8, 128], strides = [1, 1]} : vector<8x512xf32> to vector<8x128xf32>
    %274 = arith.negf %273 : vector<8x128xf32>
    %275 = math.exp %274 : vector<8x128xf32>
    %cst_132 = arith.constant 1.000000e+00 : f32
    %276 = vector.broadcast %cst_132 : f32 to vector<8x128xf32>
    %277 = arith.addf %276, %275 : vector<8x128xf32>
    %278 = arith.divf %276, %277 : vector<8x128xf32>
    %279 = vector.extract_strided_slice %266 {offsets = [0, 256], sizes = [8, 128], strides = [1, 1]} : vector<8x512xf32> to vector<8x128xf32>
    %280 = math.tanh %279 : vector<8x128xf32>
    %281 = vector.extract_strided_slice %266 {offsets = [0, 384], sizes = [8, 128], strides = [1, 1]} : vector<8x512xf32> to vector<8x128xf32>
    %282 = arith.negf %281 : vector<8x128xf32>
    %283 = math.exp %282 : vector<8x128xf32>
    %cst_133 = arith.constant 1.000000e+00 : f32
    %284 = vector.broadcast %cst_133 : f32 to vector<8x128xf32>
    %285 = arith.addf %284, %283 : vector<8x128xf32>
    %286 = arith.divf %284, %285 : vector<8x128xf32>
    %287 = arith.mulf %278, %263 : vector<8x128xf32>
    %288 = arith.mulf %272, %280 : vector<8x128xf32>
    %289 = arith.addf %287, %288 : vector<8x128xf32>
    %290 = math.tanh %289 : vector<8x128xf32>
    %291 = arith.mulf %286, %290 : vector<8x128xf32>
    %292 = vector.broadcast %258 : vector<8x1xf32> to vector<8x128xf32>
    %293 = arith.mulf %292, %291 : vector<8x128xf32>
    %cst_134 = arith.constant 1.000000e+00 : f32
    %294 = vector.broadcast %cst_134 : f32 to vector<8x1xf32>
    %295 = arith.subf %294, %258 : vector<8x1xf32>
    %c0_135 = arith.constant 0 : index
    %c0_136 = arith.constant 0 : index
    %296 = vector.load %arg8[%c0_135, %c0_136] : memref<8x128xf32, #tpu.memory_space<vmem>>, vector<8x128xf32>
    %297 = vector.broadcast %295 : vector<8x1xf32> to vector<8x128xf32>
    %298 = arith.mulf %297, %296 : vector<8x128xf32>
    %299 = arith.addf %293, %298 : vector<8x128xf32>
    %300 = vector.broadcast %258 : vector<8x1xf32> to vector<8x128xf32>
    %301 = arith.mulf %300, %289 : vector<8x128xf32>
    %cst_137 = arith.constant 1.000000e+00 : f32
    %302 = vector.broadcast %cst_137 : f32 to vector<8x1xf32>
    %303 = arith.subf %302, %258 : vector<8x1xf32>
    %c0_138 = arith.constant 0 : index
    %c0_139 = arith.constant 0 : index
    %304 = vector.load %arg9[%c0_138, %c0_139] : memref<8x128xf32, #tpu.memory_space<vmem>>, vector<8x128xf32>
    %305 = vector.broadcast %303 : vector<8x1xf32> to vector<8x128xf32>
    %306 = arith.mulf %305, %304 : vector<8x128xf32>
    %307 = arith.addf %301, %306 : vector<8x128xf32>
    %c0_140 = arith.constant 0 : index
    %c0_141 = arith.constant 0 : index
    %308 = vector.load %arg8[%c0_140, %c0_141] : memref<8x128xf32, #tpu.memory_space<vmem>>, vector<8x128xf32>
    tpu.vector_store %arg8[%c0_140, %c0_141], %299 {strides = array<i32>} : memref<8x128xf32, #tpu.memory_space<vmem>>, vector<8x128xf32>,
    %c0_142 = arith.constant 0 : index
    %c0_143 = arith.constant 0 : index
    %309 = vector.load %arg9[%c0_142, %c0_143] : memref<8x128xf32, #tpu.memory_space<vmem>>, vector<8x128xf32>
    tpu.vector_store %arg9[%c0_142, %c0_143], %307 {strides = array<i32>} : memref<8x128xf32, #tpu.memory_space<vmem>>, vector<8x128xf32>,
    %310 = vector.broadcast %258 : vector<8x1xf32> to vector<8x128xf32>
    %311 = arith.mulf %310, %299 : vector<8x128xf32>
    %312 = arith.index_cast %255 : i32 to index
    %c0_144 = arith.constant 0 : index
    %c0_145 = arith.constant 0 : index
    %313 = vector.load %arg5[%312, %c0_144, %c0_145] : memref<8x8x256xf32, #tpu.memory_space<vmem>>, vector<1x8x128xf32>
    %314 = vector.shape_cast %313 : vector<1x8x128xf32> to vector<8x128xf32>
    %315 = vector.shape_cast %311 : vector<8x128xf32> to vector<1x8x128xf32>
    tpu.vector_store %arg5[%312, %c0_144, %c0_145], %315 {strides = array<i32>} : memref<8x8x256xf32, #tpu.memory_space<vmem>>, vector<1x8x128xf32>,
    %c7_i32_146 = arith.constant 7 : i32
    %316 = arith.subi %c7_i32_146, %255 : i32
    %317 = arith.index_cast %316 : i32 to index
    %c0_147 = arith.constant 0 : index
    %c0_148 = arith.constant 0 : index
    %318 = vector.load %arg2[%317, %c0_147, %c0_148] : memref<8x8x1xf32, #tpu.memory_space<vmem>>, vector<1x8x1xf32>
    %319 = vector.shape_cast %318 : vector<1x8x1xf32> to vector<8x1xf32>
    %320 = arith.index_cast %316 : i32 to index
    %c0_149 = arith.constant 0 : index
    %c0_150 = arith.constant 0 : index
    %321 = vector.load %arg1[%320, %c0_149, %c0_150] : memref<8x8x512xf32, #tpu.memory_space<vmem>>, vector<1x8x512xf32>
    %322 = vector.shape_cast %321 : vector<1x8x512xf32> to vector<8x512xf32>
    %c0_151 = arith.constant 0 : index
    %c0_152 = arith.constant 0 : index
    %323 = vector.load %arg10[%c0_151, %c0_152] : memref<8x128xf32, #tpu.memory_space<vmem>>, vector<8x128xf32>
    %c0_153 = arith.constant 0 : index
    %c0_154 = arith.constant 0 : index
    %324 = vector.load %arg11[%c0_153, %c0_154] : memref<8x128xf32, #tpu.memory_space<vmem>>, vector<8x128xf32>
    %c0_155 = arith.constant 0 : index
    %c0_156 = arith.constant 0 : index
    %325 = vector.load %arg4[%c0_155, %c0_156] : memref<128x512xf32, #tpu.memory_space<vmem>>, vector<128x512xf32>
    %cst_157 = arith.constant dense<0.000000e+00> : vector<8x512xf32>
    %326 = tpu.matmul %323, %325, %cst_157 {dimension_numbers = #tpu.dot_dimension_numbers<[1], [0], [0], [1], [0, 0, 1, 1], [], []>} : vector<8x128xf32>, vector<128x512xf32>, vector<8x512xf32> -> vector<8x512xf32>
    %327 = arith.addf %322, %326 : vector<8x512xf32>
    %328 = vector.extract_strided_slice %327 {offsets = [0, 0], sizes = [8, 128], strides = [1, 1]} : vector<8x512xf32> to vector<8x128xf32>
    %329 = arith.negf %328 : vector<8x128xf32>
    %330 = math.exp %329 : vector<8x128xf32>
    %cst_158 = arith.constant 1.000000e+00 : f32
    %331 = vector.broadcast %cst_158 : f32 to vector<8x128xf32>
    %332 = arith.addf %331, %330 : vector<8x128xf32>
    %333 = arith.divf %331, %332 : vector<8x128xf32>
    %334 = vector.extract_strided_slice %327 {offsets = [0, 128], sizes = [8, 128], strides = [1, 1]} : vector<8x512xf32> to vector<8x128xf32>
    %335 = arith.negf %334 : vector<8x128xf32>
    %336 = math.exp %335 : vector<8x128xf32>
    %cst_159 = arith.constant 1.000000e+00 : f32
    %337 = vector.broadcast %cst_159 : f32 to vector<8x128xf32>
    %338 = arith.addf %337, %336 : vector<8x128xf32>
    %339 = arith.divf %337, %338 : vector<8x128xf32>
    %340 = vector.extract_strided_slice %327 {offsets = [0, 256], sizes = [8, 128], strides = [1, 1]} : vector<8x512xf32> to vector<8x128xf32>
    %341 = math.tanh %340 : vector<8x128xf32>
    %342 = vector.extract_strided_slice %327 {offsets = [0, 384], sizes = [8, 128], strides = [1, 1]} : vector<8x512xf32> to vector<8x128xf32>
    %343 = arith.negf %342 : vector<8x128xf32>
    %344 = math.exp %343 : vector<8x128xf32>
    %cst_160 = arith.constant 1.000000e+00 : f32
    %345 = vector.broadcast %cst_160 : f32 to vector<8x128xf32>
    %346 = arith.addf %345, %344 : vector<8x128xf32>
    %347 = arith.divf %345, %346 : vector<8x128xf32>
    %348 = arith.mulf %339, %324 : vector<8x128xf32>
    %349 = arith.mulf %333, %341 : vector<8x128xf32>
    %350 = arith.addf %348, %349 : vector<8x128xf32>
    %351 = math.tanh %350 : vector<8x128xf32>
    %352 = arith.mulf %347, %351 : vector<8x128xf32>
    %353 = vector.broadcast %319 : vector<8x1xf32> to vector<8x128xf32>
    %354 = arith.mulf %353, %352 : vector<8x128xf32>
    %cst_161 = arith.constant 1.000000e+00 : f32
    %355 = vector.broadcast %cst_161 : f32 to vector<8x1xf32>
    %356 = arith.subf %355, %319 : vector<8x1xf32>
    %c0_162 = arith.constant 0 : index
    %c0_163 = arith.constant 0 : index
    %357 = vector.load %arg10[%c0_162, %c0_163] : memref<8x128xf32, #tpu.memory_space<vmem>>, vector<8x128xf32>
    %358 = vector.broadcast %356 : vector<8x1xf32> to vector<8x128xf32>
    %359 = arith.mulf %358, %357 : vector<8x128xf32>
    %360 = arith.addf %354, %359 : vector<8x128xf32>
    %361 = vector.broadcast %319 : vector<8x1xf32> to vector<8x128xf32>
    %362 = arith.mulf %361, %350 : vector<8x128xf32>
    %cst_164 = arith.constant 1.000000e+00 : f32
    %363 = vector.broadcast %cst_164 : f32 to vector<8x1xf32>
    %364 = arith.subf %363, %319 : vector<8x1xf32>
    %c0_165 = arith.constant 0 : index
    %c0_166 = arith.constant 0 : index
    %365 = vector.load %arg11[%c0_165, %c0_166] : memref<8x128xf32, #tpu.memory_space<vmem>>, vector<8x128xf32>
    %366 = vector.broadcast %364 : vector<8x1xf32> to vector<8x128xf32>
    %367 = arith.mulf %366, %365 : vector<8x128xf32>
    %368 = arith.addf %362, %367 : vector<8x128xf32>
    %c0_167 = arith.constant 0 : index
    %c0_168 = arith.constant 0 : index
    %369 = vector.load %arg10[%c0_167, %c0_168] : memref<8x128xf32, #tpu.memory_space<vmem>>, vector<8x128xf32>
    tpu.vector_store %arg10[%c0_167, %c0_168], %360 {strides = array<i32>} : memref<8x128xf32, #tpu.memory_space<vmem>>, vector<8x128xf32>,
    %c0_169 = arith.constant 0 : index
    %c0_170 = arith.constant 0 : index
    %370 = vector.load %arg11[%c0_169, %c0_170] : memref<8x128xf32, #tpu.memory_space<vmem>>, vector<8x128xf32>
    tpu.vector_store %arg11[%c0_169, %c0_170], %368 {strides = array<i32>} : memref<8x128xf32, #tpu.memory_space<vmem>>, vector<8x128xf32>,
    %371 = vector.broadcast %319 : vector<8x1xf32> to vector<8x128xf32>
    %372 = arith.mulf %371, %360 : vector<8x128xf32>
    %373 = arith.index_cast %316 : i32 to index
    %c0_171 = arith.constant 0 : index
    %c128_172 = arith.constant 128 : index
    %374 = vector.load %arg5[%373, %c0_171, %c128_172] : memref<8x8x256xf32, #tpu.memory_space<vmem>>, vector<1x8x128xf32>
    %375 = vector.shape_cast %374 : vector<1x8x128xf32> to vector<8x128xf32>
    %376 = vector.shape_cast %372 : vector<8x128xf32> to vector<1x8x128xf32>
    tpu.vector_store %arg5[%373, %c0_171, %c128_172], %376 {strides = array<i32>} : memref<8x8x256xf32, #tpu.memory_space<vmem>>, vector<1x8x128xf32>,
    %c3_i32 = arith.constant 3 : i32
    %c1_i32_173 = arith.constant 1 : i32
    %377 = arith.muli %c3_i32, %c1_i32_173 : i32
    %c0_i32_174 = arith.constant 0 : i32
    %378 = arith.addi %c0_i32_174, %377 : i32
    %379 = arith.index_cast %378 : i32 to index
    %c0_175 = arith.constant 0 : index
    %c0_176 = arith.constant 0 : index
    %380 = vector.load %arg2[%379, %c0_175, %c0_176] : memref<8x8x1xf32, #tpu.memory_space<vmem>>, vector<1x8x1xf32>
    %381 = vector.shape_cast %380 : vector<1x8x1xf32> to vector<8x1xf32>
    %382 = arith.index_cast %378 : i32 to index
    %c0_177 = arith.constant 0 : index
    %c0_178 = arith.constant 0 : index
    %383 = vector.load %arg0[%382, %c0_177, %c0_178] : memref<8x8x512xf32, #tpu.memory_space<vmem>>, vector<1x8x512xf32>
    %384 = vector.shape_cast %383 : vector<1x8x512xf32> to vector<8x512xf32>
    %c0_179 = arith.constant 0 : index
    %c0_180 = arith.constant 0 : index
    %385 = vector.load %arg8[%c0_179, %c0_180] : memref<8x128xf32, #tpu.memory_space<vmem>>, vector<8x128xf32>
    %c0_181 = arith.constant 0 : index
    %c0_182 = arith.constant 0 : index
    %386 = vector.load %arg9[%c0_181, %c0_182] : memref<8x128xf32, #tpu.memory_space<vmem>>, vector<8x128xf32>
    %c0_183 = arith.constant 0 : index
    %c0_184 = arith.constant 0 : index
    %387 = vector.load %arg3[%c0_183, %c0_184] : memref<128x512xf32, #tpu.memory_space<vmem>>, vector<128x512xf32>
    %cst_185 = arith.constant dense<0.000000e+00> : vector<8x512xf32>
    %388 = tpu.matmul %385, %387, %cst_185 {dimension_numbers = #tpu.dot_dimension_numbers<[1], [0], [0], [1], [0, 0, 1, 1], [], []>} : vector<8x128xf32>, vector<128x512xf32>, vector<8x512xf32> -> vector<8x512xf32>
    %389 = arith.addf %384, %388 : vector<8x512xf32>
    %390 = vector.extract_strided_slice %389 {offsets = [0, 0], sizes = [8, 128], strides = [1, 1]} : vector<8x512xf32> to vector<8x128xf32>
    %391 = arith.negf %390 : vector<8x128xf32>
    %392 = math.exp %391 : vector<8x128xf32>
    %cst_186 = arith.constant 1.000000e+00 : f32
    %393 = vector.broadcast %cst_186 : f32 to vector<8x128xf32>
    %394 = arith.addf %393, %392 : vector<8x128xf32>
    %395 = arith.divf %393, %394 : vector<8x128xf32>
    %396 = vector.extract_strided_slice %389 {offsets = [0, 128], sizes = [8, 128], strides = [1, 1]} : vector<8x512xf32> to vector<8x128xf32>
    %397 = arith.negf %396 : vector<8x128xf32>
    %398 = math.exp %397 : vector<8x128xf32>
    %cst_187 = arith.constant 1.000000e+00 : f32
    %399 = vector.broadcast %cst_187 : f32 to vector<8x128xf32>
    %400 = arith.addf %399, %398 : vector<8x128xf32>
    %401 = arith.divf %399, %400 : vector<8x128xf32>
    %402 = vector.extract_strided_slice %389 {offsets = [0, 256], sizes = [8, 128], strides = [1, 1]} : vector<8x512xf32> to vector<8x128xf32>
    %403 = math.tanh %402 : vector<8x128xf32>
    %404 = vector.extract_strided_slice %389 {offsets = [0, 384], sizes = [8, 128], strides = [1, 1]} : vector<8x512xf32> to vector<8x128xf32>
    %405 = arith.negf %404 : vector<8x128xf32>
    %406 = math.exp %405 : vector<8x128xf32>
    %cst_188 = arith.constant 1.000000e+00 : f32
    %407 = vector.broadcast %cst_188 : f32 to vector<8x128xf32>
    %408 = arith.addf %407, %406 : vector<8x128xf32>
    %409 = arith.divf %407, %408 : vector<8x128xf32>
    %410 = arith.mulf %401, %386 : vector<8x128xf32>
    %411 = arith.mulf %395, %403 : vector<8x128xf32>
    %412 = arith.addf %410, %411 : vector<8x128xf32>
    %413 = math.tanh %412 : vector<8x128xf32>
    %414 = arith.mulf %409, %413 : vector<8x128xf32>
    %415 = vector.broadcast %381 : vector<8x1xf32> to vector<8x128xf32>
    %416 = arith.mulf %415, %414 : vector<8x128xf32>
    %cst_189 = arith.constant 1.000000e+00 : f32
    %417 = vector.broadcast %cst_189 : f32 to vector<8x1xf32>
    %418 = arith.subf %417, %381 : vector<8x1xf32>
    %c0_190 = arith.constant 0 : index
    %c0_191 = arith.constant 0 : index
    %419 = vector.load %arg8[%c0_190, %c0_191] : memref<8x128xf32, #tpu.memory_space<vmem>>, vector<8x128xf32>
    %420 = vector.broadcast %418 : vector<8x1xf32> to vector<8x128xf32>
    %421 = arith.mulf %420, %419 : vector<8x128xf32>
    %422 = arith.addf %416, %421 : vector<8x128xf32>
    %423 = vector.broadcast %381 : vector<8x1xf32> to vector<8x128xf32>
    %424 = arith.mulf %423, %412 : vector<8x128xf32>
    %cst_192 = arith.constant 1.000000e+00 : f32
    %425 = vector.broadcast %cst_192 : f32 to vector<8x1xf32>
    %426 = arith.subf %425, %381 : vector<8x1xf32>
    %c0_193 = arith.constant 0 : index
    %c0_194 = arith.constant 0 : index
    %427 = vector.load %arg9[%c0_193, %c0_194] : memref<8x128xf32, #tpu.memory_space<vmem>>, vector<8x128xf32>
    %428 = vector.broadcast %426 : vector<8x1xf32> to vector<8x128xf32>
    %429 = arith.mulf %428, %427 : vector<8x128xf32>
    %430 = arith.addf %424, %429 : vector<8x128xf32>
    %c0_195 = arith.constant 0 : index
    %c0_196 = arith.constant 0 : index
    %431 = vector.load %arg8[%c0_195, %c0_196] : memref<8x128xf32, #tpu.memory_space<vmem>>, vector<8x128xf32>
    tpu.vector_store %arg8[%c0_195, %c0_196], %422 {strides = array<i32>} : memref<8x128xf32, #tpu.memory_space<vmem>>, vector<8x128xf32>,
    %c0_197 = arith.constant 0 : index
    %c0_198 = arith.constant 0 : index
    %432 = vector.load %arg9[%c0_197, %c0_198] : memref<8x128xf32, #tpu.memory_space<vmem>>, vector<8x128xf32>
    tpu.vector_store %arg9[%c0_197, %c0_198], %430 {strides = array<i32>} : memref<8x128xf32, #tpu.memory_space<vmem>>, vector<8x128xf32>,
    %433 = vector.broadcast %381 : vector<8x1xf32> to vector<8x128xf32>
    %434 = arith.mulf %433, %422 : vector<8x128xf32>
    %435 = arith.index_cast %378 : i32 to index
    %c0_199 = arith.constant 0 : index
    %c0_200 = arith.constant 0 : index
    %436 = vector.load %arg5[%435, %c0_199, %c0_200] : memref<8x8x256xf32, #tpu.memory_space<vmem>>, vector<1x8x128xf32>
    %437 = vector.shape_cast %436 : vector<1x8x128xf32> to vector<8x128xf32>
    %438 = vector.shape_cast %434 : vector<8x128xf32> to vector<1x8x128xf32>
    tpu.vector_store %arg5[%435, %c0_199, %c0_200], %438 {strides = array<i32>} : memref<8x8x256xf32, #tpu.memory_space<vmem>>, vector<1x8x128xf32>,
    %c7_i32_201 = arith.constant 7 : i32
    %439 = arith.subi %c7_i32_201, %378 : i32
    %440 = arith.index_cast %439 : i32 to index
    %c0_202 = arith.constant 0 : index
    %c0_203 = arith.constant 0 : index
    %441 = vector.load %arg2[%440, %c0_202, %c0_203] : memref<8x8x1xf32, #tpu.memory_space<vmem>>, vector<1x8x1xf32>
    %442 = vector.shape_cast %441 : vector<1x8x1xf32> to vector<8x1xf32>
    %443 = arith.index_cast %439 : i32 to index
    %c0_204 = arith.constant 0 : index
    %c0_205 = arith.constant 0 : index
    %444 = vector.load %arg1[%443, %c0_204, %c0_205] : memref<8x8x512xf32, #tpu.memory_space<vmem>>, vector<1x8x512xf32>
    %445 = vector.shape_cast %444 : vector<1x8x512xf32> to vector<8x512xf32>
    %c0_206 = arith.constant 0 : index
    %c0_207 = arith.constant 0 : index
    %446 = vector.load %arg10[%c0_206, %c0_207] : memref<8x128xf32, #tpu.memory_space<vmem>>, vector<8x128xf32>
    %c0_208 = arith.constant 0 : index
    %c0_209 = arith.constant 0 : index
    %447 = vector.load %arg11[%c0_208, %c0_209] : memref<8x128xf32, #tpu.memory_space<vmem>>, vector<8x128xf32>
    %c0_210 = arith.constant 0 : index
    %c0_211 = arith.constant 0 : index
    %448 = vector.load %arg4[%c0_210, %c0_211] : memref<128x512xf32, #tpu.memory_space<vmem>>, vector<128x512xf32>
    %cst_212 = arith.constant dense<0.000000e+00> : vector<8x512xf32>
    %449 = tpu.matmul %446, %448, %cst_212 {dimension_numbers = #tpu.dot_dimension_numbers<[1], [0], [0], [1], [0, 0, 1, 1], [], []>} : vector<8x128xf32>, vector<128x512xf32>, vector<8x512xf32> -> vector<8x512xf32>
    %450 = arith.addf %445, %449 : vector<8x512xf32>
    %451 = vector.extract_strided_slice %450 {offsets = [0, 0], sizes = [8, 128], strides = [1, 1]} : vector<8x512xf32> to vector<8x128xf32>
    %452 = arith.negf %451 : vector<8x128xf32>
    %453 = math.exp %452 : vector<8x128xf32>
    %cst_213 = arith.constant 1.000000e+00 : f32
    %454 = vector.broadcast %cst_213 : f32 to vector<8x128xf32>
    %455 = arith.addf %454, %453 : vector<8x128xf32>
    %456 = arith.divf %454, %455 : vector<8x128xf32>
    %457 = vector.extract_strided_slice %450 {offsets = [0, 128], sizes = [8, 128], strides = [1, 1]} : vector<8x512xf32> to vector<8x128xf32>
    %458 = arith.negf %457 : vector<8x128xf32>
    %459 = math.exp %458 : vector<8x128xf32>
    %cst_214 = arith.constant 1.000000e+00 : f32
    %460 = vector.broadcast %cst_214 : f32 to vector<8x128xf32>
    %461 = arith.addf %460, %459 : vector<8x128xf32>
    %462 = arith.divf %460, %461 : vector<8x128xf32>
    %463 = vector.extract_strided_slice %450 {offsets = [0, 256], sizes = [8, 128], strides = [1, 1]} : vector<8x512xf32> to vector<8x128xf32>
    %464 = math.tanh %463 : vector<8x128xf32>
    %465 = vector.extract_strided_slice %450 {offsets = [0, 384], sizes = [8, 128], strides = [1, 1]} : vector<8x512xf32> to vector<8x128xf32>
    %466 = arith.negf %465 : vector<8x128xf32>
    %467 = math.exp %466 : vector<8x128xf32>
    %cst_215 = arith.constant 1.000000e+00 : f32
    %468 = vector.broadcast %cst_215 : f32 to vector<8x128xf32>
    %469 = arith.addf %468, %467 : vector<8x128xf32>
    %470 = arith.divf %468, %469 : vector<8x128xf32>
    %471 = arith.mulf %462, %447 : vector<8x128xf32>
    %472 = arith.mulf %456, %464 : vector<8x128xf32>
    %473 = arith.addf %471, %472 : vector<8x128xf32>
    %474 = math.tanh %473 : vector<8x128xf32>
    %475 = arith.mulf %470, %474 : vector<8x128xf32>
    %476 = vector.broadcast %442 : vector<8x1xf32> to vector<8x128xf32>
    %477 = arith.mulf %476, %475 : vector<8x128xf32>
    %cst_216 = arith.constant 1.000000e+00 : f32
    %478 = vector.broadcast %cst_216 : f32 to vector<8x1xf32>
    %479 = arith.subf %478, %442 : vector<8x1xf32>
    %c0_217 = arith.constant 0 : index
    %c0_218 = arith.constant 0 : index
    %480 = vector.load %arg10[%c0_217, %c0_218] : memref<8x128xf32, #tpu.memory_space<vmem>>, vector<8x128xf32>
    %481 = vector.broadcast %479 : vector<8x1xf32> to vector<8x128xf32>
    %482 = arith.mulf %481, %480 : vector<8x128xf32>
    %483 = arith.addf %477, %482 : vector<8x128xf32>
    %484 = vector.broadcast %442 : vector<8x1xf32> to vector<8x128xf32>
    %485 = arith.mulf %484, %473 : vector<8x128xf32>
    %cst_219 = arith.constant 1.000000e+00 : f32
    %486 = vector.broadcast %cst_219 : f32 to vector<8x1xf32>
    %487 = arith.subf %486, %442 : vector<8x1xf32>
    %c0_220 = arith.constant 0 : index
    %c0_221 = arith.constant 0 : index
    %488 = vector.load %arg11[%c0_220, %c0_221] : memref<8x128xf32, #tpu.memory_space<vmem>>, vector<8x128xf32>
    %489 = vector.broadcast %487 : vector<8x1xf32> to vector<8x128xf32>
    %490 = arith.mulf %489, %488 : vector<8x128xf32>
    %491 = arith.addf %485, %490 : vector<8x128xf32>
    %c0_222 = arith.constant 0 : index
    %c0_223 = arith.constant 0 : index
    %492 = vector.load %arg10[%c0_222, %c0_223] : memref<8x128xf32, #tpu.memory_space<vmem>>, vector<8x128xf32>
    tpu.vector_store %arg10[%c0_222, %c0_223], %483 {strides = array<i32>} : memref<8x128xf32, #tpu.memory_space<vmem>>, vector<8x128xf32>,
    %c0_224 = arith.constant 0 : index
    %c0_225 = arith.constant 0 : index
    %493 = vector.load %arg11[%c0_224, %c0_225] : memref<8x128xf32, #tpu.memory_space<vmem>>, vector<8x128xf32>
    tpu.vector_store %arg11[%c0_224, %c0_225], %491 {strides = array<i32>} : memref<8x128xf32, #tpu.memory_space<vmem>>, vector<8x128xf32>,
    %494 = vector.broadcast %442 : vector<8x1xf32> to vector<8x128xf32>
    %495 = arith.mulf %494, %483 : vector<8x128xf32>
    %496 = arith.index_cast %439 : i32 to index
    %c0_226 = arith.constant 0 : index
    %c128_227 = arith.constant 128 : index
    %497 = vector.load %arg5[%496, %c0_226, %c128_227] : memref<8x8x256xf32, #tpu.memory_space<vmem>>, vector<1x8x128xf32>
    %498 = vector.shape_cast %497 : vector<1x8x128xf32> to vector<8x128xf32>
    %499 = vector.shape_cast %495 : vector<8x128xf32> to vector<1x8x128xf32>
    tpu.vector_store %arg5[%496, %c0_226, %c128_227], %499 {strides = array<i32>} : memref<8x8x256xf32, #tpu.memory_space<vmem>>, vector<1x8x128xf32>,
    %c4_i32 = arith.constant 4 : i32
    %c1_i32_228 = arith.constant 1 : i32
    %500 = arith.muli %c4_i32, %c1_i32_228 : i32
    %c0_i32_229 = arith.constant 0 : i32
    %501 = arith.addi %c0_i32_229, %500 : i32
    %502 = arith.index_cast %501 : i32 to index
    %c0_230 = arith.constant 0 : index
    %c0_231 = arith.constant 0 : index
    %503 = vector.load %arg2[%502, %c0_230, %c0_231] : memref<8x8x1xf32, #tpu.memory_space<vmem>>, vector<1x8x1xf32>
    %504 = vector.shape_cast %503 : vector<1x8x1xf32> to vector<8x1xf32>
    %505 = arith.index_cast %501 : i32 to index
    %c0_232 = arith.constant 0 : index
    %c0_233 = arith.constant 0 : index
    %506 = vector.load %arg0[%505, %c0_232, %c0_233] : memref<8x8x512xf32, #tpu.memory_space<vmem>>, vector<1x8x512xf32>
    %507 = vector.shape_cast %506 : vector<1x8x512xf32> to vector<8x512xf32>
    %c0_234 = arith.constant 0 : index
    %c0_235 = arith.constant 0 : index
    %508 = vector.load %arg8[%c0_234, %c0_235] : memref<8x128xf32, #tpu.memory_space<vmem>>, vector<8x128xf32>
    %c0_236 = arith.constant 0 : index
    %c0_237 = arith.constant 0 : index
    %509 = vector.load %arg9[%c0_236, %c0_237] : memref<8x128xf32, #tpu.memory_space<vmem>>, vector<8x128xf32>
    %c0_238 = arith.constant 0 : index
    %c0_239 = arith.constant 0 : index
    %510 = vector.load %arg3[%c0_238, %c0_239] : memref<128x512xf32, #tpu.memory_space<vmem>>, vector<128x512xf32>
    %cst_240 = arith.constant dense<0.000000e+00> : vector<8x512xf32>
    %511 = tpu.matmul %508, %510, %cst_240 {dimension_numbers = #tpu.dot_dimension_numbers<[1], [0], [0], [1], [0, 0, 1, 1], [], []>} : vector<8x128xf32>, vector<128x512xf32>, vector<8x512xf32> -> vector<8x512xf32>
    %512 = arith.addf %507, %511 : vector<8x512xf32>
    %513 = vector.extract_strided_slice %512 {offsets = [0, 0], sizes = [8, 128], strides = [1, 1]} : vector<8x512xf32> to vector<8x128xf32>
    %514 = arith.negf %513 : vector<8x128xf32>
    %515 = math.exp %514 : vector<8x128xf32>
    %cst_241 = arith.constant 1.000000e+00 : f32
    %516 = vector.broadcast %cst_241 : f32 to vector<8x128xf32>
    %517 = arith.addf %516, %515 : vector<8x128xf32>
    %518 = arith.divf %516, %517 : vector<8x128xf32>
    %519 = vector.extract_strided_slice %512 {offsets = [0, 128], sizes = [8, 128], strides = [1, 1]} : vector<8x512xf32> to vector<8x128xf32>
    %520 = arith.negf %519 : vector<8x128xf32>
    %521 = math.exp %520 : vector<8x128xf32>
    %cst_242 = arith.constant 1.000000e+00 : f32
    %522 = vector.broadcast %cst_242 : f32 to vector<8x128xf32>
    %523 = arith.addf %522, %521 : vector<8x128xf32>
    %524 = arith.divf %522, %523 : vector<8x128xf32>
    %525 = vector.extract_strided_slice %512 {offsets = [0, 256], sizes = [8, 128], strides = [1, 1]} : vector<8x512xf32> to vector<8x128xf32>
    %526 = math.tanh %525 : vector<8x128xf32>
    %527 = vector.extract_strided_slice %512 {offsets = [0, 384], sizes = [8, 128], strides = [1, 1]} : vector<8x512xf32> to vector<8x128xf32>
    %528 = arith.negf %527 : vector<8x128xf32>
    %529 = math.exp %528 : vector<8x128xf32>
    %cst_243 = arith.constant 1.000000e+00 : f32
    %530 = vector.broadcast %cst_243 : f32 to vector<8x128xf32>
    %531 = arith.addf %530, %529 : vector<8x128xf32>
    %532 = arith.divf %530, %531 : vector<8x128xf32>
    %533 = arith.mulf %524, %509 : vector<8x128xf32>
    %534 = arith.mulf %518, %526 : vector<8x128xf32>
    %535 = arith.addf %533, %534 : vector<8x128xf32>
    %536 = math.tanh %535 : vector<8x128xf32>
    %537 = arith.mulf %532, %536 : vector<8x128xf32>
    %538 = vector.broadcast %504 : vector<8x1xf32> to vector<8x128xf32>
    %539 = arith.mulf %538, %537 : vector<8x128xf32>
    %cst_244 = arith.constant 1.000000e+00 : f32
    %540 = vector.broadcast %cst_244 : f32 to vector<8x1xf32>
    %541 = arith.subf %540, %504 : vector<8x1xf32>
    %c0_245 = arith.constant 0 : index
    %c0_246 = arith.constant 0 : index
    %542 = vector.load %arg8[%c0_245, %c0_246] : memref<8x128xf32, #tpu.memory_space<vmem>>, vector<8x128xf32>
    %543 = vector.broadcast %541 : vector<8x1xf32> to vector<8x128xf32>
    %544 = arith.mulf %543, %542 : vector<8x128xf32>
    %545 = arith.addf %539, %544 : vector<8x128xf32>
    %546 = vector.broadcast %504 : vector<8x1xf32> to vector<8x128xf32>
    %547 = arith.mulf %546, %535 : vector<8x128xf32>
    %cst_247 = arith.constant 1.000000e+00 : f32
    %548 = vector.broadcast %cst_247 : f32 to vector<8x1xf32>
    %549 = arith.subf %548, %504 : vector<8x1xf32>
    %c0_248 = arith.constant 0 : index
    %c0_249 = arith.constant 0 : index
    %550 = vector.load %arg9[%c0_248, %c0_249] : memref<8x128xf32, #tpu.memory_space<vmem>>, vector<8x128xf32>
    %551 = vector.broadcast %549 : vector<8x1xf32> to vector<8x128xf32>
    %552 = arith.mulf %551, %550 : vector<8x128xf32>
    %553 = arith.addf %547, %552 : vector<8x128xf32>
    %c0_250 = arith.constant 0 : index
    %c0_251 = arith.constant 0 : index
    %554 = vector.load %arg8[%c0_250, %c0_251] : memref<8x128xf32, #tpu.memory_space<vmem>>, vector<8x128xf32>
    tpu.vector_store %arg8[%c0_250, %c0_251], %545 {strides = array<i32>} : memref<8x128xf32, #tpu.memory_space<vmem>>, vector<8x128xf32>,
    %c0_252 = arith.constant 0 : index
    %c0_253 = arith.constant 0 : index
    %555 = vector.load %arg9[%c0_252, %c0_253] : memref<8x128xf32, #tpu.memory_space<vmem>>, vector<8x128xf32>
    tpu.vector_store %arg9[%c0_252, %c0_253], %553 {strides = array<i32>} : memref<8x128xf32, #tpu.memory_space<vmem>>, vector<8x128xf32>,
    %556 = vector.broadcast %504 : vector<8x1xf32> to vector<8x128xf32>
    %557 = arith.mulf %556, %545 : vector<8x128xf32>
    %558 = arith.index_cast %501 : i32 to index
    %c0_254 = arith.constant 0 : index
    %c0_255 = arith.constant 0 : index
    %559 = vector.load %arg5[%558, %c0_254, %c0_255] : memref<8x8x256xf32, #tpu.memory_space<vmem>>, vector<1x8x128xf32>
    %560 = vector.shape_cast %559 : vector<1x8x128xf32> to vector<8x128xf32>
    %561 = vector.shape_cast %557 : vector<8x128xf32> to vector<1x8x128xf32>
    tpu.vector_store %arg5[%558, %c0_254, %c0_255], %561 {strides = array<i32>} : memref<8x8x256xf32, #tpu.memory_space<vmem>>, vector<1x8x128xf32>,
    %c7_i32_256 = arith.constant 7 : i32
    %562 = arith.subi %c7_i32_256, %501 : i32
    %563 = arith.index_cast %562 : i32 to index
    %c0_257 = arith.constant 0 : index
    %c0_258 = arith.constant 0 : index
    %564 = vector.load %arg2[%563, %c0_257, %c0_258] : memref<8x8x1xf32, #tpu.memory_space<vmem>>, vector<1x8x1xf32>
    %565 = vector.shape_cast %564 : vector<1x8x1xf32> to vector<8x1xf32>
    %566 = arith.index_cast %562 : i32 to index
    %c0_259 = arith.constant 0 : index
    %c0_260 = arith.constant 0 : index
    %567 = vector.load %arg1[%566, %c0_259, %c0_260] : memref<8x8x512xf32, #tpu.memory_space<vmem>>, vector<1x8x512xf32>
    %568 = vector.shape_cast %567 : vector<1x8x512xf32> to vector<8x512xf32>
    %c0_261 = arith.constant 0 : index
    %c0_262 = arith.constant 0 : index
    %569 = vector.load %arg10[%c0_261, %c0_262] : memref<8x128xf32, #tpu.memory_space<vmem>>, vector<8x128xf32>
    %c0_263 = arith.constant 0 : index
    %c0_264 = arith.constant 0 : index
    %570 = vector.load %arg11[%c0_263, %c0_264] : memref<8x128xf32, #tpu.memory_space<vmem>>, vector<8x128xf32>
    %c0_265 = arith.constant 0 : index
    %c0_266 = arith.constant 0 : index
    %571 = vector.load %arg4[%c0_265, %c0_266] : memref<128x512xf32, #tpu.memory_space<vmem>>, vector<128x512xf32>
    %cst_267 = arith.constant dense<0.000000e+00> : vector<8x512xf32>
    %572 = tpu.matmul %569, %571, %cst_267 {dimension_numbers = #tpu.dot_dimension_numbers<[1], [0], [0], [1], [0, 0, 1, 1], [], []>} : vector<8x128xf32>, vector<128x512xf32>, vector<8x512xf32> -> vector<8x512xf32>
    %573 = arith.addf %568, %572 : vector<8x512xf32>
    %574 = vector.extract_strided_slice %573 {offsets = [0, 0], sizes = [8, 128], strides = [1, 1]} : vector<8x512xf32> to vector<8x128xf32>
    %575 = arith.negf %574 : vector<8x128xf32>
    %576 = math.exp %575 : vector<8x128xf32>
    %cst_268 = arith.constant 1.000000e+00 : f32
    %577 = vector.broadcast %cst_268 : f32 to vector<8x128xf32>
    %578 = arith.addf %577, %576 : vector<8x128xf32>
    %579 = arith.divf %577, %578 : vector<8x128xf32>
    %580 = vector.extract_strided_slice %573 {offsets = [0, 128], sizes = [8, 128], strides = [1, 1]} : vector<8x512xf32> to vector<8x128xf32>
    %581 = arith.negf %580 : vector<8x128xf32>
    %582 = math.exp %581 : vector<8x128xf32>
    %cst_269 = arith.constant 1.000000e+00 : f32
    %583 = vector.broadcast %cst_269 : f32 to vector<8x128xf32>
    %584 = arith.addf %583, %582 : vector<8x128xf32>
    %585 = arith.divf %583, %584 : vector<8x128xf32>
    %586 = vector.extract_strided_slice %573 {offsets = [0, 256], sizes = [8, 128], strides = [1, 1]} : vector<8x512xf32> to vector<8x128xf32>
    %587 = math.tanh %586 : vector<8x128xf32>
    %588 = vector.extract_strided_slice %573 {offsets = [0, 384], sizes = [8, 128], strides = [1, 1]} : vector<8x512xf32> to vector<8x128xf32>
    %589 = arith.negf %588 : vector<8x128xf32>
    %590 = math.exp %589 : vector<8x128xf32>
    %cst_270 = arith.constant 1.000000e+00 : f32
    %591 = vector.broadcast %cst_270 : f32 to vector<8x128xf32>
    %592 = arith.addf %591, %590 : vector<8x128xf32>
    %593 = arith.divf %591, %592 : vector<8x128xf32>
    %594 = arith.mulf %585, %570 : vector<8x128xf32>
    %595 = arith.mulf %579, %587 : vector<8x128xf32>
    %596 = arith.addf %594, %595 : vector<8x128xf32>
    %597 = math.tanh %596 : vector<8x128xf32>
    %598 = arith.mulf %593, %597 : vector<8x128xf32>
    %599 = vector.broadcast %565 : vector<8x1xf32> to vector<8x128xf32>
    %600 = arith.mulf %599, %598 : vector<8x128xf32>
    %cst_271 = arith.constant 1.000000e+00 : f32
    %601 = vector.broadcast %cst_271 : f32 to vector<8x1xf32>
    %602 = arith.subf %601, %565 : vector<8x1xf32>
    %c0_272 = arith.constant 0 : index
    %c0_273 = arith.constant 0 : index
    %603 = vector.load %arg10[%c0_272, %c0_273] : memref<8x128xf32, #tpu.memory_space<vmem>>, vector<8x128xf32>
    %604 = vector.broadcast %602 : vector<8x1xf32> to vector<8x128xf32>
    %605 = arith.mulf %604, %603 : vector<8x128xf32>
    %606 = arith.addf %600, %605 : vector<8x128xf32>
    %607 = vector.broadcast %565 : vector<8x1xf32> to vector<8x128xf32>
    %608 = arith.mulf %607, %596 : vector<8x128xf32>
    %cst_274 = arith.constant 1.000000e+00 : f32
    %609 = vector.broadcast %cst_274 : f32 to vector<8x1xf32>
    %610 = arith.subf %609, %565 : vector<8x1xf32>
    %c0_275 = arith.constant 0 : index
    %c0_276 = arith.constant 0 : index
    %611 = vector.load %arg11[%c0_275, %c0_276] : memref<8x128xf32, #tpu.memory_space<vmem>>, vector<8x128xf32>
    %612 = vector.broadcast %610 : vector<8x1xf32> to vector<8x128xf32>
    %613 = arith.mulf %612, %611 : vector<8x128xf32>
    %614 = arith.addf %608, %613 : vector<8x128xf32>
    %c0_277 = arith.constant 0 : index
    %c0_278 = arith.constant 0 : index
    %615 = vector.load %arg10[%c0_277, %c0_278] : memref<8x128xf32, #tpu.memory_space<vmem>>, vector<8x128xf32>
    tpu.vector_store %arg10[%c0_277, %c0_278], %606 {strides = array<i32>} : memref<8x128xf32, #tpu.memory_space<vmem>>, vector<8x128xf32>,
    %c0_279 = arith.constant 0 : index
    %c0_280 = arith.constant 0 : index
    %616 = vector.load %arg11[%c0_279, %c0_280] : memref<8x128xf32, #tpu.memory_space<vmem>>, vector<8x128xf32>
    tpu.vector_store %arg11[%c0_279, %c0_280], %614 {strides = array<i32>} : memref<8x128xf32, #tpu.memory_space<vmem>>, vector<8x128xf32>,
    %617 = vector.broadcast %565 : vector<8x1xf32> to vector<8x128xf32>
    %618 = arith.mulf %617, %606 : vector<8x128xf32>
    %619 = arith.index_cast %562 : i32 to index
    %c0_281 = arith.constant 0 : index
    %c128_282 = arith.constant 128 : index
    %620 = vector.load %arg5[%619, %c0_281, %c128_282] : memref<8x8x256xf32, #tpu.memory_space<vmem>>, vector<1x8x128xf32>
    %621 = vector.shape_cast %620 : vector<1x8x128xf32> to vector<8x128xf32>
    %622 = vector.shape_cast %618 : vector<8x128xf32> to vector<1x8x128xf32>
    tpu.vector_store %arg5[%619, %c0_281, %c128_282], %622 {strides = array<i32>} : memref<8x8x256xf32, #tpu.memory_space<vmem>>, vector<1x8x128xf32>,
    %c5_i32 = arith.constant 5 : i32
    %c1_i32_283 = arith.constant 1 : i32
    %623 = arith.muli %c5_i32, %c1_i32_283 : i32
    %c0_i32_284 = arith.constant 0 : i32
    %624 = arith.addi %c0_i32_284, %623 : i32
    %625 = arith.index_cast %624 : i32 to index
    %c0_285 = arith.constant 0 : index
    %c0_286 = arith.constant 0 : index
    %626 = vector.load %arg2[%625, %c0_285, %c0_286] : memref<8x8x1xf32, #tpu.memory_space<vmem>>, vector<1x8x1xf32>
    %627 = vector.shape_cast %626 : vector<1x8x1xf32> to vector<8x1xf32>
    %628 = arith.index_cast %624 : i32 to index
    %c0_287 = arith.constant 0 : index
    %c0_288 = arith.constant 0 : index
    %629 = vector.load %arg0[%628, %c0_287, %c0_288] : memref<8x8x512xf32, #tpu.memory_space<vmem>>, vector<1x8x512xf32>
    %630 = vector.shape_cast %629 : vector<1x8x512xf32> to vector<8x512xf32>
    %c0_289 = arith.constant 0 : index
    %c0_290 = arith.constant 0 : index
    %631 = vector.load %arg8[%c0_289, %c0_290] : memref<8x128xf32, #tpu.memory_space<vmem>>, vector<8x128xf32>
    %c0_291 = arith.constant 0 : index
    %c0_292 = arith.constant 0 : index
    %632 = vector.load %arg9[%c0_291, %c0_292] : memref<8x128xf32, #tpu.memory_space<vmem>>, vector<8x128xf32>
    %c0_293 = arith.constant 0 : index
    %c0_294 = arith.constant 0 : index
    %633 = vector.load %arg3[%c0_293, %c0_294] : memref<128x512xf32, #tpu.memory_space<vmem>>, vector<128x512xf32>
    %cst_295 = arith.constant dense<0.000000e+00> : vector<8x512xf32>
    %634 = tpu.matmul %631, %633, %cst_295 {dimension_numbers = #tpu.dot_dimension_numbers<[1], [0], [0], [1], [0, 0, 1, 1], [], []>} : vector<8x128xf32>, vector<128x512xf32>, vector<8x512xf32> -> vector<8x512xf32>
    %635 = arith.addf %630, %634 : vector<8x512xf32>
    %636 = vector.extract_strided_slice %635 {offsets = [0, 0], sizes = [8, 128], strides = [1, 1]} : vector<8x512xf32> to vector<8x128xf32>
    %637 = arith.negf %636 : vector<8x128xf32>
    %638 = math.exp %637 : vector<8x128xf32>
    %cst_296 = arith.constant 1.000000e+00 : f32
    %639 = vector.broadcast %cst_296 : f32 to vector<8x128xf32>
    %640 = arith.addf %639, %638 : vector<8x128xf32>
    %641 = arith.divf %639, %640 : vector<8x128xf32>
    %642 = vector.extract_strided_slice %635 {offsets = [0, 128], sizes = [8, 128], strides = [1, 1]} : vector<8x512xf32> to vector<8x128xf32>
    %643 = arith.negf %642 : vector<8x128xf32>
    %644 = math.exp %643 : vector<8x128xf32>
    %cst_297 = arith.constant 1.000000e+00 : f32
    %645 = vector.broadcast %cst_297 : f32 to vector<8x128xf32>
    %646 = arith.addf %645, %644 : vector<8x128xf32>
    %647 = arith.divf %645, %646 : vector<8x128xf32>
    %648 = vector.extract_strided_slice %635 {offsets = [0, 256], sizes = [8, 128], strides = [1, 1]} : vector<8x512xf32> to vector<8x128xf32>
    %649 = math.tanh %648 : vector<8x128xf32>
    %650 = vector.extract_strided_slice %635 {offsets = [0, 384], sizes = [8, 128], strides = [1, 1]} : vector<8x512xf32> to vector<8x128xf32>
    %651 = arith.negf %650 : vector<8x128xf32>
    %652 = math.exp %651 : vector<8x128xf32>
    %cst_298 = arith.constant 1.000000e+00 : f32
    %653 = vector.broadcast %cst_298 : f32 to vector<8x128xf32>
    %654 = arith.addf %653, %652 : vector<8x128xf32>
    %655 = arith.divf %653, %654 : vector<8x128xf32>
    %656 = arith.mulf %647, %632 : vector<8x128xf32>
    %657 = arith.mulf %641, %649 : vector<8x128xf32>
    %658 = arith.addf %656, %657 : vector<8x128xf32>
    %659 = math.tanh %658 : vector<8x128xf32>
    %660 = arith.mulf %655, %659 : vector<8x128xf32>
    %661 = vector.broadcast %627 : vector<8x1xf32> to vector<8x128xf32>
    %662 = arith.mulf %661, %660 : vector<8x128xf32>
    %cst_299 = arith.constant 1.000000e+00 : f32
    %663 = vector.broadcast %cst_299 : f32 to vector<8x1xf32>
    %664 = arith.subf %663, %627 : vector<8x1xf32>
    %c0_300 = arith.constant 0 : index
    %c0_301 = arith.constant 0 : index
    %665 = vector.load %arg8[%c0_300, %c0_301] : memref<8x128xf32, #tpu.memory_space<vmem>>, vector<8x128xf32>
    %666 = vector.broadcast %664 : vector<8x1xf32> to vector<8x128xf32>
    %667 = arith.mulf %666, %665 : vector<8x128xf32>
    %668 = arith.addf %662, %667 : vector<8x128xf32>
    %669 = vector.broadcast %627 : vector<8x1xf32> to vector<8x128xf32>
    %670 = arith.mulf %669, %658 : vector<8x128xf32>
    %cst_302 = arith.constant 1.000000e+00 : f32
    %671 = vector.broadcast %cst_302 : f32 to vector<8x1xf32>
    %672 = arith.subf %671, %627 : vector<8x1xf32>
    %c0_303 = arith.constant 0 : index
    %c0_304 = arith.constant 0 : index
    %673 = vector.load %arg9[%c0_303, %c0_304] : memref<8x128xf32, #tpu.memory_space<vmem>>, vector<8x128xf32>
    %674 = vector.broadcast %672 : vector<8x1xf32> to vector<8x128xf32>
    %675 = arith.mulf %674, %673 : vector<8x128xf32>
    %676 = arith.addf %670, %675 : vector<8x128xf32>
    %c0_305 = arith.constant 0 : index
    %c0_306 = arith.constant 0 : index
    %677 = vector.load %arg8[%c0_305, %c0_306] : memref<8x128xf32, #tpu.memory_space<vmem>>, vector<8x128xf32>
    tpu.vector_store %arg8[%c0_305, %c0_306], %668 {strides = array<i32>} : memref<8x128xf32, #tpu.memory_space<vmem>>, vector<8x128xf32>,
    %c0_307 = arith.constant 0 : index
    %c0_308 = arith.constant 0 : index
    %678 = vector.load %arg9[%c0_307, %c0_308] : memref<8x128xf32, #tpu.memory_space<vmem>>, vector<8x128xf32>
    tpu.vector_store %arg9[%c0_307, %c0_308], %676 {strides = array<i32>} : memref<8x128xf32, #tpu.memory_space<vmem>>, vector<8x128xf32>,
    %679 = vector.broadcast %627 : vector<8x1xf32> to vector<8x128xf32>
    %680 = arith.mulf %679, %668 : vector<8x128xf32>
    %681 = arith.index_cast %624 : i32 to index
    %c0_309 = arith.constant 0 : index
    %c0_310 = arith.constant 0 : index
    %682 = vector.load %arg5[%681, %c0_309, %c0_310] : memref<8x8x256xf32, #tpu.memory_space<vmem>>, vector<1x8x128xf32>
    %683 = vector.shape_cast %682 : vector<1x8x128xf32> to vector<8x128xf32>
    %684 = vector.shape_cast %680 : vector<8x128xf32> to vector<1x8x128xf32>
    tpu.vector_store %arg5[%681, %c0_309, %c0_310], %684 {strides = array<i32>} : memref<8x8x256xf32, #tpu.memory_space<vmem>>, vector<1x8x128xf32>,
    %c7_i32_311 = arith.constant 7 : i32
    %685 = arith.subi %c7_i32_311, %624 : i32
    %686 = arith.index_cast %685 : i32 to index
    %c0_312 = arith.constant 0 : index
    %c0_313 = arith.constant 0 : index
    %687 = vector.load %arg2[%686, %c0_312, %c0_313] : memref<8x8x1xf32, #tpu.memory_space<vmem>>, vector<1x8x1xf32>
    %688 = vector.shape_cast %687 : vector<1x8x1xf32> to vector<8x1xf32>
    %689 = arith.index_cast %685 : i32 to index
    %c0_314 = arith.constant 0 : index
    %c0_315 = arith.constant 0 : index
    %690 = vector.load %arg1[%689, %c0_314, %c0_315] : memref<8x8x512xf32, #tpu.memory_space<vmem>>, vector<1x8x512xf32>
    %691 = vector.shape_cast %690 : vector<1x8x512xf32> to vector<8x512xf32>
    %c0_316 = arith.constant 0 : index
    %c0_317 = arith.constant 0 : index
    %692 = vector.load %arg10[%c0_316, %c0_317] : memref<8x128xf32, #tpu.memory_space<vmem>>, vector<8x128xf32>
    %c0_318 = arith.constant 0 : index
    %c0_319 = arith.constant 0 : index
    %693 = vector.load %arg11[%c0_318, %c0_319] : memref<8x128xf32, #tpu.memory_space<vmem>>, vector<8x128xf32>
    %c0_320 = arith.constant 0 : index
    %c0_321 = arith.constant 0 : index
    %694 = vector.load %arg4[%c0_320, %c0_321] : memref<128x512xf32, #tpu.memory_space<vmem>>, vector<128x512xf32>
    %cst_322 = arith.constant dense<0.000000e+00> : vector<8x512xf32>
    %695 = tpu.matmul %692, %694, %cst_322 {dimension_numbers = #tpu.dot_dimension_numbers<[1], [0], [0], [1], [0, 0, 1, 1], [], []>} : vector<8x128xf32>, vector<128x512xf32>, vector<8x512xf32> -> vector<8x512xf32>
    %696 = arith.addf %691, %695 : vector<8x512xf32>
    %697 = vector.extract_strided_slice %696 {offsets = [0, 0], sizes = [8, 128], strides = [1, 1]} : vector<8x512xf32> to vector<8x128xf32>
    %698 = arith.negf %697 : vector<8x128xf32>
    %699 = math.exp %698 : vector<8x128xf32>
    %cst_323 = arith.constant 1.000000e+00 : f32
    %700 = vector.broadcast %cst_323 : f32 to vector<8x128xf32>
    %701 = arith.addf %700, %699 : vector<8x128xf32>
    %702 = arith.divf %700, %701 : vector<8x128xf32>
    %703 = vector.extract_strided_slice %696 {offsets = [0, 128], sizes = [8, 128], strides = [1, 1]} : vector<8x512xf32> to vector<8x128xf32>
    %704 = arith.negf %703 : vector<8x128xf32>
    %705 = math.exp %704 : vector<8x128xf32>
    %cst_324 = arith.constant 1.000000e+00 : f32
    %706 = vector.broadcast %cst_324 : f32 to vector<8x128xf32>
    %707 = arith.addf %706, %705 : vector<8x128xf32>
    %708 = arith.divf %706, %707 : vector<8x128xf32>
    %709 = vector.extract_strided_slice %696 {offsets = [0, 256], sizes = [8, 128], strides = [1, 1]} : vector<8x512xf32> to vector<8x128xf32>
    %710 = math.tanh %709 : vector<8x128xf32>
    %711 = vector.extract_strided_slice %696 {offsets = [0, 384], sizes = [8, 128], strides = [1, 1]} : vector<8x512xf32> to vector<8x128xf32>
    %712 = arith.negf %711 : vector<8x128xf32>
    %713 = math.exp %712 : vector<8x128xf32>
    %cst_325 = arith.constant 1.000000e+00 : f32
    %714 = vector.broadcast %cst_325 : f32 to vector<8x128xf32>
    %715 = arith.addf %714, %713 : vector<8x128xf32>
    %716 = arith.divf %714, %715 : vector<8x128xf32>
    %717 = arith.mulf %708, %693 : vector<8x128xf32>
    %718 = arith.mulf %702, %710 : vector<8x128xf32>
    %719 = arith.addf %717, %718 : vector<8x128xf32>
    %720 = math.tanh %719 : vector<8x128xf32>
    %721 = arith.mulf %716, %720 : vector<8x128xf32>
    %722 = vector.broadcast %688 : vector<8x1xf32> to vector<8x128xf32>
    %723 = arith.mulf %722, %721 : vector<8x128xf32>
    %cst_326 = arith.constant 1.000000e+00 : f32
    %724 = vector.broadcast %cst_326 : f32 to vector<8x1xf32>
    %725 = arith.subf %724, %688 : vector<8x1xf32>
    %c0_327 = arith.constant 0 : index
    %c0_328 = arith.constant 0 : index
    %726 = vector.load %arg10[%c0_327, %c0_328] : memref<8x128xf32, #tpu.memory_space<vmem>>, vector<8x128xf32>
    %727 = vector.broadcast %725 : vector<8x1xf32> to vector<8x128xf32>
    %728 = arith.mulf %727, %726 : vector<8x128xf32>
    %729 = arith.addf %723, %728 : vector<8x128xf32>
    %730 = vector.broadcast %688 : vector<8x1xf32> to vector<8x128xf32>
    %731 = arith.mulf %730, %719 : vector<8x128xf32>
    %cst_329 = arith.constant 1.000000e+00 : f32
    %732 = vector.broadcast %cst_329 : f32 to vector<8x1xf32>
    %733 = arith.subf %732, %688 : vector<8x1xf32>
    %c0_330 = arith.constant 0 : index
    %c0_331 = arith.constant 0 : index
    %734 = vector.load %arg11[%c0_330, %c0_331] : memref<8x128xf32, #tpu.memory_space<vmem>>, vector<8x128xf32>
    %735 = vector.broadcast %733 : vector<8x1xf32> to vector<8x128xf32>
    %736 = arith.mulf %735, %734 : vector<8x128xf32>
    %737 = arith.addf %731, %736 : vector<8x128xf32>
    %c0_332 = arith.constant 0 : index
    %c0_333 = arith.constant 0 : index
    %738 = vector.load %arg10[%c0_332, %c0_333] : memref<8x128xf32, #tpu.memory_space<vmem>>, vector<8x128xf32>
    tpu.vector_store %arg10[%c0_332, %c0_333], %729 {strides = array<i32>} : memref<8x128xf32, #tpu.memory_space<vmem>>, vector<8x128xf32>,
    %c0_334 = arith.constant 0 : index
    %c0_335 = arith.constant 0 : index
    %739 = vector.load %arg11[%c0_334, %c0_335] : memref<8x128xf32, #tpu.memory_space<vmem>>, vector<8x128xf32>
    tpu.vector_store %arg11[%c0_334, %c0_335], %737 {strides = array<i32>} : memref<8x128xf32, #tpu.memory_space<vmem>>, vector<8x128xf32>,
    %740 = vector.broadcast %688 : vector<8x1xf32> to vector<8x128xf32>
    %741 = arith.mulf %740, %729 : vector<8x128xf32>
    %742 = arith.index_cast %685 : i32 to index
    %c0_336 = arith.constant 0 : index
    %c128_337 = arith.constant 128 : index
    %743 = vector.load %arg5[%742, %c0_336, %c128_337] : memref<8x8x256xf32, #tpu.memory_space<vmem>>, vector<1x8x128xf32>
    %744 = vector.shape_cast %743 : vector<1x8x128xf32> to vector<8x128xf32>
    %745 = vector.shape_cast %741 : vector<8x128xf32> to vector<1x8x128xf32>
    tpu.vector_store %arg5[%742, %c0_336, %c128_337], %745 {strides = array<i32>} : memref<8x8x256xf32, #tpu.memory_space<vmem>>, vector<1x8x128xf32>,
    %c6_i32 = arith.constant 6 : i32
    %c1_i32_338 = arith.constant 1 : i32
    %746 = arith.muli %c6_i32, %c1_i32_338 : i32
    %c0_i32_339 = arith.constant 0 : i32
    %747 = arith.addi %c0_i32_339, %746 : i32
    %748 = arith.index_cast %747 : i32 to index
    %c0_340 = arith.constant 0 : index
    %c0_341 = arith.constant 0 : index
    %749 = vector.load %arg2[%748, %c0_340, %c0_341] : memref<8x8x1xf32, #tpu.memory_space<vmem>>, vector<1x8x1xf32>
    %750 = vector.shape_cast %749 : vector<1x8x1xf32> to vector<8x1xf32>
    %751 = arith.index_cast %747 : i32 to index
    %c0_342 = arith.constant 0 : index
    %c0_343 = arith.constant 0 : index
    %752 = vector.load %arg0[%751, %c0_342, %c0_343] : memref<8x8x512xf32, #tpu.memory_space<vmem>>, vector<1x8x512xf32>
    %753 = vector.shape_cast %752 : vector<1x8x512xf32> to vector<8x512xf32>
    %c0_344 = arith.constant 0 : index
    %c0_345 = arith.constant 0 : index
    %754 = vector.load %arg8[%c0_344, %c0_345] : memref<8x128xf32, #tpu.memory_space<vmem>>, vector<8x128xf32>
    %c0_346 = arith.constant 0 : index
    %c0_347 = arith.constant 0 : index
    %755 = vector.load %arg9[%c0_346, %c0_347] : memref<8x128xf32, #tpu.memory_space<vmem>>, vector<8x128xf32>
    %c0_348 = arith.constant 0 : index
    %c0_349 = arith.constant 0 : index
    %756 = vector.load %arg3[%c0_348, %c0_349] : memref<128x512xf32, #tpu.memory_space<vmem>>, vector<128x512xf32>
    %cst_350 = arith.constant dense<0.000000e+00> : vector<8x512xf32>
    %757 = tpu.matmul %754, %756, %cst_350 {dimension_numbers = #tpu.dot_dimension_numbers<[1], [0], [0], [1], [0, 0, 1, 1], [], []>} : vector<8x128xf32>, vector<128x512xf32>, vector<8x512xf32> -> vector<8x512xf32>
    %758 = arith.addf %753, %757 : vector<8x512xf32>
    %759 = vector.extract_strided_slice %758 {offsets = [0, 0], sizes = [8, 128], strides = [1, 1]} : vector<8x512xf32> to vector<8x128xf32>
    %760 = arith.negf %759 : vector<8x128xf32>
    %761 = math.exp %760 : vector<8x128xf32>
    %cst_351 = arith.constant 1.000000e+00 : f32
    %762 = vector.broadcast %cst_351 : f32 to vector<8x128xf32>
    %763 = arith.addf %762, %761 : vector<8x128xf32>
    %764 = arith.divf %762, %763 : vector<8x128xf32>
    %765 = vector.extract_strided_slice %758 {offsets = [0, 128], sizes = [8, 128], strides = [1, 1]} : vector<8x512xf32> to vector<8x128xf32>
    %766 = arith.negf %765 : vector<8x128xf32>
    %767 = math.exp %766 : vector<8x128xf32>
    %cst_352 = arith.constant 1.000000e+00 : f32
    %768 = vector.broadcast %cst_352 : f32 to vector<8x128xf32>
    %769 = arith.addf %768, %767 : vector<8x128xf32>
    %770 = arith.divf %768, %769 : vector<8x128xf32>
    %771 = vector.extract_strided_slice %758 {offsets = [0, 256], sizes = [8, 128], strides = [1, 1]} : vector<8x512xf32> to vector<8x128xf32>
    %772 = math.tanh %771 : vector<8x128xf32>
    %773 = vector.extract_strided_slice %758 {offsets = [0, 384], sizes = [8, 128], strides = [1, 1]} : vector<8x512xf32> to vector<8x128xf32>
    %774 = arith.negf %773 : vector<8x128xf32>
    %775 = math.exp %774 : vector<8x128xf32>
    %cst_353 = arith.constant 1.000000e+00 : f32
    %776 = vector.broadcast %cst_353 : f32 to vector<8x128xf32>
    %777 = arith.addf %776, %775 : vector<8x128xf32>
    %778 = arith.divf %776, %777 : vector<8x128xf32>
    %779 = arith.mulf %770, %755 : vector<8x128xf32>
    %780 = arith.mulf %764, %772 : vector<8x128xf32>
    %781 = arith.addf %779, %780 : vector<8x128xf32>
    %782 = math.tanh %781 : vector<8x128xf32>
    %783 = arith.mulf %778, %782 : vector<8x128xf32>
    %784 = vector.broadcast %750 : vector<8x1xf32> to vector<8x128xf32>
    %785 = arith.mulf %784, %783 : vector<8x128xf32>
    %cst_354 = arith.constant 1.000000e+00 : f32
    %786 = vector.broadcast %cst_354 : f32 to vector<8x1xf32>
    %787 = arith.subf %786, %750 : vector<8x1xf32>
    %c0_355 = arith.constant 0 : index
    %c0_356 = arith.constant 0 : index
    %788 = vector.load %arg8[%c0_355, %c0_356] : memref<8x128xf32, #tpu.memory_space<vmem>>, vector<8x128xf32>
    %789 = vector.broadcast %787 : vector<8x1xf32> to vector<8x128xf32>
    %790 = arith.mulf %789, %788 : vector<8x128xf32>
    %791 = arith.addf %785, %790 : vector<8x128xf32>
    %792 = vector.broadcast %750 : vector<8x1xf32> to vector<8x128xf32>
    %793 = arith.mulf %792, %781 : vector<8x128xf32>
    %cst_357 = arith.constant 1.000000e+00 : f32
    %794 = vector.broadcast %cst_357 : f32 to vector<8x1xf32>
    %795 = arith.subf %794, %750 : vector<8x1xf32>
    %c0_358 = arith.constant 0 : index
    %c0_359 = arith.constant 0 : index
    %796 = vector.load %arg9[%c0_358, %c0_359] : memref<8x128xf32, #tpu.memory_space<vmem>>, vector<8x128xf32>
    %797 = vector.broadcast %795 : vector<8x1xf32> to vector<8x128xf32>
    %798 = arith.mulf %797, %796 : vector<8x128xf32>
    %799 = arith.addf %793, %798 : vector<8x128xf32>
    %c0_360 = arith.constant 0 : index
    %c0_361 = arith.constant 0 : index
    %800 = vector.load %arg8[%c0_360, %c0_361] : memref<8x128xf32, #tpu.memory_space<vmem>>, vector<8x128xf32>
    tpu.vector_store %arg8[%c0_360, %c0_361], %791 {strides = array<i32>} : memref<8x128xf32, #tpu.memory_space<vmem>>, vector<8x128xf32>,
    %c0_362 = arith.constant 0 : index
    %c0_363 = arith.constant 0 : index
    %801 = vector.load %arg9[%c0_362, %c0_363] : memref<8x128xf32, #tpu.memory_space<vmem>>, vector<8x128xf32>
    tpu.vector_store %arg9[%c0_362, %c0_363], %799 {strides = array<i32>} : memref<8x128xf32, #tpu.memory_space<vmem>>, vector<8x128xf32>,
    %802 = vector.broadcast %750 : vector<8x1xf32> to vector<8x128xf32>
    %803 = arith.mulf %802, %791 : vector<8x128xf32>
    %804 = arith.index_cast %747 : i32 to index
    %c0_364 = arith.constant 0 : index
    %c0_365 = arith.constant 0 : index
    %805 = vector.load %arg5[%804, %c0_364, %c0_365] : memref<8x8x256xf32, #tpu.memory_space<vmem>>, vector<1x8x128xf32>
    %806 = vector.shape_cast %805 : vector<1x8x128xf32> to vector<8x128xf32>
    %807 = vector.shape_cast %803 : vector<8x128xf32> to vector<1x8x128xf32>
    tpu.vector_store %arg5[%804, %c0_364, %c0_365], %807 {strides = array<i32>} : memref<8x8x256xf32, #tpu.memory_space<vmem>>, vector<1x8x128xf32>,
    %c7_i32_366 = arith.constant 7 : i32
    %808 = arith.subi %c7_i32_366, %747 : i32
    %809 = arith.index_cast %808 : i32 to index
    %c0_367 = arith.constant 0 : index
    %c0_368 = arith.constant 0 : index
    %810 = vector.load %arg2[%809, %c0_367, %c0_368] : memref<8x8x1xf32, #tpu.memory_space<vmem>>, vector<1x8x1xf32>
    %811 = vector.shape_cast %810 : vector<1x8x1xf32> to vector<8x1xf32>
    %812 = arith.index_cast %808 : i32 to index
    %c0_369 = arith.constant 0 : index
    %c0_370 = arith.constant 0 : index
    %813 = vector.load %arg1[%812, %c0_369, %c0_370] : memref<8x8x512xf32, #tpu.memory_space<vmem>>, vector<1x8x512xf32>
    %814 = vector.shape_cast %813 : vector<1x8x512xf32> to vector<8x512xf32>
    %c0_371 = arith.constant 0 : index
    %c0_372 = arith.constant 0 : index
    %815 = vector.load %arg10[%c0_371, %c0_372] : memref<8x128xf32, #tpu.memory_space<vmem>>, vector<8x128xf32>
    %c0_373 = arith.constant 0 : index
    %c0_374 = arith.constant 0 : index
    %816 = vector.load %arg11[%c0_373, %c0_374] : memref<8x128xf32, #tpu.memory_space<vmem>>, vector<8x128xf32>
    %c0_375 = arith.constant 0 : index
    %c0_376 = arith.constant 0 : index
    %817 = vector.load %arg4[%c0_375, %c0_376] : memref<128x512xf32, #tpu.memory_space<vmem>>, vector<128x512xf32>
    %cst_377 = arith.constant dense<0.000000e+00> : vector<8x512xf32>
    %818 = tpu.matmul %815, %817, %cst_377 {dimension_numbers = #tpu.dot_dimension_numbers<[1], [0], [0], [1], [0, 0, 1, 1], [], []>} : vector<8x128xf32>, vector<128x512xf32>, vector<8x512xf32> -> vector<8x512xf32>
    %819 = arith.addf %814, %818 : vector<8x512xf32>
    %820 = vector.extract_strided_slice %819 {offsets = [0, 0], sizes = [8, 128], strides = [1, 1]} : vector<8x512xf32> to vector<8x128xf32>
    %821 = arith.negf %820 : vector<8x128xf32>
    %822 = math.exp %821 : vector<8x128xf32>
    %cst_378 = arith.constant 1.000000e+00 : f32
    %823 = vector.broadcast %cst_378 : f32 to vector<8x128xf32>
    %824 = arith.addf %823, %822 : vector<8x128xf32>
    %825 = arith.divf %823, %824 : vector<8x128xf32>
    %826 = vector.extract_strided_slice %819 {offsets = [0, 128], sizes = [8, 128], strides = [1, 1]} : vector<8x512xf32> to vector<8x128xf32>
    %827 = arith.negf %826 : vector<8x128xf32>
    %828 = math.exp %827 : vector<8x128xf32>
    %cst_379 = arith.constant 1.000000e+00 : f32
    %829 = vector.broadcast %cst_379 : f32 to vector<8x128xf32>
    %830 = arith.addf %829, %828 : vector<8x128xf32>
    %831 = arith.divf %829, %830 : vector<8x128xf32>
    %832 = vector.extract_strided_slice %819 {offsets = [0, 256], sizes = [8, 128], strides = [1, 1]} : vector<8x512xf32> to vector<8x128xf32>
    %833 = math.tanh %832 : vector<8x128xf32>
    %834 = vector.extract_strided_slice %819 {offsets = [0, 384], sizes = [8, 128], strides = [1, 1]} : vector<8x512xf32> to vector<8x128xf32>
    %835 = arith.negf %834 : vector<8x128xf32>
    %836 = math.exp %835 : vector<8x128xf32>
    %cst_380 = arith.constant 1.000000e+00 : f32
    %837 = vector.broadcast %cst_380 : f32 to vector<8x128xf32>
    %838 = arith.addf %837, %836 : vector<8x128xf32>
    %839 = arith.divf %837, %838 : vector<8x128xf32>
    %840 = arith.mulf %831, %816 : vector<8x128xf32>
    %841 = arith.mulf %825, %833 : vector<8x128xf32>
    %842 = arith.addf %840, %841 : vector<8x128xf32>
    %843 = math.tanh %842 : vector<8x128xf32>
    %844 = arith.mulf %839, %843 : vector<8x128xf32>
    %845 = vector.broadcast %811 : vector<8x1xf32> to vector<8x128xf32>
    %846 = arith.mulf %845, %844 : vector<8x128xf32>
    %cst_381 = arith.constant 1.000000e+00 : f32
    %847 = vector.broadcast %cst_381 : f32 to vector<8x1xf32>
    %848 = arith.subf %847, %811 : vector<8x1xf32>
    %c0_382 = arith.constant 0 : index
    %c0_383 = arith.constant 0 : index
    %849 = vector.load %arg10[%c0_382, %c0_383] : memref<8x128xf32, #tpu.memory_space<vmem>>, vector<8x128xf32>
    %850 = vector.broadcast %848 : vector<8x1xf32> to vector<8x128xf32>
    %851 = arith.mulf %850, %849 : vector<8x128xf32>
    %852 = arith.addf %846, %851 : vector<8x128xf32>
    %853 = vector.broadcast %811 : vector<8x1xf32> to vector<8x128xf32>
    %854 = arith.mulf %853, %842 : vector<8x128xf32>
    %cst_384 = arith.constant 1.000000e+00 : f32
    %855 = vector.broadcast %cst_384 : f32 to vector<8x1xf32>
    %856 = arith.subf %855, %811 : vector<8x1xf32>
    %c0_385 = arith.constant 0 : index
    %c0_386 = arith.constant 0 : index
    %857 = vector.load %arg11[%c0_385, %c0_386] : memref<8x128xf32, #tpu.memory_space<vmem>>, vector<8x128xf32>
    %858 = vector.broadcast %856 : vector<8x1xf32> to vector<8x128xf32>
    %859 = arith.mulf %858, %857 : vector<8x128xf32>
    %860 = arith.addf %854, %859 : vector<8x128xf32>
    %c0_387 = arith.constant 0 : index
    %c0_388 = arith.constant 0 : index
    %861 = vector.load %arg10[%c0_387, %c0_388] : memref<8x128xf32, #tpu.memory_space<vmem>>, vector<8x128xf32>
    tpu.vector_store %arg10[%c0_387, %c0_388], %852 {strides = array<i32>} : memref<8x128xf32, #tpu.memory_space<vmem>>, vector<8x128xf32>,
    %c0_389 = arith.constant 0 : index
    %c0_390 = arith.constant 0 : index
    %862 = vector.load %arg11[%c0_389, %c0_390] : memref<8x128xf32, #tpu.memory_space<vmem>>, vector<8x128xf32>
    tpu.vector_store %arg11[%c0_389, %c0_390], %860 {strides = array<i32>} : memref<8x128xf32, #tpu.memory_space<vmem>>, vector<8x128xf32>,
    %863 = vector.broadcast %811 : vector<8x1xf32> to vector<8x128xf32>
    %864 = arith.mulf %863, %852 : vector<8x128xf32>
    %865 = arith.index_cast %808 : i32 to index
    %c0_391 = arith.constant 0 : index
    %c128_392 = arith.constant 128 : index
    %866 = vector.load %arg5[%865, %c0_391, %c128_392] : memref<8x8x256xf32, #tpu.memory_space<vmem>>, vector<1x8x128xf32>
    %867 = vector.shape_cast %866 : vector<1x8x128xf32> to vector<8x128xf32>
    %868 = vector.shape_cast %864 : vector<8x128xf32> to vector<1x8x128xf32>
    tpu.vector_store %arg5[%865, %c0_391, %c128_392], %868 {strides = array<i32>} : memref<8x8x256xf32, #tpu.memory_space<vmem>>, vector<1x8x128xf32>,
    %c7_i32_393 = arith.constant 7 : i32
    %c1_i32_394 = arith.constant 1 : i32
    %869 = arith.muli %c7_i32_393, %c1_i32_394 : i32
    %c0_i32_395 = arith.constant 0 : i32
    %870 = arith.addi %c0_i32_395, %869 : i32
    %871 = arith.index_cast %870 : i32 to index
    %c0_396 = arith.constant 0 : index
    %c0_397 = arith.constant 0 : index
    %872 = vector.load %arg2[%871, %c0_396, %c0_397] : memref<8x8x1xf32, #tpu.memory_space<vmem>>, vector<1x8x1xf32>
    %873 = vector.shape_cast %872 : vector<1x8x1xf32> to vector<8x1xf32>
    %874 = arith.index_cast %870 : i32 to index
    %c0_398 = arith.constant 0 : index
    %c0_399 = arith.constant 0 : index
    %875 = vector.load %arg0[%874, %c0_398, %c0_399] : memref<8x8x512xf32, #tpu.memory_space<vmem>>, vector<1x8x512xf32>
    %876 = vector.shape_cast %875 : vector<1x8x512xf32> to vector<8x512xf32>
    %c0_400 = arith.constant 0 : index
    %c0_401 = arith.constant 0 : index
    %877 = vector.load %arg8[%c0_400, %c0_401] : memref<8x128xf32, #tpu.memory_space<vmem>>, vector<8x128xf32>
    %c0_402 = arith.constant 0 : index
    %c0_403 = arith.constant 0 : index
    %878 = vector.load %arg9[%c0_402, %c0_403] : memref<8x128xf32, #tpu.memory_space<vmem>>, vector<8x128xf32>
    %c0_404 = arith.constant 0 : index
    %c0_405 = arith.constant 0 : index
    %879 = vector.load %arg3[%c0_404, %c0_405] : memref<128x512xf32, #tpu.memory_space<vmem>>, vector<128x512xf32>
    %cst_406 = arith.constant dense<0.000000e+00> : vector<8x512xf32>
    %880 = tpu.matmul %877, %879, %cst_406 {dimension_numbers = #tpu.dot_dimension_numbers<[1], [0], [0], [1], [0, 0, 1, 1], [], []>} : vector<8x128xf32>, vector<128x512xf32>, vector<8x512xf32> -> vector<8x512xf32>
    %881 = arith.addf %876, %880 : vector<8x512xf32>
    %882 = vector.extract_strided_slice %881 {offsets = [0, 0], sizes = [8, 128], strides = [1, 1]} : vector<8x512xf32> to vector<8x128xf32>
    %883 = arith.negf %882 : vector<8x128xf32>
    %884 = math.exp %883 : vector<8x128xf32>
    %cst_407 = arith.constant 1.000000e+00 : f32
    %885 = vector.broadcast %cst_407 : f32 to vector<8x128xf32>
    %886 = arith.addf %885, %884 : vector<8x128xf32>
    %887 = arith.divf %885, %886 : vector<8x128xf32>
    %888 = vector.extract_strided_slice %881 {offsets = [0, 128], sizes = [8, 128], strides = [1, 1]} : vector<8x512xf32> to vector<8x128xf32>
    %889 = arith.negf %888 : vector<8x128xf32>
    %890 = math.exp %889 : vector<8x128xf32>
    %cst_408 = arith.constant 1.000000e+00 : f32
    %891 = vector.broadcast %cst_408 : f32 to vector<8x128xf32>
    %892 = arith.addf %891, %890 : vector<8x128xf32>
    %893 = arith.divf %891, %892 : vector<8x128xf32>
    %894 = vector.extract_strided_slice %881 {offsets = [0, 256], sizes = [8, 128], strides = [1, 1]} : vector<8x512xf32> to vector<8x128xf32>
    %895 = math.tanh %894 : vector<8x128xf32>
    %896 = vector.extract_strided_slice %881 {offsets = [0, 384], sizes = [8, 128], strides = [1, 1]} : vector<8x512xf32> to vector<8x128xf32>
    %897 = arith.negf %896 : vector<8x128xf32>
    %898 = math.exp %897 : vector<8x128xf32>
    %cst_409 = arith.constant 1.000000e+00 : f32
    %899 = vector.broadcast %cst_409 : f32 to vector<8x128xf32>
    %900 = arith.addf %899, %898 : vector<8x128xf32>
    %901 = arith.divf %899, %900 : vector<8x128xf32>
    %902 = arith.mulf %893, %878 : vector<8x128xf32>
    %903 = arith.mulf %887, %895 : vector<8x128xf32>
    %904 = arith.addf %902, %903 : vector<8x128xf32>
    %905 = math.tanh %904 : vector<8x128xf32>
    %906 = arith.mulf %901, %905 : vector<8x128xf32>
    %907 = vector.broadcast %873 : vector<8x1xf32> to vector<8x128xf32>
    %908 = arith.mulf %907, %906 : vector<8x128xf32>
    %cst_410 = arith.constant 1.000000e+00 : f32
    %909 = vector.broadcast %cst_410 : f32 to vector<8x1xf32>
    %910 = arith.subf %909, %873 : vector<8x1xf32>
    %c0_411 = arith.constant 0 : index
    %c0_412 = arith.constant 0 : index
    %911 = vector.load %arg8[%c0_411, %c0_412] : memref<8x128xf32, #tpu.memory_space<vmem>>, vector<8x128xf32>
    %912 = vector.broadcast %910 : vector<8x1xf32> to vector<8x128xf32>
    %913 = arith.mulf %912, %911 : vector<8x128xf32>
    %914 = arith.addf %908, %913 : vector<8x128xf32>
    %915 = vector.broadcast %873 : vector<8x1xf32> to vector<8x128xf32>
    %916 = arith.mulf %915, %904 : vector<8x128xf32>
    %cst_413 = arith.constant 1.000000e+00 : f32
    %917 = vector.broadcast %cst_413 : f32 to vector<8x1xf32>
    %918 = arith.subf %917, %873 : vector<8x1xf32>
    %c0_414 = arith.constant 0 : index
    %c0_415 = arith.constant 0 : index
    %919 = vector.load %arg9[%c0_414, %c0_415] : memref<8x128xf32, #tpu.memory_space<vmem>>, vector<8x128xf32>
    %920 = vector.broadcast %918 : vector<8x1xf32> to vector<8x128xf32>
    %921 = arith.mulf %920, %919 : vector<8x128xf32>
    %922 = arith.addf %916, %921 : vector<8x128xf32>
    %c0_416 = arith.constant 0 : index
    %c0_417 = arith.constant 0 : index
    %923 = vector.load %arg8[%c0_416, %c0_417] : memref<8x128xf32, #tpu.memory_space<vmem>>, vector<8x128xf32>
    tpu.vector_store %arg8[%c0_416, %c0_417], %914 {strides = array<i32>} : memref<8x128xf32, #tpu.memory_space<vmem>>, vector<8x128xf32>,
    %c0_418 = arith.constant 0 : index
    %c0_419 = arith.constant 0 : index
    %924 = vector.load %arg9[%c0_418, %c0_419] : memref<8x128xf32, #tpu.memory_space<vmem>>, vector<8x128xf32>
    tpu.vector_store %arg9[%c0_418, %c0_419], %922 {strides = array<i32>} : memref<8x128xf32, #tpu.memory_space<vmem>>, vector<8x128xf32>,
    %925 = vector.broadcast %873 : vector<8x1xf32> to vector<8x128xf32>
    %926 = arith.mulf %925, %914 : vector<8x128xf32>
    %927 = arith.index_cast %870 : i32 to index
    %c0_420 = arith.constant 0 : index
    %c0_421 = arith.constant 0 : index
    %928 = vector.load %arg5[%927, %c0_420, %c0_421] : memref<8x8x256xf32, #tpu.memory_space<vmem>>, vector<1x8x128xf32>
    %929 = vector.shape_cast %928 : vector<1x8x128xf32> to vector<8x128xf32>
    %930 = vector.shape_cast %926 : vector<8x128xf32> to vector<1x8x128xf32>
    tpu.vector_store %arg5[%927, %c0_420, %c0_421], %930 {strides = array<i32>} : memref<8x8x256xf32, #tpu.memory_space<vmem>>, vector<1x8x128xf32>,
    %c7_i32_422 = arith.constant 7 : i32
    %931 = arith.subi %c7_i32_422, %870 : i32
    %932 = arith.index_cast %931 : i32 to index
    %c0_423 = arith.constant 0 : index
    %c0_424 = arith.constant 0 : index
    %933 = vector.load %arg2[%932, %c0_423, %c0_424] : memref<8x8x1xf32, #tpu.memory_space<vmem>>, vector<1x8x1xf32>
    %934 = vector.shape_cast %933 : vector<1x8x1xf32> to vector<8x1xf32>
    %935 = arith.index_cast %931 : i32 to index
    %c0_425 = arith.constant 0 : index
    %c0_426 = arith.constant 0 : index
    %936 = vector.load %arg1[%935, %c0_425, %c0_426] : memref<8x8x512xf32, #tpu.memory_space<vmem>>, vector<1x8x512xf32>
    %937 = vector.shape_cast %936 : vector<1x8x512xf32> to vector<8x512xf32>
    %c0_427 = arith.constant 0 : index
    %c0_428 = arith.constant 0 : index
    %938 = vector.load %arg10[%c0_427, %c0_428] : memref<8x128xf32, #tpu.memory_space<vmem>>, vector<8x128xf32>
    %c0_429 = arith.constant 0 : index
    %c0_430 = arith.constant 0 : index
    %939 = vector.load %arg11[%c0_429, %c0_430] : memref<8x128xf32, #tpu.memory_space<vmem>>, vector<8x128xf32>
    %c0_431 = arith.constant 0 : index
    %c0_432 = arith.constant 0 : index
    %940 = vector.load %arg4[%c0_431, %c0_432] : memref<128x512xf32, #tpu.memory_space<vmem>>, vector<128x512xf32>
    %cst_433 = arith.constant dense<0.000000e+00> : vector<8x512xf32>
    %941 = tpu.matmul %938, %940, %cst_433 {dimension_numbers = #tpu.dot_dimension_numbers<[1], [0], [0], [1], [0, 0, 1, 1], [], []>} : vector<8x128xf32>, vector<128x512xf32>, vector<8x512xf32> -> vector<8x512xf32>
    %942 = arith.addf %937, %941 : vector<8x512xf32>
    %943 = vector.extract_strided_slice %942 {offsets = [0, 0], sizes = [8, 128], strides = [1, 1]} : vector<8x512xf32> to vector<8x128xf32>
    %944 = arith.negf %943 : vector<8x128xf32>
    %945 = math.exp %944 : vector<8x128xf32>
    %cst_434 = arith.constant 1.000000e+00 : f32
    %946 = vector.broadcast %cst_434 : f32 to vector<8x128xf32>
    %947 = arith.addf %946, %945 : vector<8x128xf32>
    %948 = arith.divf %946, %947 : vector<8x128xf32>
    %949 = vector.extract_strided_slice %942 {offsets = [0, 128], sizes = [8, 128], strides = [1, 1]} : vector<8x512xf32> to vector<8x128xf32>
    %950 = arith.negf %949 : vector<8x128xf32>
    %951 = math.exp %950 : vector<8x128xf32>
    %cst_435 = arith.constant 1.000000e+00 : f32
    %952 = vector.broadcast %cst_435 : f32 to vector<8x128xf32>
    %953 = arith.addf %952, %951 : vector<8x128xf32>
    %954 = arith.divf %952, %953 : vector<8x128xf32>
    %955 = vector.extract_strided_slice %942 {offsets = [0, 256], sizes = [8, 128], strides = [1, 1]} : vector<8x512xf32> to vector<8x128xf32>
    %956 = math.tanh %955 : vector<8x128xf32>
    %957 = vector.extract_strided_slice %942 {offsets = [0, 384], sizes = [8, 128], strides = [1, 1]} : vector<8x512xf32> to vector<8x128xf32>
    %958 = arith.negf %957 : vector<8x128xf32>
    %959 = math.exp %958 : vector<8x128xf32>
    %cst_436 = arith.constant 1.000000e+00 : f32
    %960 = vector.broadcast %cst_436 : f32 to vector<8x128xf32>
    %961 = arith.addf %960, %959 : vector<8x128xf32>
    %962 = arith.divf %960, %961 : vector<8x128xf32>
    %963 = arith.mulf %954, %939 : vector<8x128xf32>
    %964 = arith.mulf %948, %956 : vector<8x128xf32>
    %965 = arith.addf %963, %964 : vector<8x128xf32>
    %966 = math.tanh %965 : vector<8x128xf32>
    %967 = arith.mulf %962, %966 : vector<8x128xf32>
    %968 = vector.broadcast %934 : vector<8x1xf32> to vector<8x128xf32>
    %969 = arith.mulf %968, %967 : vector<8x128xf32>
    %cst_437 = arith.constant 1.000000e+00 : f32
    %970 = vector.broadcast %cst_437 : f32 to vector<8x1xf32>
    %971 = arith.subf %970, %934 : vector<8x1xf32>
    %c0_438 = arith.constant 0 : index
    %c0_439 = arith.constant 0 : index
    %972 = vector.load %arg10[%c0_438, %c0_439] : memref<8x128xf32, #tpu.memory_space<vmem>>, vector<8x128xf32>
    %973 = vector.broadcast %971 : vector<8x1xf32> to vector<8x128xf32>
    %974 = arith.mulf %973, %972 : vector<8x128xf32>
    %975 = arith.addf %969, %974 : vector<8x128xf32>
    %976 = vector.broadcast %934 : vector<8x1xf32> to vector<8x128xf32>
    %977 = arith.mulf %976, %965 : vector<8x128xf32>
    %cst_440 = arith.constant 1.000000e+00 : f32
    %978 = vector.broadcast %cst_440 : f32 to vector<8x1xf32>
    %979 = arith.subf %978, %934 : vector<8x1xf32>
    %c0_441 = arith.constant 0 : index
    %c0_442 = arith.constant 0 : index
    %980 = vector.load %arg11[%c0_441, %c0_442] : memref<8x128xf32, #tpu.memory_space<vmem>>, vector<8x128xf32>
    %981 = vector.broadcast %979 : vector<8x1xf32> to vector<8x128xf32>
    %982 = arith.mulf %981, %980 : vector<8x128xf32>
    %983 = arith.addf %977, %982 : vector<8x128xf32>
    %c0_443 = arith.constant 0 : index
    %c0_444 = arith.constant 0 : index
    %984 = vector.load %arg10[%c0_443, %c0_444] : memref<8x128xf32, #tpu.memory_space<vmem>>, vector<8x128xf32>
    tpu.vector_store %arg10[%c0_443, %c0_444], %975 {strides = array<i32>} : memref<8x128xf32, #tpu.memory_space<vmem>>, vector<8x128xf32>,
    %c0_445 = arith.constant 0 : index
    %c0_446 = arith.constant 0 : index
    %985 = vector.load %arg11[%c0_445, %c0_446] : memref<8x128xf32, #tpu.memory_space<vmem>>, vector<8x128xf32>
    tpu.vector_store %arg11[%c0_445, %c0_446], %983 {strides = array<i32>} : memref<8x128xf32, #tpu.memory_space<vmem>>, vector<8x128xf32>,
    %986 = vector.broadcast %934 : vector<8x1xf32> to vector<8x128xf32>
    %987 = arith.mulf %986, %975 : vector<8x128xf32>
    %988 = arith.index_cast %931 : i32 to index
    %c0_447 = arith.constant 0 : index
    %c128_448 = arith.constant 128 : index
    %989 = vector.load %arg5[%988, %c0_447, %c128_448] : memref<8x8x256xf32, #tpu.memory_space<vmem>>, vector<1x8x128xf32>
    %990 = vector.shape_cast %989 : vector<1x8x128xf32> to vector<8x128xf32>
    %991 = vector.shape_cast %987 : vector<8x128xf32> to vector<1x8x128xf32>
    tpu.vector_store %arg5[%988, %c0_447, %c128_448], %991 {strides = array<i32>} : memref<8x8x256xf32, #tpu.memory_space<vmem>>, vector<1x8x128xf32>,
    %c8_i32 = arith.constant 8 : i32
    %c0_449 = arith.constant 0 : index
    %c0_450 = arith.constant 0 : index
    %992 = vector.load %arg8[%c0_449, %c0_450] : memref<8x128xf32, #tpu.memory_space<vmem>>, vector<8x128xf32>
    %c0_451 = arith.constant 0 : index
    %c0_452 = arith.constant 0 : index
    %993 = vector.load %arg6[%c0_451, %c0_452] : memref<8x256xf32, #tpu.memory_space<vmem>>, vector<8x128xf32>
    tpu.vector_store %arg6[%c0_451, %c0_452], %992 {strides = array<i32>} : memref<8x256xf32, #tpu.memory_space<vmem>>, vector<8x128xf32>,
    %c0_453 = arith.constant 0 : index
    %c0_454 = arith.constant 0 : index
    %994 = vector.load %arg10[%c0_453, %c0_454] : memref<8x128xf32, #tpu.memory_space<vmem>>, vector<8x128xf32>
    %c0_455 = arith.constant 0 : index
    %c128_456 = arith.constant 128 : index
    %995 = vector.load %arg6[%c0_455, %c128_456] : memref<8x256xf32, #tpu.memory_space<vmem>>, vector<8x128xf32>
    tpu.vector_store %arg6[%c0_455, %c128_456], %994 {strides = array<i32>} : memref<8x256xf32, #tpu.memory_space<vmem>>, vector<8x128xf32>,
    %c0_457 = arith.constant 0 : index
    %c0_458 = arith.constant 0 : index
    %996 = vector.load %arg9[%c0_457, %c0_458] : memref<8x128xf32, #tpu.memory_space<vmem>>, vector<8x128xf32>
    %c0_459 = arith.constant 0 : index
    %c0_460 = arith.constant 0 : index
    %997 = vector.load %arg7[%c0_459, %c0_460] : memref<8x256xf32, #tpu.memory_space<vmem>>, vector<8x128xf32>
    tpu.vector_store %arg7[%c0_459, %c0_460], %996 {strides = array<i32>} : memref<8x256xf32, #tpu.memory_space<vmem>>, vector<8x128xf32>,
    %c0_461 = arith.constant 0 : index
    %c0_462 = arith.constant 0 : index
    %998 = vector.load %arg11[%c0_461, %c0_462] : memref<8x128xf32, #tpu.memory_space<vmem>>, vector<8x128xf32>
    %c0_463 = arith.constant 0 : index
    %c128_464 = arith.constant 128 : index
    %999 = vector.load %arg7[%c0_463, %c128_464] : memref<8x256xf32, #tpu.memory_space<vmem>>, vector<8x128xf32>
    tpu.vector_store %arg7[%c0_463, %c128_464], %998 {strides = array<i32>} : memref<8x256xf32, #tpu.memory_space<vmem>>, vector<8x128xf32>,
    return
  }
}

</mosaic_0001>

<llo_original>
// kernel: tpu_custom_call.1
$region0: #{tpu_custom_call.1}
  #allocation0 [shape = 'u32[]', space=smem, size = 0x4, offset = 0x4, fixed_abs, tag = 'smem constant byte address 0x4 - core index']
  #allocation1 [shape = 'u32[144,128]{1,0:T(1,128)}', space=vmem, size = 0x12000, scoped, tag = 'internal scratch']
  #allocation2 [shape = 'f32[8,128]{1,0:T(8,128)}', space=vmem, size = 0x1000, scoped, tag = 'scratch operand']
  #allocation3 [shape = 'f32[8,128]{1,0:T(8,128)}', space=vmem, size = 0x1000, scoped, tag = 'scratch operand']
  #allocation4 [shape = 'f32[8,128]{1,0:T(8,128)}', space=vmem, size = 0x1000, scoped, tag = 'scratch operand']
  #allocation5 [shape = 'f32[8,128]{1,0:T(8,128)}', space=vmem, size = 0x1000, scoped, tag = 'scratch operand']
  %s0 = inlined_call_operand.hbm [shape: f32[8,8,512], index: 0, kind: input, shape index: {}]
  %s1 = inlined_call_operand.hbm [shape: f32[8,8,512], index: 1, kind: input, shape index: {}]
  %s2 = inlined_call_operand.vmem [shape: f32[8,8,1], index: 2, kind: input, shape index: {}]
  %s3 = inlined_call_operand.hbm [shape: f32[128,512], index: 3, kind: input, shape index: {}]
  %s4 = inlined_call_operand.hbm [shape: f32[128,512], index: 4, kind: input, shape index: {}]
  %s5 = inlined_call_operand.hbm [shape: f32[8,8,256], index: 5, kind: output, shape index: {0}]
  %s6 = inlined_call_operand.hbm [shape: f32[8,256], index: 6, kind: output, shape index: {1}]
  %s7 = inlined_call_operand.hbm [shape: f32[8,256], index: 7, kind: output, shape index: {2}]
  %8 = xla_tuple %s5, %s6, %s7
  %s9 = sld [smem:[#allocation0]]
  $region62: #{tpu_custom_call.1} parent=0
    _
  %s11 = ssub.s32 1, %s9
  %s12 = scalar_select 0, %s11, %s9
  $region1: #{tpu_custom_call.1} parent=0
    #allocation6 [shape = 'u8[131072]{0}', space=vmem, size = 0x20000, scoped, tag = 'input window, operand 0, single buffered']
    #allocation7 [shape = 's32[1]{0}', space=sflag, size = 0x4, scoped, tag = 'scoped memory for tpu_custom_call.1']
    #allocation8 [shape = 's32[1]{0}', space=sflag, size = 0x4, scoped, tag = 'scoped memory for tpu_custom_call.1']
    #allocation9 [shape = 'u8[131072]{0}', space=vmem, size = 0x20000, scoped, tag = 'input window, operand 1, single buffered']
    #allocation10 [shape = 's32[1]{0}', space=sflag, size = 0x4, scoped, tag = 'scoped memory for tpu_custom_call.1']
    #allocation11 [shape = 'u8[262144]{0}', space=vmem, size = 0x40000, scoped, tag = 'input window, operand 3, single buffered']
    #allocation12 [shape = 'u8[262144]{0}', space=vmem, size = 0x40000, scoped, tag = 'input window, operand 4, single buffered']
    #allocation13 [shape = 's32[1]{0}', space=sflag, size = 0x4, scoped, tag = 'scoped memory for tpu_custom_call.1']
    #allocation14 [shape = 'u8[65536]{0}', space=vmem, size = 0x10000, scoped, tag = 'output window, operand 0, single buffered']
    #allocation15 [shape = 'u8[8192]{0}', space=vmem, size = 0x2000, scoped, tag = 'output window, operand 1, single buffered']
    #allocation16 [shape = 's32[1]{0}', space=sflag, size = 0x4, scoped, tag = 'scoped memory for tpu_custom_call.1']
    #allocation17 [shape = 'u8[8192]{0}', space=vmem, size = 0x2000, scoped, tag = 'output window, operand 2, single buffered']
    %13 = vsyncpa [#allocation7], 0
    %14 = vsyncpa [#allocation10], 0
    %15 = vsyncpa [#allocation13], 0
    %16 = vsyncpa [#allocation8], 0
    %17 = vsyncpa [#allocation16], 0
    // Predicated region
    $region2: #{tpu_custom_call.1} parent=1 // pred_check
      _
    $region3: #{tpu_custom_call.1} parent=1 // pred_check_branch
      %19 = sbr.rel (0) target = $region5
    $region4: #{tpu_custom_call.1} parent=1 // pred_region
      %s21 = ssub.s32 4096, 4096
      %22 = vsyncadd [#allocation7], %s21
      %s23 = sshll.u32 [#allocation6], 4
      %s24 = int_to_ptr.vmem [resolvable:$true] %s23
      %29 = dma.hbm_to_vmem [thread:$0]  %s0, 4096, %s24, [#allocation7], 512, 512, 32
    $region5: #{tpu_custom_call.1} parent=1 // pred_fallthru
      _
    // Predicated region
    $region6: #{tpu_custom_call.1} parent=1 // pred_check
      _
    $region7: #{tpu_custom_call.1} parent=1 // pred_check_branch
      %31 = sbr.rel (0) target = $region9
    $region8: #{tpu_custom_call.1} parent=1 // pred_region
      %s33 = ssub.s32 4096, 4096
      %34 = vsyncadd [#allocation10], %s33
      %s35 = sshll.u32 [#allocation9], 4
      %s36 = int_to_ptr.vmem [resolvable:$true] %s35
      %41 = dma.hbm_to_vmem [thread:$0]  %s1, 4096, %s36, [#allocation10], 512, 512, 32
    $region9: #{tpu_custom_call.1} parent=1 // pred_fallthru
      _
    // Predicated region
    $region10: #{tpu_custom_call.1} parent=1 // pred_check
      _
    $region11: #{tpu_custom_call.1} parent=1 // pred_check_branch
      %43 = sbr.rel (0) target = $region13
    $region12: #{tpu_custom_call.1} parent=1 // pred_region
      _
    $region13: #{tpu_custom_call.1} parent=1 // pred_fallthru
      _
    // Predicated region
    $region14: #{tpu_custom_call.1} parent=1 // pred_check
      _
    $region15: #{tpu_custom_call.1} parent=1 // pred_check_branch
      %45 = sbr.rel (0) target = $region17
    $region16: #{tpu_custom_call.1} parent=1 // pred_region
      %s47 = ssub.s32 8192, 8192
      %48 = vsyncadd [#allocation10], %s47
      %s49 = sshll.u32 [#allocation11], 4
      %s50 = int_to_ptr.vmem [resolvable:$true] %s49
      %55 = dma.hbm_to_vmem [thread:$0]  %s3, 8192, %s50, [#allocation10], 512, 512, 32
    $region17: #{tpu_custom_call.1} parent=1 // pred_fallthru
      _
    // Predicated region
    $region18: #{tpu_custom_call.1} parent=1 // pred_check
      _
    $region19: #{tpu_custom_call.1} parent=1 // pred_check_branch
      %57 = sbr.rel (0) target = $region21
    $region20: #{tpu_custom_call.1} parent=1 // pred_region
      %s59 = ssub.s32 8192, 8192
      %60 = vsyncadd [#allocation13], %s59
      %s61 = sshll.u32 [#allocation12], 4
      %s62 = int_to_ptr.vmem [resolvable:$true] %s61
      %67 = dma.hbm_to_vmem [thread:$0]  %s4, 8192, %s62, [#allocation13], 512, 512, 32
    $region21: #{tpu_custom_call.1} parent=1 // pred_fallthru
      _
    // Predicated region
    $region22: #{tpu_custom_call.1} parent=1 // pred_check
      _
    $region23: #{tpu_custom_call.1} parent=1 // pred_check_branch
      %69 = sbr.rel (0) target = $region25
    $region24: #{tpu_custom_call.1} parent=1 // pred_region
      %70 = dma.done [#allocation7], 4096
    $region25: #{tpu_custom_call.1} parent=1 // pred_fallthru
      _
    // Predicated region
    $region26: #{tpu_custom_call.1} parent=1 // pred_check
      _
    $region27: #{tpu_custom_call.1} parent=1 // pred_check_branch
      %72 = sbr.rel (0) target = $region29
    $region28: #{tpu_custom_call.1} parent=1 // pred_region
      %73 = dma.done [#allocation10], 4096
    $region29: #{tpu_custom_call.1} parent=1 // pred_fallthru
      _
    // Predicated region
    $region30: #{tpu_custom_call.1} parent=1 // pred_check
      _
    $region31: #{tpu_custom_call.1} parent=1 // pred_check_branch
      %75 = sbr.rel (0) target = $region33
    $region32: #{tpu_custom_call.1} parent=1 // pred_region
      %76 = dma.done [#allocation10], 8192
    $region33: #{tpu_custom_call.1} parent=1 // pred_fallthru
      _
    // Predicated region
    $region34: #{tpu_custom_call.1} parent=1 // pred_check
      _
    $region35: #{tpu_custom_call.1} parent=1 // pred_check_branch
      %78 = sbr.rel (0) target = $region37
    $region36: #{tpu_custom_call.1} parent=1 // pred_region
      %79 = dma.done [#allocation13], 8192
    $region37: #{tpu_custom_call.1} parent=1 // pred_fallthru
      _
    %80 = vst [vmem:[#allocation2] sm:$0xff] 0.0
    %81 = vst [vmem:[#allocation3] sm:$0xff] 0.0
    %82 = vst [vmem:[#allocation4] sm:$0xff] 0.0
    %83 = vst [vmem:[#allocation5] sm:$0xff] 0.0
    %v84 = vld [vmem:[%s2] sm:$0xff]
    %v85 = vld [vmem:[#allocation6] sm:$0xff]
    %v86 = vld [vmem:[#allocation6 + $0x8] sm:$0xff]
    %v87 = vld [vmem:[#allocation6 + $0x10] sm:$0xff]
    %v88 = vld [vmem:[#allocation6 + $0x18] sm:$0xff]
    %v89 = vld [vmem:[#allocation2] sm:$0xff]
    %v90 = vld [vmem:[#allocation3] sm:$0xff]
    %v91 = vld [vmem:[#allocation11] sm:$0xff]
    %v92 = vld [vmem:[#allocation11 + $0x8] sm:$0xff]
    %v93 = vld [vmem:[#allocation11 + $0x10] sm:$0xff]
    %v94 = vld [vmem:[#allocation11 + $0x18] sm:$0xff]
    %v95 = vld [vmem:[#allocation11 + $0x20] sm:$0xff]
    %v96 = vld [vmem:[#allocation11 + $0x28] sm:$0xff]
    %v97 = vld [vmem:[#allocation11 + $0x30] sm:$0xff]
    %v98 = vld [vmem:[#allocation11 + $0x38] sm:$0xff]
    %v99 = vld [vmem:[#allocation11 + $0x40] sm:$0xff]
    %v100 = vld [vmem:[#allocation11 + $0x48] sm:$0xff]
    %v101 = vld [vmem:[#allocation11 + $0x50] sm:$0xff]
    %v102 = vld [vmem:[#allocation11 + $0x58] sm:$0xff]
    %v103 = vld [vmem:[#allocation11 + $0x60] sm:$0xff]
    %v104 = vld [vmem:[#allocation11 + $0x68] sm:$0xff]
    %v105 = vld [vmem:[#allocation11 + $0x70] sm:$0xff]
    %v106 = vld [vmem:[#allocation11 + $0x78] sm:$0xff]
    %v107 = vld [vmem:[#allocation11 + $0x80] sm:$0xff]
    %v108 = vld [vmem:[#allocation11 + $0x88] sm:$0xff]
    %v109 = vld [vmem:[#allocation11 + $0x90] sm:$0xff]
    %v110 = vld [vmem:[#allocation11 + $0x98] sm:$0xff]
    %v111 = vld [vmem:[#allocation11 + $0xa0] sm:$0xff]
    %v112 = vld [vmem:[#allocation11 + $0xa8] sm:$0xff]
    %v113 = vld [vmem:[#allocation11 + $0xb0] sm:$0xff]
    %v114 = vld [vmem:[#allocation11 + $0xb8] sm:$0xff]
    %v115 = vld [vmem:[#allocation11 + $0xc0] sm:$0xff]
    %v116 = vld [vmem:[#allocation11 + $0xc8] sm:$0xff]
    %v117 = vld [vmem:[#allocation11 + $0xd0] sm:$0xff]
    %v118 = vld [vmem:[#allocation11 + $0xd8] sm:$0xff]
    %v119 = vld [vmem:[#allocation11 + $0xe0] sm:$0xff]
    %v120 = vld [vmem:[#allocation11 + $0xe8] sm:$0xff]
    %v121 = vld [vmem:[#allocation11 + $0xf0] sm:$0xff]
    %v122 = vld [vmem:[#allocation11 + $0xf8] sm:$0xff]
    %v123 = vld [vmem:[#allocation11 + $0x100] sm:$0xff]
    %v124 = vld [vmem:[#allocation11 + $0x108] sm:$0xff]
    %v125 = vld [vmem:[#allocation11 + $0x110] sm:$0xff]
    %v126 = vld [vmem:[#allocation11 + $0x118] sm:$0xff]
    %v127 = vld [vmem:[#allocation11 + $0x120] sm:$0xff]
    %v128 = vld [vmem:[#allocation11 + $0x128] sm:$0xff]
    %v129 = vld [vmem:[#allocation11 + $0x130] sm:$0xff]
    %v130 = vld [vmem:[#allocation11 + $0x138] sm:$0xff]
    %v131 = vld [vmem:[#allocation11 + $0x140] sm:$0xff]
    %v132 = vld [vmem:[#allocation11 + $0x148] sm:$0xff]
    %v133 = vld [vmem:[#allocation11 + $0x150] sm:$0xff]
    %v134 = vld [vmem:[#allocation11 + $0x158] sm:$0xff]
    %v135 = vld [vmem:[#allocation11 + $0x160] sm:$0xff]
    %v136 = vld [vmem:[#allocation11 + $0x168] sm:$0xff]
    %v137 = vld [vmem:[#allocation11 + $0x170] sm:$0xff]
    %v138 = vld [vmem:[#allocation11 + $0x178] sm:$0xff]
    %v139 = vld [vmem:[#allocation11 + $0x180] sm:$0xff]
    %v140 = vld [vmem:[#allocation11 + $0x188] sm:$0xff]
    %v141 = vld [vmem:[#allocation11 + $0x190] sm:$0xff]
    %v142 = vld [vmem:[#allocation11 + $0x198] sm:$0xff]
    %v143 = vld [vmem:[#allocation11 + $0x1a0] sm:$0xff]
    %v144 = vld [vmem:[#allocation11 + $0x1a8] sm:$0xff]
    %v145 = vld [vmem:[#allocation11 + $0x1b0] sm:$0xff]
    %v146 = vld [vmem:[#allocation11 + $0x1b8] sm:$0xff]
    %v147 = vld [vmem:[#allocation11 + $0x1c0] sm:$0xff]
    %v148 = vld [vmem:[#allocation11 + $0x1c8] sm:$0xff]
    %v149 = vld [vmem:[#allocation11 + $0x1d0] sm:$0xff]
    %v150 = vld [vmem:[#allocation11 + $0x1d8] sm:$0xff]
    %v151 = vld [vmem:[#allocation11 + $0x1e0] sm:$0xff]
    %v152 = vld [vmem:[#allocation11 + $0x1e8] sm:$0xff]
    %v153 = vld [vmem:[#allocation11 + $0x1f0] sm:$0xff]
    %v154 = vld [vmem:[#allocation11 + $0x1f8] sm:$0xff]
    %155 = vmatprep.subr.mxu0 %v92
    %156 = vmatpush1.msra.mxu0 %v91
    %157 = vmatprep.subr.mxu0 %v96
    %158 = vmatpush1.msra.mxu0 %v95
    %159 = vmatprep.subr.mxu0 %v100
    %160 = vmatpush1.msra.mxu0 %v99
    %161 = vmatprep.subr.mxu0 %v104
    %162 = vmatpush1.msra.mxu0 %v103
    %163 = vmatprep.subr.mxu0 %v108
    %164 = vmatpush1.msra.mxu0 %v107
    %165 = vmatprep.subr.mxu0 %v112
    %166 = vmatpush1.msra.mxu0 %v111
    %167 = vmatprep.subr.mxu0 %v116
    %168 = vmatpush1.msra.mxu0 %v115
    %169 = vmatprep.subr.mxu0 %v120
    %170 = vmatpush1.msra.mxu0 %v119
    %171 = vmatprep.subr.mxu0 %v124
    %172 = vmatpush1.msra.mxu0 %v123
    %173 = vmatprep.subr.mxu0 %v128
    %174 = vmatpush1.msra.mxu0 %v127
    %175 = vmatprep.subr.mxu0 %v132
    %176 = vmatpush1.msra.mxu0 %v131
    %177 = vmatprep.subr.mxu0 %v136
    %178 = vmatpush1.msra.mxu0 %v135
    %179 = vmatprep.subr.mxu0 %v140
    %180 = vmatpush1.msra.mxu0 %v139
    %181 = vmatprep.subr.mxu0 %v144
    %182 = vmatpush1.msra.mxu0 %v143
    %183 = vmatprep.subr.mxu0 %v148
    %184 = vmatpush1.msra.mxu0 %v147
    %185 = vmatprep.subr.mxu0 %v152
    %186 = vmatpush1.msra.mxu0 %v151
    %187 = vmatprep.subr.mxu0 0.0
    %188 = vmatpush1.msra.mxu0 0.0
    %189 = vmatprep.subr.mxu0 0.0
    %190 = vmatpush1.msra.mxu0 0.0
    %191 = vmatprep.subr.mxu0 0.0
    %192 = vmatpush1.msra.mxu0 0.0
    %193 = vmatprep.subr.mxu0 0.0
    %194 = vmatpush1.msra.mxu0 0.0
    %195 = vmatprep.subr.mxu0 0.0
    %196 = vmatpush1.msra.mxu0 0.0
    %197 = vmatprep.subr.mxu0 0.0
    %198 = vmatpush1.msra.mxu0 0.0
    %199 = vmatprep.subr.mxu0 0.0
    %200 = vmatpush1.msra.mxu0 0.0
    %201 = vmatprep.subr.mxu0 0.0
    %202 = vmatpush1.msra.mxu0 0.0
    %203 = vmatprep.subr.mxu0 0.0
    %204 = vmatpush1.msra.mxu0 0.0
    %205 = vmatprep.subr.mxu0 0.0
    %206 = vmatpush1.msra.mxu0 0.0
    %207 = vmatprep.subr.mxu0 0.0
    %208 = vmatpush1.msra.mxu0 0.0
    %209 = vmatprep.subr.mxu0 0.0
    %210 = vmatpush1.msra.mxu0 0.0
    %211 = vmatprep.subr.mxu0 0.0
    %212 = vmatpush1.msra.mxu0 0.0
    %213 = vmatprep.subr.mxu0 0.0
    %214 = vmatpush1.msra.mxu0 0.0
    %215 = vmatprep.subr.mxu0 0.0
    %216 = vmatpush1.msra.mxu0 0.0
    %217 = vmatprep.subr.mxu0 0.0
    %218 = vmatpush1.msra.mxu0 0.0
    %219 = vmatprep.mubr.f32.mxu0 0.0
    %220 = vmatmul.mubr.f32.gmra.mrb[0].mxu0 %v89
    %v221 = vpop.f32.mrb[0].mxu0
    %v222 = vadd.f32 0.0, %v221
    %v223 = vpop.f32.mrb[0].mxu0
    %v224 = vadd.f32 0.0, %v223
    %225 = vdwg.mxu0
    %226 = vmatprep.subr.mxu0 %v94
    %227 = vmatpush1.msra.mxu0 %v93
    %228 = vmatprep.subr.mxu0 %v98
    %229 = vmatpush1.msra.mxu0 %v97
    %230 = vmatprep.subr.mxu0 %v102
    %231 = vmatpush1.msra.mxu0 %v101
    %232 = vmatprep.subr.mxu0 %v106
    %233 = vmatpush1.msra.mxu0 %v105
    %234 = vmatprep.subr.mxu0 %v110
    %235 = vmatpush1.msra.mxu0 %v109
    %236 = vmatprep.subr.mxu0 %v114
    %237 = vmatpush1.msra.mxu0 %v113
    %238 = vmatprep.subr.mxu0 %v118
    %239 = vmatpush1.msra.mxu0 %v117
    %240 = vmatprep.subr.mxu0 %v122
    %241 = vmatpush1.msra.mxu0 %v121
    %242 = vmatprep.subr.mxu0 %v126
    %243 = vmatpush1.msra.mxu0 %v125
    %244 = vmatprep.subr.mxu0 %v130
    %245 = vmatpush1.msra.mxu0 %v129
    %246 = vmatprep.subr.mxu0 %v134
    %247 = vmatpush1.msra.mxu0 %v133
    %248 = vmatprep.subr.mxu0 %v138
    %249 = vmatpush1.msra.mxu0 %v137
    %250 = vmatprep.subr.mxu0 %v142
    %251 = vmatpush1.msra.mxu0 %v141
    %252 = vmatprep.subr.mxu0 %v146
    %253 = vmatpush1.msra.mxu0 %v145
    %254 = vmatprep.subr.mxu0 %v150
    %255 = vmatpush1.msra.mxu0 %v149
    %256 = vmatprep.subr.mxu0 %v154
    %257 = vmatpush1.msra.mxu0 %v153
    %258 = vmatprep.subr.mxu0 0.0
    %259 = vmatpush1.msra.mxu0 0.0
    %260 = vmatprep.subr.mxu0 0.0
    %261 = vmatpush1.msra.mxu0 0.0
    %262 = vmatprep.subr.mxu0 0.0
    %263 = vmatpush1.msra.mxu0 0.0
    %264 = vmatprep.subr.mxu0 0.0
    %265 = vmatpush1.msra.mxu0 0.0
    %266 = vmatprep.subr.mxu0 0.0
    %267 = vmatpush1.msra.mxu0 0.0
    %268 = vmatprep.subr.mxu0 0.0
    %269 = vmatpush1.msra.mxu0 0.0
    %270 = vmatprep.subr.mxu0 0.0
    %271 = vmatpush1.msra.mxu0 0.0
    %272 = vmatprep.subr.mxu0 0.0
    %273 = vmatpush1.msra.mxu0 0.0
    %274 = vmatprep.subr.mxu0 0.0
    %275 = vmatpush1.msra.mxu0 0.0
    %276 = vmatprep.subr.mxu0 0.0
    %277 = vmatpush1.msra.mxu0 0.0
    %278 = vmatprep.subr.mxu0 0.0
    %279 = vmatpush1.msra.mxu0 0.0
    %280 = vmatprep.subr.mxu0 0.0
    %281 = vmatpush1.msra.mxu0 0.0
    %282 = vmatprep.subr.mxu0 0.0
    %283 = vmatpush1.msra.mxu0 0.0
    %284 = vmatprep.subr.mxu0 0.0
    %285 = vmatpush1.msra.mxu0 0.0
    %286 = vmatprep.subr.mxu0 0.0
    %287 = vmatpush1.msra.mxu0 0.0
    %288 = vmatprep.subr.mxu0 0.0
    %289 = vmatpush1.msra.mxu0 0.0
    %290 = vmatprep.mubr.f32.mxu0 0.0
    %291 = vmatmul.mubr.f32.gmra.mrb[0].mxu0 %v89
    %v292 = vpop.f32.mrb[0].mxu0
    %v293 = vadd.f32 0.0, %v292
    %v294 = vpop.f32.mrb[0].mxu0
    %v295 = vadd.f32 0.0, %v294
    %296 = vdwg.mxu0
    %v297 = vadd.f32 %v85, %v222
    %v298 = vadd.f32 %v86, %v224
    %v299 = vadd.f32 %v87, %v293
    %v300 = vadd.f32 %v88, %v295
    %v301 = vxor.u32 %v297, 2147483648
    %v302 = vmul.f32 %v301, 1.442695
    %v303 = vpow.pop %v302
    %v304 = vadd.f32 %v303, 1.0
    %v305 = vrcp.pop %v304
    %v306 = vmul.f32 1.0, %v305
    %v307 = vxor.u32 %v298, 2147483648
    %v308 = vmul.f32 %v307, 1.442695
    %v309 = vpow.pop %v308
    %v310 = vadd.f32 %v309, 1.0
    %v311 = vrcp.pop %v310
    %v312 = vmul.f32 1.0, %v311
    %v313 = vtanh.pop %v299
    %v314 = vxor.u32 %v300, 2147483648
    %v315 = vmul.f32 %v314, 1.442695
    %v316 = vpow.pop %v315
    %v317 = vadd.f32 %v316, 1.0
    %v318 = vrcp.pop %v317
    %v319 = vmul.f32 1.0, %v318
    %v320 = vmul.f32 %v312, %v90
    %v321 = vmul.f32 %v306, %v313
    %v322 = vadd.f32 %v320, %v321
    %v323 = vtanh.pop %v322
    %v324 = vmul.f32 %v319, %v323
    %326 = vset.pattern.permute.xlu0 0
    %327 = vperm.xlu0 %326, %v84
    %v328 = vpop.permute.xlu0 %327
    %v330 = vmul.f32 %v328, %v324
    %v331 = vsub.f32 1.0, %v84
    %333 = vset.pattern.permute.xlu0 0
    %334 = vperm.xlu0 %333, %v331
    %v335 = vpop.permute.xlu0 %334
    %v337 = vmul.f32 %v335, %v89
    %v338 = vadd.f32 %v330, %v337
    %v339 = vmul.f32 %v328, %v322
    %v340 = vmul.f32 %v335, %v90
    %v341 = vadd.f32 %v339, %v340
    %342 = vst [vmem:[#allocation2] sm:$0xff] %v338
    %343 = vst [vmem:[#allocation3] sm:$0xff] %v341
    %v344 = vmul.f32 %v328, %v338
    %345 = vst [vmem:[#allocation14] sm:$0xff] %v344
    %s346 = scalar_lea.vmem %s2, 56
    %v347 = vld [vmem:[%s346] sm:$0xff]
    %s348 = scalar_lea.vmem [#allocation9], 224
    %v349 = vld [vmem:[%s348] sm:$0xff]
    %v350 = vld [vmem:[%s348 + $0x8] sm:$0xff]
    %v351 = vld [vmem:[%s348 + $0x10] sm:$0xff]
    %v352 = vld [vmem:[%s348 + $0x18] sm:$0xff]
    %v353 = vld [vmem:[#allocation4] sm:$0xff]
    %v354 = vld [vmem:[#allocation5] sm:$0xff]
    %v355 = vld [vmem:[#allocation12] sm:$0xff]
    %v356 = vld [vmem:[#allocation12 + $0x8] sm:$0xff]
    %v357 = vld [vmem:[#allocation12 + $0x10] sm:$0xff]
    %v358 = vld [vmem:[#allocation12 + $0x18] sm:$0xff]
    %v359 = vld [vmem:[#allocation12 + $0x20] sm:$0xff]
    %v360 = vld [vmem:[#allocation12 + $0x28] sm:$0xff]
    %v361 = vld [vmem:[#allocation12 + $0x30] sm:$0xff]
    %v362 = vld [vmem:[#allocation12 + $0x38] sm:$0xff]
    %v363 = vld [vmem:[#allocation12 + $0x40] sm:$0xff]
    %v364 = vld [vmem:[#allocation12 + $0x48] sm:$0xff]
    %v365 = vld [vmem:[#allocation12 + $0x50] sm:$0xff]
    %v366 = vld [vmem:[#allocation12 + $0x58] sm:$0xff]
    %v367 = vld [vmem:[#allocation12 + $0x60] sm:$0xff]
    %v368 = vld [vmem:[#allocation12 + $0x68] sm:$0xff]
    %v369 = vld [vmem:[#allocation12 + $0x70] sm:$0xff]
    %v370 = vld [vmem:[#allocation12 + $0x78] sm:$0xff]
    %v371 = vld [vmem:[#allocation12 + $0x80] sm:$0xff]
    %v372 = vld [vmem:[#allocation12 + $0x88] sm:$0xff]
    %v373 = vld [vmem:[#allocation12 + $0x90] sm:$0xff]
    %v374 = vld [vmem:[#allocation12 + $0x98] sm:$0xff]
    %v375 = vld [vmem:[#allocation12 + $0xa0] sm:$0xff]
    %v376 = vld [vmem:[#allocation12 + $0xa8] sm:$0xff]
    %v377 = vld [vmem:[#allocation12 + $0xb0] sm:$0xff]
    %v378 = vld [vmem:[#allocation12 + $0xb8] sm:$0xff]
    %v379 = vld [vmem:[#allocation12 + $0xc0] sm:$0xff]
    %v380 = vld [vmem:[#allocation12 + $0xc8] sm:$0xff]
    %v381 = vld [vmem:[#allocation12 + $0xd0] sm:$0xff]
    %v382 = vld [vmem:[#allocation12 + $0xd8] sm:$0xff]
    %v383 = vld [vmem:[#allocation12 + $0xe0] sm:$0xff]
    %v384 = vld [vmem:[#allocation12 + $0xe8] sm:$0xff]
    %v385 = vld [vmem:[#allocation12 + $0xf0] sm:$0xff]
    %v386 = vld [vmem:[#allocation12 + $0xf8] sm:$0xff]
    %v387 = vld [vmem:[#allocation12 + $0x100] sm:$0xff]
    %v388 = vld [vmem:[#allocation12 + $0x108] sm:$0xff]
    %v389 = vld [vmem:[#allocation12 + $0x110] sm:$0xff]
    %v390 = vld [vmem:[#allocation12 + $0x118] sm:$0xff]
    %v391 = vld [vmem:[#allocation12 + $0x120] sm:$0xff]
    %v392 = vld [vmem:[#allocation12 + $0x128] sm:$0xff]
    %v393 = vld [vmem:[#allocation12 + $0x130] sm:$0xff]
    %v394 = vld [vmem:[#allocation12 + $0x138] sm:$0xff]
    %v395 = vld [vmem:[#allocation12 + $0x140] sm:$0xff]
    %v396 = vld [vmem:[#allocation12 + $0x148] sm:$0xff]
    %v397 = vld [vmem:[#allocation12 + $0x150] sm:$0xff]
    %v398 = vld [vmem:[#allocation12 + $0x158] sm:$0xff]
    %v399 = vld [vmem:[#allocation12 + $0x160] sm:$0xff]
    %v400 = vld [vmem:[#allocation12 + $0x168] sm:$0xff]
    %v401 = vld [vmem:[#allocation12 + $0x170] sm:$0xff]
    %v402 = vld [vmem:[#allocation12 + $0x178] sm:$0xff]
    %v403 = vld [vmem:[#allocation12 + $0x180] sm:$0xff]
    %v404 = vld [vmem:[#allocation12 + $0x188] sm:$0xff]
    %v405 = vld [vmem:[#allocation12 + $0x190] sm:$0xff]
    %v406 = vld [vmem:[#allocation12 + $0x198] sm:$0xff]
    %v407 = vld [vmem:[#allocation12 + $0x1a0] sm:$0xff]
    %v408 = vld [vmem:[#allocation12 + $0x1a8] sm:$0xff]
    %v409 = vld [vmem:[#allocation12 + $0x1b0] sm:$0xff]
    %v410 = vld [vmem:[#allocation12 + $0x1b8] sm:$0xff]
    %v411 = vld [vmem:[#allocation12 + $0x1c0] sm:$0xff]
    %v412 = vld [vmem:[#allocation12 + $0x1c8] sm:$0xff]
    %v413 = vld [vmem:[#allocation12 + $0x1d0] sm:$0xff]
    %v414 = vld [vmem:[#allocation12 + $0x1d8] sm:$0xff]
    %v415 = vld [vmem:[#allocation12 + $0x1e0] sm:$0xff]
    %v416 = vld [vmem:[#allocation12 + $0x1e8] sm:$0xff]
    %v417 = vld [vmem:[#allocation12 + $0x1f0] sm:$0xff]
    %v418 = vld [vmem:[#allocation12 + $0x1f8] sm:$0xff]
    %419 = vmatprep.subr.mxu0 %v356
    %420 = vmatpush1.msra.mxu0 %v355
    %421 = vmatprep.subr.mxu0 %v360
    %422 = vmatpush1.msra.mxu0 %v359
    %423 = vmatprep.subr.mxu0 %v364
    %424 = vmatpush1.msra.mxu0 %v363
    %425 = vmatprep.subr.mxu0 %v368
    %426 = vmatpush1.msra.mxu0 %v367
    %427 = vmatprep.subr.mxu0 %v372
    %428 = vmatpush1.msra.mxu0 %v371
    %429 = vmatprep.subr.mxu0 %v376
    %430 = vmatpush1.msra.mxu0 %v375
    %431 = vmatprep.subr.mxu0 %v380
    %432 = vmatpush1.msra.mxu0 %v379
    %433 = vmatprep.subr.mxu0 %v384
    %434 = vmatpush1.msra.mxu0 %v383
    %435 = vmatprep.subr.mxu0 %v388
    %436 = vmatpush1.msra.mxu0 %v387
    %437 = vmatprep.subr.mxu0 %v392
    %438 = vmatpush1.msra.mxu0 %v391
    %439 = vmatprep.subr.mxu0 %v396
    %440 = vmatpush1.msra.mxu0 %v395
    %441 = vmatprep.subr.mxu0 %v400
    %442 = vmatpush1.msra.mxu0 %v399
    %443 = vmatprep.subr.mxu0 %v404
    %444 = vmatpush1.msra.mxu0 %v403
    %445 = vmatprep.subr.mxu0 %v408
    %446 = vmatpush1.msra.mxu0 %v407
    %447 = vmatprep.subr.mxu0 %v412
    %448 = vmatpush1.msra.mxu0 %v411
    %449 = vmatprep.subr.mxu0 %v416
    %450 = vmatpush1.msra.mxu0 %v415
    %451 = vmatprep.subr.mxu0 0.0
    %452 = vmatpush1.msra.mxu0 0.0
    %453 = vmatprep.subr.mxu0 0.0
    %454 = vmatpush1.msra.mxu0 0.0
    %455 = vmatprep.subr.mxu0 0.0
    %456 = vmatpush1.msra.mxu0 0.0
    %457 = vmatprep.subr.mxu0 0.0
    %458 = vmatpush1.msra.mxu0 0.0
    %459 = vmatprep.subr.mxu0 0.0
    %460 = vmatpush1.msra.mxu0 0.0
    %461 = vmatprep.subr.mxu0 0.0
    %462 = vmatpush1.msra.mxu0 0.0
    %463 = vmatprep.subr.mxu0 0.0
    %464 = vmatpush1.msra.mxu0 0.0
    %465 = vmatprep.subr.mxu0 0.0
    %466 = vmatpush1.msra.mxu0 0.0
    %467 = vmatprep.subr.mxu0 0.0
    %468 = vmatpush1.msra.mxu0 0.0
    %469 = vmatprep.subr.mxu0 0.0
    %470 = vmatpush1.msra.mxu0 0.0
    %471 = vmatprep.subr.mxu0 0.0
    %472 = vmatpush1.msra.mxu0 0.0
    %473 = vmatprep.subr.mxu0 0.0
    %474 = vmatpush1.msra.mxu0 0.0
    %475 = vmatprep.subr.mxu0 0.0
    %476 = vmatpush1.msra.mxu0 0.0
    %477 = vmatprep.subr.mxu0 0.0
    %478 = vmatpush1.msra.mxu0 0.0
    %479 = vmatprep.subr.mxu0 0.0
    %480 = vmatpush1.msra.mxu0 0.0
    %481 = vmatprep.subr.mxu0 0.0
    %482 = vmatpush1.msra.mxu0 0.0
    %483 = vmatprep.mubr.f32.mxu0 0.0
    %484 = vmatmul.mubr.f32.gmra.mrb[0].mxu0 %v353
    %v485 = vpop.f32.mrb[0].mxu0
    %v486 = vadd.f32 0.0, %v485
    %v487 = vpop.f32.mrb[0].mxu0
    %v488 = vadd.f32 0.0, %v487
    %489 = vdwg.mxu0
    %490 = vmatprep.subr.mxu0 %v358
    %491 = vmatpush1.msra.mxu0 %v357
    %492 = vmatprep.subr.mxu0 %v362
    %493 = vmatpush1.msra.mxu0 %v361
    %494 = vmatprep.subr.mxu0 %v366
    %495 = vmatpush1.msra.mxu0 %v365
    %496 = vmatprep.subr.mxu0 %v370
    %497 = vmatpush1.msra.mxu0 %v369
    %498 = vmatprep.subr.mxu0 %v374
    %499 = vmatpush1.msra.mxu0 %v373
    %500 = vmatprep.subr.mxu0 %v378
    %501 = vmatpush1.msra.mxu0 %v377
    %502 = vmatprep.subr.mxu0 %v382
    %503 = vmatpush1.msra.mxu0 %v381
    %504 = vmatprep.subr.mxu0 %v386
    %505 = vmatpush1.msra.mxu0 %v385
    %506 = vmatprep.subr.mxu0 %v390
    %507 = vmatpush1.msra.mxu0 %v389
    %508 = vmatprep.subr.mxu0 %v394
    %509 = vmatpush1.msra.mxu0 %v393
    %510 = vmatprep.subr.mxu0 %v398
    %511 = vmatpush1.msra.mxu0 %v397
    %512 = vmatprep.subr.mxu0 %v402
    %513 = vmatpush1.msra.mxu0 %v401
    %514 = vmatprep.subr.mxu0 %v406
    %515 = vmatpush1.msra.mxu0 %v405
    %516 = vmatprep.subr.mxu0 %v410
    %517 = vmatpush1.msra.mxu0 %v409
    %518 = vmatprep.subr.mxu0 %v414
    %519 = vmatpush1.msra.mxu0 %v413
    %520 = vmatprep.subr.mxu0 %v418
    %521 = vmatpush1.msra.mxu0 %v417
    %522 = vmatprep.subr.mxu0 0.0
    %523 = vmatpush1.msra.mxu0 0.0
    %524 = vmatprep.subr.mxu0 0.0
    %525 = vmatpush1.msra.mxu0 0.0
    %526 = vmatprep.subr.mxu0 0.0
    %527 = vmatpush1.msra.mxu0 0.0
    %528 = vmatprep.subr.mxu0 0.0
    %529 = vmatpush1.msra.mxu0 0.0
    %530 = vmatprep.subr.mxu0 0.0
    %531 = vmatpush1.msra.mxu0 0.0
    %532 = vmatprep.subr.mxu0 0.0
    %533 = vmatpush1.msra.mxu0 0.0
    %534 = vmatprep.subr.mxu0 0.0
    %535 = vmatpush1.msra.mxu0 0.0
    %536 = vmatprep.subr.mxu0 0.0
    %537 = vmatpush1.msra.mxu0 0.0
    %538 = vmatprep.subr.mxu0 0.0
    %539 = vmatpush1.msra.mxu0 0.0
    %540 = vmatprep.subr.mxu0 0.0
    %541 = vmatpush1.msra.mxu0 0.0
    %542 = vmatprep.subr.mxu0 0.0
    %543 = vmatpush1.msra.mxu0 0.0
    %544 = vmatprep.subr.mxu0 0.0
    %545 = vmatpush1.msra.mxu0 0.0
    %546 = vmatprep.subr.mxu0 0.0
    %547 = vmatpush1.msra.mxu0 0.0
    %548 = vmatprep.subr.mxu0 0.0
    %549 = vmatpush1.msra.mxu0 0.0
    %550 = vmatprep.subr.mxu0 0.0
    %551 = vmatpush1.msra.mxu0 0.0
    %552 = vmatprep.subr.mxu0 0.0
    %553 = vmatpush1.msra.mxu0 0.0
    %554 = vmatprep.mubr.f32.mxu0 0.0
    %555 = vmatmul.mubr.f32.gmra.mrb[0].mxu0 %v353
    %v556 = vpop.f32.mrb[0].mxu0
    %v557 = vadd.f32 0.0, %v556
    %v558 = vpop.f32.mrb[0].mxu0
    %v559 = vadd.f32 0.0, %v558
    %560 = vdwg.mxu0
    %v561 = vadd.f32 %v349, %v486
    %v562 = vadd.f32 %v350, %v488
    %v563 = vadd.f32 %v351, %v557
    %v564 = vadd.f32 %v352, %v559
    %v565 = vxor.u32 %v561, 2147483648
    %v566 = vmul.f32 %v565, 1.442695
    %v567 = vpow.pop %v566
    %v568 = vadd.f32 %v567, 1.0
    %v569 = vrcp.pop %v568
    %v570 = vmul.f32 1.0, %v569
    %v571 = vxor.u32 %v562, 2147483648
    %v572 = vmul.f32 %v571, 1.442695
    %v573 = vpow.pop %v572
    %v574 = vadd.f32 %v573, 1.0
    %v575 = vrcp.pop %v574
    %v576 = vmul.f32 1.0, %v575
    %v577 = vtanh.pop %v563
    %v578 = vxor.u32 %v564, 2147483648
    %v579 = vmul.f32 %v578, 1.442695
    %v580 = vpow.pop %v579
    %v581 = vadd.f32 %v580, 1.0
    %v582 = vrcp.pop %v581
    %v583 = vmul.f32 1.0, %v582
    %v584 = vmul.f32 %v576, %v354
    %v585 = vmul.f32 %v570, %v577
    %v586 = vadd.f32 %v584, %v585
    %v587 = vtanh.pop %v586
    %v588 = vmul.f32 %v583, %v587
    %590 = vset.pattern.permute.xlu0 0
    %591 = vperm.xlu0 %590, %v347
    %v592 = vpop.permute.xlu0 %591
    %v594 = vmul.f32 %v592, %v588
    %v595 = vsub.f32 1.0, %v347
    %597 = vset.pattern.permute.xlu0 0
    %598 = vperm.xlu0 %597, %v595
    %v599 = vpop.permute.xlu0 %598
    %v601 = vmul.f32 %v599, %v353
    %v602 = vadd.f32 %v594, %v601
    %v603 = vmul.f32 %v592, %v586
    %v604 = vmul.f32 %v599, %v354
    %v605 = vadd.f32 %v603, %v604
    %606 = vst [vmem:[#allocation4] sm:$0xff] %v602
    %607 = vst [vmem:[#allocation5] sm:$0xff] %v605
    %v608 = vmul.f32 %v592, %v602
    %s609 = scalar_lea.vmem [#allocation14], 112
    %610 = vst [vmem:[%s609 + $0x8] sm:$0xff] %v608
    %s611 = scalar_lea.vmem %s2, 8
    %v612 = vld [vmem:[%s611] sm:$0xff]
    %s613 = scalar_lea.vmem [#allocation6], 32
    %v614 = vld [vmem:[%s613] sm:$0xff]
    %v615 = vld [vmem:[%s613 + $0x8] sm:$0xff]
    %v616 = vld [vmem:[%s613 + $0x10] sm:$0xff]
    %v617 = vld [vmem:[%s613 + $0x18] sm:$0xff]
    %v618 = vld [vmem:[#allocation2] sm:$0xff]
    %v619 = vld [vmem:[#allocation3] sm:$0xff]
    %v620 = vld [vmem:[#allocation11] sm:$0xff]
    %v621 = vld [vmem:[#allocation11 + $0x8] sm:$0xff]
    %v622 = vld [vmem:[#allocation11 + $0x10] sm:$0xff]
    %v623 = vld [vmem:[#allocation11 + $0x18] sm:$0xff]
    %v624 = vld [vmem:[#allocation11 + $0x20] sm:$0xff]
    %v625 = vld [vmem:[#allocation11 + $0x28] sm:$0xff]
    %v626 = vld [vmem:[#allocation11 + $0x30] sm:$0xff]
    %v627 = vld [vmem:[#allocation11 + $0x38] sm:$0xff]
    %v628 = vld [vmem:[#allocation11 + $0x40] sm:$0xff]
    %v629 = vld [vmem:[#allocation11 + $0x48] sm:$0xff]
    %v630 = vld [vmem:[#allocation11 + $0x50] sm:$0xff]
    %v631 = vld [vmem:[#allocation11 + $0x58] sm:$0xff]
    %v632 = vld [vmem:[#allocation11 + $0x60] sm:$0xff]
    %v633 = vld [vmem:[#allocation11 + $0x68] sm:$0xff]
    %v634 = vld [vmem:[#allocation11 + $0x70] sm:$0xff]
    %v635 = vld [vmem:[#allocation11 + $0x78] sm:$0xff]
    %v636 = vld [vmem:[#allocation11 + $0x80] sm:$0xff]
    %v637 = vld [vmem:[#allocation11 + $0x88] sm:$0xff]
    %v638 = vld [vmem:[#allocation11 + $0x90] sm:$0xff]
    %v639 = vld [vmem:[#allocation11 + $0x98] sm:$0xff]
    %v640 = vld [vmem:[#allocation11 + $0xa0] sm:$0xff]
    %v641 = vld [vmem:[#allocation11 + $0xa8] sm:$0xff]
    %v642 = vld [vmem:[#allocation11 + $0xb0] sm:$0xff]
    %v643 = vld [vmem:[#allocation11 + $0xb8] sm:$0xff]
    %v644 = vld [vmem:[#allocation11 + $0xc0] sm:$0xff]
    %v645 = vld [vmem:[#allocation11 + $0xc8] sm:$0xff]
    %v646 = vld [vmem:[#allocation11 + $0xd0] sm:$0xff]
    %v647 = vld [vmem:[#allocation11 + $0xd8] sm:$0xff]
    %v648 = vld [vmem:[#allocation11 + $0xe0] sm:$0xff]
    %v649 = vld [vmem:[#allocation11 + $0xe8] sm:$0xff]
    %v650 = vld [vmem:[#allocation11 + $0xf0] sm:$0xff]
    %v651 = vld [vmem:[#allocation11 + $0xf8] sm:$0xff]
    %v652 = vld [vmem:[#allocation11 + $0x100] sm:$0xff]
    %v653 = vld [vmem:[#allocation11 + $0x108] sm:$0xff]
    %v654 = vld [vmem:[#allocation11 + $0x110] sm:$0xff]
    %v655 = vld [vmem:[#allocation11 + $0x118] sm:$0xff]
    %v656 = vld [vmem:[#allocation11 + $0x120] sm:$0xff]
    %v657 = vld [vmem:[#allocation11 + $0x128] sm:$0xff]
    %v658 = vld [vmem:[#allocation11 + $0x130] sm:$0xff]
    %v659 = vld [vmem:[#allocation11 + $0x138] sm:$0xff]
    %v660 = vld [vmem:[#allocation11 + $0x140] sm:$0xff]
    %v661 = vld [vmem:[#allocation11 + $0x148] sm:$0xff]
    %v662 = vld [vmem:[#allocation11 + $0x150] sm:$0xff]
    %v663 = vld [vmem:[#allocation11 + $0x158] sm:$0xff]
    %v664 = vld [vmem:[#allocation11 + $0x160] sm:$0xff]
    %v665 = vld [vmem:[#allocation11 + $0x168] sm:$0xff]
    %v666 = vld [vmem:[#allocation11 + $0x170] sm:$0xff]
    %v667 = vld [vmem:[#allocation11 + $0x178] sm:$0xff]
    %v668 = vld [vmem:[#allocation11 + $0x180] sm:$0xff]
    %v669 = vld [vmem:[#allocation11 + $0x188] sm:$0xff]
    %v670 = vld [vmem:[#allocation11 + $0x190] sm:$0xff]
    %v671 = vld [vmem:[#allocation11 + $0x198] sm:$0xff]
    %v672 = vld [vmem:[#allocation11 + $0x1a0] sm:$0xff]
    %v673 = vld [vmem:[#allocation11 + $0x1a8] sm:$0xff]
    %v674 = vld [vmem:[#allocation11 + $0x1b0] sm:$0xff]
    %v675 = vld [vmem:[#allocation11 + $0x1b8] sm:$0xff]
    %v676 = vld [vmem:[#allocation11 + $0x1c0] sm:$0xff]
    %v677 = vld [vmem:[#allocation11 + $0x1c8] sm:$0xff]
    %v678 = vld [vmem:[#allocation11 + $0x1d0] sm:$0xff]
    %v679 = vld [vmem:[#allocation11 + $0x1d8] sm:$0xff]
    %v680 = vld [vmem:[#allocation11 + $0x1e0] sm:$0xff]
    %v681 = vld [vmem:[#allocation11 + $0x1e8] sm:$0xff]
    %v682 = vld [vmem:[#allocation11 + $0x1f0] sm:$0xff]
    %v683 = vld [vmem:[#allocation11 + $0x1f8] sm:$0xff]
    %684 = vmatprep.subr.mxu0 %v621
    %685 = vmatpush1.msra.mxu0 %v620
    %686 = vmatprep.subr.mxu0 %v625
    %687 = vmatpush1.msra.mxu0 %v624
    %688 = vmatprep.subr.mxu0 %v629
    %689 = vmatpush1.msra.mxu0 %v628
    %690 = vmatprep.subr.mxu0 %v633
    %691 = vmatpush1.msra.mxu0 %v632
    %692 = vmatprep.subr.mxu0 %v637
    %693 = vmatpush1.msra.mxu0 %v636
    %694 = vmatprep.subr.mxu0 %v641
    %695 = vmatpush1.msra.mxu0 %v640
    %696 = vmatprep.subr.mxu0 %v645
    %697 = vmatpush1.msra.mxu0 %v644
    %698 = vmatprep.subr.mxu0 %v649
    %699 = vmatpush1.msra.mxu0 %v648
    %700 = vmatprep.subr.mxu0 %v653
    %701 = vmatpush1.msra.mxu0 %v652
    %702 = vmatprep.subr.mxu0 %v657
    %703 = vmatpush1.msra.mxu0 %v656
    %704 = vmatprep.subr.mxu0 %v661
    %705 = vmatpush1.msra.mxu0 %v660
    %706 = vmatprep.subr.mxu0 %v665
    %707 = vmatpush1.msra.mxu0 %v664
    %708 = vmatprep.subr.mxu0 %v669
    %709 = vmatpush1.msra.mxu0 %v668
    %710 = vmatprep.subr.mxu0 %v673
    %711 = vmatpush1.msra.mxu0 %v672
    %712 = vmatprep.subr.mxu0 %v677
    %713 = vmatpush1.msra.mxu0 %v676
    %714 = vmatprep.subr.mxu0 %v681
    %715 = vmatpush1.msra.mxu0 %v680
    %716 = vmatprep.subr.mxu0 0.0
    %717 = vmatpush1.msra.mxu0 0.0
    %718 = vmatprep.subr.mxu0 0.0
    %719 = vmatpush1.msra.mxu0 0.0
    %720 = vmatprep.subr.mxu0 0.0
    %721 = vmatpush1.msra.mxu0 0.0
    %722 = vmatprep.subr.mxu0 0.0
    %723 = vmatpush1.msra.mxu0 0.0
    %724 = vmatprep.subr.mxu0 0.0
    %725 = vmatpush1.msra.mxu0 0.0
    %726 = vmatprep.subr.mxu0 0.0
    %727 = vmatpush1.msra.mxu0 0.0
    %728 = vmatprep.subr.mxu0 0.0
    %729 = vmatpush1.msra.mxu0 0.0
    %730 = vmatprep.subr.mxu0 0.0
    %731 = vmatpush1.msra.mxu0 0.0
    %732 = vmatprep.subr.mxu0 0.0
    %733 = vmatpush1.msra.mxu0 0.0
    %734 = vmatprep.subr.mxu0 0.0
    %735 = vmatpush1.msra.mxu0 0.0
    %736 = vmatprep.subr.mxu0 0.0
    %737 = vmatpush1.msra.mxu0 0.0
    %738 = vmatprep.subr.mxu0 0.0
    %739 = vmatpush1.msra.mxu0 0.0
    %740 = vmatprep.subr.mxu0 0.0
    %741 = vmatpush1.msra.mxu0 0.0
    %742 = vmatprep.subr.mxu0 0.0
    %743 = vmatpush1.msra.mxu0 0.0
    %744 = vmatprep.subr.mxu0 0.0
    %745 = vmatpush1.msra.mxu0 0.0
    %746 = vmatprep.subr.mxu0 0.0
    %747 = vmatpush1.msra.mxu0 0.0
    %748 = vmatprep.mubr.f32.mxu0 0.0
    %749 = vmatmul.mubr.f32.gmra.mrb[0].mxu0 %v618
    %v750 = vpop.f32.mrb[0].mxu0
    %v751 = vadd.f32 0.0, %v750
    %v752 = vpop.f32.mrb[0].mxu0
    %v753 = vadd.f32 0.0, %v752
    %754 = vdwg.mxu0
    %755 = vmatprep.subr.mxu0 %v623
    %756 = vmatpush1.msra.mxu0 %v622
    %757 = vmatprep.subr.mxu0 %v627
    %758 = vmatpush1.msra.mxu0 %v626
    %759 = vmatprep.subr.mxu0 %v631
    %760 = vmatpush1.msra.mxu0 %v630
    %761 = vmatprep.subr.mxu0 %v635
    %762 = vmatpush1.msra.mxu0 %v634
    %763 = vmatprep.subr.mxu0 %v639
    %764 = vmatpush1.msra.mxu0 %v638
    %765 = vmatprep.subr.mxu0 %v643
    %766 = vmatpush1.msra.mxu0 %v642
    %767 = vmatprep.subr.mxu0 %v647
    %768 = vmatpush1.msra.mxu0 %v646
    %769 = vmatprep.subr.mxu0 %v651
    %770 = vmatpush1.msra.mxu0 %v650
    %771 = vmatprep.subr.mxu0 %v655
    %772 = vmatpush1.msra.mxu0 %v654
    %773 = vmatprep.subr.mxu0 %v659
    %774 = vmatpush1.msra.mxu0 %v658
    %775 = vmatprep.subr.mxu0 %v663
    %776 = vmatpush1.msra.mxu0 %v662
    %777 = vmatprep.subr.mxu0 %v667
    %778 = vmatpush1.msra.mxu0 %v666
    %779 = vmatprep.subr.mxu0 %v671
    %780 = vmatpush1.msra.mxu0 %v670
    %781 = vmatprep.subr.mxu0 %v675
    %782 = vmatpush1.msra.mxu0 %v674
    %783 = vmatprep.subr.mxu0 %v679
    %784 = vmatpush1.msra.mxu0 %v678
    %785 = vmatprep.subr.mxu0 %v683
    %786 = vmatpush1.msra.mxu0 %v682
    %787 = vmatprep.subr.mxu0 0.0
    %788 = vmatpush1.msra.mxu0 0.0
    %789 = vmatprep.subr.mxu0 0.0
    %790 = vmatpush1.msra.mxu0 0.0
    %791 = vmatprep.subr.mxu0 0.0
    %792 = vmatpush1.msra.mxu0 0.0
    %793 = vmatprep.subr.mxu0 0.0
    %794 = vmatpush1.msra.mxu0 0.0
    %795 = vmatprep.subr.mxu0 0.0
    %796 = vmatpush1.msra.mxu0 0.0
    %797 = vmatprep.subr.mxu0 0.0
    %798 = vmatpush1.msra.mxu0 0.0
    %799 = vmatprep.subr.mxu0 0.0
    %800 = vmatpush1.msra.mxu0 0.0
    %801 = vmatprep.subr.mxu0 0.0
    %802 = vmatpush1.msra.mxu0 0.0
    %803 = vmatprep.subr.mxu0 0.0
    %804 = vmatpush1.msra.mxu0 0.0
    %805 = vmatprep.subr.mxu0 0.0
    %806 = vmatpush1.msra.mxu0 0.0
    %807 = vmatprep.subr.mxu0 0.0
    %808 = vmatpush1.msra.mxu0 0.0
    %809 = vmatprep.subr.mxu0 0.0
    %810 = vmatpush1.msra.mxu0 0.0
    %811 = vmatprep.subr.mxu0 0.0
    %812 = vmatpush1.msra.mxu0 0.0
    %813 = vmatprep.subr.mxu0 0.0
    %814 = vmatpush1.msra.mxu0 0.0
    %815 = vmatprep.subr.mxu0 0.0
    %816 = vmatpush1.msra.mxu0 0.0
    %817 = vmatprep.subr.mxu0 0.0
    %818 = vmatpush1.msra.mxu0 0.0
    %819 = vmatprep.mubr.f32.mxu0 0.0
    %820 = vmatmul.mubr.f32.gmra.mrb[0].mxu0 %v618
    %v821 = vpop.f32.mrb[0].mxu0
    %v822 = vadd.f32 0.0, %v821
    %v823 = vpop.f32.mrb[0].mxu0
    %v824 = vadd.f32 0.0, %v823
    %825 = vdwg.mxu0
    %v826 = vadd.f32 %v614, %v751
    %v827 = vadd.f32 %v615, %v753
    %v828 = vadd.f32 %v616, %v822
    %v829 = vadd.f32 %v617, %v824
    %v830 = vxor.u32 %v826, 2147483648
    %v831 = vmul.f32 %v830, 1.442695
    %v832 = vpow.pop %v831
    %v833 = vadd.f32 %v832, 1.0
    %v834 = vrcp.pop %v833
    %v835 = vmul.f32 1.0, %v834
    %v836 = vxor.u32 %v827, 2147483648
    %v837 = vmul.f32 %v836, 1.442695
    %v838 = vpow.pop %v837
    %v839 = vadd.f32 %v838, 1.0
    %v840 = vrcp.pop %v839
    %v841 = vmul.f32 1.0, %v840
    %v842 = vtanh.pop %v828
    %v843 = vxor.u32 %v829, 2147483648
    %v844 = vmul.f32 %v843, 1.442695
    %v845 = vpow.pop %v844
    %v846 = vadd.f32 %v845, 1.0
    %v847 = vrcp.pop %v846
    %v848 = vmul.f32 1.0, %v847
    %v849 = vmul.f32 %v841, %v619
    %v850 = vmul.f32 %v835, %v842
    %v851 = vadd.f32 %v849, %v850
    %v852 = vtanh.pop %v851
    %v853 = vmul.f32 %v848, %v852
    %855 = vset.pattern.permute.xlu0 0
    %856 = vperm.xlu0 %855, %v612
    %v857 = vpop.permute.xlu0 %856
    %v859 = vmul.f32 %v857, %v853
    %v860 = vsub.f32 1.0, %v612
    %862 = vset.pattern.permute.xlu0 0
    %863 = vperm.xlu0 %862, %v860
    %v864 = vpop.permute.xlu0 %863
    %v866 = vmul.f32 %v864, %v618
    %v867 = vadd.f32 %v859, %v866
    %v868 = vmul.f32 %v857, %v851
    %v869 = vmul.f32 %v864, %v619
    %v870 = vadd.f32 %v868, %v869
    %871 = vst [vmem:[#allocation2] sm:$0xff] %v867
    %872 = vst [vmem:[#allocation3] sm:$0xff] %v870
    %v873 = vmul.f32 %v857, %v867
    %s874 = scalar_lea.vmem [#allocation14], 16
    %875 = vst [vmem:[%s874] sm:$0xff] %v873
    %s876 = scalar_lea.vmem %s2, 48
    %v877 = vld [vmem:[%s876] sm:$0xff]
    %s878 = scalar_lea.vmem [#allocation9], 192
    %v879 = vld [vmem:[%s878] sm:$0xff]
    %v880 = vld [vmem:[%s878 + $0x8] sm:$0xff]
    %v881 = vld [vmem:[%s878 + $0x10] sm:$0xff]
    %v882 = vld [vmem:[%s878 + $0x18] sm:$0xff]
    %v883 = vld [vmem:[#allocation4] sm:$0xff]
    %v884 = vld [vmem:[#allocation5] sm:$0xff]
    %v885 = vld [vmem:[#allocation12] sm:$0xff]
    %v886 = vld [vmem:[#allocation12 + $0x8] sm:$0xff]
    %v887 = vld [vmem:[#allocation12 + $0x10] sm:$0xff]
    %v888 = vld [vmem:[#allocation12 + $0x18] sm:$0xff]
    %v889 = vld [vmem:[#allocation12 + $0x20] sm:$0xff]
    %v890 = vld [vmem:[#allocation12 + $0x28] sm:$0xff]
    %v891 = vld [vmem:[#allocation12 + $0x30] sm:$0xff]
    %v892 = vld [vmem:[#allocation12 + $0x38] sm:$0xff]
    %v893 = vld [vmem:[#allocation12 + $0x40] sm:$0xff]
    %v894 = vld [vmem:[#allocation12 + $0x48] sm:$0xff]
    %v895 = vld [vmem:[#allocation12 + $0x50] sm:$0xff]
    %v896 = vld [vmem:[#allocation12 + $0x58] sm:$0xff]
    %v897 = vld [vmem:[#allocation12 + $0x60] sm:$0xff]
    %v898 = vld [vmem:[#allocation12 + $0x68] sm:$0xff]
    %v899 = vld [vmem:[#allocation12 + $0x70] sm:$0xff]
    %v900 = vld [vmem:[#allocation12 + $0x78] sm:$0xff]
    %v901 = vld [vmem:[#allocation12 + $0x80] sm:$0xff]
    %v902 = vld [vmem:[#allocation12 + $0x88] sm:$0xff]
    %v903 = vld [vmem:[#allocation12 + $0x90] sm:$0xff]
    %v904 = vld [vmem:[#allocation12 + $0x98] sm:$0xff]
    %v905 = vld [vmem:[#allocation12 + $0xa0] sm:$0xff]
    %v906 = vld [vmem:[#allocation12 + $0xa8] sm:$0xff]
    %v907 = vld [vmem:[#allocation12 + $0xb0] sm:$0xff]
    %v908 = vld [vmem:[#allocation12 + $0xb8] sm:$0xff]
    %v909 = vld [vmem:[#allocation12 + $0xc0] sm:$0xff]
    %v910 = vld [vmem:[#allocation12 + $0xc8] sm:$0xff]
    %v911 = vld [vmem:[#allocation12 + $0xd0] sm:$0xff]
    %v912 = vld [vmem:[#allocation12 + $0xd8] sm:$0xff]
    %v913 = vld [vmem:[#allocation12 + $0xe0] sm:$0xff]
    %v914 = vld [vmem:[#allocation12 + $0xe8] sm:$0xff]
    %v915 = vld [vmem:[#allocation12 + $0xf0] sm:$0xff]
    %v916 = vld [vmem:[#allocation12 + $0xf8] sm:$0xff]
    %v917 = vld [vmem:[#allocation12 + $0x100] sm:$0xff]
    %v918 = vld [vmem:[#allocation12 + $0x108] sm:$0xff]
    %v919 = vld [vmem:[#allocation12 + $0x110] sm:$0xff]
    %v920 = vld [vmem:[#allocation12 + $0x118] sm:$0xff]
    %v921 = vld [vmem:[#allocation12 + $0x120] sm:$0xff]
    %v922 = vld [vmem:[#allocation12 + $0x128] sm:$0xff]
    %v923 = vld [vmem:[#allocation12 + $0x130] sm:$0xff]
    %v924 = vld [vmem:[#allocation12 + $0x138] sm:$0xff]
    %v925 = vld [vmem:[#allocation12 + $0x140] sm:$0xff]
    %v926 = vld [vmem:[#allocation12 + $0x148] sm:$0xff]
    %v927 = vld [vmem:[#allocation12 + $0x150] sm:$0xff]
    %v928 = vld [vmem:[#allocation12 + $0x158] sm:$0xff]
    %v929 = vld [vmem:[#allocation12 + $0x160] sm:$0xff]
    %v930 = vld [vmem:[#allocation12 + $0x168] sm:$0xff]
    %v931 = vld [vmem:[#allocation12 + $0x170] sm:$0xff]
    %v932 = vld [vmem:[#allocation12 + $0x178] sm:$0xff]
    %v933 = vld [vmem:[#allocation12 + $0x180] sm:$0xff]
    %v934 = vld [vmem:[#allocation12 + $0x188] sm:$0xff]
    %v935 = vld [vmem:[#allocation12 + $0x190] sm:$0xff]
    %v936 = vld [vmem:[#allocation12 + $0x198] sm:$0xff]
    %v937 = vld [vmem:[#allocation12 + $0x1a0] sm:$0xff]
    %v938 = vld [vmem:[#allocation12 + $0x1a8] sm:$0xff]
    %v939 = vld [vmem:[#allocation12 + $0x1b0] sm:$0xff]
    %v940 = vld [vmem:[#allocation12 + $0x1b8] sm:$0xff]
    %v941 = vld [vmem:[#allocation12 + $0x1c0] sm:$0xff]
    %v942 = vld [vmem:[#allocation12 + $0x1c8] sm:$0xff]
    %v943 = vld [vmem:[#allocation12 + $0x1d0] sm:$0xff]
    %v944 = vld [vmem:[#allocation12 + $0x1d8] sm:$0xff]
    %v945 = vld [vmem:[#allocation12 + $0x1e0] sm:$0xff]
    %v946 = vld [vmem:[#allocation12 + $0x1e8] sm:$0xff]
    %v947 = vld [vmem:[#allocation12 + $0x1f0] sm:$0xff]
    %v948 = vld [vmem:[#allocation12 + $0x1f8] sm:$0xff]
    %949 = vmatprep.subr.mxu0 %v886
    %950 = vmatpush1.msra.mxu0 %v885
    %951 = vmatprep.subr.mxu0 %v890
    %952 = vmatpush1.msra.mxu0 %v889
    %953 = vmatprep.subr.mxu0 %v894
    %954 = vmatpush1.msra.mxu0 %v893
    %955 = vmatprep.subr.mxu0 %v898
    %956 = vmatpush1.msra.mxu0 %v897
    %957 = vmatprep.subr.mxu0 %v902
    %958 = vmatpush1.msra.mxu0 %v901
    %959 = vmatprep.subr.mxu0 %v906
    %960 = vmatpush1.msra.mxu0 %v905
    %961 = vmatprep.subr.mxu0 %v910
    %962 = vmatpush1.msra.mxu0 %v909
    %963 = vmatprep.subr.mxu0 %v914
    %964 = vmatpush1.msra.mxu0 %v913
    %965 = vmatprep.subr.mxu0 %v918
    %966 = vmatpush1.msra.mxu0 %v917
    %967 = vmatprep.subr.mxu0 %v922
    %968 = vmatpush1.msra.mxu0 %v921
    %969 = vmatprep.subr.mxu0 %v926
    %970 = vmatpush1.msra.mxu0 %v925
    %971 = vmatprep.subr.mxu0 %v930
    %972 = vmatpush1.msra.mxu0 %v929
    %973 = vmatprep.subr.mxu0 %v934
    %974 = vmatpush1.msra.mxu0 %v933
    %975 = vmatprep.subr.mxu0 %v938
    %976 = vmatpush1.msra.mxu0 %v937
    %977 = vmatprep.subr.mxu0 %v942
    %978 = vmatpush1.msra.mxu0 %v941
    %979 = vmatprep.subr.mxu0 %v946
    %980 = vmatpush1.msra.mxu0 %v945
    %981 = vmatprep.subr.mxu0 0.0
    %982 = vmatpush1.msra.mxu0 0.0
    %983 = vmatprep.subr.mxu0 0.0
    %984 = vmatpush1.msra.mxu0 0.0
    %985 = vmatprep.subr.mxu0 0.0
    %986 = vmatpush1.msra.mxu0 0.0
    %987 = vmatprep.subr.mxu0 0.0
    %988 = vmatpush1.msra.mxu0 0.0
    %989 = vmatprep.subr.mxu0 0.0
    %990 = vmatpush1.msra.mxu0 0.0
    %991 = vmatprep.subr.mxu0 0.0
    %992 = vmatpush1.msra.mxu0 0.0
    %993 = vmatprep.subr.mxu0 0.0
    %994 = vmatpush1.msra.mxu0 0.0
    %995 = vmatprep.subr.mxu0 0.0
    %996 = vmatpush1.msra.mxu0 0.0
    %997 = vmatprep.subr.mxu0 0.0
    %998 = vmatpush1.msra.mxu0 0.0
    %999 = vmatprep.subr.mxu0 0.0
    %1000 = vmatpush1.msra.mxu0 0.0
    %1001 = vmatprep.subr.mxu0 0.0
    %1002 = vmatpush1.msra.mxu0 0.0
    %1003 = vmatprep.subr.mxu0 0.0
    %1004 = vmatpush1.msra.mxu0 0.0
    %1005 = vmatprep.subr.mxu0 0.0
    %1006 = vmatpush1.msra.mxu0 0.0
    %1007 = vmatprep.subr.mxu0 0.0
    %1008 = vmatpush1.msra.mxu0 0.0
    %1009 = vmatprep.subr.mxu0 0.0
    %1010 = vmatpush1.msra.mxu0 0.0
    %1011 = vmatprep.subr.mxu0 0.0
    %1012 = vmatpush1.msra.mxu0 0.0
    %1013 = vmatprep.mubr.f32.mxu0 0.0
    %1014 = vmatmul.mubr.f32.gmra.mrb[0].mxu0 %v883
    %v1015 = vpop.f32.mrb[0].mxu0
    %v1016 = vadd.f32 0.0, %v1015
    %v1017 = vpop.f32.mrb[0].mxu0
    %v1018 = vadd.f32 0.0, %v1017
    %1019 = vdwg.mxu0
    %1020 = vmatprep.subr.mxu0 %v888
    %1021 = vmatpush1.msra.mxu0 %v887
    %1022 = vmatprep.subr.mxu0 %v892
    %1023 = vmatpush1.msra.mxu0 %v891
    %1024 = vmatprep.subr.mxu0 %v896
    %1025 = vmatpush1.msra.mxu0 %v895
    %1026 = vmatprep.subr.mxu0 %v900
    %1027 = vmatpush1.msra.mxu0 %v899
    %1028 = vmatprep.subr.mxu0 %v904
    %1029 = vmatpush1.msra.mxu0 %v903
    %1030 = vmatprep.subr.mxu0 %v908
    %1031 = vmatpush1.msra.mxu0 %v907
    %1032 = vmatprep.subr.mxu0 %v912
    %1033 = vmatpush1.msra.mxu0 %v911
    %1034 = vmatprep.subr.mxu0 %v916
    %1035 = vmatpush1.msra.mxu0 %v915
    %1036 = vmatprep.subr.mxu0 %v920
    %1037 = vmatpush1.msra.mxu0 %v919
    %1038 = vmatprep.subr.mxu0 %v924
    %1039 = vmatpush1.msra.mxu0 %v923
    %1040 = vmatprep.subr.mxu0 %v928
    %1041 = vmatpush1.msra.mxu0 %v927
    %1042 = vmatprep.subr.mxu0 %v932
    %1043 = vmatpush1.msra.mxu0 %v931
    %1044 = vmatprep.subr.mxu0 %v936
    %1045 = vmatpush1.msra.mxu0 %v935
    %1046 = vmatprep.subr.mxu0 %v940
    %1047 = vmatpush1.msra.mxu0 %v939
    %1048 = vmatprep.subr.mxu0 %v944
    %1049 = vmatpush1.msra.mxu0 %v943
    %1050 = vmatprep.subr.mxu0 %v948
    %1051 = vmatpush1.msra.mxu0 %v947
    %1052 = vmatprep.subr.mxu0 0.0
    %1053 = vmatpush1.msra.mxu0 0.0
    %1054 = vmatprep.subr.mxu0 0.0
    %1055 = vmatpush1.msra.mxu0 0.0
    %1056 = vmatprep.subr.mxu0 0.0
    %1057 = vmatpush1.msra.mxu0 0.0
    %1058 = vmatprep.subr.mxu0 0.0
    %1059 = vmatpush1.msra.mxu0 0.0
    %1060 = vmatprep.subr.mxu0 0.0
    %1061 = vmatpush1.msra.mxu0 0.0
    %1062 = vmatprep.subr.mxu0 0.0
    %1063 = vmatpush1.msra.mxu0 0.0
    %1064 = vmatprep.subr.mxu0 0.0
    %1065 = vmatpush1.msra.mxu0 0.0
    %1066 = vmatprep.subr.mxu0 0.0
    %1067 = vmatpush1.msra.mxu0 0.0
    %1068 = vmatprep.subr.mxu0 0.0
    %1069 = vmatpush1.msra.mxu0 0.0
    %1070 = vmatprep.subr.mxu0 0.0
    %1071 = vmatpush1.msra.mxu0 0.0
    %1072 = vmatprep.subr.mxu0 0.0
    %1073 = vmatpush1.msra.mxu0 0.0
    %1074 = vmatprep.subr.mxu0 0.0
    %1075 = vmatpush1.msra.mxu0 0.0
    %1076 = vmatprep.subr.mxu0 0.0
    %1077 = vmatpush1.msra.mxu0 0.0
    %1078 = vmatprep.subr.mxu0 0.0
    %1079 = vmatpush1.msra.mxu0 0.0
    %1080 = vmatprep.subr.mxu0 0.0
    %1081 = vmatpush1.msra.mxu0 0.0
    %1082 = vmatprep.subr.mxu0 0.0
    %1083 = vmatpush1.msra.mxu0 0.0
    %1084 = vmatprep.mubr.f32.mxu0 0.0
    %1085 = vmatmul.mubr.f32.gmra.mrb[0].mxu0 %v883
    %v1086 = vpop.f32.mrb[0].mxu0
    %v1087 = vadd.f32 0.0, %v1086
    %v1088 = vpop.f32.mrb[0].mxu0
    %v1089 = vadd.f32 0.0, %v1088
    %1090 = vdwg.mxu0
    %v1091 = vadd.f32 %v879, %v1016
    %v1092 = vadd.f32 %v880, %v1018
    %v1093 = vadd.f32 %v881, %v1087
    %v1094 = vadd.f32 %v882, %v1089
    %v1095 = vxor.u32 %v1091, 2147483648
    %v1096 = vmul.f32 %v1095, 1.442695
    %v1097 = vpow.pop %v1096
    %v1098 = vadd.f32 %v1097, 1.0
    %v1099 = vrcp.pop %v1098
    %v1100 = vmul.f32 1.0, %v1099
    %v1101 = vxor.u32 %v1092, 2147483648
    %v1102 = vmul.f32 %v1101, 1.442695
    %v1103 = vpow.pop %v1102
    %v1104 = vadd.f32 %v1103, 1.0
    %v1105 = vrcp.pop %v1104
    %v1106 = vmul.f32 1.0, %v1105
    %v1107 = vtanh.pop %v1093
    %v1108 = vxor.u32 %v1094, 2147483648
    %v1109 = vmul.f32 %v1108, 1.442695
    %v1110 = vpow.pop %v1109
    %v1111 = vadd.f32 %v1110, 1.0
    %v1112 = vrcp.pop %v1111
    %v1113 = vmul.f32 1.0, %v1112
    %v1114 = vmul.f32 %v1106, %v884
    %v1115 = vmul.f32 %v1100, %v1107
    %v1116 = vadd.f32 %v1114, %v1115
    %v1117 = vtanh.pop %v1116
    %v1118 = vmul.f32 %v1113, %v1117
    %1120 = vset.pattern.permute.xlu0 0
    %1121 = vperm.xlu0 %1120, %v877
    %v1122 = vpop.permute.xlu0 %1121
    %v1124 = vmul.f32 %v1122, %v1118
    %v1125 = vsub.f32 1.0, %v877
    %1127 = vset.pattern.permute.xlu0 0
    %1128 = vperm.xlu0 %1127, %v1125
    %v1129 = vpop.permute.xlu0 %1128
    %v1131 = vmul.f32 %v1129, %v883
    %v1132 = vadd.f32 %v1124, %v1131
    %v1133 = vmul.f32 %v1122, %v1116
    %v1134 = vmul.f32 %v1129, %v884
    %v1135 = vadd.f32 %v1133, %v1134
    %1136 = vst [vmem:[#allocation4] sm:$0xff] %v1132
    %1137 = vst [vmem:[#allocation5] sm:$0xff] %v1135
    %v1138 = vmul.f32 %v1122, %v1132
    %s1139 = scalar_lea.vmem [#allocation14], 96
    %1140 = vst [vmem:[%s1139 + $0x8] sm:$0xff] %v1138
    %s1141 = scalar_lea.vmem %s2, 16
    %v1142 = vld [vmem:[%s1141] sm:$0xff]
    %s1143 = scalar_lea.vmem [#allocation6], 64
    %v1144 = vld [vmem:[%s1143] sm:$0xff]
    %v1145 = vld [vmem:[%s1143 + $0x8] sm:$0xff]
    %v1146 = vld [vmem:[%s1143 + $0x10] sm:$0xff]
    %v1147 = vld [vmem:[%s1143 + $0x18] sm:$0xff]
    %v1148 = vld [vmem:[#allocation2] sm:$0xff]
    %v1149 = vld [vmem:[#allocation3] sm:$0xff]
    %v1150 = vld [vmem:[#allocation11] sm:$0xff]
    %v1151 = vld [vmem:[#allocation11 + $0x8] sm:$0xff]
    %v1152 = vld [vmem:[#allocation11 + $0x10] sm:$0xff]
    %v1153 = vld [vmem:[#allocation11 + $0x18] sm:$0xff]
    %v1154 = vld [vmem:[#allocation11 + $0x20] sm:$0xff]
    %v1155 = vld [vmem:[#allocation11 + $0x28] sm:$0xff]
    %v1156 = vld [vmem:[#allocation11 + $0x30] sm:$0xff]
    %v1157 = vld [vmem:[#allocation11 + $0x38] sm:$0xff]
    %v1158 = vld [vmem:[#allocation11 + $0x40] sm:$0xff]
    %v1159 = vld [vmem:[#allocation11 + $0x48] sm:$0xff]
    %v1160 = vld [vmem:[#allocation11 + $0x50] sm:$0xff]
    %v1161 = vld [vmem:[#allocation11 + $0x58] sm:$0xff]
    %v1162 = vld [vmem:[#allocation11 + $0x60] sm:$0xff]
    %v1163 = vld [vmem:[#allocation11 + $0x68] sm:$0xff]
    %v1164 = vld [vmem:[#allocation11 + $0x70] sm:$0xff]
    %v1165 = vld [vmem:[#allocation11 + $0x78] sm:$0xff]
    %v1166 = vld [vmem:[#allocation11 + $0x80] sm:$0xff]
    %v1167 = vld [vmem:[#allocation11 + $0x88] sm:$0xff]
    %v1168 = vld [vmem:[#allocation11 + $0x90] sm:$0xff]
    %v1169 = vld [vmem:[#allocation11 + $0x98] sm:$0xff]
    %v1170 = vld [vmem:[#allocation11 + $0xa0] sm:$0xff]
    %v1171 = vld [vmem:[#allocation11 + $0xa8] sm:$0xff]
    %v1172 = vld [vmem:[#allocation11 + $0xb0] sm:$0xff]
    %v1173 = vld [vmem:[#allocation11 + $0xb8] sm:$0xff]
    %v1174 = vld [vmem:[#allocation11 + $0xc0] sm:$0xff]
    %v1175 = vld [vmem:[#allocation11 + $0xc8] sm:$0xff]
    %v1176 = vld [vmem:[#allocation11 + $0xd0] sm:$0xff]
    %v1177 = vld [vmem:[#allocation11 + $0xd8] sm:$0xff]
    %v1178 = vld [vmem:[#allocation11 + $0xe0] sm:$0xff]
    %v1179 = vld [vmem:[#allocation11 + $0xe8] sm:$0xff]
    %v1180 = vld [vmem:[#allocation11 + $0xf0] sm:$0xff]
    %v1181 = vld [vmem:[#allocation11 + $0xf8] sm:$0xff]
    %v1182 = vld [vmem:[#allocation11 + $0x100] sm:$0xff]
    %v1183 = vld [vmem:[#allocation11 + $0x108] sm:$0xff]
    %v1184 = vld [vmem:[#allocation11 + $0x110] sm:$0xff]
    %v1185 = vld [vmem:[#allocation11 + $0x118] sm:$0xff]
    %v1186 = vld [vmem:[#allocation11 + $0x120] sm:$0xff]
    %v1187 = vld [vmem:[#allocation11 + $0x128] sm:$0xff]
    %v1188 = vld [vmem:[#allocation11 + $0x130] sm:$0xff]
    %v1189 = vld [vmem:[#allocation11 + $0x138] sm:$0xff]
    %v1190 = vld [vmem:[#allocation11 + $0x140] sm:$0xff]
    %v1191 = vld [vmem:[#allocation11 + $0x148] sm:$0xff]
    %v1192 = vld [vmem:[#allocation11 + $0x150] sm:$0xff]
    %v1193 = vld [vmem:[#allocation11 + $0x158] sm:$0xff]
    %v1194 = vld [vmem:[#allocation11 + $0x160] sm:$0xff]
    %v1195 = vld [vmem:[#allocation11 + $0x168] sm:$0xff]
    %v1196 = vld [vmem:[#allocation11 + $0x170] sm:$0xff]
    %v1197 = vld [vmem:[#allocation11 + $0x178] sm:$0xff]
    %v1198 = vld [vmem:[#allocation11 + $0x180] sm:$0xff]
    %v1199 = vld [vmem:[#allocation11 + $0x188] sm:$0xff]
    %v1200 = vld [vmem:[#allocation11 + $0x190] sm:$0xff]
    %v1201 = vld [vmem:[#allocation11 + $0x198] sm:$0xff]
    %v1202 = vld [vmem:[#allocation11 + $0x1a0] sm:$0xff]
    %v1203 = vld [vmem:[#allocation11 + $0x1a8] sm:$0xff]
    %v1204 = vld [vmem:[#allocation11 + $0x1b0] sm:$0xff]
    %v1205 = vld [vmem:[#allocation11 + $0x1b8] sm:$0xff]
    %v1206 = vld [vmem:[#allocation11 + $0x1c0] sm:$0xff]
    %v1207 = vld [vmem:[#allocation11 + $0x1c8] sm:$0xff]
    %v1208 = vld [vmem:[#allocation11 + $0x1d0] sm:$0xff]
    %v1209 = vld [vmem:[#allocation11 + $0x1d8] sm:$0xff]
    %v1210 = vld [vmem:[#allocation11 + $0x1e0] sm:$0xff]
    %v1211 = vld [vmem:[#allocation11 + $0x1e8] sm:$0xff]
    %v1212 = vld [vmem:[#allocation11 + $0x1f0] sm:$0xff]
    %v1213 = vld [vmem:[#allocation11 + $0x1f8] sm:$0xff]
    %1214 = vmatprep.subr.mxu0 %v1151
    %1215 = vmatpush1.msra.mxu0 %v1150
    %1216 = vmatprep.subr.mxu0 %v1155
    %1217 = vmatpush1.msra.mxu0 %v1154
    %1218 = vmatprep.subr.mxu0 %v1159
    %1219 = vmatpush1.msra.mxu0 %v1158
    %1220 = vmatprep.subr.mxu0 %v1163
    %1221 = vmatpush1.msra.mxu0 %v1162
    %1222 = vmatprep.subr.mxu0 %v1167
    %1223 = vmatpush1.msra.mxu0 %v1166
    %1224 = vmatprep.subr.mxu0 %v1171
    %1225 = vmatpush1.msra.mxu0 %v1170
    %1226 = vmatprep.subr.mxu0 %v1175
    %1227 = vmatpush1.msra.mxu0 %v1174
    %1228 = vmatprep.subr.mxu0 %v1179
    %1229 = vmatpush1.msra.mxu0 %v1178
    %1230 = vmatprep.subr.mxu0 %v1183
    %1231 = vmatpush1.msra.mxu0 %v1182
    %1232 = vmatprep.subr.mxu0 %v1187
    %1233 = vmatpush1.msra.mxu0 %v1186
    %1234 = vmatprep.subr.mxu0 %v1191
    %1235 = vmatpush1.msra.mxu0 %v1190
    %1236 = vmatprep.subr.mxu0 %v1195
    %1237 = vmatpush1.msra.mxu0 %v1194
    %1238 = vmatprep.subr.mxu0 %v1199
    %1239 = vmatpush1.msra.mxu0 %v1198
    %1240 = vmatprep.subr.mxu0 %v1203
    %1241 = vmatpush1.msra.mxu0 %v1202
    %1242 = vmatprep.subr.mxu0 %v1207
    %1243 = vmatpush1.msra.mxu0 %v1206
    %1244 = vmatprep.subr.mxu0 %v1211
    %1245 = vmatpush1.msra.mxu0 %v1210
    %1246 = vmatprep.subr.mxu0 0.0
    %1247 = vmatpush1.msra.mxu0 0.0
    %1248 = vmatprep.subr.mxu0 0.0
    %1249 = vmatpush1.msra.mxu0 0.0
    %1250 = vmatprep.subr.mxu0 0.0
    %1251 = vmatpush1.msra.mxu0 0.0
    %1252 = vmatprep.subr.mxu0 0.0
    %1253 = vmatpush1.msra.mxu0 0.0
    %1254 = vmatprep.subr.mxu0 0.0
    %1255 = vmatpush1.msra.mxu0 0.0
    %1256 = vmatprep.subr.mxu0 0.0
    %1257 = vmatpush1.msra.mxu0 0.0
    %1258 = vmatprep.subr.mxu0 0.0
    %1259 = vmatpush1.msra.mxu0 0.0
    %1260 = vmatprep.subr.mxu0 0.0
    %1261 = vmatpush1.msra.mxu0 0.0
    %1262 = vmatprep.subr.mxu0 0.0
    %1263 = vmatpush1.msra.mxu0 0.0
    %1264 = vmatprep.subr.mxu0 0.0
    %1265 = vmatpush1.msra.mxu0 0.0
    %1266 = vmatprep.subr.mxu0 0.0
    %1267 = vmatpush1.msra.mxu0 0.0
    %1268 = vmatprep.subr.mxu0 0.0
    %1269 = vmatpush1.msra.mxu0 0.0
    %1270 = vmatprep.subr.mxu0 0.0
    %1271 = vmatpush1.msra.mxu0 0.0
    %1272 = vmatprep.subr.mxu0 0.0
    %1273 = vmatpush1.msra.mxu0 0.0
    %1274 = vmatprep.subr.mxu0 0.0
    %1275 = vmatpush1.msra.mxu0 0.0
    %1276 = vmatprep.subr.mxu0 0.0
    %1277 = vmatpush1.msra.mxu0 0.0
    %1278 = vmatprep.mubr.f32.mxu0 0.0
    %1279 = vmatmul.mubr.f32.gmra.mrb[0].mxu0 %v1148
    %v1280 = vpop.f32.mrb[0].mxu0
    %v1281 = vadd.f32 0.0, %v1280
    %v1282 = vpop.f32.mrb[0].mxu0
    %v1283 = vadd.f32 0.0, %v1282
    %1284 = vdwg.mxu0
    %1285 = vmatprep.subr.mxu0 %v1153
    %1286 = vmatpush1.msra.mxu0 %v1152
    %1287 = vmatprep.subr.mxu0 %v1157
    %1288 = vmatpush1.msra.mxu0 %v1156
    %1289 = vmatprep.subr.mxu0 %v1161
    %1290 = vmatpush1.msra.mxu0 %v1160
    %1291 = vmatprep.subr.mxu0 %v1165
    %1292 = vmatpush1.msra.mxu0 %v1164
    %1293 = vmatprep.subr.mxu0 %v1169
    %1294 = vmatpush1.msra.mxu0 %v1168
    %1295 = vmatprep.subr.mxu0 %v1173
    %1296 = vmatpush1.msra.mxu0 %v1172
    %1297 = vmatprep.subr.mxu0 %v1177
    %1298 = vmatpush1.msra.mxu0 %v1176
    %1299 = vmatprep.subr.mxu0 %v1181
    %1300 = vmatpush1.msra.mxu0 %v1180
    %1301 = vmatprep.subr.mxu0 %v1185
    %1302 = vmatpush1.msra.mxu0 %v1184
    %1303 = vmatprep.subr.mxu0 %v1189
    %1304 = vmatpush1.msra.mxu0 %v1188
    %1305 = vmatprep.subr.mxu0 %v1193
    %1306 = vmatpush1.msra.mxu0 %v1192
    %1307 = vmatprep.subr.mxu0 %v1197
    %1308 = vmatpush1.msra.mxu0 %v1196
    %1309 = vmatprep.subr.mxu0 %v1201
    %1310 = vmatpush1.msra.mxu0 %v1200
    %1311 = vmatprep.subr.mxu0 %v1205
    %1312 = vmatpush1.msra.mxu0 %v1204
    %1313 = vmatprep.subr.mxu0 %v1209
    %1314 = vmatpush1.msra.mxu0 %v1208
    %1315 = vmatprep.subr.mxu0 %v1213
    %1316 = vmatpush1.msra.mxu0 %v1212
    %1317 = vmatprep.subr.mxu0 0.0
    %1318 = vmatpush1.msra.mxu0 0.0
    %1319 = vmatprep.subr.mxu0 0.0
    %1320 = vmatpush1.msra.mxu0 0.0
    %1321 = vmatprep.subr.mxu0 0.0
    %1322 = vmatpush1.msra.mxu0 0.0
    %1323 = vmatprep.subr.mxu0 0.0
    %1324 = vmatpush1.msra.mxu0 0.0
    %1325 = vmatprep.subr.mxu0 0.0
    %1326 = vmatpush1.msra.mxu0 0.0
    %1327 = vmatprep.subr.mxu0 0.0
    %1328 = vmatpush1.msra.mxu0 0.0
    %1329 = vmatprep.subr.mxu0 0.0
    %1330 = vmatpush1.msra.mxu0 0.0
    %1331 = vmatprep.subr.mxu0 0.0
    %1332 = vmatpush1.msra.mxu0 0.0
    %1333 = vmatprep.subr.mxu0 0.0
    %1334 = vmatpush1.msra.mxu0 0.0
    %1335 = vmatprep.subr.mxu0 0.0
    %1336 = vmatpush1.msra.mxu0 0.0
    %1337 = vmatprep.subr.mxu0 0.0
    %1338 = vmatpush1.msra.mxu0 0.0
    %1339 = vmatprep.subr.mxu0 0.0
    %1340 = vmatpush1.msra.mxu0 0.0
    %1341 = vmatprep.subr.mxu0 0.0
    %1342 = vmatpush1.msra.mxu0 0.0
    %1343 = vmatprep.subr.mxu0 0.0
    %1344 = vmatpush1.msra.mxu0 0.0
    %1345 = vmatprep.subr.mxu0 0.0
    %1346 = vmatpush1.msra.mxu0 0.0
    %1347 = vmatprep.subr.mxu0 0.0
    %1348 = vmatpush1.msra.mxu0 0.0
    %1349 = vmatprep.mubr.f32.mxu0 0.0
    %1350 = vmatmul.mubr.f32.gmra.mrb[0].mxu0 %v1148
    %v1351 = vpop.f32.mrb[0].mxu0
    %v1352 = vadd.f32 0.0, %v1351
    %v1353 = vpop.f32.mrb[0].mxu0
    %v1354 = vadd.f32 0.0, %v1353
    %1355 = vdwg.mxu0
    %v1356 = vadd.f32 %v1144, %v1281
    %v1357 = vadd.f32 %v1145, %v1283
    %v1358 = vadd.f32 %v1146, %v1352
    %v1359 = vadd.f32 %v1147, %v1354
    %v1360 = vxor.u32 %v1356, 2147483648
    %v1361 = vmul.f32 %v1360, 1.442695
    %v1362 = vpow.pop %v1361
    %v1363 = vadd.f32 %v1362, 1.0
    %v1364 = vrcp.pop %v1363
    %v1365 = vmul.f32 1.0, %v1364
    %v1366 = vxor.u32 %v1357, 2147483648
    %v1367 = vmul.f32 %v1366, 1.442695
    %v1368 = vpow.pop %v1367
    %v1369 = vadd.f32 %v1368, 1.0
    %v1370 = vrcp.pop %v1369
    %v1371 = vmul.f32 1.0, %v1370
    %v1372 = vtanh.pop %v1358
    %v1373 = vxor.u32 %v1359, 2147483648
    %v1374 = vmul.f32 %v1373, 1.442695
    %v1375 = vpow.pop %v1374
    %v1376 = vadd.f32 %v1375, 1.0
    %v1377 = vrcp.pop %v1376
    %v1378 = vmul.f32 1.0, %v1377
    %v1379 = vmul.f32 %v1371, %v1149
    %v1380 = vmul.f32 %v1365, %v1372
    %v1381 = vadd.f32 %v1379, %v1380
    %v1382 = vtanh.pop %v1381
    %v1383 = vmul.f32 %v1378, %v1382
    %1385 = vset.pattern.permute.xlu0 0
    %1386 = vperm.xlu0 %1385, %v1142
    %v1387 = vpop.permute.xlu0 %1386
    %v1389 = vmul.f32 %v1387, %v1383
    %v1390 = vsub.f32 1.0, %v1142
    %1392 = vset.pattern.permute.xlu0 0
    %1393 = vperm.xlu0 %1392, %v1390
    %v1394 = vpop.permute.xlu0 %1393
    %v1396 = vmul.f32 %v1394, %v1148
    %v1397 = vadd.f32 %v1389, %v1396
    %v1398 = vmul.f32 %v1387, %v1381
    %v1399 = vmul.f32 %v1394, %v1149
    %v1400 = vadd.f32 %v1398, %v1399
    %1401 = vst [vmem:[#allocation2] sm:$0xff] %v1397
    %1402 = vst [vmem:[#allocation3] sm:$0xff] %v1400
    %v1403 = vmul.f32 %v1387, %v1397
    %s1404 = scalar_lea.vmem [#allocation14], 32
    %1405 = vst [vmem:[%s1404] sm:$0xff] %v1403
    %s1406 = scalar_lea.vmem %s2, 40
    %v1407 = vld [vmem:[%s1406] sm:$0xff]
    %s1408 = scalar_lea.vmem [#allocation9], 160
    %v1409 = vld [vmem:[%s1408] sm:$0xff]
    %v1410 = vld [vmem:[%s1408 + $0x8] sm:$0xff]
    %v1411 = vld [vmem:[%s1408 + $0x10] sm:$0xff]
    %v1412 = vld [vmem:[%s1408 + $0x18] sm:$0xff]
    %v1413 = vld [vmem:[#allocation4] sm:$0xff]
    %v1414 = vld [vmem:[#allocation5] sm:$0xff]
    %v1415 = vld [vmem:[#allocation12] sm:$0xff]
    %v1416 = vld [vmem:[#allocation12 + $0x8] sm:$0xff]
    %v1417 = vld [vmem:[#allocation12 + $0x10] sm:$0xff]
    %v1418 = vld [vmem:[#allocation12 + $0x18] sm:$0xff]
    %v1419 = vld [vmem:[#allocation12 + $0x20] sm:$0xff]
    %v1420 = vld [vmem:[#allocation12 + $0x28] sm:$0xff]
    %v1421 = vld [vmem:[#allocation12 + $0x30] sm:$0xff]
    %v1422 = vld [vmem:[#allocation12 + $0x38] sm:$0xff]
    %v1423 = vld [vmem:[#allocation12 + $0x40] sm:$0xff]
    %v1424 = vld [vmem:[#allocation12 + $0x48] sm:$0xff]
    %v1425 = vld [vmem:[#allocation12 + $0x50] sm:$0xff]
    %v1426 = vld [vmem:[#allocation12 + $0x58] sm:$0xff]
    %v1427 = vld [vmem:[#allocation12 + $0x60] sm:$0xff]
    %v1428 = vld [vmem:[#allocation12 + $0x68] sm:$0xff]
    %v1429 = vld [vmem:[#allocation12 + $0x70] sm:$0xff]
    %v1430 = vld [vmem:[#allocation12 + $0x78] sm:$0xff]
    %v1431 = vld [vmem:[#allocation12 + $0x80] sm:$0xff]
    %v1432 = vld [vmem:[#allocation12 + $0x88] sm:$0xff]
    %v1433 = vld [vmem:[#allocation12 + $0x90] sm:$0xff]
    %v1434 = vld [vmem:[#allocation12 + $0x98] sm:$0xff]
    %v1435 = vld [vmem:[#allocation12 + $0xa0] sm:$0xff]
    %v1436 = vld [vmem:[#allocation12 + $0xa8] sm:$0xff]
    %v1437 = vld [vmem:[#allocation12 + $0xb0] sm:$0xff]
    %v1438 = vld [vmem:[#allocation12 + $0xb8] sm:$0xff]
    %v1439 = vld [vmem:[#allocation12 + $0xc0] sm:$0xff]
    %v1440 = vld [vmem:[#allocation12 + $0xc8] sm:$0xff]
    %v1441 = vld [vmem:[#allocation12 + $0xd0] sm:$0xff]
    %v1442 = vld [vmem:[#allocation12 + $0xd8] sm:$0xff]
    %v1443 = vld [vmem:[#allocation12 + $0xe0] sm:$0xff]
    %v1444 = vld [vmem:[#allocation12 + $0xe8] sm:$0xff]
    %v1445 = vld [vmem:[#allocation12 + $0xf0] sm:$0xff]
    %v1446 = vld [vmem:[#allocation12 + $0xf8] sm:$0xff]
    %v1447 = vld [vmem:[#allocation12 + $0x100] sm:$0xff]
    %v1448 = vld [vmem:[#allocation12 + $0x108] sm:$0xff]
    %v1449 = vld [vmem:[#allocation12 + $0x110] sm:$0xff]
    %v1450 = vld [vmem:[#allocation12 + $0x118] sm:$0xff]
    %v1451 = vld [vmem:[#allocation12 + $0x120] sm:$0xff]
    %v1452 = vld [vmem:[#allocation12 + $0x128] sm:$0xff]
    %v1453 = vld [vmem:[#allocation12 + $0x130] sm:$0xff]
    %v1454 = vld [vmem:[#allocation12 + $0x138] sm:$0xff]
    %v1455 = vld [vmem:[#allocation12 + $0x140] sm:$0xff]
    %v1456 = vld [vmem:[#allocation12 + $0x148] sm:$0xff]
    %v1457 = vld [vmem:[#allocation12 + $0x150] sm:$0xff]
    %v1458 = vld [vmem:[#allocation12 + $0x158] sm:$0xff]
    %v1459 = vld [vmem:[#allocation12 + $0x160] sm:$0xff]
    %v1460 = vld [vmem:[#allocation12 + $0x168] sm:$0xff]
    %v1461 = vld [vmem:[#allocation12 + $0x170] sm:$0xff]
    %v1462 = vld [vmem:[#allocation12 + $0x178] sm:$0xff]
    %v1463 = vld [vmem:[#allocation12 + $0x180] sm:$0xff]
    %v1464 = vld [vmem:[#allocation12 + $0x188] sm:$0xff]
    %v1465 = vld [vmem:[#allocation12 + $0x190] sm:$0xff]
    %v1466 = vld [vmem:[#allocation12 + $0x198] sm:$0xff]
    %v1467 = vld [vmem:[#allocation12 + $0x1a0] sm:$0xff]
    %v1468 = vld [vmem:[#allocation12 + $0x1a8] sm:$0xff]
    %v1469 = vld [vmem:[#allocation12 + $0x1b0] sm:$0xff]
    %v1470 = vld [vmem:[#allocation12 + $0x1b8] sm:$0xff]
    %v1471 = vld [vmem:[#allocation12 + $0x1c0] sm:$0xff]
    %v1472 = vld [vmem:[#allocation12 + $0x1c8] sm:$0xff]
    %v1473 = vld [vmem:[#allocation12 + $0x1d0] sm:$0xff]
    %v1474 = vld [vmem:[#allocation12 + $0x1d8] sm:$0xff]
    %v1475 = vld [vmem:[#allocation12 + $0x1e0] sm:$0xff]
    %v1476 = vld [vmem:[#allocation12 + $0x1e8] sm:$0xff]
    %v1477 = vld [vmem:[#allocation12 + $0x1f0] sm:$0xff]
    %v1478 = vld [vmem:[#allocation12 + $0x1f8] sm:$0xff]
    %1479 = vmatprep.subr.mxu0 %v1416
    %1480 = vmatpush1.msra.mxu0 %v1415
    %1481 = vmatprep.subr.mxu0 %v1420
    %1482 = vmatpush1.msra.mxu0 %v1419
    %1483 = vmatprep.subr.mxu0 %v1424
    %1484 = vmatpush1.msra.mxu0 %v1423
    %1485 = vmatprep.subr.mxu0 %v1428
    %1486 = vmatpush1.msra.mxu0 %v1427
    %1487 = vmatprep.subr.mxu0 %v1432
    %1488 = vmatpush1.msra.mxu0 %v1431
    %1489 = vmatprep.subr.mxu0 %v1436
    %1490 = vmatpush1.msra.mxu0 %v1435
    %1491 = vmatprep.subr.mxu0 %v1440
    %1492 = vmatpush1.msra.mxu0 %v1439
    %1493 = vmatprep.subr.mxu0 %v1444
    %1494 = vmatpush1.msra.mxu0 %v1443
    %1495 = vmatprep.subr.mxu0 %v1448
    %1496 = vmatpush1.msra.mxu0 %v1447
    %1497 = vmatprep.subr.mxu0 %v1452
    %1498 = vmatpush1.msra.mxu0 %v1451
    %1499 = vmatprep.subr.mxu0 %v1456
    %1500 = vmatpush1.msra.mxu0 %v1455
    %1501 = vmatprep.subr.mxu0 %v1460
    %1502 = vmatpush1.msra.mxu0 %v1459
    %1503 = vmatprep.subr.mxu0 %v1464
    %1504 = vmatpush1.msra.mxu0 %v1463
    %1505 = vmatprep.subr.mxu0 %v1468
    %1506 = vmatpush1.msra.mxu0 %v1467
    %1507 = vmatprep.subr.mxu0 %v1472
    %1508 = vmatpush1.msra.mxu0 %v1471
    %1509 = vmatprep.subr.mxu0 %v1476
    %1510 = vmatpush1.msra.mxu0 %v1475
    %1511 = vmatprep.subr.mxu0 0.0
    %1512 = vmatpush1.msra.mxu0 0.0
    %1513 = vmatprep.subr.mxu0 0.0
    %1514 = vmatpush1.msra.mxu0 0.0
    %1515 = vmatprep.subr.mxu0 0.0
    %1516 = vmatpush1.msra.mxu0 0.0
    %1517 = vmatprep.subr.mxu0 0.0
    %1518 = vmatpush1.msra.mxu0 0.0
    %1519 = vmatprep.subr.mxu0 0.0
    %1520 = vmatpush1.msra.mxu0 0.0
    %1521 = vmatprep.subr.mxu0 0.0
    %1522 = vmatpush1.msra.mxu0 0.0
    %1523 = vmatprep.subr.mxu0 0.0
    %1524 = vmatpush1.msra.mxu0 0.0
    %1525 = vmatprep.subr.mxu0 0.0
    %1526 = vmatpush1.msra.mxu0 0.0
    %1527 = vmatprep.subr.mxu0 0.0
    %1528 = vmatpush1.msra.mxu0 0.0
    %1529 = vmatprep.subr.mxu0 0.0
    %1530 = vmatpush1.msra.mxu0 0.0
    %1531 = vmatprep.subr.mxu0 0.0
    %1532 = vmatpush1.msra.mxu0 0.0
    %1533 = vmatprep.subr.mxu0 0.0
    %1534 = vmatpush1.msra.mxu0 0.0
    %1535 = vmatprep.subr.mxu0 0.0
    %1536 = vmatpush1.msra.mxu0 0.0
    %1537 = vmatprep.subr.mxu0 0.0
    %1538 = vmatpush1.msra.mxu0 0.0
    %1539 = vmatprep.subr.mxu0 0.0
    %1540 = vmatpush1.msra.mxu0 0.0
    %1541 = vmatprep.subr.mxu0 0.0
    %1542 = vmatpush1.msra.mxu0 0.0
    %1543 = vmatprep.mubr.f32.mxu0 0.0
    %1544 = vmatmul.mubr.f32.gmra.mrb[0].mxu0 %v1413
    %v1545 = vpop.f32.mrb[0].mxu0
    %v1546 = vadd.f32 0.0, %v1545
    %v1547 = vpop.f32.mrb[0].mxu0
    %v1548 = vadd.f32 0.0, %v1547
    %1549 = vdwg.mxu0
    %1550 = vmatprep.subr.mxu0 %v1418
    %1551 = vmatpush1.msra.mxu0 %v1417
    %1552 = vmatprep.subr.mxu0 %v1422
    %1553 = vmatpush1.msra.mxu0 %v1421
    %1554 = vmatprep.subr.mxu0 %v1426
    %1555 = vmatpush1.msra.mxu0 %v1425
    %1556 = vmatprep.subr.mxu0 %v1430
    %1557 = vmatpush1.msra.mxu0 %v1429
    %1558 = vmatprep.subr.mxu0 %v1434
    %1559 = vmatpush1.msra.mxu0 %v1433
    %1560 = vmatprep.subr.mxu0 %v1438
    %1561 = vmatpush1.msra.mxu0 %v1437
    %1562 = vmatprep.subr.mxu0 %v1442
    %1563 = vmatpush1.msra.mxu0 %v1441
    %1564 = vmatprep.subr.mxu0 %v1446
    %1565 = vmatpush1.msra.mxu0 %v1445
    %1566 = vmatprep.subr.mxu0 %v1450
    %1567 = vmatpush1.msra.mxu0 %v1449
    %1568 = vmatprep.subr.mxu0 %v1454
    %1569 = vmatpush1.msra.mxu0 %v1453
    %1570 = vmatprep.subr.mxu0 %v1458
    %1571 = vmatpush1.msra.mxu0 %v1457
    %1572 = vmatprep.subr.mxu0 %v1462
    %1573 = vmatpush1.msra.mxu0 %v1461
    %1574 = vmatprep.subr.mxu0 %v1466
    %1575 = vmatpush1.msra.mxu0 %v1465
    %1576 = vmatprep.subr.mxu0 %v1470
    %1577 = vmatpush1.msra.mxu0 %v1469
    %1578 = vmatprep.subr.mxu0 %v1474
    %1579 = vmatpush1.msra.mxu0 %v1473
    %1580 = vmatprep.subr.mxu0 %v1478
    %1581 = vmatpush1.msra.mxu0 %v1477
    %1582 = vmatprep.subr.mxu0 0.0
    %1583 = vmatpush1.msra.mxu0 0.0
    %1584 = vmatprep.subr.mxu0 0.0
    %1585 = vmatpush1.msra.mxu0 0.0
    %1586 = vmatprep.subr.mxu0 0.0
    %1587 = vmatpush1.msra.mxu0 0.0
    %1588 = vmatprep.subr.mxu0 0.0
    %1589 = vmatpush1.msra.mxu0 0.0
    %1590 = vmatprep.subr.mxu0 0.0
    %1591 = vmatpush1.msra.mxu0 0.0
    %1592 = vmatprep.subr.mxu0 0.0
    %1593 = vmatpush1.msra.mxu0 0.0
    %1594 = vmatprep.subr.mxu0 0.0
    %1595 = vmatpush1.msra.mxu0 0.0
    %1596 = vmatprep.subr.mxu0 0.0
    %1597 = vmatpush1.msra.mxu0 0.0
    %1598 = vmatprep.subr.mxu0 0.0
    %1599 = vmatpush1.msra.mxu0 0.0
    %1600 = vmatprep.subr.mxu0 0.0
    %1601 = vmatpush1.msra.mxu0 0.0
    %1602 = vmatprep.subr.mxu0 0.0
    %1603 = vmatpush1.msra.mxu0 0.0
    %1604 = vmatprep.subr.mxu0 0.0
    %1605 = vmatpush1.msra.mxu0 0.0
    %1606 = vmatprep.subr.mxu0 0.0
    %1607 = vmatpush1.msra.mxu0 0.0
    %1608 = vmatprep.subr.mxu0 0.0
    %1609 = vmatpush1.msra.mxu0 0.0
    %1610 = vmatprep.subr.mxu0 0.0
    %1611 = vmatpush1.msra.mxu0 0.0
    %1612 = vmatprep.subr.mxu0 0.0
    %1613 = vmatpush1.msra.mxu0 0.0
    %1614 = vmatprep.mubr.f32.mxu0 0.0
    %1615 = vmatmul.mubr.f32.gmra.mrb[0].mxu0 %v1413
    %v1616 = vpop.f32.mrb[0].mxu0
    %v1617 = vadd.f32 0.0, %v1616
    %v1618 = vpop.f32.mrb[0].mxu0
    %v1619 = vadd.f32 0.0, %v1618
    %1620 = vdwg.mxu0
    %v1621 = vadd.f32 %v1409, %v1546
    %v1622 = vadd.f32 %v1410, %v1548
    %v1623 = vadd.f32 %v1411, %v1617
    %v1624 = vadd.f32 %v1412, %v1619
    %v1625 = vxor.u32 %v1621, 2147483648
    %v1626 = vmul.f32 %v1625, 1.442695
    %v1627 = vpow.pop %v1626
    %v1628 = vadd.f32 %v1627, 1.0
    %v1629 = vrcp.pop %v1628
    %v1630 = vmul.f32 1.0, %v1629
    %v1631 = vxor.u32 %v1622, 2147483648
    %v1632 = vmul.f32 %v1631, 1.442695
    %v1633 = vpow.pop %v1632
    %v1634 = vadd.f32 %v1633, 1.0
    %v1635 = vrcp.pop %v1634
    %v1636 = vmul.f32 1.0, %v1635
    %v1637 = vtanh.pop %v1623
    %v1638 = vxor.u32 %v1624, 2147483648
    %v1639 = vmul.f32 %v1638, 1.442695
    %v1640 = vpow.pop %v1639
    %v1641 = vadd.f32 %v1640, 1.0
    %v1642 = vrcp.pop %v1641
    %v1643 = vmul.f32 1.0, %v1642
    %v1644 = vmul.f32 %v1636, %v1414
    %v1645 = vmul.f32 %v1630, %v1637
    %v1646 = vadd.f32 %v1644, %v1645
    %v1647 = vtanh.pop %v1646
    %v1648 = vmul.f32 %v1643, %v1647
    %1650 = vset.pattern.permute.xlu0 0
    %1651 = vperm.xlu0 %1650, %v1407
    %v1652 = vpop.permute.xlu0 %1651
    %v1654 = vmul.f32 %v1652, %v1648
    %v1655 = vsub.f32 1.0, %v1407
    %1657 = vset.pattern.permute.xlu0 0
    %1658 = vperm.xlu0 %1657, %v1655
    %v1659 = vpop.permute.xlu0 %1658
    %v1661 = vmul.f32 %v1659, %v1413
    %v1662 = vadd.f32 %v1654, %v1661
    %v1663 = vmul.f32 %v1652, %v1646
    %v1664 = vmul.f32 %v1659, %v1414
    %v1665 = vadd.f32 %v1663, %v1664
    %1666 = vst [vmem:[#allocation4] sm:$0xff] %v1662
    %1667 = vst [vmem:[#allocation5] sm:$0xff] %v1665
    %v1668 = vmul.f32 %v1652, %v1662
    %s1669 = scalar_lea.vmem [#allocation14], 80
    %1670 = vst [vmem:[%s1669 + $0x8] sm:$0xff] %v1668
    %s1671 = scalar_lea.vmem %s2, 24
    %v1672 = vld [vmem:[%s1671] sm:$0xff]
    %s1673 = scalar_lea.vmem [#allocation6], 96
    %v1674 = vld [vmem:[%s1673] sm:$0xff]
    %v1675 = vld [vmem:[%s1673 + $0x8] sm:$0xff]
    %v1676 = vld [vmem:[%s1673 + $0x10] sm:$0xff]
    %v1677 = vld [vmem:[%s1673 + $0x18] sm:$0xff]
    %v1678 = vld [vmem:[#allocation2] sm:$0xff]
    %v1679 = vld [vmem:[#allocation3] sm:$0xff]
    %v1680 = vld [vmem:[#allocation11] sm:$0xff]
    %v1681 = vld [vmem:[#allocation11 + $0x8] sm:$0xff]
    %v1682 = vld [vmem:[#allocation11 + $0x10] sm:$0xff]
    %v1683 = vld [vmem:[#allocation11 + $0x18] sm:$0xff]
    %v1684 = vld [vmem:[#allocation11 + $0x20] sm:$0xff]
    %v1685 = vld [vmem:[#allocation11 + $0x28] sm:$0xff]
    %v1686 = vld [vmem:[#allocation11 + $0x30] sm:$0xff]
    %v1687 = vld [vmem:[#allocation11 + $0x38] sm:$0xff]
    %v1688 = vld [vmem:[#allocation11 + $0x40] sm:$0xff]
    %v1689 = vld [vmem:[#allocation11 + $0x48] sm:$0xff]
    %v1690 = vld [vmem:[#allocation11 + $0x50] sm:$0xff]
    %v1691 = vld [vmem:[#allocation11 + $0x58] sm:$0xff]
    %v1692 = vld [vmem:[#allocation11 + $0x60] sm:$0xff]
    %v1693 = vld [vmem:[#allocation11 + $0x68] sm:$0xff]
    %v1694 = vld [vmem:[#allocation11 + $0x70] sm:$0xff]
    %v1695 = vld [vmem:[#allocation11 + $0x78] sm:$0xff]
    %v1696 = vld [vmem:[#allocation11 + $0x80] sm:$0xff]
    %v1697 = vld [vmem:[#allocation11 + $0x88] sm:$0xff]
    %v1698 = vld [vmem:[#allocation11 + $0x90] sm:$0xff]
    %v1699 = vld [vmem:[#allocation11 + $0x98] sm:$0xff]
    %v1700 = vld [vmem:[#allocation11 + $0xa0] sm:$0xff]
    %v1701 = vld [vmem:[#allocation11 + $0xa8] sm:$0xff]
    %v1702 = vld [vmem:[#allocation11 + $0xb0] sm:$0xff]
    %v1703 = vld [vmem:[#allocation11 + $0xb8] sm:$0xff]
    %v1704 = vld [vmem:[#allocation11 + $0xc0] sm:$0xff]
    %v1705 = vld [vmem:[#allocation11 + $0xc8] sm:$0xff]
    %v1706 = vld [vmem:[#allocation11 + $0xd0] sm:$0xff]
    %v1707 = vld [vmem:[#allocation11 + $0xd8] sm:$0xff]
    %v1708 = vld [vmem:[#allocation11 + $0xe0] sm:$0xff]
    %v1709 = vld [vmem:[#allocation11 + $0xe8] sm:$0xff]
    %v1710 = vld [vmem:[#allocation11 + $0xf0] sm:$0xff]
    %v1711 = vld [vmem:[#allocation11 + $0xf8] sm:$0xff]
    %v1712 = vld [vmem:[#allocation11 + $0x100] sm:$0xff]
    %v1713 = vld [vmem:[#allocation11 + $0x108] sm:$0xff]
    %v1714 = vld [vmem:[#allocation11 + $0x110] sm:$0xff]
    %v1715 = vld [vmem:[#allocation11 + $0x118] sm:$0xff]
    %v1716 = vld [vmem:[#allocation11 + $0x120] sm:$0xff]
    %v1717 = vld [vmem:[#allocation11 + $0x128] sm:$0xff]
    %v1718 = vld [vmem:[#allocation11 + $0x130] sm:$0xff]
    %v1719 = vld [vmem:[#allocation11 + $0x138] sm:$0xff]
    %v1720 = vld [vmem:[#allocation11 + $0x140] sm:$0xff]
    %v1721 = vld [vmem:[#allocation11 + $0x148] sm:$0xff]
    %v1722 = vld [vmem:[#allocation11 + $0x150] sm:$0xff]
    %v1723 = vld [vmem:[#allocation11 + $0x158] sm:$0xff]
    %v1724 = vld [vmem:[#allocation11 + $0x160] sm:$0xff]
    %v1725 = vld [vmem:[#allocation11 + $0x168] sm:$0xff]
    %v1726 = vld [vmem:[#allocation11 + $0x170] sm:$0xff]
    %v1727 = vld [vmem:[#allocation11 + $0x178] sm:$0xff]
    %v1728 = vld [vmem:[#allocation11 + $0x180] sm:$0xff]
    %v1729 = vld [vmem:[#allocation11 + $0x188] sm:$0xff]
    %v1730 = vld [vmem:[#allocation11 + $0x190] sm:$0xff]
    %v1731 = vld [vmem:[#allocation11 + $0x198] sm:$0xff]
    %v1732 = vld [vmem:[#allocation11 + $0x1a0] sm:$0xff]
    %v1733 = vld [vmem:[#allocation11 + $0x1a8] sm:$0xff]
    %v1734 = vld [vmem:[#allocation11 + $0x1b0] sm:$0xff]
    %v1735 = vld [vmem:[#allocation11 + $0x1b8] sm:$0xff]
    %v1736 = vld [vmem:[#allocation11 + $0x1c0] sm:$0xff]
    %v1737 = vld [vmem:[#allocation11 + $0x1c8] sm:$0xff]
    %v1738 = vld [vmem:[#allocation11 + $0x1d0] sm:$0xff]
    %v1739 = vld [vmem:[#allocation11 + $0x1d8] sm:$0xff]
    %v1740 = vld [vmem:[#allocation11 + $0x1e0] sm:$0xff]
    %v1741 = vld [vmem:[#allocation11 + $0x1e8] sm:$0xff]
    %v1742 = vld [vmem:[#allocation11 + $0x1f0] sm:$0xff]
    %v1743 = vld [vmem:[#allocation11 + $0x1f8] sm:$0xff]
    %1744 = vmatprep.subr.mxu0 %v1681
    %1745 = vmatpush1.msra.mxu0 %v1680
    %1746 = vmatprep.subr.mxu0 %v1685
    %1747 = vmatpush1.msra.mxu0 %v1684
    %1748 = vmatprep.subr.mxu0 %v1689
    %1749 = vmatpush1.msra.mxu0 %v1688
    %1750 = vmatprep.subr.mxu0 %v1693
    %1751 = vmatpush1.msra.mxu0 %v1692
    %1752 = vmatprep.subr.mxu0 %v1697
    %1753 = vmatpush1.msra.mxu0 %v1696
    %1754 = vmatprep.subr.mxu0 %v1701
    %1755 = vmatpush1.msra.mxu0 %v1700
    %1756 = vmatprep.subr.mxu0 %v1705
    %1757 = vmatpush1.msra.mxu0 %v1704
    %1758 = vmatprep.subr.mxu0 %v1709
    %1759 = vmatpush1.msra.mxu0 %v1708
    %1760 = vmatprep.subr.mxu0 %v1713
    %1761 = vmatpush1.msra.mxu0 %v1712
    %1762 = vmatprep.subr.mxu0 %v1717
    %1763 = vmatpush1.msra.mxu0 %v1716
    %1764 = vmatprep.subr.mxu0 %v1721
    %1765 = vmatpush1.msra.mxu0 %v1720
    %1766 = vmatprep.subr.mxu0 %v1725
    %1767 = vmatpush1.msra.mxu0 %v1724
    %1768 = vmatprep.subr.mxu0 %v1729
    %1769 = vmatpush1.msra.mxu0 %v1728
    %1770 = vmatprep.subr.mxu0 %v1733
    %1771 = vmatpush1.msra.mxu0 %v1732
    %1772 = vmatprep.subr.mxu0 %v1737
    %1773 = vmatpush1.msra.mxu0 %v1736
    %1774 = vmatprep.subr.mxu0 %v1741
    %1775 = vmatpush1.msra.mxu0 %v1740
    %1776 = vmatprep.subr.mxu0 0.0
    %1777 = vmatpush1.msra.mxu0 0.0
    %1778 = vmatprep.subr.mxu0 0.0
    %1779 = vmatpush1.msra.mxu0 0.0
    %1780 = vmatprep.subr.mxu0 0.0
    %1781 = vmatpush1.msra.mxu0 0.0
    %1782 = vmatprep.subr.mxu0 0.0
    %1783 = vmatpush1.msra.mxu0 0.0
    %1784 = vmatprep.subr.mxu0 0.0
    %1785 = vmatpush1.msra.mxu0 0.0
    %1786 = vmatprep.subr.mxu0 0.0
    %1787 = vmatpush1.msra.mxu0 0.0
    %1788 = vmatprep.subr.mxu0 0.0
    %1789 = vmatpush1.msra.mxu0 0.0
    %1790 = vmatprep.subr.mxu0 0.0
    %1791 = vmatpush1.msra.mxu0 0.0
    %1792 = vmatprep.subr.mxu0 0.0
    %1793 = vmatpush1.msra.mxu0 0.0
    %1794 = vmatprep.subr.mxu0 0.0
    %1795 = vmatpush1.msra.mxu0 0.0
    %1796 = vmatprep.subr.mxu0 0.0
    %1797 = vmatpush1.msra.mxu0 0.0
    %1798 = vmatprep.subr.mxu0 0.0
    %1799 = vmatpush1.msra.mxu0 0.0
    %1800 = vmatprep.subr.mxu0 0.0
    %1801 = vmatpush1.msra.mxu0 0.0
    %1802 = vmatprep.subr.mxu0 0.0
    %1803 = vmatpush1.msra.mxu0 0.0
    %1804 = vmatprep.subr.mxu0 0.0
    %1805 = vmatpush1.msra.mxu0 0.0
    %1806 = vmatprep.subr.mxu0 0.0
    %1807 = vmatpush1.msra.mxu0 0.0
    %1808 = vmatprep.mubr.f32.mxu0 0.0
    %1809 = vmatmul.mubr.f32.gmra.mrb[0].mxu0 %v1678
    %v1810 = vpop.f32.mrb[0].mxu0
    %v1811 = vadd.f32 0.0, %v1810
    %v1812 = vpop.f32.mrb[0].mxu0
    %v1813 = vadd.f32 0.0, %v1812
    %1814 = vdwg.mxu0
    %1815 = vmatprep.subr.mxu0 %v1683
    %1816 = vmatpush1.msra.mxu0 %v1682
    %1817 = vmatprep.subr.mxu0 %v1687
    %1818 = vmatpush1.msra.mxu0 %v1686
    %1819 = vmatprep.subr.mxu0 %v1691
    %1820 = vmatpush1.msra.mxu0 %v1690
    %1821 = vmatprep.subr.mxu0 %v1695
    %1822 = vmatpush1.msra.mxu0 %v1694
    %1823 = vmatprep.subr.mxu0 %v1699
    %1824 = vmatpush1.msra.mxu0 %v1698
    %1825 = vmatprep.subr.mxu0 %v1703
    %1826 = vmatpush1.msra.mxu0 %v1702
    %1827 = vmatprep.subr.mxu0 %v1707
    %1828 = vmatpush1.msra.mxu0 %v1706
    %1829 = vmatprep.subr.mxu0 %v1711
    %1830 = vmatpush1.msra.mxu0 %v1710
    %1831 = vmatprep.subr.mxu0 %v1715
    %1832 = vmatpush1.msra.mxu0 %v1714
    %1833 = vmatprep.subr.mxu0 %v1719
    %1834 = vmatpush1.msra.mxu0 %v1718
    %1835 = vmatprep.subr.mxu0 %v1723
    %1836 = vmatpush1.msra.mxu0 %v1722
    %1837 = vmatprep.subr.mxu0 %v1727
    %1838 = vmatpush1.msra.mxu0 %v1726
    %1839 = vmatprep.subr.mxu0 %v1731
    %1840 = vmatpush1.msra.mxu0 %v1730
    %1841 = vmatprep.subr.mxu0 %v1735
    %1842 = vmatpush1.msra.mxu0 %v1734
    %1843 = vmatprep.subr.mxu0 %v1739
    %1844 = vmatpush1.msra.mxu0 %v1738
    %1845 = vmatprep.subr.mxu0 %v1743
    %1846 = vmatpush1.msra.mxu0 %v1742
    %1847 = vmatprep.subr.mxu0 0.0
    %1848 = vmatpush1.msra.mxu0 0.0
    %1849 = vmatprep.subr.mxu0 0.0
    %1850 = vmatpush1.msra.mxu0 0.0
    %1851 = vmatprep.subr.mxu0 0.0
    %1852 = vmatpush1.msra.mxu0 0.0
    %1853 = vmatprep.subr.mxu0 0.0
    %1854 = vmatpush1.msra.mxu0 0.0
    %1855 = vmatprep.subr.mxu0 0.0
    %1856 = vmatpush1.msra.mxu0 0.0
    %1857 = vmatprep.subr.mxu0 0.0
    %1858 = vmatpush1.msra.mxu0 0.0
    %1859 = vmatprep.subr.mxu0 0.0
    %1860 = vmatpush1.msra.mxu0 0.0
    %1861 = vmatprep.subr.mxu0 0.0
    %1862 = vmatpush1.msra.mxu0 0.0
    %1863 = vmatprep.subr.mxu0 0.0
    %1864 = vmatpush1.msra.mxu0 0.0
    %1865 = vmatprep.subr.mxu0 0.0
    %1866 = vmatpush1.msra.mxu0 0.0
    %1867 = vmatprep.subr.mxu0 0.0
    %1868 = vmatpush1.msra.mxu0 0.0
    %1869 = vmatprep.subr.mxu0 0.0
    %1870 = vmatpush1.msra.mxu0 0.0
    %1871 = vmatprep.subr.mxu0 0.0
    %1872 = vmatpush1.msra.mxu0 0.0
    %1873 = vmatprep.subr.mxu0 0.0
    %1874 = vmatpush1.msra.mxu0 0.0
    %1875 = vmatprep.subr.mxu0 0.0
    %1876 = vmatpush1.msra.mxu0 0.0
    %1877 = vmatprep.subr.mxu0 0.0
    %1878 = vmatpush1.msra.mxu0 0.0
    %1879 = vmatprep.mubr.f32.mxu0 0.0
    %1880 = vmatmul.mubr.f32.gmra.mrb[0].mxu0 %v1678
    %v1881 = vpop.f32.mrb[0].mxu0
    %v1882 = vadd.f32 0.0, %v1881
    %v1883 = vpop.f32.mrb[0].mxu0
    %v1884 = vadd.f32 0.0, %v1883
    %1885 = vdwg.mxu0
    %v1886 = vadd.f32 %v1674, %v1811
    %v1887 = vadd.f32 %v1675, %v1813
    %v1888 = vadd.f32 %v1676, %v1882
    %v1889 = vadd.f32 %v1677, %v1884
    %v1890 = vxor.u32 %v1886, 2147483648
    %v1891 = vmul.f32 %v1890, 1.442695
    %v1892 = vpow.pop %v1891
    %v1893 = vadd.f32 %v1892, 1.0
    %v1894 = vrcp.pop %v1893
    %v1895 = vmul.f32 1.0, %v1894
    %v1896 = vxor.u32 %v1887, 2147483648
    %v1897 = vmul.f32 %v1896, 1.442695
    %v1898 = vpow.pop %v1897
    %v1899 = vadd.f32 %v1898, 1.0
    %v1900 = vrcp.pop %v1899
    %v1901 = vmul.f32 1.0, %v1900
    %v1902 = vtanh.pop %v1888
    %v1903 = vxor.u32 %v1889, 2147483648
    %v1904 = vmul.f32 %v1903, 1.442695
    %v1905 = vpow.pop %v1904
    %v1906 = vadd.f32 %v1905, 1.0
    %v1907 = vrcp.pop %v1906
    %v1908 = vmul.f32 1.0, %v1907
    %v1909 = vmul.f32 %v1901, %v1679
    %v1910 = vmul.f32 %v1895, %v1902
    %v1911 = vadd.f32 %v1909, %v1910
    %v1912 = vtanh.pop %v1911
    %v1913 = vmul.f32 %v1908, %v1912
    %1915 = vset.pattern.permute.xlu0 0
    %1916 = vperm.xlu0 %1915, %v1672
    %v1917 = vpop.permute.xlu0 %1916
    %v1919 = vmul.f32 %v1917, %v1913
    %v1920 = vsub.f32 1.0, %v1672
    %1922 = vset.pattern.permute.xlu0 0
    %1923 = vperm.xlu0 %1922, %v1920
    %v1924 = vpop.permute.xlu0 %1923
    %v1926 = vmul.f32 %v1924, %v1678
    %v1927 = vadd.f32 %v1919, %v1926
    %v1928 = vmul.f32 %v1917, %v1911
    %v1929 = vmul.f32 %v1924, %v1679
    %v1930 = vadd.f32 %v1928, %v1929
    %1931 = vst [vmem:[#allocation2] sm:$0xff] %v1927
    %1932 = vst [vmem:[#allocation3] sm:$0xff] %v1930
    %v1933 = vmul.f32 %v1917, %v1927
    %s1934 = scalar_lea.vmem [#allocation14], 48
    %1935 = vst [vmem:[%s1934] sm:$0xff] %v1933
    %s1936 = scalar_lea.vmem %s2, 32
    %v1937 = vld [vmem:[%s1936] sm:$0xff]
    %s1938 = scalar_lea.vmem [#allocation9], 128
    %v1939 = vld [vmem:[%s1938] sm:$0xff]
    %v1940 = vld [vmem:[%s1938 + $0x8] sm:$0xff]
    %v1941 = vld [vmem:[%s1938 + $0x10] sm:$0xff]
    %v1942 = vld [vmem:[%s1938 + $0x18] sm:$0xff]
    %v1943 = vld [vmem:[#allocation4] sm:$0xff]
    %v1944 = vld [vmem:[#allocation5] sm:$0xff]
    %v1945 = vld [vmem:[#allocation12] sm:$0xff]
    %v1946 = vld [vmem:[#allocation12 + $0x8] sm:$0xff]
    %v1947 = vld [vmem:[#allocation12 + $0x10] sm:$0xff]
    %v1948 = vld [vmem:[#allocation12 + $0x18] sm:$0xff]
    %v1949 = vld [vmem:[#allocation12 + $0x20] sm:$0xff]
    %v1950 = vld [vmem:[#allocation12 + $0x28] sm:$0xff]
    %v1951 = vld [vmem:[#allocation12 + $0x30] sm:$0xff]
    %v1952 = vld [vmem:[#allocation12 + $0x38] sm:$0xff]
    %v1953 = vld [vmem:[#allocation12 + $0x40] sm:$0xff]
    %v1954 = vld [vmem:[#allocation12 + $0x48] sm:$0xff]
    %v1955 = vld [vmem:[#allocation12 + $0x50] sm:$0xff]
    %v1956 = vld [vmem:[#allocation12 + $0x58] sm:$0xff]
    %v1957 = vld [vmem:[#allocation12 + $0x60] sm:$0xff]
    %v1958 = vld [vmem:[#allocation12 + $0x68] sm:$0xff]
    %v1959 = vld [vmem:[#allocation12 + $0x70] sm:$0xff]
    %v1960 = vld [vmem:[#allocation12 + $0x78] sm:$0xff]
    %v1961 = vld [vmem:[#allocation12 + $0x80] sm:$0xff]
    %v1962 = vld [vmem:[#allocation12 + $0x88] sm:$0xff]
    %v1963 = vld [vmem:[#allocation12 + $0x90] sm:$0xff]
    %v1964 = vld [vmem:[#allocation12 + $0x98] sm:$0xff]
    %v1965 = vld [vmem:[#allocation12 + $0xa0] sm:$0xff]
    %v1966 = vld [vmem:[#allocation12 + $0xa8] sm:$0xff]
    %v1967 = vld [vmem:[#allocation12 + $0xb0] sm:$0xff]
    %v1968 = vld [vmem:[#allocation12 + $0xb8] sm:$0xff]
    %v1969 = vld [vmem:[#allocation12 + $0xc0] sm:$0xff]
    %v1970 = vld [vmem:[#allocation12 + $0xc8] sm:$0xff]
    %v1971 = vld [vmem:[#allocation12 + $0xd0] sm:$0xff]
    %v1972 = vld [vmem:[#allocation12 + $0xd8] sm:$0xff]
    %v1973 = vld [vmem:[#allocation12 + $0xe0] sm:$0xff]
    %v1974 = vld [vmem:[#allocation12 + $0xe8] sm:$0xff]
    %v1975 = vld [vmem:[#allocation12 + $0xf0] sm:$0xff]
    %v1976 = vld [vmem:[#allocation12 + $0xf8] sm:$0xff]
    %v1977 = vld [vmem:[#allocation12 + $0x100] sm:$0xff]
    %v1978 = vld [vmem:[#allocation12 + $0x108] sm:$0xff]
    %v1979 = vld [vmem:[#allocation12 + $0x110] sm:$0xff]
    %v1980 = vld [vmem:[#allocation12 + $0x118] sm:$0xff]
    %v1981 = vld [vmem:[#allocation12 + $0x120] sm:$0xff]
    %v1982 = vld [vmem:[#allocation12 + $0x128] sm:$0xff]
    %v1983 = vld [vmem:[#allocation12 + $0x130] sm:$0xff]
    %v1984 = vld [vmem:[#allocation12 + $0x138] sm:$0xff]
    %v1985 = vld [vmem:[#allocation12 + $0x140] sm:$0xff]
    %v1986 = vld [vmem:[#allocation12 + $0x148] sm:$0xff]
    %v1987 = vld [vmem:[#allocation12 + $0x150] sm:$0xff]
    %v1988 = vld [vmem:[#allocation12 + $0x158] sm:$0xff]
    %v1989 = vld [vmem:[#allocation12 + $0x160] sm:$0xff]
    %v1990 = vld [vmem:[#allocation12 + $0x168] sm:$0xff]
    %v1991 = vld [vmem:[#allocation12 + $0x170] sm:$0xff]
    %v1992 = vld [vmem:[#allocation12 + $0x178] sm:$0xff]
    %v1993 = vld [vmem:[#allocation12 + $0x180] sm:$0xff]
    %v1994 = vld [vmem:[#allocation12 + $0x188] sm:$0xff]
    %v1995 = vld [vmem:[#allocation12 + $0x190] sm:$0xff]
    %v1996 = vld [vmem:[#allocation12 + $0x198] sm:$0xff]
    %v1997 = vld [vmem:[#allocation12 + $0x1a0] sm:$0xff]
    %v1998 = vld [vmem:[#allocation12 + $0x1a8] sm:$0xff]
    %v1999 = vld [vmem:[#allocation12 + $0x1b0] sm:$0xff]
    %v2000 = vld [vmem:[#allocation12 + $0x1b8] sm:$0xff]
    %v2001 = vld [vmem:[#allocation12 + $0x1c0] sm:$0xff]
    %v2002 = vld [vmem:[#allocation12 + $0x1c8] sm:$0xff]
    %v2003 = vld [vmem:[#allocation12 + $0x1d0] sm:$0xff]
    %v2004 = vld [vmem:[#allocation12 + $0x1d8] sm:$0xff]
    %v2005 = vld [vmem:[#allocation12 + $0x1e0] sm:$0xff]
    %v2006 = vld [vmem:[#allocation12 + $0x1e8] sm:$0xff]
    %v2007 = vld [vmem:[#allocation12 + $0x1f0] sm:$0xff]
    %v2008 = vld [vmem:[#allocation12 + $0x1f8] sm:$0xff]
    %2009 = vmatprep.subr.mxu0 %v1946
    %2010 = vmatpush1.msra.mxu0 %v1945
    %2011 = vmatprep.subr.mxu0 %v1950
    %2012 = vmatpush1.msra.mxu0 %v1949
    %2013 = vmatprep.subr.mxu0 %v1954
    %2014 = vmatpush1.msra.mxu0 %v1953
    %2015 = vmatprep.subr.mxu0 %v1958
    %2016 = vmatpush1.msra.mxu0 %v1957
    %2017 = vmatprep.subr.mxu0 %v1962
    %2018 = vmatpush1.msra.mxu0 %v1961
    %2019 = vmatprep.subr.mxu0 %v1966
    %2020 = vmatpush1.msra.mxu0 %v1965
    %2021 = vmatprep.subr.mxu0 %v1970
    %2022 = vmatpush1.msra.mxu0 %v1969
    %2023 = vmatprep.subr.mxu0 %v1974
    %2024 = vmatpush1.msra.mxu0 %v1973
    %2025 = vmatprep.subr.mxu0 %v1978
    %2026 = vmatpush1.msra.mxu0 %v1977
    %2027 = vmatprep.subr.mxu0 %v1982
    %2028 = vmatpush1.msra.mxu0 %v1981
    %2029 = vmatprep.subr.mxu0 %v1986
    %2030 = vmatpush1.msra.mxu0 %v1985
    %2031 = vmatprep.subr.mxu0 %v1990
    %2032 = vmatpush1.msra.mxu0 %v1989
    %2033 = vmatprep.subr.mxu0 %v1994
    %2034 = vmatpush1.msra.mxu0 %v1993
    %2035 = vmatprep.subr.mxu0 %v1998
    %2036 = vmatpush1.msra.mxu0 %v1997
    %2037 = vmatprep.subr.mxu0 %v2002
    %2038 = vmatpush1.msra.mxu0 %v2001
    %2039 = vmatprep.subr.mxu0 %v2006
    %2040 = vmatpush1.msra.mxu0 %v2005
    %2041 = vmatprep.subr.mxu0 0.0
    %2042 = vmatpush1.msra.mxu0 0.0
    %2043 = vmatprep.subr.mxu0 0.0
    %2044 = vmatpush1.msra.mxu0 0.0
    %2045 = vmatprep.subr.mxu0 0.0
    %2046 = vmatpush1.msra.mxu0 0.0
    %2047 = vmatprep.subr.mxu0 0.0
    %2048 = vmatpush1.msra.mxu0 0.0
    %2049 = vmatprep.subr.mxu0 0.0
    %2050 = vmatpush1.msra.mxu0 0.0
    %2051 = vmatprep.subr.mxu0 0.0
    %2052 = vmatpush1.msra.mxu0 0.0
    %2053 = vmatprep.subr.mxu0 0.0
    %2054 = vmatpush1.msra.mxu0 0.0
    %2055 = vmatprep.subr.mxu0 0.0
    %2056 = vmatpush1.msra.mxu0 0.0
    %2057 = vmatprep.subr.mxu0 0.0
    %2058 = vmatpush1.msra.mxu0 0.0
    %2059 = vmatprep.subr.mxu0 0.0
    %2060 = vmatpush1.msra.mxu0 0.0
    %2061 = vmatprep.subr.mxu0 0.0
    %2062 = vmatpush1.msra.mxu0 0.0
    %2063 = vmatprep.subr.mxu0 0.0
    %2064 = vmatpush1.msra.mxu0 0.0
    %2065 = vmatprep.subr.mxu0 0.0
    %2066 = vmatpush1.msra.mxu0 0.0
    %2067 = vmatprep.subr.mxu0 0.0
    %2068 = vmatpush1.msra.mxu0 0.0
    %2069 = vmatprep.subr.mxu0 0.0
    %2070 = vmatpush1.msra.mxu0 0.0
    %2071 = vmatprep.subr.mxu0 0.0
    %2072 = vmatpush1.msra.mxu0 0.0
    %2073 = vmatprep.mubr.f32.mxu0 0.0
    %2074 = vmatmul.mubr.f32.gmra.mrb[0].mxu0 %v1943
    %v2075 = vpop.f32.mrb[0].mxu0
    %v2076 = vadd.f32 0.0, %v2075
    %v2077 = vpop.f32.mrb[0].mxu0
    %v2078 = vadd.f32 0.0, %v2077
    %2079 = vdwg.mxu0
    %2080 = vmatprep.subr.mxu0 %v1948
    %2081 = vmatpush1.msra.mxu0 %v1947
    %2082 = vmatprep.subr.mxu0 %v1952
    %2083 = vmatpush1.msra.mxu0 %v1951
    %2084 = vmatprep.subr.mxu0 %v1956
    %2085 = vmatpush1.msra.mxu0 %v1955
    %2086 = vmatprep.subr.mxu0 %v1960
    %2087 = vmatpush1.msra.mxu0 %v1959
    %2088 = vmatprep.subr.mxu0 %v1964
    %2089 = vmatpush1.msra.mxu0 %v1963
    %2090 = vmatprep.subr.mxu0 %v1968
    %2091 = vmatpush1.msra.mxu0 %v1967
    %2092 = vmatprep.subr.mxu0 %v1972
    %2093 = vmatpush1.msra.mxu0 %v1971
    %2094 = vmatprep.subr.mxu0 %v1976
    %2095 = vmatpush1.msra.mxu0 %v1975
    %2096 = vmatprep.subr.mxu0 %v1980
    %2097 = vmatpush1.msra.mxu0 %v1979
    %2098 = vmatprep.subr.mxu0 %v1984
    %2099 = vmatpush1.msra.mxu0 %v1983
    %2100 = vmatprep.subr.mxu0 %v1988
    %2101 = vmatpush1.msra.mxu0 %v1987
    %2102 = vmatprep.subr.mxu0 %v1992
    %2103 = vmatpush1.msra.mxu0 %v1991
    %2104 = vmatprep.subr.mxu0 %v1996
    %2105 = vmatpush1.msra.mxu0 %v1995
    %2106 = vmatprep.subr.mxu0 %v2000
    %2107 = vmatpush1.msra.mxu0 %v1999
    %2108 = vmatprep.subr.mxu0 %v2004
    %2109 = vmatpush1.msra.mxu0 %v2003
    %2110 = vmatprep.subr.mxu0 %v2008
    %2111 = vmatpush1.msra.mxu0 %v2007
    %2112 = vmatprep.subr.mxu0 0.0
    %2113 = vmatpush1.msra.mxu0 0.0
    %2114 = vmatprep.subr.mxu0 0.0
    %2115 = vmatpush1.msra.mxu0 0.0
    %2116 = vmatprep.subr.mxu0 0.0
    %2117 = vmatpush1.msra.mxu0 0.0
    %2118 = vmatprep.subr.mxu0 0.0
    %2119 = vmatpush1.msra.mxu0 0.0
    %2120 = vmatprep.subr.mxu0 0.0
    %2121 = vmatpush1.msra.mxu0 0.0
    %2122 = vmatprep.subr.mxu0 0.0
    %2123 = vmatpush1.msra.mxu0 0.0
    %2124 = vmatprep.subr.mxu0 0.0
    %2125 = vmatpush1.msra.mxu0 0.0
    %2126 = vmatprep.subr.mxu0 0.0
    %2127 = vmatpush1.msra.mxu0 0.0
    %2128 = vmatprep.subr.mxu0 0.0
    %2129 = vmatpush1.msra.mxu0 0.0
    %2130 = vmatprep.subr.mxu0 0.0
    %2131 = vmatpush1.msra.mxu0 0.0
    %2132 = vmatprep.subr.mxu0 0.0
    %2133 = vmatpush1.msra.mxu0 0.0
    %2134 = vmatprep.subr.mxu0 0.0
    %2135 = vmatpush1.msra.mxu0 0.0
    %2136 = vmatprep.subr.mxu0 0.0
    %2137 = vmatpush1.msra.mxu0 0.0
    %2138 = vmatprep.subr.mxu0 0.0
    %2139 = vmatpush1.msra.mxu0 0.0
    %2140 = vmatprep.subr.mxu0 0.0
    %2141 = vmatpush1.msra.mxu0 0.0
    %2142 = vmatprep.subr.mxu0 0.0
    %2143 = vmatpush1.msra.mxu0 0.0
    %2144 = vmatprep.mubr.f32.mxu0 0.0
    %2145 = vmatmul.mubr.f32.gmra.mrb[0].mxu0 %v1943
    %v2146 = vpop.f32.mrb[0].mxu0
    %v2147 = vadd.f32 0.0, %v2146
    %v2148 = vpop.f32.mrb[0].mxu0
    %v2149 = vadd.f32 0.0, %v2148
    %2150 = vdwg.mxu0
    %v2151 = vadd.f32 %v1939, %v2076
    %v2152 = vadd.f32 %v1940, %v2078
    %v2153 = vadd.f32 %v1941, %v2147
    %v2154 = vadd.f32 %v1942, %v2149
    %v2155 = vxor.u32 %v2151, 2147483648
    %v2156 = vmul.f32 %v2155, 1.442695
    %v2157 = vpow.pop %v2156
    %v2158 = vadd.f32 %v2157, 1.0
    %v2159 = vrcp.pop %v2158
    %v2160 = vmul.f32 1.0, %v2159
    %v2161 = vxor.u32 %v2152, 2147483648
    %v2162 = vmul.f32 %v2161, 1.442695
    %v2163 = vpow.pop %v2162
    %v2164 = vadd.f32 %v2163, 1.0
    %v2165 = vrcp.pop %v2164
    %v2166 = vmul.f32 1.0, %v2165
    %v2167 = vtanh.pop %v2153
    %v2168 = vxor.u32 %v2154, 2147483648
    %v2169 = vmul.f32 %v2168, 1.442695
    %v2170 = vpow.pop %v2169
    %v2171 = vadd.f32 %v2170, 1.0
    %v2172 = vrcp.pop %v2171
    %v2173 = vmul.f32 1.0, %v2172
    %v2174 = vmul.f32 %v2166, %v1944
    %v2175 = vmul.f32 %v2160, %v2167
    %v2176 = vadd.f32 %v2174, %v2175
    %v2177 = vtanh.pop %v2176
    %v2178 = vmul.f32 %v2173, %v2177
    %2180 = vset.pattern.permute.xlu0 0
    %2181 = vperm.xlu0 %2180, %v1937
    %v2182 = vpop.permute.xlu0 %2181
    %v2184 = vmul.f32 %v2182, %v2178
    %v2185 = vsub.f32 1.0, %v1937
    %2187 = vset.pattern.permute.xlu0 0
    %2188 = vperm.xlu0 %2187, %v2185
    %v2189 = vpop.permute.xlu0 %2188
    %v2191 = vmul.f32 %v2189, %v1943
    %v2192 = vadd.f32 %v2184, %v2191
    %v2193 = vmul.f32 %v2182, %v2176
    %v2194 = vmul.f32 %v2189, %v1944
    %v2195 = vadd.f32 %v2193, %v2194
    %2196 = vst [vmem:[#allocation4] sm:$0xff] %v2192
    %2197 = vst [vmem:[#allocation5] sm:$0xff] %v2195
    %v2198 = vmul.f32 %v2182, %v2192
    %s2199 = scalar_lea.vmem [#allocation14], 64
    %2200 = vst [vmem:[%s2199 + $0x8] sm:$0xff] %v2198
    %v2201 = vld [vmem:[%s1936] sm:$0xff]
    %s2202 = scalar_lea.vmem [#allocation6], 128
    %v2203 = vld [vmem:[%s2202] sm:$0xff]
    %v2204 = vld [vmem:[%s2202 + $0x8] sm:$0xff]
    %v2205 = vld [vmem:[%s2202 + $0x10] sm:$0xff]
    %v2206 = vld [vmem:[%s2202 + $0x18] sm:$0xff]
    %v2207 = vld [vmem:[#allocation2] sm:$0xff]
    %v2208 = vld [vmem:[#allocation3] sm:$0xff]
    %v2209 = vld [vmem:[#allocation11] sm:$0xff]
    %v2210 = vld [vmem:[#allocation11 + $0x8] sm:$0xff]
    %v2211 = vld [vmem:[#allocation11 + $0x10] sm:$0xff]
    %v2212 = vld [vmem:[#allocation11 + $0x18] sm:$0xff]
    %v2213 = vld [vmem:[#allocation11 + $0x20] sm:$0xff]
    %v2214 = vld [vmem:[#allocation11 + $0x28] sm:$0xff]
    %v2215 = vld [vmem:[#allocation11 + $0x30] sm:$0xff]
    %v2216 = vld [vmem:[#allocation11 + $0x38] sm:$0xff]
    %v2217 = vld [vmem:[#allocation11 + $0x40] sm:$0xff]
    %v2218 = vld [vmem:[#allocation11 + $0x48] sm:$0xff]
    %v2219 = vld [vmem:[#allocation11 + $0x50] sm:$0xff]
    %v2220 = vld [vmem:[#allocation11 + $0x58] sm:$0xff]
    %v2221 = vld [vmem:[#allocation11 + $0x60] sm:$0xff]
    %v2222 = vld [vmem:[#allocation11 + $0x68] sm:$0xff]
    %v2223 = vld [vmem:[#allocation11 + $0x70] sm:$0xff]
    %v2224 = vld [vmem:[#allocation11 + $0x78] sm:$0xff]
    %v2225 = vld [vmem:[#allocation11 + $0x80] sm:$0xff]
    %v2226 = vld [vmem:[#allocation11 + $0x88] sm:$0xff]
    %v2227 = vld [vmem:[#allocation11 + $0x90] sm:$0xff]
    %v2228 = vld [vmem:[#allocation11 + $0x98] sm:$0xff]
    %v2229 = vld [vmem:[#allocation11 + $0xa0] sm:$0xff]
    %v2230 = vld [vmem:[#allocation11 + $0xa8] sm:$0xff]
    %v2231 = vld [vmem:[#allocation11 + $0xb0] sm:$0xff]
    %v2232 = vld [vmem:[#allocation11 + $0xb8] sm:$0xff]
    %v2233 = vld [vmem:[#allocation11 + $0xc0] sm:$0xff]
    %v2234 = vld [vmem:[#allocation11 + $0xc8] sm:$0xff]
    %v2235 = vld [vmem:[#allocation11 + $0xd0] sm:$0xff]
    %v2236 = vld [vmem:[#allocation11 + $0xd8] sm:$0xff]
    %v2237 = vld [vmem:[#allocation11 + $0xe0] sm:$0xff]
    %v2238 = vld [vmem:[#allocation11 + $0xe8] sm:$0xff]
    %v2239 = vld [vmem:[#allocation11 + $0xf0] sm:$0xff]
    %v2240 = vld [vmem:[#allocation11 + $0xf8] sm:$0xff]
    %v2241 = vld [vmem:[#allocation11 + $0x100] sm:$0xff]
    %v2242 = vld [vmem:[#allocation11 + $0x108] sm:$0xff]
    %v2243 = vld [vmem:[#allocation11 + $0x110] sm:$0xff]
    %v2244 = vld [vmem:[#allocation11 + $0x118] sm:$0xff]
    %v2245 = vld [vmem:[#allocation11 + $0x120] sm:$0xff]
    %v2246 = vld [vmem:[#allocation11 + $0x128] sm:$0xff]
    %v2247 = vld [vmem:[#allocation11 + $0x130] sm:$0xff]
    %v2248 = vld [vmem:[#allocation11 + $0x138] sm:$0xff]
    %v2249 = vld [vmem:[#allocation11 + $0x140] sm:$0xff]
    %v2250 = vld [vmem:[#allocation11 + $0x148] sm:$0xff]
    %v2251 = vld [vmem:[#allocation11 + $0x150] sm:$0xff]
    %v2252 = vld [vmem:[#allocation11 + $0x158] sm:$0xff]
    %v2253 = vld [vmem:[#allocation11 + $0x160] sm:$0xff]
    %v2254 = vld [vmem:[#allocation11 + $0x168] sm:$0xff]
    %v2255 = vld [vmem:[#allocation11 + $0x170] sm:$0xff]
    %v2256 = vld [vmem:[#allocation11 + $0x178] sm:$0xff]
    %v2257 = vld [vmem:[#allocation11 + $0x180] sm:$0xff]
    %v2258 = vld [vmem:[#allocation11 + $0x188] sm:$0xff]
    %v2259 = vld [vmem:[#allocation11 + $0x190] sm:$0xff]
    %v2260 = vld [vmem:[#allocation11 + $0x198] sm:$0xff]
    %v2261 = vld [vmem:[#allocation11 + $0x1a0] sm:$0xff]
    %v2262 = vld [vmem:[#allocation11 + $0x1a8] sm:$0xff]
    %v2263 = vld [vmem:[#allocation11 + $0x1b0] sm:$0xff]
    %v2264 = vld [vmem:[#allocation11 + $0x1b8] sm:$0xff]
    %v2265 = vld [vmem:[#allocation11 + $0x1c0] sm:$0xff]
    %v2266 = vld [vmem:[#allocation11 + $0x1c8] sm:$0xff]
    %v2267 = vld [vmem:[#allocation11 + $0x1d0] sm:$0xff]
    %v2268 = vld [vmem:[#allocation11 + $0x1d8] sm:$0xff]
    %v2269 = vld [vmem:[#allocation11 + $0x1e0] sm:$0xff]
    %v2270 = vld [vmem:[#allocation11 + $0x1e8] sm:$0xff]
    %v2271 = vld [vmem:[#allocation11 + $0x1f0] sm:$0xff]
    %v2272 = vld [vmem:[#allocation11 + $0x1f8] sm:$0xff]
    %2273 = vmatprep.subr.mxu0 %v2210
    %2274 = vmatpush1.msra.mxu0 %v2209
    %2275 = vmatprep.subr.mxu0 %v2214
    %2276 = vmatpush1.msra.mxu0 %v2213
    %2277 = vmatprep.subr.mxu0 %v2218
    %2278 = vmatpush1.msra.mxu0 %v2217
    %2279 = vmatprep.subr.mxu0 %v2222
    %2280 = vmatpush1.msra.mxu0 %v2221
    %2281 = vmatprep.subr.mxu0 %v2226
    %2282 = vmatpush1.msra.mxu0 %v2225
    %2283 = vmatprep.subr.mxu0 %v2230
    %2284 = vmatpush1.msra.mxu0 %v2229
    %2285 = vmatprep.subr.mxu0 %v2234
    %2286 = vmatpush1.msra.mxu0 %v2233
    %2287 = vmatprep.subr.mxu0 %v2238
    %2288 = vmatpush1.msra.mxu0 %v2237
    %2289 = vmatprep.subr.mxu0 %v2242
    %2290 = vmatpush1.msra.mxu0 %v2241
    %2291 = vmatprep.subr.mxu0 %v2246
    %2292 = vmatpush1.msra.mxu0 %v2245
    %2293 = vmatprep.subr.mxu0 %v2250
    %2294 = vmatpush1.msra.mxu0 %v2249
    %2295 = vmatprep.subr.mxu0 %v2254
    %2296 = vmatpush1.msra.mxu0 %v2253
    %2297 = vmatprep.subr.mxu0 %v2258
    %2298 = vmatpush1.msra.mxu0 %v2257
    %2299 = vmatprep.subr.mxu0 %v2262
    %2300 = vmatpush1.msra.mxu0 %v2261
    %2301 = vmatprep.subr.mxu0 %v2266
    %2302 = vmatpush1.msra.mxu0 %v2265
    %2303 = vmatprep.subr.mxu0 %v2270
    %2304 = vmatpush1.msra.mxu0 %v2269
    %2305 = vmatprep.subr.mxu0 0.0
    %2306 = vmatpush1.msra.mxu0 0.0
    %2307 = vmatprep.subr.mxu0 0.0
    %2308 = vmatpush1.msra.mxu0 0.0
    %2309 = vmatprep.subr.mxu0 0.0
    %2310 = vmatpush1.msra.mxu0 0.0
    %2311 = vmatprep.subr.mxu0 0.0
    %2312 = vmatpush1.msra.mxu0 0.0
    %2313 = vmatprep.subr.mxu0 0.0
    %2314 = vmatpush1.msra.mxu0 0.0
    %2315 = vmatprep.subr.mxu0 0.0
    %2316 = vmatpush1.msra.mxu0 0.0
    %2317 = vmatprep.subr.mxu0 0.0
    %2318 = vmatpush1.msra.mxu0 0.0
    %2319 = vmatprep.subr.mxu0 0.0
    %2320 = vmatpush1.msra.mxu0 0.0
    %2321 = vmatprep.subr.mxu0 0.0
    %2322 = vmatpush1.msra.mxu0 0.0
    %2323 = vmatprep.subr.mxu0 0.0
    %2324 = vmatpush1.msra.mxu0 0.0
    %2325 = vmatprep.subr.mxu0 0.0
    %2326 = vmatpush1.msra.mxu0 0.0
    %2327 = vmatprep.subr.mxu0 0.0
    %2328 = vmatpush1.msra.mxu0 0.0
    %2329 = vmatprep.subr.mxu0 0.0
    %2330 = vmatpush1.msra.mxu0 0.0
    %2331 = vmatprep.subr.mxu0 0.0
    %2332 = vmatpush1.msra.mxu0 0.0
    %2333 = vmatprep.subr.mxu0 0.0
    %2334 = vmatpush1.msra.mxu0 0.0
    %2335 = vmatprep.subr.mxu0 0.0
    %2336 = vmatpush1.msra.mxu0 0.0
    %2337 = vmatprep.mubr.f32.mxu0 0.0
    %2338 = vmatmul.mubr.f32.gmra.mrb[0].mxu0 %v2207
    %v2339 = vpop.f32.mrb[0].mxu0
    %v2340 = vadd.f32 0.0, %v2339
    %v2341 = vpop.f32.mrb[0].mxu0
    %v2342 = vadd.f32 0.0, %v2341
    %2343 = vdwg.mxu0
    %2344 = vmatprep.subr.mxu0 %v2212
    %2345 = vmatpush1.msra.mxu0 %v2211
    %2346 = vmatprep.subr.mxu0 %v2216
    %2347 = vmatpush1.msra.mxu0 %v2215
    %2348 = vmatprep.subr.mxu0 %v2220
    %2349 = vmatpush1.msra.mxu0 %v2219
    %2350 = vmatprep.subr.mxu0 %v2224
    %2351 = vmatpush1.msra.mxu0 %v2223
    %2352 = vmatprep.subr.mxu0 %v2228
    %2353 = vmatpush1.msra.mxu0 %v2227
    %2354 = vmatprep.subr.mxu0 %v2232
    %2355 = vmatpush1.msra.mxu0 %v2231
    %2356 = vmatprep.subr.mxu0 %v2236
    %2357 = vmatpush1.msra.mxu0 %v2235
    %2358 = vmatprep.subr.mxu0 %v2240
    %2359 = vmatpush1.msra.mxu0 %v2239
    %2360 = vmatprep.subr.mxu0 %v2244
    %2361 = vmatpush1.msra.mxu0 %v2243
    %2362 = vmatprep.subr.mxu0 %v2248
    %2363 = vmatpush1.msra.mxu0 %v2247
    %2364 = vmatprep.subr.mxu0 %v2252
    %2365 = vmatpush1.msra.mxu0 %v2251
    %2366 = vmatprep.subr.mxu0 %v2256
    %2367 = vmatpush1.msra.mxu0 %v2255
    %2368 = vmatprep.subr.mxu0 %v2260
    %2369 = vmatpush1.msra.mxu0 %v2259
    %2370 = vmatprep.subr.mxu0 %v2264
    %2371 = vmatpush1.msra.mxu0 %v2263
    %2372 = vmatprep.subr.mxu0 %v2268
    %2373 = vmatpush1.msra.mxu0 %v2267
    %2374 = vmatprep.subr.mxu0 %v2272
    %2375 = vmatpush1.msra.mxu0 %v2271
    %2376 = vmatprep.subr.mxu0 0.0
    %2377 = vmatpush1.msra.mxu0 0.0
    %2378 = vmatprep.subr.mxu0 0.0
    %2379 = vmatpush1.msra.mxu0 0.0
    %2380 = vmatprep.subr.mxu0 0.0
    %2381 = vmatpush1.msra.mxu0 0.0
    %2382 = vmatprep.subr.mxu0 0.0
    %2383 = vmatpush1.msra.mxu0 0.0
    %2384 = vmatprep.subr.mxu0 0.0
    %2385 = vmatpush1.msra.mxu0 0.0
    %2386 = vmatprep.subr.mxu0 0.0
    %2387 = vmatpush1.msra.mxu0 0.0
    %2388 = vmatprep.subr.mxu0 0.0
    %2389 = vmatpush1.msra.mxu0 0.0
    %2390 = vmatprep.subr.mxu0 0.0
    %2391 = vmatpush1.msra.mxu0 0.0
    %2392 = vmatprep.subr.mxu0 0.0
    %2393 = vmatpush1.msra.mxu0 0.0
    %2394 = vmatprep.subr.mxu0 0.0
    %2395 = vmatpush1.msra.mxu0 0.0
    %2396 = vmatprep.subr.mxu0 0.0
    %2397 = vmatpush1.msra.mxu0 0.0
    %2398 = vmatprep.subr.mxu0 0.0
    %2399 = vmatpush1.msra.mxu0 0.0
    %2400 = vmatprep.subr.mxu0 0.0
    %2401 = vmatpush1.msra.mxu0 0.0
    %2402 = vmatprep.subr.mxu0 0.0
    %2403 = vmatpush1.msra.mxu0 0.0
    %2404 = vmatprep.subr.mxu0 0.0
    %2405 = vmatpush1.msra.mxu0 0.0
    %2406 = vmatprep.subr.mxu0 0.0
    %2407 = vmatpush1.msra.mxu0 0.0
    %2408 = vmatprep.mubr.f32.mxu0 0.0
    %2409 = vmatmul.mubr.f32.gmra.mrb[0].mxu0 %v2207
    %v2410 = vpop.f32.mrb[0].mxu0
    %v2411 = vadd.f32 0.0, %v2410
    %v2412 = vpop.f32.mrb[0].mxu0
    %v2413 = vadd.f32 0.0, %v2412
    %2414 = vdwg.mxu0
    %v2415 = vadd.f32 %v2203, %v2340
    %v2416 = vadd.f32 %v2204, %v2342
    %v2417 = vadd.f32 %v2205, %v2411
    %v2418 = vadd.f32 %v2206, %v2413
    %v2419 = vxor.u32 %v2415, 2147483648
    %v2420 = vmul.f32 %v2419, 1.442695
    %v2421 = vpow.pop %v2420
    %v2422 = vadd.f32 %v2421, 1.0
    %v2423 = vrcp.pop %v2422
    %v2424 = vmul.f32 1.0, %v2423
    %v2425 = vxor.u32 %v2416, 2147483648
    %v2426 = vmul.f32 %v2425, 1.442695
    %v2427 = vpow.pop %v2426
    %v2428 = vadd.f32 %v2427, 1.0
    %v2429 = vrcp.pop %v2428
    %v2430 = vmul.f32 1.0, %v2429
    %v2431 = vtanh.pop %v2417
    %v2432 = vxor.u32 %v2418, 2147483648
    %v2433 = vmul.f32 %v2432, 1.442695
    %v2434 = vpow.pop %v2433
    %v2435 = vadd.f32 %v2434, 1.0
    %v2436 = vrcp.pop %v2435
    %v2437 = vmul.f32 1.0, %v2436
    %v2438 = vmul.f32 %v2430, %v2208
    %v2439 = vmul.f32 %v2424, %v2431
    %v2440 = vadd.f32 %v2438, %v2439
    %v2441 = vtanh.pop %v2440
    %v2442 = vmul.f32 %v2437, %v2441
    %2444 = vset.pattern.permute.xlu0 0
    %2445 = vperm.xlu0 %2444, %v2201
    %v2446 = vpop.permute.xlu0 %2445
    %v2448 = vmul.f32 %v2446, %v2442
    %v2449 = vsub.f32 1.0, %v2201
    %2451 = vset.pattern.permute.xlu0 0
    %2452 = vperm.xlu0 %2451, %v2449
    %v2453 = vpop.permute.xlu0 %2452
    %v2455 = vmul.f32 %v2453, %v2207
    %v2456 = vadd.f32 %v2448, %v2455
    %v2457 = vmul.f32 %v2446, %v2440
    %v2458 = vmul.f32 %v2453, %v2208
    %v2459 = vadd.f32 %v2457, %v2458
    %2460 = vst [vmem:[#allocation2] sm:$0xff] %v2456
    %2461 = vst [vmem:[#allocation3] sm:$0xff] %v2459
    %v2462 = vmul.f32 %v2446, %v2456
    %2463 = vst [vmem:[%s2199] sm:$0xff] %v2462
    %v2464 = vld [vmem:[%s1671] sm:$0xff]
    %s2465 = scalar_lea.vmem [#allocation9], 96
    %v2466 = vld [vmem:[%s2465] sm:$0xff]
    %v2467 = vld [vmem:[%s2465 + $0x8] sm:$0xff]
    %v2468 = vld [vmem:[%s2465 + $0x10] sm:$0xff]
    %v2469 = vld [vmem:[%s2465 + $0x18] sm:$0xff]
    %v2470 = vld [vmem:[#allocation4] sm:$0xff]
    %v2471 = vld [vmem:[#allocation5] sm:$0xff]
    %v2472 = vld [vmem:[#allocation12] sm:$0xff]
    %v2473 = vld [vmem:[#allocation12 + $0x8] sm:$0xff]
    %v2474 = vld [vmem:[#allocation12 + $0x10] sm:$0xff]
    %v2475 = vld [vmem:[#allocation12 + $0x18] sm:$0xff]
    %v2476 = vld [vmem:[#allocation12 + $0x20] sm:$0xff]
    %v2477 = vld [vmem:[#allocation12 + $0x28] sm:$0xff]
    %v2478 = vld [vmem:[#allocation12 + $0x30] sm:$0xff]
    %v2479 = vld [vmem:[#allocation12 + $0x38] sm:$0xff]
    %v2480 = vld [vmem:[#allocation12 + $0x40] sm:$0xff]
    %v2481 = vld [vmem:[#allocation12 + $0x48] sm:$0xff]
    %v2482 = vld [vmem:[#allocation12 + $0x50] sm:$0xff]
    %v2483 = vld [vmem:[#allocation12 + $0x58] sm:$0xff]
    %v2484 = vld [vmem:[#allocation12 + $0x60] sm:$0xff]
    %v2485 = vld [vmem:[#allocation12 + $0x68] sm:$0xff]
    %v2486 = vld [vmem:[#allocation12 + $0x70] sm:$0xff]
    %v2487 = vld [vmem:[#allocation12 + $0x78] sm:$0xff]
    %v2488 = vld [vmem:[#allocation12 + $0x80] sm:$0xff]
    %v2489 = vld [vmem:[#allocation12 + $0x88] sm:$0xff]
    %v2490 = vld [vmem:[#allocation12 + $0x90] sm:$0xff]
    %v2491 = vld [vmem:[#allocation12 + $0x98] sm:$0xff]
    %v2492 = vld [vmem:[#allocation12 + $0xa0] sm:$0xff]
    %v2493 = vld [vmem:[#allocation12 + $0xa8] sm:$0xff]
    %v2494 = vld [vmem:[#allocation12 + $0xb0] sm:$0xff]
    %v2495 = vld [vmem:[#allocation12 + $0xb8] sm:$0xff]
    %v2496 = vld [vmem:[#allocation12 + $0xc0] sm:$0xff]
    %v2497 = vld [vmem:[#allocation12 + $0xc8] sm:$0xff]
    %v2498 = vld [vmem:[#allocation12 + $0xd0] sm:$0xff]
    %v2499 = vld [vmem:[#allocation12 + $0xd8] sm:$0xff]
    %v2500 = vld [vmem:[#allocation12 + $0xe0] sm:$0xff]
    %v2501 = vld [vmem:[#allocation12 + $0xe8] sm:$0xff]
    %v2502 = vld [vmem:[#allocation12 + $0xf0] sm:$0xff]
    %v2503 = vld [vmem:[#allocation12 + $0xf8] sm:$0xff]
    %v2504 = vld [vmem:[#allocation12 + $0x100] sm:$0xff]
    %v2505 = vld [vmem:[#allocation12 + $0x108] sm:$0xff]
    %v2506 = vld [vmem:[#allocation12 + $0x110] sm:$0xff]
    %v2507 = vld [vmem:[#allocation12 + $0x118] sm:$0xff]
    %v2508 = vld [vmem:[#allocation12 + $0x120] sm:$0xff]
    %v2509 = vld [vmem:[#allocation12 + $0x128] sm:$0xff]
    %v2510 = vld [vmem:[#allocation12 + $0x130] sm:$0xff]
    %v2511 = vld [vmem:[#allocation12 + $0x138] sm:$0xff]
    %v2512 = vld [vmem:[#allocation12 + $0x140] sm:$0xff]
    %v2513 = vld [vmem:[#allocation12 + $0x148] sm:$0xff]
    %v2514 = vld [vmem:[#allocation12 + $0x150] sm:$0xff]
    %v2515 = vld [vmem:[#allocation12 + $0x158] sm:$0xff]
    %v2516 = vld [vmem:[#allocation12 + $0x160] sm:$0xff]
    %v2517 = vld [vmem:[#allocation12 + $0x168] sm:$0xff]
    %v2518 = vld [vmem:[#allocation12 + $0x170] sm:$0xff]
    %v2519 = vld [vmem:[#allocation12 + $0x178] sm:$0xff]
    %v2520 = vld [vmem:[#allocation12 + $0x180] sm:$0xff]
    %v2521 = vld [vmem:[#allocation12 + $0x188] sm:$0xff]
    %v2522 = vld [vmem:[#allocation12 + $0x190] sm:$0xff]
    %v2523 = vld [vmem:[#allocation12 + $0x198] sm:$0xff]
    %v2524 = vld [vmem:[#allocation12 + $0x1a0] sm:$0xff]
    %v2525 = vld [vmem:[#allocation12 + $0x1a8] sm:$0xff]
    %v2526 = vld [vmem:[#allocation12 + $0x1b0] sm:$0xff]
    %v2527 = vld [vmem:[#allocation12 + $0x1b8] sm:$0xff]
    %v2528 = vld [vmem:[#allocation12 + $0x1c0] sm:$0xff]
    %v2529 = vld [vmem:[#allocation12 + $0x1c8] sm:$0xff]
    %v2530 = vld [vmem:[#allocation12 + $0x1d0] sm:$0xff]
    %v2531 = vld [vmem:[#allocation12 + $0x1d8] sm:$0xff]
    %v2532 = vld [vmem:[#allocation12 + $0x1e0] sm:$0xff]
    %v2533 = vld [vmem:[#allocation12 + $0x1e8] sm:$0xff]
    %v2534 = vld [vmem:[#allocation12 + $0x1f0] sm:$0xff]
    %v2535 = vld [vmem:[#allocation12 + $0x1f8] sm:$0xff]
    %2536 = vmatprep.subr.mxu0 %v2473
    %2537 = vmatpush1.msra.mxu0 %v2472
    %2538 = vmatprep.subr.mxu0 %v2477
    %2539 = vmatpush1.msra.mxu0 %v2476
    %2540 = vmatprep.subr.mxu0 %v2481
    %2541 = vmatpush1.msra.mxu0 %v2480
    %2542 = vmatprep.subr.mxu0 %v2485
    %2543 = vmatpush1.msra.mxu0 %v2484
    %2544 = vmatprep.subr.mxu0 %v2489
    %2545 = vmatpush1.msra.mxu0 %v2488
    %2546 = vmatprep.subr.mxu0 %v2493
    %2547 = vmatpush1.msra.mxu0 %v2492
    %2548 = vmatprep.subr.mxu0 %v2497
    %2549 = vmatpush1.msra.mxu0 %v2496
    %2550 = vmatprep.subr.mxu0 %v2501
    %2551 = vmatpush1.msra.mxu0 %v2500
    %2552 = vmatprep.subr.mxu0 %v2505
    %2553 = vmatpush1.msra.mxu0 %v2504
    %2554 = vmatprep.subr.mxu0 %v2509
    %2555 = vmatpush1.msra.mxu0 %v2508
    %2556 = vmatprep.subr.mxu0 %v2513
    %2557 = vmatpush1.msra.mxu0 %v2512
    %2558 = vmatprep.subr.mxu0 %v2517
    %2559 = vmatpush1.msra.mxu0 %v2516
    %2560 = vmatprep.subr.mxu0 %v2521
    %2561 = vmatpush1.msra.mxu0 %v2520
    %2562 = vmatprep.subr.mxu0 %v2525
    %2563 = vmatpush1.msra.mxu0 %v2524
    %2564 = vmatprep.subr.mxu0 %v2529
    %2565 = vmatpush1.msra.mxu0 %v2528
    %2566 = vmatprep.subr.mxu0 %v2533
    %2567 = vmatpush1.msra.mxu0 %v2532
    %2568 = vmatprep.subr.mxu0 0.0
    %2569 = vmatpush1.msra.mxu0 0.0
    %2570 = vmatprep.subr.mxu0 0.0
    %2571 = vmatpush1.msra.mxu0 0.0
    %2572 = vmatprep.subr.mxu0 0.0
    %2573 = vmatpush1.msra.mxu0 0.0
    %2574 = vmatprep.subr.mxu0 0.0
    %2575 = vmatpush1.msra.mxu0 0.0
    %2576 = vmatprep.subr.mxu0 0.0
    %2577 = vmatpush1.msra.mxu0 0.0
    %2578 = vmatprep.subr.mxu0 0.0
    %2579 = vmatpush1.msra.mxu0 0.0
    %2580 = vmatprep.subr.mxu0 0.0
    %2581 = vmatpush1.msra.mxu0 0.0
    %2582 = vmatprep.subr.mxu0 0.0
    %2583 = vmatpush1.msra.mxu0 0.0
    %2584 = vmatprep.subr.mxu0 0.0
    %2585 = vmatpush1.msra.mxu0 0.0
    %2586 = vmatprep.subr.mxu0 0.0
    %2587 = vmatpush1.msra.mxu0 0.0
    %2588 = vmatprep.subr.mxu0 0.0
    %2589 = vmatpush1.msra.mxu0 0.0
    %2590 = vmatprep.subr.mxu0 0.0
    %2591 = vmatpush1.msra.mxu0 0.0
    %2592 = vmatprep.subr.mxu0 0.0
    %2593 = vmatpush1.msra.mxu0 0.0
    %2594 = vmatprep.subr.mxu0 0.0
    %2595 = vmatpush1.msra.mxu0 0.0
    %2596 = vmatprep.subr.mxu0 0.0
    %2597 = vmatpush1.msra.mxu0 0.0
    %2598 = vmatprep.subr.mxu0 0.0
    %2599 = vmatpush1.msra.mxu0 0.0
    %2600 = vmatprep.mubr.f32.mxu0 0.0
    %2601 = vmatmul.mubr.f32.gmra.mrb[0].mxu0 %v2470
    %v2602 = vpop.f32.mrb[0].mxu0
    %v2603 = vadd.f32 0.0, %v2602
    %v2604 = vpop.f32.mrb[0].mxu0
    %v2605 = vadd.f32 0.0, %v2604
    %2606 = vdwg.mxu0
    %2607 = vmatprep.subr.mxu0 %v2475
    %2608 = vmatpush1.msra.mxu0 %v2474
    %2609 = vmatprep.subr.mxu0 %v2479
    %2610 = vmatpush1.msra.mxu0 %v2478
    %2611 = vmatprep.subr.mxu0 %v2483
    %2612 = vmatpush1.msra.mxu0 %v2482
    %2613 = vmatprep.subr.mxu0 %v2487
    %2614 = vmatpush1.msra.mxu0 %v2486
    %2615 = vmatprep.subr.mxu0 %v2491
    %2616 = vmatpush1.msra.mxu0 %v2490
    %2617 = vmatprep.subr.mxu0 %v2495
    %2618 = vmatpush1.msra.mxu0 %v2494
    %2619 = vmatprep.subr.mxu0 %v2499
    %2620 = vmatpush1.msra.mxu0 %v2498
    %2621 = vmatprep.subr.mxu0 %v2503
    %2622 = vmatpush1.msra.mxu0 %v2502
    %2623 = vmatprep.subr.mxu0 %v2507
    %2624 = vmatpush1.msra.mxu0 %v2506
    %2625 = vmatprep.subr.mxu0 %v2511
    %2626 = vmatpush1.msra.mxu0 %v2510
    %2627 = vmatprep.subr.mxu0 %v2515
    %2628 = vmatpush1.msra.mxu0 %v2514
    %2629 = vmatprep.subr.mxu0 %v2519
    %2630 = vmatpush1.msra.mxu0 %v2518
    %2631 = vmatprep.subr.mxu0 %v2523
    %2632 = vmatpush1.msra.mxu0 %v2522
    %2633 = vmatprep.subr.mxu0 %v2527
    %2634 = vmatpush1.msra.mxu0 %v2526
    %2635 = vmatprep.subr.mxu0 %v2531
    %2636 = vmatpush1.msra.mxu0 %v2530
    %2637 = vmatprep.subr.mxu0 %v2535
    %2638 = vmatpush1.msra.mxu0 %v2534
    %2639 = vmatprep.subr.mxu0 0.0
    %2640 = vmatpush1.msra.mxu0 0.0
    %2641 = vmatprep.subr.mxu0 0.0
    %2642 = vmatpush1.msra.mxu0 0.0
    %2643 = vmatprep.subr.mxu0 0.0
    %2644 = vmatpush1.msra.mxu0 0.0
    %2645 = vmatprep.subr.mxu0 0.0
    %2646 = vmatpush1.msra.mxu0 0.0
    %2647 = vmatprep.subr.mxu0 0.0
    %2648 = vmatpush1.msra.mxu0 0.0
    %2649 = vmatprep.subr.mxu0 0.0
    %2650 = vmatpush1.msra.mxu0 0.0
    %2651 = vmatprep.subr.mxu0 0.0
    %2652 = vmatpush1.msra.mxu0 0.0
    %2653 = vmatprep.subr.mxu0 0.0
    %2654 = vmatpush1.msra.mxu0 0.0
    %2655 = vmatprep.subr.mxu0 0.0
    %2656 = vmatpush1.msra.mxu0 0.0
    %2657 = vmatprep.subr.mxu0 0.0
    %2658 = vmatpush1.msra.mxu0 0.0
    %2659 = vmatprep.subr.mxu0 0.0
    %2660 = vmatpush1.msra.mxu0 0.0
    %2661 = vmatprep.subr.mxu0 0.0
    %2662 = vmatpush1.msra.mxu0 0.0
    %2663 = vmatprep.subr.mxu0 0.0
    %2664 = vmatpush1.msra.mxu0 0.0
    %2665 = vmatprep.subr.mxu0 0.0
    %2666 = vmatpush1.msra.mxu0 0.0
    %2667 = vmatprep.subr.mxu0 0.0
    %2668 = vmatpush1.msra.mxu0 0.0
    %2669 = vmatprep.subr.mxu0 0.0
    %2670 = vmatpush1.msra.mxu0 0.0
    %2671 = vmatprep.mubr.f32.mxu0 0.0
    %2672 = vmatmul.mubr.f32.gmra.mrb[0].mxu0 %v2470
    %v2673 = vpop.f32.mrb[0].mxu0
    %v2674 = vadd.f32 0.0, %v2673
    %v2675 = vpop.f32.mrb[0].mxu0
    %v2676 = vadd.f32 0.0, %v2675
    %2677 = vdwg.mxu0
    %v2678 = vadd.f32 %v2466, %v2603
    %v2679 = vadd.f32 %v2467, %v2605
    %v2680 = vadd.f32 %v2468, %v2674
    %v2681 = vadd.f32 %v2469, %v2676
    %v2682 = vxor.u32 %v2678, 2147483648
    %v2683 = vmul.f32 %v2682, 1.442695
    %v2684 = vpow.pop %v2683
    %v2685 = vadd.f32 %v2684, 1.0
    %v2686 = vrcp.pop %v2685
    %v2687 = vmul.f32 1.0, %v2686
    %v2688 = vxor.u32 %v2679, 2147483648
    %v2689 = vmul.f32 %v2688, 1.442695
    %v2690 = vpow.pop %v2689
    %v2691 = vadd.f32 %v2690, 1.0
    %v2692 = vrcp.pop %v2691
    %v2693 = vmul.f32 1.0, %v2692
    %v2694 = vtanh.pop %v2680
    %v2695 = vxor.u32 %v2681, 2147483648
    %v2696 = vmul.f32 %v2695, 1.442695
    %v2697 = vpow.pop %v2696
    %v2698 = vadd.f32 %v2697, 1.0
    %v2699 = vrcp.pop %v2698
    %v2700 = vmul.f32 1.0, %v2699
    %v2701 = vmul.f32 %v2693, %v2471
    %v2702 = vmul.f32 %v2687, %v2694
    %v2703 = vadd.f32 %v2701, %v2702
    %v2704 = vtanh.pop %v2703
    %v2705 = vmul.f32 %v2700, %v2704
    %2707 = vset.pattern.permute.xlu0 0
    %2708 = vperm.xlu0 %2707, %v2464
    %v2709 = vpop.permute.xlu0 %2708
    %v2711 = vmul.f32 %v2709, %v2705
    %v2712 = vsub.f32 1.0, %v2464
    %2714 = vset.pattern.permute.xlu0 0
    %2715 = vperm.xlu0 %2714, %v2712
    %v2716 = vpop.permute.xlu0 %2715
    %v2718 = vmul.f32 %v2716, %v2470
    %v2719 = vadd.f32 %v2711, %v2718
    %v2720 = vmul.f32 %v2709, %v2703
    %v2721 = vmul.f32 %v2716, %v2471
    %v2722 = vadd.f32 %v2720, %v2721
    %2723 = vst [vmem:[#allocation4] sm:$0xff] %v2719
    %2724 = vst [vmem:[#allocation5] sm:$0xff] %v2722
    %v2725 = vmul.f32 %v2709, %v2719
    %2726 = vst [vmem:[%s1934 + $0x8] sm:$0xff] %v2725
    %v2727 = vld [vmem:[%s1406] sm:$0xff]
    %s2728 = scalar_lea.vmem [#allocation6], 160
    %v2729 = vld [vmem:[%s2728] sm:$0xff]
    %v2730 = vld [vmem:[%s2728 + $0x8] sm:$0xff]
    %v2731 = vld [vmem:[%s2728 + $0x10] sm:$0xff]
    %v2732 = vld [vmem:[%s2728 + $0x18] sm:$0xff]
    %v2733 = vld [vmem:[#allocation2] sm:$0xff]
    %v2734 = vld [vmem:[#allocation3] sm:$0xff]
    %v2735 = vld [vmem:[#allocation11] sm:$0xff]
    %v2736 = vld [vmem:[#allocation11 + $0x8] sm:$0xff]
    %v2737 = vld [vmem:[#allocation11 + $0x10] sm:$0xff]
    %v2738 = vld [vmem:[#allocation11 + $0x18] sm:$0xff]
    %v2739 = vld [vmem:[#allocation11 + $0x20] sm:$0xff]
    %v2740 = vld [vmem:[#allocation11 + $0x28] sm:$0xff]
    %v2741 = vld [vmem:[#allocation11 + $0x30] sm:$0xff]
    %v2742 = vld [vmem:[#allocation11 + $0x38] sm:$0xff]
    %v2743 = vld [vmem:[#allocation11 + $0x40] sm:$0xff]
    %v2744 = vld [vmem:[#allocation11 + $0x48] sm:$0xff]
    %v2745 = vld [vmem:[#allocation11 + $0x50] sm:$0xff]
    %v2746 = vld [vmem:[#allocation11 + $0x58] sm:$0xff]
    %v2747 = vld [vmem:[#allocation11 + $0x60] sm:$0xff]
    %v2748 = vld [vmem:[#allocation11 + $0x68] sm:$0xff]
    %v2749 = vld [vmem:[#allocation11 + $0x70] sm:$0xff]
    %v2750 = vld [vmem:[#allocation11 + $0x78] sm:$0xff]
    %v2751 = vld [vmem:[#allocation11 + $0x80] sm:$0xff]
    %v2752 = vld [vmem:[#allocation11 + $0x88] sm:$0xff]
    %v2753 = vld [vmem:[#allocation11 + $0x90] sm:$0xff]
    %v2754 = vld [vmem:[#allocation11 + $0x98] sm:$0xff]
    %v2755 = vld [vmem:[#allocation11 + $0xa0] sm:$0xff]
    %v2756 = vld [vmem:[#allocation11 + $0xa8] sm:$0xff]
    %v2757 = vld [vmem:[#allocation11 + $0xb0] sm:$0xff]
    %v2758 = vld [vmem:[#allocation11 + $0xb8] sm:$0xff]
    %v2759 = vld [vmem:[#allocation11 + $0xc0] sm:$0xff]
    %v2760 = vld [vmem:[#allocation11 + $0xc8] sm:$0xff]
    %v2761 = vld [vmem:[#allocation11 + $0xd0] sm:$0xff]
    %v2762 = vld [vmem:[#allocation11 + $0xd8] sm:$0xff]
    %v2763 = vld [vmem:[#allocation11 + $0xe0] sm:$0xff]
    %v2764 = vld [vmem:[#allocation11 + $0xe8] sm:$0xff]
    %v2765 = vld [vmem:[#allocation11 + $0xf0] sm:$0xff]
    %v2766 = vld [vmem:[#allocation11 + $0xf8] sm:$0xff]
    %v2767 = vld [vmem:[#allocation11 + $0x100] sm:$0xff]
    %v2768 = vld [vmem:[#allocation11 + $0x108] sm:$0xff]
    %v2769 = vld [vmem:[#allocation11 + $0x110] sm:$0xff]
    %v2770 = vld [vmem:[#allocation11 + $0x118] sm:$0xff]
    %v2771 = vld [vmem:[#allocation11 + $0x120] sm:$0xff]
    %v2772 = vld [vmem:[#allocation11 + $0x128] sm:$0xff]
    %v2773 = vld [vmem:[#allocation11 + $0x130] sm:$0xff]
    %v2774 = vld [vmem:[#allocation11 + $0x138] sm:$0xff]
    %v2775 = vld [vmem:[#allocation11 + $0x140] sm:$0xff]
    %v2776 = vld [vmem:[#allocation11 + $0x148] sm:$0xff]
    %v2777 = vld [vmem:[#allocation11 + $0x150] sm:$0xff]
    %v2778 = vld [vmem:[#allocation11 + $0x158] sm:$0xff]
    %v2779 = vld [vmem:[#allocation11 + $0x160] sm:$0xff]
    %v2780 = vld [vmem:[#allocation11 + $0x168] sm:$0xff]
    %v2781 = vld [vmem:[#allocation11 + $0x170] sm:$0xff]
    %v2782 = vld [vmem:[#allocation11 + $0x178] sm:$0xff]
    %v2783 = vld [vmem:[#allocation11 + $0x180] sm:$0xff]
    %v2784 = vld [vmem:[#allocation11 + $0x188] sm:$0xff]
    %v2785 = vld [vmem:[#allocation11 + $0x190] sm:$0xff]
    %v2786 = vld [vmem:[#allocation11 + $0x198] sm:$0xff]
    %v2787 = vld [vmem:[#allocation11 + $0x1a0] sm:$0xff]
    %v2788 = vld [vmem:[#allocation11 + $0x1a8] sm:$0xff]
    %v2789 = vld [vmem:[#allocation11 + $0x1b0] sm:$0xff]
    %v2790 = vld [vmem:[#allocation11 + $0x1b8] sm:$0xff]
    %v2791 = vld [vmem:[#allocation11 + $0x1c0] sm:$0xff]
    %v2792 = vld [vmem:[#allocation11 + $0x1c8] sm:$0xff]
    %v2793 = vld [vmem:[#allocation11 + $0x1d0] sm:$0xff]
    %v2794 = vld [vmem:[#allocation11 + $0x1d8] sm:$0xff]
    %v2795 = vld [vmem:[#allocation11 + $0x1e0] sm:$0xff]
    %v2796 = vld [vmem:[#allocation11 + $0x1e8] sm:$0xff]
    %v2797 = vld [vmem:[#allocation11 + $0x1f0] sm:$0xff]
    %v2798 = vld [vmem:[#allocation11 + $0x1f8] sm:$0xff]
    %2799 = vmatprep.subr.mxu0 %v2736
    %2800 = vmatpush1.msra.mxu0 %v2735
    %2801 = vmatprep.subr.mxu0 %v2740
    %2802 = vmatpush1.msra.mxu0 %v2739
    %2803 = vmatprep.subr.mxu0 %v2744
    %2804 = vmatpush1.msra.mxu0 %v2743
    %2805 = vmatprep.subr.mxu0 %v2748
    %2806 = vmatpush1.msra.mxu0 %v2747
    %2807 = vmatprep.subr.mxu0 %v2752
    %2808 = vmatpush1.msra.mxu0 %v2751
    %2809 = vmatprep.subr.mxu0 %v2756
    %2810 = vmatpush1.msra.mxu0 %v2755
    %2811 = vmatprep.subr.mxu0 %v2760
    %2812 = vmatpush1.msra.mxu0 %v2759
    %2813 = vmatprep.subr.mxu0 %v2764
    %2814 = vmatpush1.msra.mxu0 %v2763
    %2815 = vmatprep.subr.mxu0 %v2768
    %2816 = vmatpush1.msra.mxu0 %v2767
    %2817 = vmatprep.subr.mxu0 %v2772
    %2818 = vmatpush1.msra.mxu0 %v2771
    %2819 = vmatprep.subr.mxu0 %v2776
    %2820 = vmatpush1.msra.mxu0 %v2775
    %2821 = vmatprep.subr.mxu0 %v2780
    %2822 = vmatpush1.msra.mxu0 %v2779
    %2823 = vmatprep.subr.mxu0 %v2784
    %2824 = vmatpush1.msra.mxu0 %v2783
    %2825 = vmatprep.subr.mxu0 %v2788
    %2826 = vmatpush1.msra.mxu0 %v2787
    %2827 = vmatprep.subr.mxu0 %v2792
    %2828 = vmatpush1.msra.mxu0 %v2791
    %2829 = vmatprep.subr.mxu0 %v2796
    %2830 = vmatpush1.msra.mxu0 %v2795
    %2831 = vmatprep.subr.mxu0 0.0
    %2832 = vmatpush1.msra.mxu0 0.0
    %2833 = vmatprep.subr.mxu0 0.0
    %2834 = vmatpush1.msra.mxu0 0.0
    %2835 = vmatprep.subr.mxu0 0.0
    %2836 = vmatpush1.msra.mxu0 0.0
    %2837 = vmatprep.subr.mxu0 0.0
    %2838 = vmatpush1.msra.mxu0 0.0
    %2839 = vmatprep.subr.mxu0 0.0
    %2840 = vmatpush1.msra.mxu0 0.0
    %2841 = vmatprep.subr.mxu0 0.0
    %2842 = vmatpush1.msra.mxu0 0.0
    %2843 = vmatprep.subr.mxu0 0.0
    %2844 = vmatpush1.msra.mxu0 0.0
    %2845 = vmatprep.subr.mxu0 0.0
    %2846 = vmatpush1.msra.mxu0 0.0
    %2847 = vmatprep.subr.mxu0 0.0
    %2848 = vmatpush1.msra.mxu0 0.0
    %2849 = vmatprep.subr.mxu0 0.0
    %2850 = vmatpush1.msra.mxu0 0.0
    %2851 = vmatprep.subr.mxu0 0.0
    %2852 = vmatpush1.msra.mxu0 0.0
    %2853 = vmatprep.subr.mxu0 0.0
    %2854 = vmatpush1.msra.mxu0 0.0
    %2855 = vmatprep.subr.mxu0 0.0
    %2856 = vmatpush1.msra.mxu0 0.0
    %2857 = vmatprep.subr.mxu0 0.0
    %2858 = vmatpush1.msra.mxu0 0.0
    %2859 = vmatprep.subr.mxu0 0.0
    %2860 = vmatpush1.msra.mxu0 0.0
    %2861 = vmatprep.subr.mxu0 0.0
    %2862 = vmatpush1.msra.mxu0 0.0
    %2863 = vmatprep.mubr.f32.mxu0 0.0
    %2864 = vmatmul.mubr.f32.gmra.mrb[0].mxu0 %v2733
    %v2865 = vpop.f32.mrb[0].mxu0
    %v2866 = vadd.f32 0.0, %v2865
    %v2867 = vpop.f32.mrb[0].mxu0
    %v2868 = vadd.f32 0.0, %v2867
    %2869 = vdwg.mxu0
    %2870 = vmatprep.subr.mxu0 %v2738
    %2871 = vmatpush1.msra.mxu0 %v2737
    %2872 = vmatprep.subr.mxu0 %v2742
    %2873 = vmatpush1.msra.mxu0 %v2741
    %2874 = vmatprep.subr.mxu0 %v2746
    %2875 = vmatpush1.msra.mxu0 %v2745
    %2876 = vmatprep.subr.mxu0 %v2750
    %2877 = vmatpush1.msra.mxu0 %v2749
    %2878 = vmatprep.subr.mxu0 %v2754
    %2879 = vmatpush1.msra.mxu0 %v2753
    %2880 = vmatprep.subr.mxu0 %v2758
    %2881 = vmatpush1.msra.mxu0 %v2757
    %2882 = vmatprep.subr.mxu0 %v2762
    %2883 = vmatpush1.msra.mxu0 %v2761
    %2884 = vmatprep.subr.mxu0 %v2766
    %2885 = vmatpush1.msra.mxu0 %v2765
    %2886 = vmatprep.subr.mxu0 %v2770
    %2887 = vmatpush1.msra.mxu0 %v2769
    %2888 = vmatprep.subr.mxu0 %v2774
    %2889 = vmatpush1.msra.mxu0 %v2773
    %2890 = vmatprep.subr.mxu0 %v2778
    %2891 = vmatpush1.msra.mxu0 %v2777
    %2892 = vmatprep.subr.mxu0 %v2782
    %2893 = vmatpush1.msra.mxu0 %v2781
    %2894 = vmatprep.subr.mxu0 %v2786
    %2895 = vmatpush1.msra.mxu0 %v2785
    %2896 = vmatprep.subr.mxu0 %v2790
    %2897 = vmatpush1.msra.mxu0 %v2789
    %2898 = vmatprep.subr.mxu0 %v2794
    %2899 = vmatpush1.msra.mxu0 %v2793
    %2900 = vmatprep.subr.mxu0 %v2798
    %2901 = vmatpush1.msra.mxu0 %v2797
    %2902 = vmatprep.subr.mxu0 0.0
    %2903 = vmatpush1.msra.mxu0 0.0
    %2904 = vmatprep.subr.mxu0 0.0
    %2905 = vmatpush1.msra.mxu0 0.0
    %2906 = vmatprep.subr.mxu0 0.0
    %2907 = vmatpush1.msra.mxu0 0.0
    %2908 = vmatprep.subr.mxu0 0.0
    %2909 = vmatpush1.msra.mxu0 0.0
    %2910 = vmatprep.subr.mxu0 0.0
    %2911 = vmatpush1.msra.mxu0 0.0
    %2912 = vmatprep.subr.mxu0 0.0
    %2913 = vmatpush1.msra.mxu0 0.0
    %2914 = vmatprep.subr.mxu0 0.0
    %2915 = vmatpush1.msra.mxu0 0.0
    %2916 = vmatprep.subr.mxu0 0.0
    %2917 = vmatpush1.msra.mxu0 0.0
    %2918 = vmatprep.subr.mxu0 0.0
    %2919 = vmatpush1.msra.mxu0 0.0
    %2920 = vmatprep.subr.mxu0 0.0
    %2921 = vmatpush1.msra.mxu0 0.0
    %2922 = vmatprep.subr.mxu0 0.0
    %2923 = vmatpush1.msra.mxu0 0.0
    %2924 = vmatprep.subr.mxu0 0.0
    %2925 = vmatpush1.msra.mxu0 0.0
    %2926 = vmatprep.subr.mxu0 0.0
    %2927 = vmatpush1.msra.mxu0 0.0
    %2928 = vmatprep.subr.mxu0 0.0
    %2929 = vmatpush1.msra.mxu0 0.0
    %2930 = vmatprep.subr.mxu0 0.0
    %2931 = vmatpush1.msra.mxu0 0.0
    %2932 = vmatprep.subr.mxu0 0.0
    %2933 = vmatpush1.msra.mxu0 0.0
    %2934 = vmatprep.mubr.f32.mxu0 0.0
    %2935 = vmatmul.mubr.f32.gmra.mrb[0].mxu0 %v2733
    %v2936 = vpop.f32.mrb[0].mxu0
    %v2937 = vadd.f32 0.0, %v2936
    %v2938 = vpop.f32.mrb[0].mxu0
    %v2939 = vadd.f32 0.0, %v2938
    %2940 = vdwg.mxu0
    %v2941 = vadd.f32 %v2729, %v2866
    %v2942 = vadd.f32 %v2730, %v2868
    %v2943 = vadd.f32 %v2731, %v2937
    %v2944 = vadd.f32 %v2732, %v2939
    %v2945 = vxor.u32 %v2941, 2147483648
    %v2946 = vmul.f32 %v2945, 1.442695
    %v2947 = vpow.pop %v2946
    %v2948 = vadd.f32 %v2947, 1.0
    %v2949 = vrcp.pop %v2948
    %v2950 = vmul.f32 1.0, %v2949
    %v2951 = vxor.u32 %v2942, 2147483648
    %v2952 = vmul.f32 %v2951, 1.442695
    %v2953 = vpow.pop %v2952
    %v2954 = vadd.f32 %v2953, 1.0
    %v2955 = vrcp.pop %v2954
    %v2956 = vmul.f32 1.0, %v2955
    %v2957 = vtanh.pop %v2943
    %v2958 = vxor.u32 %v2944, 2147483648
    %v2959 = vmul.f32 %v2958, 1.442695
    %v2960 = vpow.pop %v2959
    %v2961 = vadd.f32 %v2960, 1.0
    %v2962 = vrcp.pop %v2961
    %v2963 = vmul.f32 1.0, %v2962
    %v2964 = vmul.f32 %v2956, %v2734
    %v2965 = vmul.f32 %v2950, %v2957
    %v2966 = vadd.f32 %v2964, %v2965
    %v2967 = vtanh.pop %v2966
    %v2968 = vmul.f32 %v2963, %v2967
    %2970 = vset.pattern.permute.xlu0 0
    %2971 = vperm.xlu0 %2970, %v2727
    %v2972 = vpop.permute.xlu0 %2971
    %v2974 = vmul.f32 %v2972, %v2968
    %v2975 = vsub.f32 1.0, %v2727
    %2977 = vset.pattern.permute.xlu0 0
    %2978 = vperm.xlu0 %2977, %v2975
    %v2979 = vpop.permute.xlu0 %2978
    %v2981 = vmul.f32 %v2979, %v2733
    %v2982 = vadd.f32 %v2974, %v2981
    %v2983 = vmul.f32 %v2972, %v2966
    %v2984 = vmul.f32 %v2979, %v2734
    %v2985 = vadd.f32 %v2983, %v2984
    %2986 = vst [vmem:[#allocation2] sm:$0xff] %v2982
    %2987 = vst [vmem:[#allocation3] sm:$0xff] %v2985
    %v2988 = vmul.f32 %v2972, %v2982
    %2989 = vst [vmem:[%s1669] sm:$0xff] %v2988
    %v2990 = vld [vmem:[%s1141] sm:$0xff]
    %s2991 = scalar_lea.vmem [#allocation9], 64
    %v2992 = vld [vmem:[%s2991] sm:$0xff]
    %v2993 = vld [vmem:[%s2991 + $0x8] sm:$0xff]
    %v2994 = vld [vmem:[%s2991 + $0x10] sm:$0xff]
    %v2995 = vld [vmem:[%s2991 + $0x18] sm:$0xff]
    %v2996 = vld [vmem:[#allocation4] sm:$0xff]
    %v2997 = vld [vmem:[#allocation5] sm:$0xff]
    %v2998 = vld [vmem:[#allocation12] sm:$0xff]
    %v2999 = vld [vmem:[#allocation12 + $0x8] sm:$0xff]
    %v3000 = vld [vmem:[#allocation12 + $0x10] sm:$0xff]
    %v3001 = vld [vmem:[#allocation12 + $0x18] sm:$0xff]
    %v3002 = vld [vmem:[#allocation12 + $0x20] sm:$0xff]
    %v3003 = vld [vmem:[#allocation12 + $0x28] sm:$0xff]
    %v3004 = vld [vmem:[#allocation12 + $0x30] sm:$0xff]
    %v3005 = vld [vmem:[#allocation12 + $0x38] sm:$0xff]
    %v3006 = vld [vmem:[#allocation12 + $0x40] sm:$0xff]
    %v3007 = vld [vmem:[#allocation12 + $0x48] sm:$0xff]
    %v3008 = vld [vmem:[#allocation12 + $0x50] sm:$0xff]
    %v3009 = vld [vmem:[#allocation12 + $0x58] sm:$0xff]
    %v3010 = vld [vmem:[#allocation12 + $0x60] sm:$0xff]
    %v3011 = vld [vmem:[#allocation12 + $0x68] sm:$0xff]
    %v3012 = vld [vmem:[#allocation12 + $0x70] sm:$0xff]
    %v3013 = vld [vmem:[#allocation12 + $0x78] sm:$0xff]
    %v3014 = vld [vmem:[#allocation12 + $0x80] sm:$0xff]
    %v3015 = vld [vmem:[#allocation12 + $0x88] sm:$0xff]
    %v3016 = vld [vmem:[#allocation12 + $0x90] sm:$0xff]
    %v3017 = vld [vmem:[#allocation12 + $0x98] sm:$0xff]
    %v3018 = vld [vmem:[#allocation12 + $0xa0] sm:$0xff]
    %v3019 = vld [vmem:[#allocation12 + $0xa8] sm:$0xff]
    %v3020 = vld [vmem:[#allocation12 + $0xb0] sm:$0xff]
    %v3021 = vld [vmem:[#allocation12 + $0xb8] sm:$0xff]
    %v3022 = vld [vmem:[#allocation12 + $0xc0] sm:$0xff]
    %v3023 = vld [vmem:[#allocation12 + $0xc8] sm:$0xff]
    %v3024 = vld [vmem:[#allocation12 + $0xd0] sm:$0xff]
    %v3025 = vld [vmem:[#allocation12 + $0xd8] sm:$0xff]
    %v3026 = vld [vmem:[#allocation12 + $0xe0] sm:$0xff]
    %v3027 = vld [vmem:[#allocation12 + $0xe8] sm:$0xff]
    %v3028 = vld [vmem:[#allocation12 + $0xf0] sm:$0xff]
    %v3029 = vld [vmem:[#allocation12 + $0xf8] sm:$0xff]
    %v3030 = vld [vmem:[#allocation12 + $0x100] sm:$0xff]
    %v3031 = vld [vmem:[#allocation12 + $0x108] sm:$0xff]
    %v3032 = vld [vmem:[#allocation12 + $0x110] sm:$0xff]
    %v3033 = vld [vmem:[#allocation12 + $0x118] sm:$0xff]
    %v3034 = vld [vmem:[#allocation12 + $0x120] sm:$0xff]
    %v3035 = vld [vmem:[#allocation12 + $0x128] sm:$0xff]
    %v3036 = vld [vmem:[#allocation12 + $0x130] sm:$0xff]
    %v3037 = vld [vmem:[#allocation12 + $0x138] sm:$0xff]
    %v3038 = vld [vmem:[#allocation12 + $0x140] sm:$0xff]
    %v3039 = vld [vmem:[#allocation12 + $0x148] sm:$0xff]
    %v3040 = vld [vmem:[#allocation12 + $0x150] sm:$0xff]
    %v3041 = vld [vmem:[#allocation12 + $0x158] sm:$0xff]
    %v3042 = vld [vmem:[#allocation12 + $0x160] sm:$0xff]
    %v3043 = vld [vmem:[#allocation12 + $0x168] sm:$0xff]
    %v3044 = vld [vmem:[#allocation12 + $0x170] sm:$0xff]
    %v3045 = vld [vmem:[#allocation12 + $0x178] sm:$0xff]
    %v3046 = vld [vmem:[#allocation12 + $0x180] sm:$0xff]
    %v3047 = vld [vmem:[#allocation12 + $0x188] sm:$0xff]
    %v3048 = vld [vmem:[#allocation12 + $0x190] sm:$0xff]
    %v3049 = vld [vmem:[#allocation12 + $0x198] sm:$0xff]
    %v3050 = vld [vmem:[#allocation12 + $0x1a0] sm:$0xff]
    %v3051 = vld [vmem:[#allocation12 + $0x1a8] sm:$0xff]
    %v3052 = vld [vmem:[#allocation12 + $0x1b0] sm:$0xff]
    %v3053 = vld [vmem:[#allocation12 + $0x1b8] sm:$0xff]
    %v3054 = vld [vmem:[#allocation12 + $0x1c0] sm:$0xff]
    %v3055 = vld [vmem:[#allocation12 + $0x1c8] sm:$0xff]
    %v3056 = vld [vmem:[#allocation12 + $0x1d0] sm:$0xff]
    %v3057 = vld [vmem:[#allocation12 + $0x1d8] sm:$0xff]
    %v3058 = vld [vmem:[#allocation12 + $0x1e0] sm:$0xff]
    %v3059 = vld [vmem:[#allocation12 + $0x1e8] sm:$0xff]
    %v3060 = vld [vmem:[#allocation12 + $0x1f0] sm:$0xff]
    %v3061 = vld [vmem:[#allocation12 + $0x1f8] sm:$0xff]
    %3062 = vmatprep.subr.mxu0 %v2999
    %3063 = vmatpush1.msra.mxu0 %v2998
    %3064 = vmatprep.subr.mxu0 %v3003
    %3065 = vmatpush1.msra.mxu0 %v3002
    %3066 = vmatprep.subr.mxu0 %v3007
    %3067 = vmatpush1.msra.mxu0 %v3006
    %3068 = vmatprep.subr.mxu0 %v3011
    %3069 = vmatpush1.msra.mxu0 %v3010
    %3070 = vmatprep.subr.mxu0 %v3015
    %3071 = vmatpush1.msra.mxu0 %v3014
    %3072 = vmatprep.subr.mxu0 %v3019
    %3073 = vmatpush1.msra.mxu0 %v3018
    %3074 = vmatprep.subr.mxu0 %v3023
    %3075 = vmatpush1.msra.mxu0 %v3022
    %3076 = vmatprep.subr.mxu0 %v3027
    %3077 = vmatpush1.msra.mxu0 %v3026
    %3078 = vmatprep.subr.mxu0 %v3031
    %3079 = vmatpush1.msra.mxu0 %v3030
    %3080 = vmatprep.subr.mxu0 %v3035
    %3081 = vmatpush1.msra.mxu0 %v3034
    %3082 = vmatprep.subr.mxu0 %v3039
    %3083 = vmatpush1.msra.mxu0 %v3038
    %3084 = vmatprep.subr.mxu0 %v3043
    %3085 = vmatpush1.msra.mxu0 %v3042
    %3086 = vmatprep.subr.mxu0 %v3047
    %3087 = vmatpush1.msra.mxu0 %v3046
    %3088 = vmatprep.subr.mxu0 %v3051
    %3089 = vmatpush1.msra.mxu0 %v3050
    %3090 = vmatprep.subr.mxu0 %v3055
    %3091 = vmatpush1.msra.mxu0 %v3054
    %3092 = vmatprep.subr.mxu0 %v3059
    %3093 = vmatpush1.msra.mxu0 %v3058
    %3094 = vmatprep.subr.mxu0 0.0
    %3095 = vmatpush1.msra.mxu0 0.0
    %3096 = vmatprep.subr.mxu0 0.0
    %3097 = vmatpush1.msra.mxu0 0.0
    %3098 = vmatprep.subr.mxu0 0.0
    %3099 = vmatpush1.msra.mxu0 0.0
    %3100 = vmatprep.subr.mxu0 0.0
    %3101 = vmatpush1.msra.mxu0 0.0
    %3102 = vmatprep.subr.mxu0 0.0
    %3103 = vmatpush1.msra.mxu0 0.0
    %3104 = vmatprep.subr.mxu0 0.0
    %3105 = vmatpush1.msra.mxu0 0.0
    %3106 = vmatprep.subr.mxu0 0.0
    %3107 = vmatpush1.msra.mxu0 0.0
    %3108 = vmatprep.subr.mxu0 0.0
    %3109 = vmatpush1.msra.mxu0 0.0
    %3110 = vmatprep.subr.mxu0 0.0
    %3111 = vmatpush1.msra.mxu0 0.0
    %3112 = vmatprep.subr.mxu0 0.0
    %3113 = vmatpush1.msra.mxu0 0.0
    %3114 = vmatprep.subr.mxu0 0.0
    %3115 = vmatpush1.msra.mxu0 0.0
    %3116 = vmatprep.subr.mxu0 0.0
    %3117 = vmatpush1.msra.mxu0 0.0
    %3118 = vmatprep.subr.mxu0 0.0
    %3119 = vmatpush1.msra.mxu0 0.0
    %3120 = vmatprep.subr.mxu0 0.0
    %3121 = vmatpush1.msra.mxu0 0.0
    %3122 = vmatprep.subr.mxu0 0.0
    %3123 = vmatpush1.msra.mxu0 0.0
    %3124 = vmatprep.subr.mxu0 0.0
    %3125 = vmatpush1.msra.mxu0 0.0
    %3126 = vmatprep.mubr.f32.mxu0 0.0
    %3127 = vmatmul.mubr.f32.gmra.mrb[0].mxu0 %v2996
    %v3128 = vpop.f32.mrb[0].mxu0
    %v3129 = vadd.f32 0.0, %v3128
    %v3130 = vpop.f32.mrb[0].mxu0
    %v3131 = vadd.f32 0.0, %v3130
    %3132 = vdwg.mxu0
    %3133 = vmatprep.subr.mxu0 %v3001
    %3134 = vmatpush1.msra.mxu0 %v3000
    %3135 = vmatprep.subr.mxu0 %v3005
    %3136 = vmatpush1.msra.mxu0 %v3004
    %3137 = vmatprep.subr.mxu0 %v3009
    %3138 = vmatpush1.msra.mxu0 %v3008
    %3139 = vmatprep.subr.mxu0 %v3013
    %3140 = vmatpush1.msra.mxu0 %v3012
    %3141 = vmatprep.subr.mxu0 %v3017
    %3142 = vmatpush1.msra.mxu0 %v3016
    %3143 = vmatprep.subr.mxu0 %v3021
    %3144 = vmatpush1.msra.mxu0 %v3020
    %3145 = vmatprep.subr.mxu0 %v3025
    %3146 = vmatpush1.msra.mxu0 %v3024
    %3147 = vmatprep.subr.mxu0 %v3029
    %3148 = vmatpush1.msra.mxu0 %v3028
    %3149 = vmatprep.subr.mxu0 %v3033
    %3150 = vmatpush1.msra.mxu0 %v3032
    %3151 = vmatprep.subr.mxu0 %v3037
    %3152 = vmatpush1.msra.mxu0 %v3036
    %3153 = vmatprep.subr.mxu0 %v3041
    %3154 = vmatpush1.msra.mxu0 %v3040
    %3155 = vmatprep.subr.mxu0 %v3045
    %3156 = vmatpush1.msra.mxu0 %v3044
    %3157 = vmatprep.subr.mxu0 %v3049
    %3158 = vmatpush1.msra.mxu0 %v3048
    %3159 = vmatprep.subr.mxu0 %v3053
    %3160 = vmatpush1.msra.mxu0 %v3052
    %3161 = vmatprep.subr.mxu0 %v3057
    %3162 = vmatpush1.msra.mxu0 %v3056
    %3163 = vmatprep.subr.mxu0 %v3061
    %3164 = vmatpush1.msra.mxu0 %v3060
    %3165 = vmatprep.subr.mxu0 0.0
    %3166 = vmatpush1.msra.mxu0 0.0
    %3167 = vmatprep.subr.mxu0 0.0
    %3168 = vmatpush1.msra.mxu0 0.0
    %3169 = vmatprep.subr.mxu0 0.0
    %3170 = vmatpush1.msra.mxu0 0.0
    %3171 = vmatprep.subr.mxu0 0.0
    %3172 = vmatpush1.msra.mxu0 0.0
    %3173 = vmatprep.subr.mxu0 0.0
    %3174 = vmatpush1.msra.mxu0 0.0
    %3175 = vmatprep.subr.mxu0 0.0
    %3176 = vmatpush1.msra.mxu0 0.0
    %3177 = vmatprep.subr.mxu0 0.0
    %3178 = vmatpush1.msra.mxu0 0.0
    %3179 = vmatprep.subr.mxu0 0.0
    %3180 = vmatpush1.msra.mxu0 0.0
    %3181 = vmatprep.subr.mxu0 0.0
    %3182 = vmatpush1.msra.mxu0 0.0
    %3183 = vmatprep.subr.mxu0 0.0
    %3184 = vmatpush1.msra.mxu0 0.0
    %3185 = vmatprep.subr.mxu0 0.0
    %3186 = vmatpush1.msra.mxu0 0.0
    %3187 = vmatprep.subr.mxu0 0.0
    %3188 = vmatpush1.msra.mxu0 0.0
    %3189 = vmatprep.subr.mxu0 0.0
    %3190 = vmatpush1.msra.mxu0 0.0
    %3191 = vmatprep.subr.mxu0 0.0
    %3192 = vmatpush1.msra.mxu0 0.0
    %3193 = vmatprep.subr.mxu0 0.0
    %3194 = vmatpush1.msra.mxu0 0.0
    %3195 = vmatprep.subr.mxu0 0.0
    %3196 = vmatpush1.msra.mxu0 0.0
    %3197 = vmatprep.mubr.f32.mxu0 0.0
    %3198 = vmatmul.mubr.f32.gmra.mrb[0].mxu0 %v2996
    %v3199 = vpop.f32.mrb[0].mxu0
    %v3200 = vadd.f32 0.0, %v3199
    %v3201 = vpop.f32.mrb[0].mxu0
    %v3202 = vadd.f32 0.0, %v3201
    %3203 = vdwg.mxu0
    %v3204 = vadd.f32 %v2992, %v3129
    %v3205 = vadd.f32 %v2993, %v3131
    %v3206 = vadd.f32 %v2994, %v3200
    %v3207 = vadd.f32 %v2995, %v3202
    %v3208 = vxor.u32 %v3204, 2147483648
    %v3209 = vmul.f32 %v3208, 1.442695
    %v3210 = vpow.pop %v3209
    %v3211 = vadd.f32 %v3210, 1.0
    %v3212 = vrcp.pop %v3211
    %v3213 = vmul.f32 1.0, %v3212
    %v3214 = vxor.u32 %v3205, 2147483648
    %v3215 = vmul.f32 %v3214, 1.442695
    %v3216 = vpow.pop %v3215
    %v3217 = vadd.f32 %v3216, 1.0
    %v3218 = vrcp.pop %v3217
    %v3219 = vmul.f32 1.0, %v3218
    %v3220 = vtanh.pop %v3206
    %v3221 = vxor.u32 %v3207, 2147483648
    %v3222 = vmul.f32 %v3221, 1.442695
    %v3223 = vpow.pop %v3222
    %v3224 = vadd.f32 %v3223, 1.0
    %v3225 = vrcp.pop %v3224
    %v3226 = vmul.f32 1.0, %v3225
    %v3227 = vmul.f32 %v3219, %v2997
    %v3228 = vmul.f32 %v3213, %v3220
    %v3229 = vadd.f32 %v3227, %v3228
    %v3230 = vtanh.pop %v3229
    %v3231 = vmul.f32 %v3226, %v3230
    %3233 = vset.pattern.permute.xlu0 0
    %3234 = vperm.xlu0 %3233, %v2990
    %v3235 = vpop.permute.xlu0 %3234
    %v3237 = vmul.f32 %v3235, %v3231
    %v3238 = vsub.f32 1.0, %v2990
    %3240 = vset.pattern.permute.xlu0 0
    %3241 = vperm.xlu0 %3240, %v3238
    %v3242 = vpop.permute.xlu0 %3241
    %v3244 = vmul.f32 %v3242, %v2996
    %v3245 = vadd.f32 %v3237, %v3244
    %v3246 = vmul.f32 %v3235, %v3229
    %v3247 = vmul.f32 %v3242, %v2997
    %v3248 = vadd.f32 %v3246, %v3247
    %3249 = vst [vmem:[#allocation4] sm:$0xff] %v3245
    %3250 = vst [vmem:[#allocation5] sm:$0xff] %v3248
    %v3251 = vmul.f32 %v3235, %v3245
    %3252 = vst [vmem:[%s1404 + $0x8] sm:$0xff] %v3251
    %v3253 = vld [vmem:[%s876] sm:$0xff]
    %s3254 = scalar_lea.vmem [#allocation6], 192
    %v3255 = vld [vmem:[%s3254] sm:$0xff]
    %v3256 = vld [vmem:[%s3254 + $0x8] sm:$0xff]
    %v3257 = vld [vmem:[%s3254 + $0x10] sm:$0xff]
    %v3258 = vld [vmem:[%s3254 + $0x18] sm:$0xff]
    %v3259 = vld [vmem:[#allocation2] sm:$0xff]
    %v3260 = vld [vmem:[#allocation3] sm:$0xff]
    %v3261 = vld [vmem:[#allocation11] sm:$0xff]
    %v3262 = vld [vmem:[#allocation11 + $0x8] sm:$0xff]
    %v3263 = vld [vmem:[#allocation11 + $0x10] sm:$0xff]
    %v3264 = vld [vmem:[#allocation11 + $0x18] sm:$0xff]
    %v3265 = vld [vmem:[#allocation11 + $0x20] sm:$0xff]
    %v3266 = vld [vmem:[#allocation11 + $0x28] sm:$0xff]
    %v3267 = vld [vmem:[#allocation11 + $0x30] sm:$0xff]
    %v3268 = vld [vmem:[#allocation11 + $0x38] sm:$0xff]
    %v3269 = vld [vmem:[#allocation11 + $0x40] sm:$0xff]
    %v3270 = vld [vmem:[#allocation11 + $0x48] sm:$0xff]
    %v3271 = vld [vmem:[#allocation11 + $0x50] sm:$0xff]
    %v3272 = vld [vmem:[#allocation11 + $0x58] sm:$0xff]
    %v3273 = vld [vmem:[#allocation11 + $0x60] sm:$0xff]
    %v3274 = vld [vmem:[#allocation11 + $0x68] sm:$0xff]
    %v3275 = vld [vmem:[#allocation11 + $0x70] sm:$0xff]
    %v3276 = vld [vmem:[#allocation11 + $0x78] sm:$0xff]
    %v3277 = vld [vmem:[#allocation11 + $0x80] sm:$0xff]
    %v3278 = vld [vmem:[#allocation11 + $0x88] sm:$0xff]
    %v3279 = vld [vmem:[#allocation11 + $0x90] sm:$0xff]
    %v3280 = vld [vmem:[#allocation11 + $0x98] sm:$0xff]
    %v3281 = vld [vmem:[#allocation11 + $0xa0] sm:$0xff]
    %v3282 = vld [vmem:[#allocation11 + $0xa8] sm:$0xff]
    %v3283 = vld [vmem:[#allocation11 + $0xb0] sm:$0xff]
    %v3284 = vld [vmem:[#allocation11 + $0xb8] sm:$0xff]
    %v3285 = vld [vmem:[#allocation11 + $0xc0] sm:$0xff]
    %v3286 = vld [vmem:[#allocation11 + $0xc8] sm:$0xff]
    %v3287 = vld [vmem:[#allocation11 + $0xd0] sm:$0xff]
    %v3288 = vld [vmem:[#allocation11 + $0xd8] sm:$0xff]
    %v3289 = vld [vmem:[#allocation11 + $0xe0] sm:$0xff]
    %v3290 = vld [vmem:[#allocation11 + $0xe8] sm:$0xff]
    %v3291 = vld [vmem:[#allocation11 + $0xf0] sm:$0xff]
    %v3292 = vld [vmem:[#allocation11 + $0xf8] sm:$0xff]
    %v3293 = vld [vmem:[#allocation11 + $0x100] sm:$0xff]
    %v3294 = vld [vmem:[#allocation11 + $0x108] sm:$0xff]
    %v3295 = vld [vmem:[#allocation11 + $0x110] sm:$0xff]
    %v3296 = vld [vmem:[#allocation11 + $0x118] sm:$0xff]
    %v3297 = vld [vmem:[#allocation11 + $0x120] sm:$0xff]
    %v3298 = vld [vmem:[#allocation11 + $0x128] sm:$0xff]
    %v3299 = vld [vmem:[#allocation11 + $0x130] sm:$0xff]
    %v3300 = vld [vmem:[#allocation11 + $0x138] sm:$0xff]
    %v3301 = vld [vmem:[#allocation11 + $0x140] sm:$0xff]
    %v3302 = vld [vmem:[#allocation11 + $0x148] sm:$0xff]
    %v3303 = vld [vmem:[#allocation11 + $0x150] sm:$0xff]
    %v3304 = vld [vmem:[#allocation11 + $0x158] sm:$0xff]
    %v3305 = vld [vmem:[#allocation11 + $0x160] sm:$0xff]
    %v3306 = vld [vmem:[#allocation11 + $0x168] sm:$0xff]
    %v3307 = vld [vmem:[#allocation11 + $0x170] sm:$0xff]
    %v3308 = vld [vmem:[#allocation11 + $0x178] sm:$0xff]
    %v3309 = vld [vmem:[#allocation11 + $0x180] sm:$0xff]
    %v3310 = vld [vmem:[#allocation11 + $0x188] sm:$0xff]
    %v3311 = vld [vmem:[#allocation11 + $0x190] sm:$0xff]
    %v3312 = vld [vmem:[#allocation11 + $0x198] sm:$0xff]
    %v3313 = vld [vmem:[#allocation11 + $0x1a0] sm:$0xff]
    %v3314 = vld [vmem:[#allocation11 + $0x1a8] sm:$0xff]
    %v3315 = vld [vmem:[#allocation11 + $0x1b0] sm:$0xff]
    %v3316 = vld [vmem:[#allocation11 + $0x1b8] sm:$0xff]
    %v3317 = vld [vmem:[#allocation11 + $0x1c0] sm:$0xff]
    %v3318 = vld [vmem:[#allocation11 + $0x1c8] sm:$0xff]
    %v3319 = vld [vmem:[#allocation11 + $0x1d0] sm:$0xff]
    %v3320 = vld [vmem:[#allocation11 + $0x1d8] sm:$0xff]
    %v3321 = vld [vmem:[#allocation11 + $0x1e0] sm:$0xff]
    %v3322 = vld [vmem:[#allocation11 + $0x1e8] sm:$0xff]
    %v3323 = vld [vmem:[#allocation11 + $0x1f0] sm:$0xff]
    %v3324 = vld [vmem:[#allocation11 + $0x1f8] sm:$0xff]
    %3325 = vmatprep.subr.mxu0 %v3262
    %3326 = vmatpush1.msra.mxu0 %v3261
    %3327 = vmatprep.subr.mxu0 %v3266
    %3328 = vmatpush1.msra.mxu0 %v3265
    %3329 = vmatprep.subr.mxu0 %v3270
    %3330 = vmatpush1.msra.mxu0 %v3269
    %3331 = vmatprep.subr.mxu0 %v3274
    %3332 = vmatpush1.msra.mxu0 %v3273
    %3333 = vmatprep.subr.mxu0 %v3278
    %3334 = vmatpush1.msra.mxu0 %v3277
    %3335 = vmatprep.subr.mxu0 %v3282
    %3336 = vmatpush1.msra.mxu0 %v3281
    %3337 = vmatprep.subr.mxu0 %v3286
    %3338 = vmatpush1.msra.mxu0 %v3285
    %3339 = vmatprep.subr.mxu0 %v3290
    %3340 = vmatpush1.msra.mxu0 %v3289
    %3341 = vmatprep.subr.mxu0 %v3294
    %3342 = vmatpush1.msra.mxu0 %v3293
    %3343 = vmatprep.subr.mxu0 %v3298
    %3344 = vmatpush1.msra.mxu0 %v3297
    %3345 = vmatprep.subr.mxu0 %v3302
    %3346 = vmatpush1.msra.mxu0 %v3301
    %3347 = vmatprep.subr.mxu0 %v3306
    %3348 = vmatpush1.msra.mxu0 %v3305
    %3349 = vmatprep.subr.mxu0 %v3310
    %3350 = vmatpush1.msra.mxu0 %v3309
    %3351 = vmatprep.subr.mxu0 %v3314
    %3352 = vmatpush1.msra.mxu0 %v3313
    %3353 = vmatprep.subr.mxu0 %v3318
    %3354 = vmatpush1.msra.mxu0 %v3317
    %3355 = vmatprep.subr.mxu0 %v3322
    %3356 = vmatpush1.msra.mxu0 %v3321
    %3357 = vmatprep.subr.mxu0 0.0
    %3358 = vmatpush1.msra.mxu0 0.0
    %3359 = vmatprep.subr.mxu0 0.0
    %3360 = vmatpush1.msra.mxu0 0.0
    %3361 = vmatprep.subr.mxu0 0.0
    %3362 = vmatpush1.msra.mxu0 0.0
    %3363 = vmatprep.subr.mxu0 0.0
    %3364 = vmatpush1.msra.mxu0 0.0
    %3365 = vmatprep.subr.mxu0 0.0
    %3366 = vmatpush1.msra.mxu0 0.0
    %3367 = vmatprep.subr.mxu0 0.0
    %3368 = vmatpush1.msra.mxu0 0.0
    %3369 = vmatprep.subr.mxu0 0.0
    %3370 = vmatpush1.msra.mxu0 0.0
    %3371 = vmatprep.subr.mxu0 0.0
    %3372 = vmatpush1.msra.mxu0 0.0
    %3373 = vmatprep.subr.mxu0 0.0
    %3374 = vmatpush1.msra.mxu0 0.0
    %3375 = vmatprep.subr.mxu0 0.0
    %3376 = vmatpush1.msra.mxu0 0.0
    %3377 = vmatprep.subr.mxu0 0.0
    %3378 = vmatpush1.msra.mxu0 0.0
    %3379 = vmatprep.subr.mxu0 0.0
    %3380 = vmatpush1.msra.mxu0 0.0
    %3381 = vmatprep.subr.mxu0 0.0
    %3382 = vmatpush1.msra.mxu0 0.0
    %3383 = vmatprep.subr.mxu0 0.0
    %3384 = vmatpush1.msra.mxu0 0.0
    %3385 = vmatprep.subr.mxu0 0.0
    %3386 = vmatpush1.msra.mxu0 0.0
    %3387 = vmatprep.subr.mxu0 0.0
    %3388 = vmatpush1.msra.mxu0 0.0
    %3389 = vmatprep.mubr.f32.mxu0 0.0
    %3390 = vmatmul.mubr.f32.gmra.mrb[0].mxu0 %v3259
    %v3391 = vpop.f32.mrb[0].mxu0
    %v3392 = vadd.f32 0.0, %v3391
    %v3393 = vpop.f32.mrb[0].mxu0
    %v3394 = vadd.f32 0.0, %v3393
    %3395 = vdwg.mxu0
    %3396 = vmatprep.subr.mxu0 %v3264
    %3397 = vmatpush1.msra.mxu0 %v3263
    %3398 = vmatprep.subr.mxu0 %v3268
    %3399 = vmatpush1.msra.mxu0 %v3267
    %3400 = vmatprep.subr.mxu0 %v3272
    %3401 = vmatpush1.msra.mxu0 %v3271
    %3402 = vmatprep.subr.mxu0 %v3276
    %3403 = vmatpush1.msra.mxu0 %v3275
    %3404 = vmatprep.subr.mxu0 %v3280
    %3405 = vmatpush1.msra.mxu0 %v3279
    %3406 = vmatprep.subr.mxu0 %v3284
    %3407 = vmatpush1.msra.mxu0 %v3283
    %3408 = vmatprep.subr.mxu0 %v3288
    %3409 = vmatpush1.msra.mxu0 %v3287
    %3410 = vmatprep.subr.mxu0 %v3292
    %3411 = vmatpush1.msra.mxu0 %v3291
    %3412 = vmatprep.subr.mxu0 %v3296
    %3413 = vmatpush1.msra.mxu0 %v3295
    %3414 = vmatprep.subr.mxu0 %v3300
    %3415 = vmatpush1.msra.mxu0 %v3299
    %3416 = vmatprep.subr.mxu0 %v3304
    %3417 = vmatpush1.msra.mxu0 %v3303
    %3418 = vmatprep.subr.mxu0 %v3308
    %3419 = vmatpush1.msra.mxu0 %v3307
    %3420 = vmatprep.subr.mxu0 %v3312
    %3421 = vmatpush1.msra.mxu0 %v3311
    %3422 = vmatprep.subr.mxu0 %v3316
    %3423 = vmatpush1.msra.mxu0 %v3315
    %3424 = vmatprep.subr.mxu0 %v3320
    %3425 = vmatpush1.msra.mxu0 %v3319
    %3426 = vmatprep.subr.mxu0 %v3324
    %3427 = vmatpush1.msra.mxu0 %v3323
    %3428 = vmatprep.subr.mxu0 0.0
    %3429 = vmatpush1.msra.mxu0 0.0
    %3430 = vmatprep.subr.mxu0 0.0
    %3431 = vmatpush1.msra.mxu0 0.0
    %3432 = vmatprep.subr.mxu0 0.0
    %3433 = vmatpush1.msra.mxu0 0.0
    %3434 = vmatprep.subr.mxu0 0.0
    %3435 = vmatpush1.msra.mxu0 0.0
    %3436 = vmatprep.subr.mxu0 0.0
    %3437 = vmatpush1.msra.mxu0 0.0
    %3438 = vmatprep.subr.mxu0 0.0
    %3439 = vmatpush1.msra.mxu0 0.0
    %3440 = vmatprep.subr.mxu0 0.0
    %3441 = vmatpush1.msra.mxu0 0.0
    %3442 = vmatprep.subr.mxu0 0.0
    %3443 = vmatpush1.msra.mxu0 0.0
    %3444 = vmatprep.subr.mxu0 0.0
    %3445 = vmatpush1.msra.mxu0 0.0
    %3446 = vmatprep.subr.mxu0 0.0
    %3447 = vmatpush1.msra.mxu0 0.0
    %3448 = vmatprep.subr.mxu0 0.0
    %3449 = vmatpush1.msra.mxu0 0.0
    %3450 = vmatprep.subr.mxu0 0.0
    %3451 = vmatpush1.msra.mxu0 0.0
    %3452 = vmatprep.subr.mxu0 0.0
    %3453 = vmatpush1.msra.mxu0 0.0
    %3454 = vmatprep.subr.mxu0 0.0
    %3455 = vmatpush1.msra.mxu0 0.0
    %3456 = vmatprep.subr.mxu0 0.0
    %3457 = vmatpush1.msra.mxu0 0.0
    %3458 = vmatprep.subr.mxu0 0.0
    %3459 = vmatpush1.msra.mxu0 0.0
    %3460 = vmatprep.mubr.f32.mxu0 0.0
    %3461 = vmatmul.mubr.f32.gmra.mrb[0].mxu0 %v3259
    %v3462 = vpop.f32.mrb[0].mxu0
    %v3463 = vadd.f32 0.0, %v3462
    %v3464 = vpop.f32.mrb[0].mxu0
    %v3465 = vadd.f32 0.0, %v3464
    %3466 = vdwg.mxu0
    %v3467 = vadd.f32 %v3255, %v3392
    %v3468 = vadd.f32 %v3256, %v3394
    %v3469 = vadd.f32 %v3257, %v3463
    %v3470 = vadd.f32 %v3258, %v3465
    %v3471 = vxor.u32 %v3467, 2147483648
    %v3472 = vmul.f32 %v3471, 1.442695
    %v3473 = vpow.pop %v3472
    %v3474 = vadd.f32 %v3473, 1.0
    %v3475 = vrcp.pop %v3474
    %v3476 = vmul.f32 1.0, %v3475
    %v3477 = vxor.u32 %v3468, 2147483648
    %v3478 = vmul.f32 %v3477, 1.442695
    %v3479 = vpow.pop %v3478
    %v3480 = vadd.f32 %v3479, 1.0
    %v3481 = vrcp.pop %v3480
    %v3482 = vmul.f32 1.0, %v3481
    %v3483 = vtanh.pop %v3469
    %v3484 = vxor.u32 %v3470, 2147483648
    %v3485 = vmul.f32 %v3484, 1.442695
    %v3486 = vpow.pop %v3485
    %v3487 = vadd.f32 %v3486, 1.0
    %v3488 = vrcp.pop %v3487
    %v3489 = vmul.f32 1.0, %v3488
    %v3490 = vmul.f32 %v3482, %v3260
    %v3491 = vmul.f32 %v3476, %v3483
    %v3492 = vadd.f32 %v3490, %v3491
    %v3493 = vtanh.pop %v3492
    %v3494 = vmul.f32 %v3489, %v3493
    %3496 = vset.pattern.permute.xlu0 0
    %3497 = vperm.xlu0 %3496, %v3253
    %v3498 = vpop.permute.xlu0 %3497
    %v3500 = vmul.f32 %v3498, %v3494
    %v3501 = vsub.f32 1.0, %v3253
    %3503 = vset.pattern.permute.xlu0 0
    %3504 = vperm.xlu0 %3503, %v3501
    %v3505 = vpop.permute.xlu0 %3504
    %v3507 = vmul.f32 %v3505, %v3259
    %v3508 = vadd.f32 %v3500, %v3507
    %v3509 = vmul.f32 %v3498, %v3492
    %v3510 = vmul.f32 %v3505, %v3260
    %v3511 = vadd.f32 %v3509, %v3510
    %3512 = vst [vmem:[#allocation2] sm:$0xff] %v3508
    %3513 = vst [vmem:[#allocation3] sm:$0xff] %v3511
    %v3514 = vmul.f32 %v3498, %v3508
    %3515 = vst [vmem:[%s1139] sm:$0xff] %v3514
    %v3516 = vld [vmem:[%s611] sm:$0xff]
    %s3517 = scalar_lea.vmem [#allocation9], 32
    %v3518 = vld [vmem:[%s3517] sm:$0xff]
    %v3519 = vld [vmem:[%s3517 + $0x8] sm:$0xff]
    %v3520 = vld [vmem:[%s3517 + $0x10] sm:$0xff]
    %v3521 = vld [vmem:[%s3517 + $0x18] sm:$0xff]
    %v3522 = vld [vmem:[#allocation4] sm:$0xff]
    %v3523 = vld [vmem:[#allocation5] sm:$0xff]
    %v3524 = vld [vmem:[#allocation12] sm:$0xff]
    %v3525 = vld [vmem:[#allocation12 + $0x8] sm:$0xff]
    %v3526 = vld [vmem:[#allocation12 + $0x10] sm:$0xff]
    %v3527 = vld [vmem:[#allocation12 + $0x18] sm:$0xff]
    %v3528 = vld [vmem:[#allocation12 + $0x20] sm:$0xff]
    %v3529 = vld [vmem:[#allocation12 + $0x28] sm:$0xff]
    %v3530 = vld [vmem:[#allocation12 + $0x30] sm:$0xff]
    %v3531 = vld [vmem:[#allocation12 + $0x38] sm:$0xff]
    %v3532 = vld [vmem:[#allocation12 + $0x40] sm:$0xff]
    %v3533 = vld [vmem:[#allocation12 + $0x48] sm:$0xff]
    %v3534 = vld [vmem:[#allocation12 + $0x50] sm:$0xff]
    %v3535 = vld [vmem:[#allocation12 + $0x58] sm:$0xff]
    %v3536 = vld [vmem:[#allocation12 + $0x60] sm:$0xff]
    %v3537 = vld [vmem:[#allocation12 + $0x68] sm:$0xff]
    %v3538 = vld [vmem:[#allocation12 + $0x70] sm:$0xff]
    %v3539 = vld [vmem:[#allocation12 + $0x78] sm:$0xff]
    %v3540 = vld [vmem:[#allocation12 + $0x80] sm:$0xff]
    %v3541 = vld [vmem:[#allocation12 + $0x88] sm:$0xff]
    %v3542 = vld [vmem:[#allocation12 + $0x90] sm:$0xff]
    %v3543 = vld [vmem:[#allocation12 + $0x98] sm:$0xff]
    %v3544 = vld [vmem:[#allocation12 + $0xa0] sm:$0xff]
    %v3545 = vld [vmem:[#allocation12 + $0xa8] sm:$0xff]
    %v3546 = vld [vmem:[#allocation12 + $0xb0] sm:$0xff]
    %v3547 = vld [vmem:[#allocation12 + $0xb8] sm:$0xff]
    %v3548 = vld [vmem:[#allocation12 + $0xc0] sm:$0xff]
    %v3549 = vld [vmem:[#allocation12 + $0xc8] sm:$0xff]
    %v3550 = vld [vmem:[#allocation12 + $0xd0] sm:$0xff]
    %v3551 = vld [vmem:[#allocation12 + $0xd8] sm:$0xff]
    %v3552 = vld [vmem:[#allocation12 + $0xe0] sm:$0xff]
    %v3553 = vld [vmem:[#allocation12 + $0xe8] sm:$0xff]
    %v3554 = vld [vmem:[#allocation12 + $0xf0] sm:$0xff]
    %v3555 = vld [vmem:[#allocation12 + $0xf8] sm:$0xff]
    %v3556 = vld [vmem:[#allocation12 + $0x100] sm:$0xff]
    %v3557 = vld [vmem:[#allocation12 + $0x108] sm:$0xff]
    %v3558 = vld [vmem:[#allocation12 + $0x110] sm:$0xff]
    %v3559 = vld [vmem:[#allocation12 + $0x118] sm:$0xff]
    %v3560 = vld [vmem:[#allocation12 + $0x120] sm:$0xff]
    %v3561 = vld [vmem:[#allocation12 + $0x128] sm:$0xff]
    %v3562 = vld [vmem:[#allocation12 + $0x130] sm:$0xff]
    %v3563 = vld [vmem:[#allocation12 + $0x138] sm:$0xff]
    %v3564 = vld [vmem:[#allocation12 + $0x140] sm:$0xff]
    %v3565 = vld [vmem:[#allocation12 + $0x148] sm:$0xff]
    %v3566 = vld [vmem:[#allocation12 + $0x150] sm:$0xff]
    %v3567 = vld [vmem:[#allocation12 + $0x158] sm:$0xff]
    %v3568 = vld [vmem:[#allocation12 + $0x160] sm:$0xff]
    %v3569 = vld [vmem:[#allocation12 + $0x168] sm:$0xff]
    %v3570 = vld [vmem:[#allocation12 + $0x170] sm:$0xff]
    %v3571 = vld [vmem:[#allocation12 + $0x178] sm:$0xff]
    %v3572 = vld [vmem:[#allocation12 + $0x180] sm:$0xff]
    %v3573 = vld [vmem:[#allocation12 + $0x188] sm:$0xff]
    %v3574 = vld [vmem:[#allocation12 + $0x190] sm:$0xff]
    %v3575 = vld [vmem:[#allocation12 + $0x198] sm:$0xff]
    %v3576 = vld [vmem:[#allocation12 + $0x1a0] sm:$0xff]
    %v3577 = vld [vmem:[#allocation12 + $0x1a8] sm:$0xff]
    %v3578 = vld [vmem:[#allocation12 + $0x1b0] sm:$0xff]
    %v3579 = vld [vmem:[#allocation12 + $0x1b8] sm:$0xff]
    %v3580 = vld [vmem:[#allocation12 + $0x1c0] sm:$0xff]
    %v3581 = vld [vmem:[#allocation12 + $0x1c8] sm:$0xff]
    %v3582 = vld [vmem:[#allocation12 + $0x1d0] sm:$0xff]
    %v3583 = vld [vmem:[#allocation12 + $0x1d8] sm:$0xff]
    %v3584 = vld [vmem:[#allocation12 + $0x1e0] sm:$0xff]
    %v3585 = vld [vmem:[#allocation12 + $0x1e8] sm:$0xff]
    %v3586 = vld [vmem:[#allocation12 + $0x1f0] sm:$0xff]
    %v3587 = vld [vmem:[#allocation12 + $0x1f8] sm:$0xff]
    %3588 = vmatprep.subr.mxu0 %v3525
    %3589 = vmatpush1.msra.mxu0 %v3524
    %3590 = vmatprep.subr.mxu0 %v3529
    %3591 = vmatpush1.msra.mxu0 %v3528
    %3592 = vmatprep.subr.mxu0 %v3533
    %3593 = vmatpush1.msra.mxu0 %v3532
    %3594 = vmatprep.subr.mxu0 %v3537
    %3595 = vmatpush1.msra.mxu0 %v3536
    %3596 = vmatprep.subr.mxu0 %v3541
    %3597 = vmatpush1.msra.mxu0 %v3540
    %3598 = vmatprep.subr.mxu0 %v3545
    %3599 = vmatpush1.msra.mxu0 %v3544
    %3600 = vmatprep.subr.mxu0 %v3549
    %3601 = vmatpush1.msra.mxu0 %v3548
    %3602 = vmatprep.subr.mxu0 %v3553
    %3603 = vmatpush1.msra.mxu0 %v3552
    %3604 = vmatprep.subr.mxu0 %v3557
    %3605 = vmatpush1.msra.mxu0 %v3556
    %3606 = vmatprep.subr.mxu0 %v3561
    %3607 = vmatpush1.msra.mxu0 %v3560
    %3608 = vmatprep.subr.mxu0 %v3565
    %3609 = vmatpush1.msra.mxu0 %v3564
    %3610 = vmatprep.subr.mxu0 %v3569
    %3611 = vmatpush1.msra.mxu0 %v3568
    %3612 = vmatprep.subr.mxu0 %v3573
    %3613 = vmatpush1.msra.mxu0 %v3572
    %3614 = vmatprep.subr.mxu0 %v3577
    %3615 = vmatpush1.msra.mxu0 %v3576
    %3616 = vmatprep.subr.mxu0 %v3581
    %3617 = vmatpush1.msra.mxu0 %v3580
    %3618 = vmatprep.subr.mxu0 %v3585
    %3619 = vmatpush1.msra.mxu0 %v3584
    %3620 = vmatprep.subr.mxu0 0.0
    %3621 = vmatpush1.msra.mxu0 0.0
    %3622 = vmatprep.subr.mxu0 0.0
    %3623 = vmatpush1.msra.mxu0 0.0
    %3624 = vmatprep.subr.mxu0 0.0
    %3625 = vmatpush1.msra.mxu0 0.0
    %3626 = vmatprep.subr.mxu0 0.0
    %3627 = vmatpush1.msra.mxu0 0.0
    %3628 = vmatprep.subr.mxu0 0.0
    %3629 = vmatpush1.msra.mxu0 0.0
    %3630 = vmatprep.subr.mxu0 0.0
    %3631 = vmatpush1.msra.mxu0 0.0
    %3632 = vmatprep.subr.mxu0 0.0
    %3633 = vmatpush1.msra.mxu0 0.0
    %3634 = vmatprep.subr.mxu0 0.0
    %3635 = vmatpush1.msra.mxu0 0.0
    %3636 = vmatprep.subr.mxu0 0.0
    %3637 = vmatpush1.msra.mxu0 0.0
    %3638 = vmatprep.subr.mxu0 0.0
    %3639 = vmatpush1.msra.mxu0 0.0
    %3640 = vmatprep.subr.mxu0 0.0
    %3641 = vmatpush1.msra.mxu0 0.0
    %3642 = vmatprep.subr.mxu0 0.0
    %3643 = vmatpush1.msra.mxu0 0.0
    %3644 = vmatprep.subr.mxu0 0.0
    %3645 = vmatpush1.msra.mxu0 0.0
    %3646 = vmatprep.subr.mxu0 0.0
    %3647 = vmatpush1.msra.mxu0 0.0
    %3648 = vmatprep.subr.mxu0 0.0
    %3649 = vmatpush1.msra.mxu0 0.0
    %3650 = vmatprep.subr.mxu0 0.0
    %3651 = vmatpush1.msra.mxu0 0.0
    %3652 = vmatprep.mubr.f32.mxu0 0.0
    %3653 = vmatmul.mubr.f32.gmra.mrb[0].mxu0 %v3522
    %v3654 = vpop.f32.mrb[0].mxu0
    %v3655 = vadd.f32 0.0, %v3654
    %v3656 = vpop.f32.mrb[0].mxu0
    %v3657 = vadd.f32 0.0, %v3656
    %3658 = vdwg.mxu0
    %3659 = vmatprep.subr.mxu0 %v3527
    %3660 = vmatpush1.msra.mxu0 %v3526
    %3661 = vmatprep.subr.mxu0 %v3531
    %3662 = vmatpush1.msra.mxu0 %v3530
    %3663 = vmatprep.subr.mxu0 %v3535
    %3664 = vmatpush1.msra.mxu0 %v3534
    %3665 = vmatprep.subr.mxu0 %v3539
    %3666 = vmatpush1.msra.mxu0 %v3538
    %3667 = vmatprep.subr.mxu0 %v3543
    %3668 = vmatpush1.msra.mxu0 %v3542
    %3669 = vmatprep.subr.mxu0 %v3547
    %3670 = vmatpush1.msra.mxu0 %v3546
    %3671 = vmatprep.subr.mxu0 %v3551
    %3672 = vmatpush1.msra.mxu0 %v3550
    %3673 = vmatprep.subr.mxu0 %v3555
    %3674 = vmatpush1.msra.mxu0 %v3554
    %3675 = vmatprep.subr.mxu0 %v3559
    %3676 = vmatpush1.msra.mxu0 %v3558
    %3677 = vmatprep.subr.mxu0 %v3563
    %3678 = vmatpush1.msra.mxu0 %v3562
    %3679 = vmatprep.subr.mxu0 %v3567
    %3680 = vmatpush1.msra.mxu0 %v3566
    %3681 = vmatprep.subr.mxu0 %v3571
    %3682 = vmatpush1.msra.mxu0 %v3570
    %3683 = vmatprep.subr.mxu0 %v3575
    %3684 = vmatpush1.msra.mxu0 %v3574
    %3685 = vmatprep.subr.mxu0 %v3579
    %3686 = vmatpush1.msra.mxu0 %v3578
    %3687 = vmatprep.subr.mxu0 %v3583
    %3688 = vmatpush1.msra.mxu0 %v3582
    %3689 = vmatprep.subr.mxu0 %v3587
    %3690 = vmatpush1.msra.mxu0 %v3586
    %3691 = vmatprep.subr.mxu0 0.0
    %3692 = vmatpush1.msra.mxu0 0.0
    %3693 = vmatprep.subr.mxu0 0.0
    %3694 = vmatpush1.msra.mxu0 0.0
    %3695 = vmatprep.subr.mxu0 0.0
    %3696 = vmatpush1.msra.mxu0 0.0
    %3697 = vmatprep.subr.mxu0 0.0
    %3698 = vmatpush1.msra.mxu0 0.0
    %3699 = vmatprep.subr.mxu0 0.0
    %3700 = vmatpush1.msra.mxu0 0.0
    %3701 = vmatprep.subr.mxu0 0.0
    %3702 = vmatpush1.msra.mxu0 0.0
    %3703 = vmatprep.subr.mxu0 0.0
    %3704 = vmatpush1.msra.mxu0 0.0
    %3705 = vmatprep.subr.mxu0 0.0
    %3706 = vmatpush1.msra.mxu0 0.0
    %3707 = vmatprep.subr.mxu0 0.0
    %3708 = vmatpush1.msra.mxu0 0.0
    %3709 = vmatprep.subr.mxu0 0.0
    %3710 = vmatpush1.msra.mxu0 0.0
    %3711 = vmatprep.subr.mxu0 0.0
    %3712 = vmatpush1.msra.mxu0 0.0
    %3713 = vmatprep.subr.mxu0 0.0
    %3714 = vmatpush1.msra.mxu0 0.0
    %3715 = vmatprep.subr.mxu0 0.0
    %3716 = vmatpush1.msra.mxu0 0.0
    %3717 = vmatprep.subr.mxu0 0.0
    %3718 = vmatpush1.msra.mxu0 0.0
    %3719 = vmatprep.subr.mxu0 0.0
    %3720 = vmatpush1.msra.mxu0 0.0
    %3721 = vmatprep.subr.mxu0 0.0
    %3722 = vmatpush1.msra.mxu0 0.0
    %3723 = vmatprep.mubr.f32.mxu0 0.0
    %3724 = vmatmul.mubr.f32.gmra.mrb[0].mxu0 %v3522
    %v3725 = vpop.f32.mrb[0].mxu0
    %v3726 = vadd.f32 0.0, %v3725
    %v3727 = vpop.f32.mrb[0].mxu0
    %v3728 = vadd.f32 0.0, %v3727
    %3729 = vdwg.mxu0
    %v3730 = vadd.f32 %v3518, %v3655
    %v3731 = vadd.f32 %v3519, %v3657
    %v3732 = vadd.f32 %v3520, %v3726
    %v3733 = vadd.f32 %v3521, %v3728
    %v3734 = vxor.u32 %v3730, 2147483648
    %v3735 = vmul.f32 %v3734, 1.442695
    %v3736 = vpow.pop %v3735
    %v3737 = vadd.f32 %v3736, 1.0
    %v3738 = vrcp.pop %v3737
    %v3739 = vmul.f32 1.0, %v3738
    %v3740 = vxor.u32 %v3731, 2147483648
    %v3741 = vmul.f32 %v3740, 1.442695
    %v3742 = vpow.pop %v3741
    %v3743 = vadd.f32 %v3742, 1.0
    %v3744 = vrcp.pop %v3743
    %v3745 = vmul.f32 1.0, %v3744
    %v3746 = vtanh.pop %v3732
    %v3747 = vxor.u32 %v3733, 2147483648
    %v3748 = vmul.f32 %v3747, 1.442695
    %v3749 = vpow.pop %v3748
    %v3750 = vadd.f32 %v3749, 1.0
    %v3751 = vrcp.pop %v3750
    %v3752 = vmul.f32 1.0, %v3751
    %v3753 = vmul.f32 %v3745, %v3523
    %v3754 = vmul.f32 %v3739, %v3746
    %v3755 = vadd.f32 %v3753, %v3754
    %v3756 = vtanh.pop %v3755
    %v3757 = vmul.f32 %v3752, %v3756
    %3759 = vset.pattern.permute.xlu0 0
    %3760 = vperm.xlu0 %3759, %v3516
    %v3761 = vpop.permute.xlu0 %3760
    %v3763 = vmul.f32 %v3761, %v3757
    %v3764 = vsub.f32 1.0, %v3516
    %3766 = vset.pattern.permute.xlu0 0
    %3767 = vperm.xlu0 %3766, %v3764
    %v3768 = vpop.permute.xlu0 %3767
    %v3770 = vmul.f32 %v3768, %v3522
    %v3771 = vadd.f32 %v3763, %v3770
    %v3772 = vmul.f32 %v3761, %v3755
    %v3773 = vmul.f32 %v3768, %v3523
    %v3774 = vadd.f32 %v3772, %v3773
    %3775 = vst [vmem:[#allocation4] sm:$0xff] %v3771
    %3776 = vst [vmem:[#allocation5] sm:$0xff] %v3774
    %v3777 = vmul.f32 %v3761, %v3771
    %3778 = vst [vmem:[%s874 + $0x8] sm:$0xff] %v3777
    %v3779 = vld [vmem:[%s346] sm:$0xff]
    %s3780 = scalar_lea.vmem [#allocation6], 224
    %v3781 = vld [vmem:[%s3780] sm:$0xff]
    %v3782 = vld [vmem:[%s3780 + $0x8] sm:$0xff]
    %v3783 = vld [vmem:[%s3780 + $0x10] sm:$0xff]
    %v3784 = vld [vmem:[%s3780 + $0x18] sm:$0xff]
    %v3785 = vld [vmem:[#allocation2] sm:$0xff]
    %v3786 = vld [vmem:[#allocation3] sm:$0xff]
    %v3787 = vld [vmem:[#allocation11] sm:$0xff]
    %v3788 = vld [vmem:[#allocation11 + $0x8] sm:$0xff]
    %v3789 = vld [vmem:[#allocation11 + $0x10] sm:$0xff]
    %v3790 = vld [vmem:[#allocation11 + $0x18] sm:$0xff]
    %v3791 = vld [vmem:[#allocation11 + $0x20] sm:$0xff]
    %v3792 = vld [vmem:[#allocation11 + $0x28] sm:$0xff]
    %v3793 = vld [vmem:[#allocation11 + $0x30] sm:$0xff]
    %v3794 = vld [vmem:[#allocation11 + $0x38] sm:$0xff]
    %v3795 = vld [vmem:[#allocation11 + $0x40] sm:$0xff]
    %v3796 = vld [vmem:[#allocation11 + $0x48] sm:$0xff]
    %v3797 = vld [vmem:[#allocation11 + $0x50] sm:$0xff]
    %v3798 = vld [vmem:[#allocation11 + $0x58] sm:$0xff]
    %v3799 = vld [vmem:[#allocation11 + $0x60] sm:$0xff]
    %v3800 = vld [vmem:[#allocation11 + $0x68] sm:$0xff]
    %v3801 = vld [vmem:[#allocation11 + $0x70] sm:$0xff]
    %v3802 = vld [vmem:[#allocation11 + $0x78] sm:$0xff]
    %v3803 = vld [vmem:[#allocation11 + $0x80] sm:$0xff]
    %v3804 = vld [vmem:[#allocation11 + $0x88] sm:$0xff]
    %v3805 = vld [vmem:[#allocation11 + $0x90] sm:$0xff]
    %v3806 = vld [vmem:[#allocation11 + $0x98] sm:$0xff]
    %v3807 = vld [vmem:[#allocation11 + $0xa0] sm:$0xff]
    %v3808 = vld [vmem:[#allocation11 + $0xa8] sm:$0xff]
    %v3809 = vld [vmem:[#allocation11 + $0xb0] sm:$0xff]
    %v3810 = vld [vmem:[#allocation11 + $0xb8] sm:$0xff]
    %v3811 = vld [vmem:[#allocation11 + $0xc0] sm:$0xff]
    %v3812 = vld [vmem:[#allocation11 + $0xc8] sm:$0xff]
    %v3813 = vld [vmem:[#allocation11 + $0xd0] sm:$0xff]
    %v3814 = vld [vmem:[#allocation11 + $0xd8] sm:$0xff]
    %v3815 = vld [vmem:[#allocation11 + $0xe0] sm:$0xff]
    %v3816 = vld [vmem:[#allocation11 + $0xe8] sm:$0xff]
    %v3817 = vld [vmem:[#allocation11 + $0xf0] sm:$0xff]
    %v3818 = vld [vmem:[#allocation11 + $0xf8] sm:$0xff]
    %v3819 = vld [vmem:[#allocation11 + $0x100] sm:$0xff]
    %v3820 = vld [vmem:[#allocation11 + $0x108] sm:$0xff]
    %v3821 = vld [vmem:[#allocation11 + $0x110] sm:$0xff]
    %v3822 = vld [vmem:[#allocation11 + $0x118] sm:$0xff]
    %v3823 = vld [vmem:[#allocation11 + $0x120] sm:$0xff]
    %v3824 = vld [vmem:[#allocation11 + $0x128] sm:$0xff]
    %v3825 = vld [vmem:[#allocation11 + $0x130] sm:$0xff]
    %v3826 = vld [vmem:[#allocation11 + $0x138] sm:$0xff]
    %v3827 = vld [vmem:[#allocation11 + $0x140] sm:$0xff]
    %v3828 = vld [vmem:[#allocation11 + $0x148] sm:$0xff]
    %v3829 = vld [vmem:[#allocation11 + $0x150] sm:$0xff]
    %v3830 = vld [vmem:[#allocation11 + $0x158] sm:$0xff]
    %v3831 = vld [vmem:[#allocation11 + $0x160] sm:$0xff]
    %v3832 = vld [vmem:[#allocation11 + $0x168] sm:$0xff]
    %v3833 = vld [vmem:[#allocation11 + $0x170] sm:$0xff]
    %v3834 = vld [vmem:[#allocation11 + $0x178] sm:$0xff]
    %v3835 = vld [vmem:[#allocation11 + $0x180] sm:$0xff]
    %v3836 = vld [vmem:[#allocation11 + $0x188] sm:$0xff]
    %v3837 = vld [vmem:[#allocation11 + $0x190] sm:$0xff]
    %v3838 = vld [vmem:[#allocation11 + $0x198] sm:$0xff]
    %v3839 = vld [vmem:[#allocation11 + $0x1a0] sm:$0xff]
    %v3840 = vld [vmem:[#allocation11 + $0x1a8] sm:$0xff]
    %v3841 = vld [vmem:[#allocation11 + $0x1b0] sm:$0xff]
    %v3842 = vld [vmem:[#allocation11 + $0x1b8] sm:$0xff]
    %v3843 = vld [vmem:[#allocation11 + $0x1c0] sm:$0xff]
    %v3844 = vld [vmem:[#allocation11 + $0x1c8] sm:$0xff]
    %v3845 = vld [vmem:[#allocation11 + $0x1d0] sm:$0xff]
    %v3846 = vld [vmem:[#allocation11 + $0x1d8] sm:$0xff]
    %v3847 = vld [vmem:[#allocation11 + $0x1e0] sm:$0xff]
    %v3848 = vld [vmem:[#allocation11 + $0x1e8] sm:$0xff]
    %v3849 = vld [vmem:[#allocation11 + $0x1f0] sm:$0xff]
    %v3850 = vld [vmem:[#allocation11 + $0x1f8] sm:$0xff]
    %3851 = vmatprep.subr.mxu0 %v3788
    %3852 = vmatpush1.msra.mxu0 %v3787
    %3853 = vmatprep.subr.mxu0 %v3792
    %3854 = vmatpush1.msra.mxu0 %v3791
    %3855 = vmatprep.subr.mxu0 %v3796
    %3856 = vmatpush1.msra.mxu0 %v3795
    %3857 = vmatprep.subr.mxu0 %v3800
    %3858 = vmatpush1.msra.mxu0 %v3799
    %3859 = vmatprep.subr.mxu0 %v3804
    %3860 = vmatpush1.msra.mxu0 %v3803
    %3861 = vmatprep.subr.mxu0 %v3808
    %3862 = vmatpush1.msra.mxu0 %v3807
    %3863 = vmatprep.subr.mxu0 %v3812
    %3864 = vmatpush1.msra.mxu0 %v3811
    %3865 = vmatprep.subr.mxu0 %v3816
    %3866 = vmatpush1.msra.mxu0 %v3815
    %3867 = vmatprep.subr.mxu0 %v3820
    %3868 = vmatpush1.msra.mxu0 %v3819
    %3869 = vmatprep.subr.mxu0 %v3824
    %3870 = vmatpush1.msra.mxu0 %v3823
    %3871 = vmatprep.subr.mxu0 %v3828
    %3872 = vmatpush1.msra.mxu0 %v3827
    %3873 = vmatprep.subr.mxu0 %v3832
    %3874 = vmatpush1.msra.mxu0 %v3831
    %3875 = vmatprep.subr.mxu0 %v3836
    %3876 = vmatpush1.msra.mxu0 %v3835
    %3877 = vmatprep.subr.mxu0 %v3840
    %3878 = vmatpush1.msra.mxu0 %v3839
    %3879 = vmatprep.subr.mxu0 %v3844
    %3880 = vmatpush1.msra.mxu0 %v3843
    %3881 = vmatprep.subr.mxu0 %v3848
    %3882 = vmatpush1.msra.mxu0 %v3847
    %3883 = vmatprep.subr.mxu0 0.0
    %3884 = vmatpush1.msra.mxu0 0.0
    %3885 = vmatprep.subr.mxu0 0.0
    %3886 = vmatpush1.msra.mxu0 0.0
    %3887 = vmatprep.subr.mxu0 0.0
    %3888 = vmatpush1.msra.mxu0 0.0
    %3889 = vmatprep.subr.mxu0 0.0
    %3890 = vmatpush1.msra.mxu0 0.0
    %3891 = vmatprep.subr.mxu0 0.0
    %3892 = vmatpush1.msra.mxu0 0.0
    %3893 = vmatprep.subr.mxu0 0.0
    %3894 = vmatpush1.msra.mxu0 0.0
    %3895 = vmatprep.subr.mxu0 0.0
    %3896 = vmatpush1.msra.mxu0 0.0
    %3897 = vmatprep.subr.mxu0 0.0
    %3898 = vmatpush1.msra.mxu0 0.0
    %3899 = vmatprep.subr.mxu0 0.0
    %3900 = vmatpush1.msra.mxu0 0.0
    %3901 = vmatprep.subr.mxu0 0.0
    %3902 = vmatpush1.msra.mxu0 0.0
    %3903 = vmatprep.subr.mxu0 0.0
    %3904 = vmatpush1.msra.mxu0 0.0
    %3905 = vmatprep.subr.mxu0 0.0
    %3906 = vmatpush1.msra.mxu0 0.0
    %3907 = vmatprep.subr.mxu0 0.0
    %3908 = vmatpush1.msra.mxu0 0.0
    %3909 = vmatprep.subr.mxu0 0.0
    %3910 = vmatpush1.msra.mxu0 0.0
    %3911 = vmatprep.subr.mxu0 0.0
    %3912 = vmatpush1.msra.mxu0 0.0
    %3913 = vmatprep.subr.mxu0 0.0
    %3914 = vmatpush1.msra.mxu0 0.0
    %3915 = vmatprep.mubr.f32.mxu0 0.0
    %3916 = vmatmul.mubr.f32.gmra.mrb[0].mxu0 %v3785
    %v3917 = vpop.f32.mrb[0].mxu0
    %v3918 = vadd.f32 0.0, %v3917
    %v3919 = vpop.f32.mrb[0].mxu0
    %v3920 = vadd.f32 0.0, %v3919
    %3921 = vdwg.mxu0
    %3922 = vmatprep.subr.mxu0 %v3790
    %3923 = vmatpush1.msra.mxu0 %v3789
    %3924 = vmatprep.subr.mxu0 %v3794
    %3925 = vmatpush1.msra.mxu0 %v3793
    %3926 = vmatprep.subr.mxu0 %v3798
    %3927 = vmatpush1.msra.mxu0 %v3797
    %3928 = vmatprep.subr.mxu0 %v3802
    %3929 = vmatpush1.msra.mxu0 %v3801
    %3930 = vmatprep.subr.mxu0 %v3806
    %3931 = vmatpush1.msra.mxu0 %v3805
    %3932 = vmatprep.subr.mxu0 %v3810
    %3933 = vmatpush1.msra.mxu0 %v3809
    %3934 = vmatprep.subr.mxu0 %v3814
    %3935 = vmatpush1.msra.mxu0 %v3813
    %3936 = vmatprep.subr.mxu0 %v3818
    %3937 = vmatpush1.msra.mxu0 %v3817
    %3938 = vmatprep.subr.mxu0 %v3822
    %3939 = vmatpush1.msra.mxu0 %v3821
    %3940 = vmatprep.subr.mxu0 %v3826
    %3941 = vmatpush1.msra.mxu0 %v3825
    %3942 = vmatprep.subr.mxu0 %v3830
    %3943 = vmatpush1.msra.mxu0 %v3829
    %3944 = vmatprep.subr.mxu0 %v3834
    %3945 = vmatpush1.msra.mxu0 %v3833
    %3946 = vmatprep.subr.mxu0 %v3838
    %3947 = vmatpush1.msra.mxu0 %v3837
    %3948 = vmatprep.subr.mxu0 %v3842
    %3949 = vmatpush1.msra.mxu0 %v3841
    %3950 = vmatprep.subr.mxu0 %v3846
    %3951 = vmatpush1.msra.mxu0 %v3845
    %3952 = vmatprep.subr.mxu0 %v3850
    %3953 = vmatpush1.msra.mxu0 %v3849
    %3954 = vmatprep.subr.mxu0 0.0
    %3955 = vmatpush1.msra.mxu0 0.0
    %3956 = vmatprep.subr.mxu0 0.0
    %3957 = vmatpush1.msra.mxu0 0.0
    %3958 = vmatprep.subr.mxu0 0.0
    %3959 = vmatpush1.msra.mxu0 0.0
    %3960 = vmatprep.subr.mxu0 0.0
    %3961 = vmatpush1.msra.mxu0 0.0
    %3962 = vmatprep.subr.mxu0 0.0
    %3963 = vmatpush1.msra.mxu0 0.0
    %3964 = vmatprep.subr.mxu0 0.0
    %3965 = vmatpush1.msra.mxu0 0.0
    %3966 = vmatprep.subr.mxu0 0.0
    %3967 = vmatpush1.msra.mxu0 0.0
    %3968 = vmatprep.subr.mxu0 0.0
    %3969 = vmatpush1.msra.mxu0 0.0
    %3970 = vmatprep.subr.mxu0 0.0
    %3971 = vmatpush1.msra.mxu0 0.0
    %3972 = vmatprep.subr.mxu0 0.0
    %3973 = vmatpush1.msra.mxu0 0.0
    %3974 = vmatprep.subr.mxu0 0.0
    %3975 = vmatpush1.msra.mxu0 0.0
    %3976 = vmatprep.subr.mxu0 0.0
    %3977 = vmatpush1.msra.mxu0 0.0
    %3978 = vmatprep.subr.mxu0 0.0
    %3979 = vmatpush1.msra.mxu0 0.0
    %3980 = vmatprep.subr.mxu0 0.0
    %3981 = vmatpush1.msra.mxu0 0.0
    %3982 = vmatprep.subr.mxu0 0.0
    %3983 = vmatpush1.msra.mxu0 0.0
    %3984 = vmatprep.subr.mxu0 0.0
    %3985 = vmatpush1.msra.mxu0 0.0
    %3986 = vmatprep.mubr.f32.mxu0 0.0
    %3987 = vmatmul.mubr.f32.gmra.mrb[0].mxu0 %v3785
    %v3988 = vpop.f32.mrb[0].mxu0
    %v3989 = vadd.f32 0.0, %v3988
    %v3990 = vpop.f32.mrb[0].mxu0
    %v3991 = vadd.f32 0.0, %v3990
    %3992 = vdwg.mxu0
    %v3993 = vadd.f32 %v3781, %v3918
    %v3994 = vadd.f32 %v3782, %v3920
    %v3995 = vadd.f32 %v3783, %v3989
    %v3996 = vadd.f32 %v3784, %v3991
    %v3997 = vxor.u32 %v3993, 2147483648
    %v3998 = vmul.f32 %v3997, 1.442695
    %v3999 = vpow.pop %v3998
    %v4000 = vadd.f32 %v3999, 1.0
    %v4001 = vrcp.pop %v4000
    %v4002 = vmul.f32 1.0, %v4001
    %v4003 = vxor.u32 %v3994, 2147483648
    %v4004 = vmul.f32 %v4003, 1.442695
    %v4005 = vpow.pop %v4004
    %v4006 = vadd.f32 %v4005, 1.0
    %v4007 = vrcp.pop %v4006
    %v4008 = vmul.f32 1.0, %v4007
    %v4009 = vtanh.pop %v3995
    %v4010 = vxor.u32 %v3996, 2147483648
    %v4011 = vmul.f32 %v4010, 1.442695
    %v4012 = vpow.pop %v4011
    %v4013 = vadd.f32 %v4012, 1.0
    %v4014 = vrcp.pop %v4013
    %v4015 = vmul.f32 1.0, %v4014
    %v4016 = vmul.f32 %v4008, %v3786
    %v4017 = vmul.f32 %v4002, %v4009
    %v4018 = vadd.f32 %v4016, %v4017
    %v4019 = vtanh.pop %v4018
    %v4020 = vmul.f32 %v4015, %v4019
    %4022 = vset.pattern.permute.xlu0 0
    %4023 = vperm.xlu0 %4022, %v3779
    %v4024 = vpop.permute.xlu0 %4023
    %v4026 = vmul.f32 %v4024, %v4020
    %v4027 = vsub.f32 1.0, %v3779
    %4029 = vset.pattern.permute.xlu0 0
    %4030 = vperm.xlu0 %4029, %v4027
    %v4031 = vpop.permute.xlu0 %4030
    %v4033 = vmul.f32 %v4031, %v3785
    %v4034 = vadd.f32 %v4026, %v4033
    %v4035 = vmul.f32 %v4024, %v4018
    %v4036 = vmul.f32 %v4031, %v3786
    %v4037 = vadd.f32 %v4035, %v4036
    %4038 = vst [vmem:[#allocation2] sm:$0xff] %v4034
    %4039 = vst [vmem:[#allocation3] sm:$0xff] %v4037
    %v4040 = vmul.f32 %v4024, %v4034
    %4041 = vst [vmem:[%s609] sm:$0xff] %v4040
    %v4042 = vld [vmem:[%s2] sm:$0xff]
    %v4043 = vld [vmem:[#allocation9] sm:$0xff]
    %v4044 = vld [vmem:[#allocation9 + $0x8] sm:$0xff]
    %v4045 = vld [vmem:[#allocation9 + $0x10] sm:$0xff]
    %v4046 = vld [vmem:[#allocation9 + $0x18] sm:$0xff]
    %v4047 = vld [vmem:[#allocation4] sm:$0xff]
    %v4048 = vld [vmem:[#allocation5] sm:$0xff]
    %v4049 = vld [vmem:[#allocation12] sm:$0xff]
    %v4050 = vld [vmem:[#allocation12 + $0x8] sm:$0xff]
    %v4051 = vld [vmem:[#allocation12 + $0x10] sm:$0xff]
    %v4052 = vld [vmem:[#allocation12 + $0x18] sm:$0xff]
    %v4053 = vld [vmem:[#allocation12 + $0x20] sm:$0xff]
    %v4054 = vld [vmem:[#allocation12 + $0x28] sm:$0xff]
    %v4055 = vld [vmem:[#allocation12 + $0x30] sm:$0xff]
    %v4056 = vld [vmem:[#allocation12 + $0x38] sm:$0xff]
    %v4057 = vld [vmem:[#allocation12 + $0x40] sm:$0xff]
    %v4058 = vld [vmem:[#allocation12 + $0x48] sm:$0xff]
    %v4059 = vld [vmem:[#allocation12 + $0x50] sm:$0xff]
    %v4060 = vld [vmem:[#allocation12 + $0x58] sm:$0xff]
    %v4061 = vld [vmem:[#allocation12 + $0x60] sm:$0xff]
    %v4062 = vld [vmem:[#allocation12 + $0x68] sm:$0xff]
    %v4063 = vld [vmem:[#allocation12 + $0x70] sm:$0xff]
    %v4064 = vld [vmem:[#allocation12 + $0x78] sm:$0xff]
    %v4065 = vld [vmem:[#allocation12 + $0x80] sm:$0xff]
    %v4066 = vld [vmem:[#allocation12 + $0x88] sm:$0xff]
    %v4067 = vld [vmem:[#allocation12 + $0x90] sm:$0xff]
    %v4068 = vld [vmem:[#allocation12 + $0x98] sm:$0xff]
    %v4069 = vld [vmem:[#allocation12 + $0xa0] sm:$0xff]
    %v4070 = vld [vmem:[#allocation12 + $0xa8] sm:$0xff]
    %v4071 = vld [vmem:[#allocation12 + $0xb0] sm:$0xff]
    %v4072 = vld [vmem:[#allocation12 + $0xb8] sm:$0xff]
    %v4073 = vld [vmem:[#allocation12 + $0xc0] sm:$0xff]
    %v4074 = vld [vmem:[#allocation12 + $0xc8] sm:$0xff]
    %v4075 = vld [vmem:[#allocation12 + $0xd0] sm:$0xff]
    %v4076 = vld [vmem:[#allocation12 + $0xd8] sm:$0xff]
    %v4077 = vld [vmem:[#allocation12 + $0xe0] sm:$0xff]
    %v4078 = vld [vmem:[#allocation12 + $0xe8] sm:$0xff]
    %v4079 = vld [vmem:[#allocation12 + $0xf0] sm:$0xff]
    %v4080 = vld [vmem:[#allocation12 + $0xf8] sm:$0xff]
    %v4081 = vld [vmem:[#allocation12 + $0x100] sm:$0xff]
    %v4082 = vld [vmem:[#allocation12 + $0x108] sm:$0xff]
    %v4083 = vld [vmem:[#allocation12 + $0x110] sm:$0xff]
    %v4084 = vld [vmem:[#allocation12 + $0x118] sm:$0xff]
    %v4085 = vld [vmem:[#allocation12 + $0x120] sm:$0xff]
    %v4086 = vld [vmem:[#allocation12 + $0x128] sm:$0xff]
    %v4087 = vld [vmem:[#allocation12 + $0x130] sm:$0xff]
    %v4088 = vld [vmem:[#allocation12 + $0x138] sm:$0xff]
    %v4089 = vld [vmem:[#allocation12 + $0x140] sm:$0xff]
    %v4090 = vld [vmem:[#allocation12 + $0x148] sm:$0xff]
    %v4091 = vld [vmem:[#allocation12 + $0x150] sm:$0xff]
    %v4092 = vld [vmem:[#allocation12 + $0x158] sm:$0xff]
    %v4093 = vld [vmem:[#allocation12 + $0x160] sm:$0xff]
    %v4094 = vld [vmem:[#allocation12 + $0x168] sm:$0xff]
    %v4095 = vld [vmem:[#allocation12 + $0x170] sm:$0xff]
    %v4096 = vld [vmem:[#allocation12 + $0x178] sm:$0xff]
    %v4097 = vld [vmem:[#allocation12 + $0x180] sm:$0xff]
    %v4098 = vld [vmem:[#allocation12 + $0x188] sm:$0xff]
    %v4099 = vld [vmem:[#allocation12 + $0x190] sm:$0xff]
    %v4100 = vld [vmem:[#allocation12 + $0x198] sm:$0xff]
    %v4101 = vld [vmem:[#allocation12 + $0x1a0] sm:$0xff]
    %v4102 = vld [vmem:[#allocation12 + $0x1a8] sm:$0xff]
    %v4103 = vld [vmem:[#allocation12 + $0x1b0] sm:$0xff]
    %v4104 = vld [vmem:[#allocation12 + $0x1b8] sm:$0xff]
    %v4105 = vld [vmem:[#allocation12 + $0x1c0] sm:$0xff]
    %v4106 = vld [vmem:[#allocation12 + $0x1c8] sm:$0xff]
    %v4107 = vld [vmem:[#allocation12 + $0x1d0] sm:$0xff]
    %v4108 = vld [vmem:[#allocation12 + $0x1d8] sm:$0xff]
    %v4109 = vld [vmem:[#allocation12 + $0x1e0] sm:$0xff]
    %v4110 = vld [vmem:[#allocation12 + $0x1e8] sm:$0xff]
    %v4111 = vld [vmem:[#allocation12 + $0x1f0] sm:$0xff]
    %v4112 = vld [vmem:[#allocation12 + $0x1f8] sm:$0xff]
    %4113 = vmatprep.subr.mxu0 %v4050
    %4114 = vmatpush1.msra.mxu0 %v4049
    %4115 = vmatprep.subr.mxu0 %v4054
    %4116 = vmatpush1.msra.mxu0 %v4053
    %4117 = vmatprep.subr.mxu0 %v4058
    %4118 = vmatpush1.msra.mxu0 %v4057
    %4119 = vmatprep.subr.mxu0 %v4062
    %4120 = vmatpush1.msra.mxu0 %v4061
    %4121 = vmatprep.subr.mxu0 %v4066
    %4122 = vmatpush1.msra.mxu0 %v4065
    %4123 = vmatprep.subr.mxu0 %v4070
    %4124 = vmatpush1.msra.mxu0 %v4069
    %4125 = vmatprep.subr.mxu0 %v4074
    %4126 = vmatpush1.msra.mxu0 %v4073
    %4127 = vmatprep.subr.mxu0 %v4078
    %4128 = vmatpush1.msra.mxu0 %v4077
    %4129 = vmatprep.subr.mxu0 %v4082
    %4130 = vmatpush1.msra.mxu0 %v4081
    %4131 = vmatprep.subr.mxu0 %v4086
    %4132 = vmatpush1.msra.mxu0 %v4085
    %4133 = vmatprep.subr.mxu0 %v4090
    %4134 = vmatpush1.msra.mxu0 %v4089
    %4135 = vmatprep.subr.mxu0 %v4094
    %4136 = vmatpush1.msra.mxu0 %v4093
    %4137 = vmatprep.subr.mxu0 %v4098
    %4138 = vmatpush1.msra.mxu0 %v4097
    %4139 = vmatprep.subr.mxu0 %v4102
    %4140 = vmatpush1.msra.mxu0 %v4101
    %4141 = vmatprep.subr.mxu0 %v4106
    %4142 = vmatpush1.msra.mxu0 %v4105
    %4143 = vmatprep.subr.mxu0 %v4110
    %4144 = vmatpush1.msra.mxu0 %v4109
    %4145 = vmatprep.subr.mxu0 0.0
    %4146 = vmatpush1.msra.mxu0 0.0
    %4147 = vmatprep.subr.mxu0 0.0
    %4148 = vmatpush1.msra.mxu0 0.0
    %4149 = vmatprep.subr.mxu0 0.0
    %4150 = vmatpush1.msra.mxu0 0.0
    %4151 = vmatprep.subr.mxu0 0.0
    %4152 = vmatpush1.msra.mxu0 0.0
    %4153 = vmatprep.subr.mxu0 0.0
    %4154 = vmatpush1.msra.mxu0 0.0
    %4155 = vmatprep.subr.mxu0 0.0
    %4156 = vmatpush1.msra.mxu0 0.0
    %4157 = vmatprep.subr.mxu0 0.0
    %4158 = vmatpush1.msra.mxu0 0.0
    %4159 = vmatprep.subr.mxu0 0.0
    %4160 = vmatpush1.msra.mxu0 0.0
    %4161 = vmatprep.subr.mxu0 0.0
    %4162 = vmatpush1.msra.mxu0 0.0
    %4163 = vmatprep.subr.mxu0 0.0
    %4164 = vmatpush1.msra.mxu0 0.0
    %4165 = vmatprep.subr.mxu0 0.0
    %4166 = vmatpush1.msra.mxu0 0.0
    %4167 = vmatprep.subr.mxu0 0.0
    %4168 = vmatpush1.msra.mxu0 0.0
    %4169 = vmatprep.subr.mxu0 0.0
    %4170 = vmatpush1.msra.mxu0 0.0
    %4171 = vmatprep.subr.mxu0 0.0
    %4172 = vmatpush1.msra.mxu0 0.0
    %4173 = vmatprep.subr.mxu0 0.0
    %4174 = vmatpush1.msra.mxu0 0.0
    %4175 = vmatprep.subr.mxu0 0.0
    %4176 = vmatpush1.msra.mxu0 0.0
    %4177 = vmatprep.mubr.f32.mxu0 0.0
    %4178 = vmatmul.mubr.f32.gmra.mrb[0].mxu0 %v4047
    %v4179 = vpop.f32.mrb[0].mxu0
    %v4180 = vadd.f32 0.0, %v4179
    %v4181 = vpop.f32.mrb[0].mxu0
    %v4182 = vadd.f32 0.0, %v4181
    %4183 = vdwg.mxu0
    %4184 = vmatprep.subr.mxu0 %v4052
    %4185 = vmatpush1.msra.mxu0 %v4051
    %4186 = vmatprep.subr.mxu0 %v4056
    %4187 = vmatpush1.msra.mxu0 %v4055
    %4188 = vmatprep.subr.mxu0 %v4060
    %4189 = vmatpush1.msra.mxu0 %v4059
    %4190 = vmatprep.subr.mxu0 %v4064
    %4191 = vmatpush1.msra.mxu0 %v4063
    %4192 = vmatprep.subr.mxu0 %v4068
    %4193 = vmatpush1.msra.mxu0 %v4067
    %4194 = vmatprep.subr.mxu0 %v4072
    %4195 = vmatpush1.msra.mxu0 %v4071
    %4196 = vmatprep.subr.mxu0 %v4076
    %4197 = vmatpush1.msra.mxu0 %v4075
    %4198 = vmatprep.subr.mxu0 %v4080
    %4199 = vmatpush1.msra.mxu0 %v4079
    %4200 = vmatprep.subr.mxu0 %v4084
    %4201 = vmatpush1.msra.mxu0 %v4083
    %4202 = vmatprep.subr.mxu0 %v4088
    %4203 = vmatpush1.msra.mxu0 %v4087
    %4204 = vmatprep.subr.mxu0 %v4092
    %4205 = vmatpush1.msra.mxu0 %v4091
    %4206 = vmatprep.subr.mxu0 %v4096
    %4207 = vmatpush1.msra.mxu0 %v4095
    %4208 = vmatprep.subr.mxu0 %v4100
    %4209 = vmatpush1.msra.mxu0 %v4099
    %4210 = vmatprep.subr.mxu0 %v4104
    %4211 = vmatpush1.msra.mxu0 %v4103
    %4212 = vmatprep.subr.mxu0 %v4108
    %4213 = vmatpush1.msra.mxu0 %v4107
    %4214 = vmatprep.subr.mxu0 %v4112
    %4215 = vmatpush1.msra.mxu0 %v4111
    %4216 = vmatprep.subr.mxu0 0.0
    %4217 = vmatpush1.msra.mxu0 0.0
    %4218 = vmatprep.subr.mxu0 0.0
    %4219 = vmatpush1.msra.mxu0 0.0
    %4220 = vmatprep.subr.mxu0 0.0
    %4221 = vmatpush1.msra.mxu0 0.0
    %4222 = vmatprep.subr.mxu0 0.0
    %4223 = vmatpush1.msra.mxu0 0.0
    %4224 = vmatprep.subr.mxu0 0.0
    %4225 = vmatpush1.msra.mxu0 0.0
    %4226 = vmatprep.subr.mxu0 0.0
    %4227 = vmatpush1.msra.mxu0 0.0
    %4228 = vmatprep.subr.mxu0 0.0
    %4229 = vmatpush1.msra.mxu0 0.0
    %4230 = vmatprep.subr.mxu0 0.0
    %4231 = vmatpush1.msra.mxu0 0.0
    %4232 = vmatprep.subr.mxu0 0.0
    %4233 = vmatpush1.msra.mxu0 0.0
    %4234 = vmatprep.subr.mxu0 0.0
    %4235 = vmatpush1.msra.mxu0 0.0
    %4236 = vmatprep.subr.mxu0 0.0
    %4237 = vmatpush1.msra.mxu0 0.0
    %4238 = vmatprep.subr.mxu0 0.0
    %4239 = vmatpush1.msra.mxu0 0.0
    %4240 = vmatprep.subr.mxu0 0.0
    %4241 = vmatpush1.msra.mxu0 0.0
    %4242 = vmatprep.subr.mxu0 0.0
    %4243 = vmatpush1.msra.mxu0 0.0
    %4244 = vmatprep.subr.mxu0 0.0
    %4245 = vmatpush1.msra.mxu0 0.0
    %4246 = vmatprep.subr.mxu0 0.0
    %4247 = vmatpush1.msra.mxu0 0.0
    %4248 = vmatprep.mubr.f32.mxu0 0.0
    %4249 = vmatmul.mubr.f32.gmra.mrb[0].mxu0 %v4047
    %v4250 = vpop.f32.mrb[0].mxu0
    %v4251 = vadd.f32 0.0, %v4250
    %v4252 = vpop.f32.mrb[0].mxu0
    %v4253 = vadd.f32 0.0, %v4252
    %4254 = vdwg.mxu0
    %v4255 = vadd.f32 %v4043, %v4180
    %v4256 = vadd.f32 %v4044, %v4182
    %v4257 = vadd.f32 %v4045, %v4251
    %v4258 = vadd.f32 %v4046, %v4253
    %v4259 = vxor.u32 %v4255, 2147483648
    %v4260 = vmul.f32 %v4259, 1.442695
    %v4261 = vpow.pop %v4260
    %v4262 = vadd.f32 %v4261, 1.0
    %v4263 = vrcp.pop %v4262
    %v4264 = vmul.f32 1.0, %v4263
    %v4265 = vxor.u32 %v4256, 2147483648
    %v4266 = vmul.f32 %v4265, 1.442695
    %v4267 = vpow.pop %v4266
    %v4268 = vadd.f32 %v4267, 1.0
    %v4269 = vrcp.pop %v4268
    %v4270 = vmul.f32 1.0, %v4269
    %v4271 = vtanh.pop %v4257
    %v4272 = vxor.u32 %v4258, 2147483648
    %v4273 = vmul.f32 %v4272, 1.442695
    %v4274 = vpow.pop %v4273
    %v4275 = vadd.f32 %v4274, 1.0
    %v4276 = vrcp.pop %v4275
    %v4277 = vmul.f32 1.0, %v4276
    %v4278 = vmul.f32 %v4270, %v4048
    %v4279 = vmul.f32 %v4264, %v4271
    %v4280 = vadd.f32 %v4278, %v4279
    %v4281 = vtanh.pop %v4280
    %v4282 = vmul.f32 %v4277, %v4281
    %4284 = vset.pattern.permute.xlu0 0
    %4285 = vperm.xlu0 %4284, %v4042
    %v4286 = vpop.permute.xlu0 %4285
    %v4288 = vmul.f32 %v4286, %v4282
    %v4289 = vsub.f32 1.0, %v4042
    %4291 = vset.pattern.permute.xlu0 0
    %4292 = vperm.xlu0 %4291, %v4289
    %v4293 = vpop.permute.xlu0 %4292
    %v4295 = vmul.f32 %v4293, %v4047
    %v4296 = vadd.f32 %v4288, %v4295
    %v4297 = vmul.f32 %v4286, %v4280
    %v4298 = vmul.f32 %v4293, %v4048
    %v4299 = vadd.f32 %v4297, %v4298
    %4300 = vst [vmem:[#allocation4] sm:$0xff] %v4296
    %4301 = vst [vmem:[#allocation5] sm:$0xff] %v4299
    %v4302 = vmul.f32 %v4286, %v4296
    %4303 = vst [vmem:[#allocation14 + $0x8] sm:$0xff] %v4302
    %v4304 = vld [vmem:[#allocation2] sm:$0xff]
    %4305 = vst [vmem:[#allocation15] sm:$0xff] %v4304
    %v4306 = vld [vmem:[#allocation4] sm:$0xff]
    %4307 = vst [vmem:[#allocation15 + $0x8] sm:$0xff] %v4306
    %v4308 = vld [vmem:[#allocation3] sm:$0xff]
    %4309 = vst [vmem:[#allocation17] sm:$0xff] %v4308
    %v4310 = vld [vmem:[#allocation5] sm:$0xff]
    %4311 = vst [vmem:[#allocation17 + $0x8] sm:$0xff] %v4310
    // Predicated region
    $region38: #{tpu_custom_call.1} parent=1 // pred_check
      _
    $region39: #{tpu_custom_call.1} parent=1 // pred_check_branch
      %4313 = sbr.rel (0) target = $region41
    $region40: #{tpu_custom_call.1} parent=1 // pred_region
      %s4315 = ssub.s32 2048, 2048
      %4316 = vsyncadd [#allocation8], %s4315
      %s4317 = sshll.u32 [#allocation14], 4
      %s4318 = int_to_ptr.vmem [resolvable:$true] %s4317
      %4323 = dma.vmem_to_hbm [thread:$0]  %s4318, 2048, %s5, [#allocation8], 256, 256, 16
    $region41: #{tpu_custom_call.1} parent=1 // pred_fallthru
      _
    // Predicated region
    $region42: #{tpu_custom_call.1} parent=1 // pred_check
      _
    $region43: #{tpu_custom_call.1} parent=1 // pred_check_branch
      %4325 = sbr.rel (0) target = $region45
    $region44: #{tpu_custom_call.1} parent=1 // pred_region
      %s4327 = ssub.s32 256, 256
      %4328 = vsyncadd [#allocation16], %s4327
      %s4330 = sshll.u32 [#allocation15], 4
      %s4331 = int_to_ptr.vmem [resolvable:$true] %s4330
      %4333 = dma.vmem_to_hbm [thread:$0]  %s4331, 256, %s6, [#allocation16]
    $region45: #{tpu_custom_call.1} parent=1 // pred_fallthru
      _
    // Predicated region
    $region46: #{tpu_custom_call.1} parent=1 // pred_check
      _
    $region47: #{tpu_custom_call.1} parent=1 // pred_check_branch
      %4335 = sbr.rel (0) target = $region49
    $region48: #{tpu_custom_call.1} parent=1 // pred_region
      %s4337 = ssub.s32 256, 256
      %4338 = vsyncadd [#allocation16], %s4337
      %s4340 = sshll.u32 [#allocation17], 4
      %s4341 = int_to_ptr.vmem [resolvable:$true] %s4340
      %4343 = dma.vmem_to_hbm [thread:$0]  %s4341, 256, %s7, [#allocation16]
    $region49: #{tpu_custom_call.1} parent=1 // pred_fallthru
      _
    // Predicated region
    $region50: #{tpu_custom_call.1} parent=1 // pred_check
      _
    $region51: #{tpu_custom_call.1} parent=1 // pred_check_branch
      %4345 = sbr.rel (0) target = $region53
    $region52: #{tpu_custom_call.1} parent=1 // pred_region
      %4346 = dma.done [#allocation8], 2048
    $region53: #{tpu_custom_call.1} parent=1 // pred_fallthru
      _
    // Predicated region
    $region54: #{tpu_custom_call.1} parent=1 // pred_check
      _
    $region55: #{tpu_custom_call.1} parent=1 // pred_check_branch
      %4348 = sbr.rel (0) target = $region57
    $region56: #{tpu_custom_call.1} parent=1 // pred_region
      %4349 = dma.done [#allocation16], 256
    $region57: #{tpu_custom_call.1} parent=1 // pred_fallthru
      _
    // Predicated region
    $region58: #{tpu_custom_call.1} parent=1 // pred_check
      _
    $region59: #{tpu_custom_call.1} parent=1 // pred_check_branch
      %4351 = sbr.rel (0) target = $region61
    $region60: #{tpu_custom_call.1} parent=1 // pred_region
      %4352 = dma.done [#allocation16], 256
    $region61: #{tpu_custom_call.1} parent=1 // pred_fallthru
      _
    %4353 = vsyncpa [#allocation7], 1
    %4354 = vsyncpa [#allocation10], 1
    %4355 = vsyncpa [#allocation13], 1
    %4356 = vsyncpa [#allocation8], 1
    %4357 = vsyncpa [#allocation16], 1

</llo_original>
